<compile_context>
chip_gen: v7x
topology: tpu7x:2x2x1
jax: 0.10.0
libtpu: 0.0.40
codegen_flags: <defaults>
</compile_context>

<pallas_src>
import functools

import jax
import jax.numpy as jnp
from jax import lax
from jax.experimental import pallas as pl
from jax.experimental.pallas import tpu as pltpu


def _round_up(x: int, m: int) -> int:
    return ((x + m - 1) // m) * m


def _pad_to(a, shape):
    pads = [(0, s - d) for d, s in zip(a.shape, shape)]
    if all(p == (0, 0) for p in pads):
        return a
    return jnp.pad(a, pads)


def prepare_params(w1, b1, w2, b2, gamma, beta, *, weight_dtype=None):
    """One-time padding/packing of the layer parameters.

    Hoisted out of the per-call path so each forward only streams x / out and
    the already-packed weights (no extra HBM read+write of the weights per call).
    w1: (in_dim, out_dim)  [transposed PyTorch layout so the kernel does x @ W],
    w2: (out_dim, out_dim), b1/b2/gamma/beta: (out_dim,).
    """
    in_dim, out_dim = w1.shape
    out_p = _round_up(out_dim, 128)          # lane-dense feature padding
    wdt = weight_dtype if weight_dtype is not None else w1.dtype

    w1_p = _pad_to(w1, (in_dim, out_p)).astype(wdt)      # pad only the N (lane) axis
    w2_p = _pad_to(w2, (out_p, out_p)).astype(wdt)       # padded rows/cols are zero

    # Pack the four per-feature vectors into one (8, out_p) lane-dense slab.
    params = jnp.zeros((8, out_p), jnp.float32)
    params = params.at[0, :out_dim].set(b1.astype(jnp.float32))
    params = params.at[1, :out_dim].set(b2.astype(jnp.float32))
    params = params.at[2, :out_dim].set(gamma.astype(jnp.float32))
    params = params.at[3, :out_dim].set(beta.astype(jnp.float32))

    return {"w1": w1_p, "w2": w2_p, "params": params,
            "in_dim": in_dim, "out_dim": out_dim, "out_p": out_p}


def residual_layer_kernel(x_ref, w1_ref, w2_ref, params_ref, o_ref, *,
                          d_valid: int, eps: float):
    """One row-block of x; weights + packed params are fully VMEM-resident.

    params_ref rows: 0=b1, 1=b2, 2=gamma, 3=beta (rows 4..7 are padding).
    The feature axis may be zero-padded to a multiple of 128; d_valid is the
    true out_dim used for the LayerNorm statistics.
    """
    w1 = w1_ref[...]
    w2 = w2_ref[...]
    x = x_ref[...].astype(w1.dtype)          # MXU operands in the weights' dtype
    params = params_ref[...].astype(jnp.float32)
    b1 = params[0:1, :]
    b2 = params[1:2, :]
    gamma = params[2:3, :]
    beta = params[3:4, :]

    # lin1 + relu   (dropout p=0.0 -> identity)
    h = jnp.dot(x, w1, preferred_element_type=jnp.float32) + b1
    h = jnp.maximum(h, 0.0)

    # lin2 + relu   (f32 accumulation; only the MXU operands are downcast)
    y = jnp.dot(h.astype(w2.dtype), w2, preferred_element_type=jnp.float32) + b2
    y = jnp.maximum(y, 0.0)

    # residual add (the PyTorch module adds the post-ReLU output of lin1, i.e. h)
    z = y + h

    # LayerNorm over the true feature width; padded lanes of z are exactly zero,
    # so only the centered term needs masking.
    d_padded = z.shape[-1]
    inv_d = 1.0 / float(d_valid)
    mean = jnp.sum(z, axis=-1, keepdims=True) * inv_d
    cen = z - mean
    if d_valid != d_padded:
        lane = lax.broadcasted_iota(jnp.int32, (1, d_padded), 1)
        cen = jnp.where(lane < d_valid, cen, 0.0)
    var = jnp.sum(cen * cen, axis=-1, keepdims=True) * inv_d
    out = cen * lax.rsqrt(var + eps) * gamma + beta   # padded lanes -> 0

    o_ref[...] = out.astype(o_ref.dtype)


def _vmem_budget_bytes() -> int:
    """Generation-aware usable VMEM (v5e/v6e ~128 MiB, v7x ~64 MiB per TC)."""
    cap = 64 << 20
    try:
        cap = getattr(pltpu.get_tpu_info(), "vmem_capacity_bytes", None) or cap
    except Exception:
        pass
    return int(0.8 * cap)


def residual_layer(x, prepared, *, block_rows=512, eps=1e-5, strip_padding=True):
    """x: (N, in_dim); prepared: output of prepare_params(). Returns (N, out_dim)
    (or (N, out_p) lane-padded if strip_padding=False, e.g. between stacked layers)."""
    N, in_dim = x.shape
    assert in_dim == prepared["in_dim"]
    out_dim, out_p = prepared["out_dim"], prepared["out_p"]
    w1_p, w2_p, params = prepared["w1"], prepared["w2"], prepared["params"]

    xb = x.dtype.itemsize
    wb = w1_p.dtype.itemsize
    in_p = _round_up(in_dim, 128)

    budget = _vmem_budget_bytes()

    # Row tiling: largest bm <= block_rows that fits the VMEM budget.
    # TODO(synk): for out_dim large enough that (in_dim+out_p)*out_p*itemsize
    # exceeds ~24 MiB (v7x), tile W1/W2 along a feature-dim grid axis instead of
    # keeping them fully resident (and/or share them via VMEM_SHARED across TCs).
    def vmem_est(bm_):
        return (2 * bm_ * (in_p + out_p) * xb        # streaming x / out tiles (double-buffered)
                + (in_p + out_p) * out_p * wb        # single-buffered resident W1 + W2
                + 8 * out_p * 4                      # packed params
                + 5 * bm_ * out_p * 4)               # f32 intermediates (h/y/z/cen/out)

    bm = min(_round_up(block_rows, 8), _round_up(N, 8))
    while bm > 8 and vmem_est(bm) > budget:
        bm = _round_up(bm // 2, 8)
    np_rows = _round_up(N, bm)
    grid = (np_rows // bm,)

    # Row padding only (no-op when N is a multiple of bm); no lane padding of x.
    x_rows = _pad_to(x, (np_rows, in_dim))

    vmem_limit = int(min(max(2 * vmem_est(bm), 32 << 20), budget))
    flops = 2 * np_rows * in_dim * out_p + 2 * np_rows * out_p * out_p
    bytes_accessed = (np_rows * in_dim * xb + w1_p.size * wb + w2_p.size * wb
                      + params.size * 4 + np_rows * out_p * xb)

    kernel = functools.partial(residual_layer_kernel, d_valid=out_dim, eps=eps)

    def attempt(x_arr, w1_arr, single_buffer_weights):
        k_dim = x_arr.shape[1]
        resident = ({"pipeline_mode": pl.Buffered(1)}
                    if single_buffer_weights else {})
        return pl.pallas_call(
            kernel,
            out_shape=jax.ShapeDtypeStruct((np_rows, out_p), x.dtype),
            grid_spec=pltpu.PrefetchScalarGridSpec(
                num_scalar_prefetch=0,
                grid=grid,
                in_specs=[
                    pl.BlockSpec((bm, k_dim), lambda i: (i, 0)),             # x rows
                    pl.BlockSpec((k_dim, out_p), lambda i: (0, 0), **resident),  # W1
                    pl.BlockSpec((out_p, out_p), lambda i: (0, 0), **resident),  # W2
                    pl.BlockSpec((8, out_p), lambda i: (0, 0), **resident),      # b1/b2/g/b
                ],
                out_specs=pl.BlockSpec((bm, out_p), lambda i: (i, 0)),
            ),
            compiler_params=pltpu.CompilerParams(
                dimension_semantics=("parallel",),
                vmem_limit_bytes=vmem_limit),
            cost_estimate=pl.CostEstimate(flops=flops,
                                          transcendentals=np_rows,
                                          bytes_accessed=bytes_accessed),
        )(x_arr, w1_arr, w2_p, params)

    # Fast path: un-padded contraction dim, single-buffered resident weights.
    # Fallbacks only trigger on compiler-capability errors (e.g. Buffered(1)
    # unsupported, or the compiler rejecting a non-128-multiple K).
    out_full = None
    last_err = None
    for cfg in ("fast_sb", "fast_db", "padk_sb", "padk_db"):
        try:
            if cfg.startswith("fast"):
                xa, wa = x_rows, w1_p
            else:
                xa = _pad_to(x_rows, (np_rows, in_p))
                wa = _pad_to(w1_p, (in_p, out_p))
            out_full = attempt(xa, wa, cfg.endswith("sb"))
            break
        except Exception as e:  # pragma: no cover - capability fallback
            last_err = e
    if out_full is None:
        raise last_err

    if strip_padding:
        return out_full[:N, :out_dim]
    return out_full[:N]


def residual_layer_ref(x, w1, b1, w2, b2, gamma, beta, eps=1e-5):
    h = jnp.maximum(x @ w1 + b1, 0.0)
    y = jnp.maximum(h @ w2 + b2, 0.0)
    z = y + h
    mean = jnp.mean(z, axis=-1, keepdims=True)
    var = jnp.mean((z - mean) ** 2, axis=-1, keepdims=True)
    return (z - mean) / jnp.sqrt(var + eps) * gamma + beta


if __name__ == "__main__":
    # Module-default feature dims (100 -> 100) exercise the lane-padding +
    # masked-LayerNorm path; N=512 rows keep the example small.
    N, in_dim, out_dim = 512, 100, 100

    key = jax.random.PRNGKey(0)
    kx, kw1, kb1, kw2, kb2 = jax.random.split(key, 5)

    x = jax.random.normal(kx, (N, in_dim), dtype=jnp.float32)

    # PyTorch Linear stores weight as (out, in); we keep the transposed
    # (in, out) layout so the kernel does plain x @ W.
    bound1 = 1.0 / (in_dim ** 0.5)
    bound2 = 1.0 / (out_dim ** 0.5)
    w1 = jax.random.uniform(kw1, (in_dim, out_dim), jnp.float32, -bound1, bound1)
    b1 = jax.random.uniform(kb1, (out_dim,), jnp.float32, -bound1, bound1)
    w2 = jax.random.uniform(kw2, (out_dim, out_dim), jnp.float32, -bound2, bound2)
    b2 = jax.random.uniform(kb2, (out_dim,), jnp.float32, -bound2, bound2)
    gamma = jnp.ones((out_dim,), jnp.float32)   # nn.LayerNorm default init
    beta = jnp.zeros((out_dim,), jnp.float32)

    # TODO(synk): dropout with p>0 (training-mode RNG masking) is not implemented;
    # the module's default p=0.0 makes it an identity.
    ref = residual_layer_ref(x, w1, b1, w2, b2, gamma, beta)

    # 1) f32 path, one-time packed params, single large row tile.
    packed_f32 = prepare_params(w1, b1, w2, b2, gamma, beta)
    out = jax.block_until_ready(residual_layer(x, packed_f32))
    assert out.shape == (N, out_dim)
    assert jnp.allclose(out, ref, atol=1e-4, rtol=1e-4), \
        float(jnp.max(jnp.abs(out - ref)))

    # 2) Multi-step grid with ragged row count (exercises row padding + pipeline).
    Nr = 77
    out_r = jax.block_until_ready(residual_layer(x[:Nr], packed_f32, block_rows=64))
    assert out_r.shape == (Nr, out_dim)
    assert jnp.allclose(out_r, ref[:Nr], atol=1e-4, rtol=1e-4), \
        float(jnp.max(jnp.abs(out_r - ref[:Nr])))

    # 3) bf16 MXU operands (the main compute lever on v6e/v7x), f32 accumulation;
    #    validated against the f32 reference with a relaxed tolerance.
    packed_bf16 = prepare_params(w1, b1, w2, b2, gamma, beta,
                                 weight_dtype=jnp.bfloat16)
    out_bf = jax.block_until_ready(residual_layer(x, packed_bf16))
    assert out_bf.shape == (N, out_dim)
    assert float(jnp.max(jnp.abs(out_bf - ref))) < 0.1

    print("KERNEL_OK")
</pallas_src>

<mosaic_0001>
module attributes {stable_mosaic.version = 11 : i64} {
  func.func @residual_layer_kernel(%arg0: i32, %arg1: memref<512x100xf32, #tpu.memory_space<vmem>>, %arg2: memref<100x128xf32, #tpu.memory_space<vmem>>, %arg3: memref<128x128xf32, #tpu.memory_space<vmem>>, %arg4: memref<8x128xf32, #tpu.memory_space<vmem>>, %arg5: memref<512x128xf32, #tpu.memory_space<vmem>>) attributes {dimension_semantics = [#tpu.dimension_semantics<parallel>], iteration_bounds = array<i64: 1>, scalar_prefetch = 0 : i64, scratch_operands = 0 : i64, tpu.core_type = #tpu.core_type<tc>, window_params = [{transform_indices = @transform_0, window_bounds = array<i64: 512, 100>}, {pipeline_mode = #tpu.pipeline_mode<synchronous>, transform_indices = @transform_1, window_bounds = array<i64: 100, 128>}, {pipeline_mode = #tpu.pipeline_mode<synchronous>, transform_indices = @transform_2, window_bounds = array<i64: 128, 128>}, {pipeline_mode = #tpu.pipeline_mode<synchronous>, transform_indices = @transform_3, window_bounds = array<i64: 8, 128>}, {transform_indices = @transform_4, window_bounds = array<i64: 512, 128>}]} {
    %c0 = arith.constant 0 : index
    %c0_0 = arith.constant 0 : index
    %0 = vector.load %arg2[%c0, %c0_0] : memref<100x128xf32, #tpu.memory_space<vmem>>, vector<100x128xf32>
    %c0_1 = arith.constant 0 : index
    %c0_2 = arith.constant 0 : index
    %1 = vector.load %arg3[%c0_1, %c0_2] : memref<128x128xf32, #tpu.memory_space<vmem>>, vector<128x128xf32>
    %c0_3 = arith.constant 0 : index
    %c0_4 = arith.constant 0 : index
    %2 = vector.load %arg1[%c0_3, %c0_4] : memref<512x100xf32, #tpu.memory_space<vmem>>, vector<512x100xf32>
    %c0_5 = arith.constant 0 : index
    %c0_6 = arith.constant 0 : index
    %3 = vector.load %arg4[%c0_5, %c0_6] : memref<8x128xf32, #tpu.memory_space<vmem>>, vector<8x128xf32>
    %4 = vector.extract_strided_slice %3 {offsets = [0, 0], sizes = [1, 128], strides = [1, 1]} : vector<8x128xf32> to vector<1x128xf32>
    %5 = vector.extract_strided_slice %3 {offsets = [1, 0], sizes = [1, 128], strides = [1, 1]} : vector<8x128xf32> to vector<1x128xf32>
    %6 = vector.extract_strided_slice %3 {offsets = [2, 0], sizes = [1, 128], strides = [1, 1]} : vector<8x128xf32> to vector<1x128xf32>
    %7 = vector.extract_strided_slice %3 {offsets = [3, 0], sizes = [1, 128], strides = [1, 1]} : vector<8x128xf32> to vector<1x128xf32>
    %cst = arith.constant dense<0.000000e+00> : vector<512x128xf32>
    %8 = tpu.matmul %2, %0, %cst {dimension_numbers = #tpu.dot_dimension_numbers<[1], [0], [0], [1], [0, 0, 1, 1], [], []>} : vector<512x100xf32>, vector<100x128xf32>, vector<512x128xf32> -> vector<512x128xf32>
    %9 = vector.broadcast %4 : vector<1x128xf32> to vector<512x128xf32>
    %10 = arith.addf %8, %9 : vector<512x128xf32>
    %cst_7 = arith.constant 0.000000e+00 : f32
    %11 = vector.broadcast %cst_7 : f32 to vector<512x128xf32>
    %12 = arith.maximumf %10, %11 : vector<512x128xf32>
    %cst_8 = arith.constant dense<0.000000e+00> : vector<512x128xf32>
    %13 = tpu.matmul %12, %1, %cst_8 {dimension_numbers = #tpu.dot_dimension_numbers<[1], [0], [0], [1], [0, 0, 1, 1], [], []>} : vector<512x128xf32>, vector<128x128xf32>, vector<512x128xf32> -> vector<512x128xf32>
    %14 = vector.broadcast %5 : vector<1x128xf32> to vector<512x128xf32>
    %15 = arith.addf %13, %14 : vector<512x128xf32>
    %cst_9 = arith.constant 0.000000e+00 : f32
    %16 = vector.broadcast %cst_9 : f32 to vector<512x128xf32>
    %17 = arith.maximumf %15, %16 : vector<512x128xf32>
    %18 = arith.addf %17, %12 : vector<512x128xf32>
    %cst_10 = arith.constant dense<0.000000e+00> : vector<512xf32>
    %19 = vector.multi_reduction <add>, %18, %cst_10 [1] : vector<512x128xf32> to vector<512xf32>
    %20 = vector.shape_cast %19 : vector<512xf32> to vector<512x1xf32>
    %cst_11 = arith.constant 0.00999999977 : f32
    %21 = vector.broadcast %cst_11 : f32 to vector<512x1xf32>
    %22 = arith.mulf %20, %21 : vector<512x1xf32>
    %23 = vector.broadcast %22 : vector<512x1xf32> to vector<512x128xf32>
    %24 = arith.subf %18, %23 : vector<512x128xf32>
    %25 = tpu.iota {dimensions = array<i32: 1>} : vector<1x128xi32>
    %c100_i32 = arith.constant 100 : i32
    %26 = vector.broadcast %c100_i32 : i32 to vector<1x128xi32>
    %27 = arith.cmpi slt, %25, %26 : vector<1x128xi32>
    %cst_12 = arith.constant 0.000000e+00 : f32
    %28 = vector.shape_cast %27 : vector<1x128xi1> to vector<1x128xi1>
    %29 = vector.broadcast %28 : vector<1x128xi1> to vector<512x128xi1>
    %30 = vector.broadcast %cst_12 : f32 to vector<512x128xf32>
    %31 = arith.select %29, %24, %30 : vector<512x128xi1>, vector<512x128xf32>
    %32 = arith.mulf %31, %31 : vector<512x128xf32>
    %cst_13 = arith.constant dense<0.000000e+00> : vector<512xf32>
    %33 = vector.multi_reduction <add>, %32, %cst_13 [1] : vector<512x128xf32> to vector<512xf32>
    %34 = vector.shape_cast %33 : vector<512xf32> to vector<512x1xf32>
    %cst_14 = arith.constant 0.00999999977 : f32
    %35 = vector.broadcast %cst_14 : f32 to vector<512x1xf32>
    %36 = arith.mulf %34, %35 : vector<512x1xf32>
    %cst_15 = arith.constant 9.99999974E-6 : f32
    %37 = vector.broadcast %cst_15 : f32 to vector<512x1xf32>
    %38 = arith.addf %36, %37 : vector<512x1xf32>
    %39 = math.rsqrt %38 : vector<512x1xf32>
    %40 = vector.broadcast %39 : vector<512x1xf32> to vector<512x128xf32>
    %41 = arith.mulf %31, %40 : vector<512x128xf32>
    %42 = vector.broadcast %6 : vector<1x128xf32> to vector<512x128xf32>
    %43 = arith.mulf %41, %42 : vector<512x128xf32>
    %44 = vector.broadcast %7 : vector<1x128xf32> to vector<512x128xf32>
    %45 = arith.addf %43, %44 : vector<512x128xf32>
    %c0_16 = arith.constant 0 : index
    %c0_17 = arith.constant 0 : index
    %46 = vector.load %arg5[%c0_16, %c0_17] : memref<512x128xf32, #tpu.memory_space<vmem>>, vector<512x128xf32>
    tpu.vector_store %arg5[%c0_16, %c0_17], %45 {strides = array<i32>} : memref<512x128xf32, #tpu.memory_space<vmem>>, vector<512x128xf32>,
    return
  }
  func.func @transform_0(%arg0: i32) -> (i32, i32) {
    %c0_i32 = arith.constant 0 : i32
    %c0_i32_0 = arith.constant 0 : i32
    return %arg0, %c0_i32 : i32, i32
  }
  func.func @transform_1(%arg0: i32) -> (i32, i32) {
    %c0_i32 = arith.constant 0 : i32
    %c0_i32_0 = arith.constant 0 : i32
    %c0_i32_1 = arith.constant 0 : i32
    return %c0_i32, %c0_i32_0 : i32, i32
  }
  func.func @transform_2(%arg0: i32) -> (i32, i32) {
    %c0_i32 = arith.constant 0 : i32
    %c0_i32_0 = arith.constant 0 : i32
    %c0_i32_1 = arith.constant 0 : i32
    return %c0_i32, %c0_i32_0 : i32, i32
  }
  func.func @transform_3(%arg0: i32) -> (i32, i32) {
    %c0_i32 = arith.constant 0 : i32
    %c0_i32_0 = arith.constant 0 : i32
    %c0_i32_1 = arith.constant 0 : i32
    return %c0_i32, %c0_i32_0 : i32, i32
  }
  func.func @transform_4(%arg0: i32) -> (i32, i32) {
    %c0_i32 = arith.constant 0 : i32
    %c0_i32_0 = arith.constant 0 : i32
    return %arg0, %c0_i32 : i32, i32
  }
}

module attributes {stable_mosaic.version = 11 : i64} {
  func.func @residual_layer_kernel(%arg0: i32, %arg1: memref<512x100xf32, #tpu.memory_space<vmem>>, %arg2: memref<100x128xf32, #tpu.memory_space<vmem>>, %arg3: memref<128x128xf32, #tpu.memory_space<vmem>>, %arg4: memref<8x128xf32, #tpu.memory_space<vmem>>, %arg5: memref<512x128xf32, #tpu.memory_space<vmem>>) attributes {dimension_semantics = [#tpu.dimension_semantics<parallel>], iteration_bounds = array<i64: 1>, scalar_prefetch = 0 : i64, scratch_operands = 0 : i64, tpu.core_type = #tpu.core_type<tc>, window_params = [{transform_indices = @transform_0, window_bounds = array<i64: 512, 100>}, {pipeline_mode = #tpu.pipeline_mode<synchronous>, transform_indices = @transform_1, window_bounds = array<i64: 100, 128>}, {pipeline_mode = #tpu.pipeline_mode<synchronous>, transform_indices = @transform_2, window_bounds = array<i64: 128, 128>}, {pipeline_mode = #tpu.pipeline_mode<synchronous>, transform_indices = @transform_3, window_bounds = array<i64: 8, 128>}, {transform_indices = @transform_4, window_bounds = array<i64: 512, 128>}]} {
    %c0 = arith.constant 0 : index
    %c0_0 = arith.constant 0 : index
    %0 = vector.load %arg2[%c0, %c0_0] : memref<100x128xf32, #tpu.memory_space<vmem>>, vector<100x128xf32>
    %c0_1 = arith.constant 0 : index
    %c0_2 = arith.constant 0 : index
    %1 = vector.load %arg3[%c0_1, %c0_2] : memref<128x128xf32, #tpu.memory_space<vmem>>, vector<128x128xf32>
    %c0_3 = arith.constant 0 : index
    %c0_4 = arith.constant 0 : index
    %2 = vector.load %arg1[%c0_3, %c0_4] : memref<512x100xf32, #tpu.memory_space<vmem>>, vector<512x100xf32>
    %c0_5 = arith.constant 0 : index
    %c0_6 = arith.constant 0 : index
    %3 = vector.load %arg4[%c0_5, %c0_6] : memref<8x128xf32, #tpu.memory_space<vmem>>, vector<8x128xf32>
    %4 = vector.extract_strided_slice %3 {offsets = [0, 0], sizes = [1, 128], strides = [1, 1]} : vector<8x128xf32> to vector<1x128xf32>
    %5 = vector.extract_strided_slice %3 {offsets = [1, 0], sizes = [1, 128], strides = [1, 1]} : vector<8x128xf32> to vector<1x128xf32>
    %6 = vector.extract_strided_slice %3 {offsets = [2, 0], sizes = [1, 128], strides = [1, 1]} : vector<8x128xf32> to vector<1x128xf32>
    %7 = vector.extract_strided_slice %3 {offsets = [3, 0], sizes = [1, 128], strides = [1, 1]} : vector<8x128xf32> to vector<1x128xf32>
    %cst = arith.constant dense<0.000000e+00> : vector<512x128xf32>
    %8 = tpu.matmul %2, %0, %cst {dimension_numbers = #tpu.dot_dimension_numbers<[1], [0], [0], [1], [0, 0, 1, 1], [], []>} : vector<512x100xf32>, vector<100x128xf32>, vector<512x128xf32> -> vector<512x128xf32>
    %9 = vector.broadcast %4 : vector<1x128xf32> to vector<512x128xf32>
    %10 = arith.addf %8, %9 : vector<512x128xf32>
    %cst_7 = arith.constant 0.000000e+00 : f32
    %11 = vector.broadcast %cst_7 : f32 to vector<512x128xf32>
    %12 = arith.maximumf %10, %11 : vector<512x128xf32>
    %cst_8 = arith.constant dense<0.000000e+00> : vector<512x128xf32>
    %13 = tpu.matmul %12, %1, %cst_8 {dimension_numbers = #tpu.dot_dimension_numbers<[1], [0], [0], [1], [0, 0, 1, 1], [], []>} : vector<512x128xf32>, vector<128x128xf32>, vector<512x128xf32> -> vector<512x128xf32>
    %14 = vector.broadcast %5 : vector<1x128xf32> to vector<512x128xf32>
    %15 = arith.addf %13, %14 : vector<512x128xf32>
    %cst_9 = arith.constant 0.000000e+00 : f32
    %16 = vector.broadcast %cst_9 : f32 to vector<512x128xf32>
    %17 = arith.maximumf %15, %16 : vector<512x128xf32>
    %18 = arith.addf %17, %12 : vector<512x128xf32>
    %cst_10 = arith.constant dense<0.000000e+00> : vector<512xf32>
    %19 = vector.multi_reduction <add>, %18, %cst_10 [1] : vector<512x128xf32> to vector<512xf32>
    %20 = vector.shape_cast %19 : vector<512xf32> to vector<512x1xf32>
    %cst_11 = arith.constant 0.00999999977 : f32
    %21 = vector.broadcast %cst_11 : f32 to vector<512x1xf32>
    %22 = arith.mulf %20, %21 : vector<512x1xf32>
    %23 = vector.broadcast %22 : vector<512x1xf32> to vector<512x128xf32>
    %24 = arith.subf %18, %23 : vector<512x128xf32>
    %25 = tpu.iota {dimensions = array<i32: 1>} : vector<1x128xi32>
    %c100_i32 = arith.constant 100 : i32
    %26 = vector.broadcast %c100_i32 : i32 to vector<1x128xi32>
    %27 = arith.cmpi slt, %25, %26 : vector<1x128xi32>
    %cst_12 = arith.constant 0.000000e+00 : f32
    %28 = vector.shape_cast %27 : vector<1x128xi1> to vector<1x128xi1>
    %29 = vector.broadcast %28 : vector<1x128xi1> to vector<512x128xi1>
    %30 = vector.broadcast %cst_12 : f32 to vector<512x128xf32>
    %31 = arith.select %29, %24, %30 : vector<512x128xi1>, vector<512x128xf32>
    %32 = arith.mulf %31, %31 : vector<512x128xf32>
    %cst_13 = arith.constant dense<0.000000e+00> : vector<512xf32>
    %33 = vector.multi_reduction <add>, %32, %cst_13 [1] : vector<512x128xf32> to vector<512xf32>
    %34 = vector.shape_cast %33 : vector<512xf32> to vector<512x1xf32>
    %cst_14 = arith.constant 0.00999999977 : f32
    %35 = vector.broadcast %cst_14 : f32 to vector<512x1xf32>
    %36 = arith.mulf %34, %35 : vector<512x1xf32>
    %cst_15 = arith.constant 9.99999974E-6 : f32
    %37 = vector.broadcast %cst_15 : f32 to vector<512x1xf32>
    %38 = arith.addf %36, %37 : vector<512x1xf32>
    %39 = math.rsqrt %38 : vector<512x1xf32>
    %40 = vector.broadcast %39 : vector<512x1xf32> to vector<512x128xf32>
    %41 = arith.mulf %31, %40 : vector<512x128xf32>
    %42 = vector.broadcast %6 : vector<1x128xf32> to vector<512x128xf32>
    %43 = arith.mulf %41, %42 : vector<512x128xf32>
    %44 = vector.broadcast %7 : vector<1x128xf32> to vector<512x128xf32>
    %45 = arith.addf %43, %44 : vector<512x128xf32>
    %c0_16 = arith.constant 0 : index
    %c0_17 = arith.constant 0 : index
    %46 = vector.load %arg5[%c0_16, %c0_17] : memref<512x128xf32, #tpu.memory_space<vmem>>, vector<512x128xf32>
    tpu.vector_store %arg5[%c0_16, %c0_17], %45 {strides = array<i32>} : memref<512x128xf32, #tpu.memory_space<vmem>>, vector<512x128xf32>,
    return
  }
  func.func @transform_0(%arg0: i32) -> (i32, i32) {
    %c0_i32 = arith.constant 0 : i32
    %c0_i32_0 = arith.constant 0 : i32
    return %arg0, %c0_i32 : i32, i32
  }
  func.func @transform_1(%arg0: i32) -> (i32, i32) {
    %c0_i32 = arith.constant 0 : i32
    %c0_i32_0 = arith.constant 0 : i32
    %c0_i32_1 = arith.constant 0 : i32
    return %c0_i32, %c0_i32_0 : i32, i32
  }
  func.func @transform_2(%arg0: i32) -> (i32, i32) {
    %c0_i32 = arith.constant 0 : i32
    %c0_i32_0 = arith.constant 0 : i32
    %c0_i32_1 = arith.constant 0 : i32
    return %c0_i32, %c0_i32_0 : i32, i32
  }
  func.func @transform_3(%arg0: i32) -> (i32, i32) {
    %c0_i32 = arith.constant 0 : i32
    %c0_i32_0 = arith.constant 0 : i32
    %c0_i32_1 = arith.constant 0 : i32
    return %c0_i32, %c0_i32_0 : i32, i32
  }
  func.func @transform_4(%arg0: i32) -> (i32, i32) {
    %c0_i32 = arith.constant 0 : i32
    %c0_i32_0 = arith.constant 0 : i32
    return %arg0, %c0_i32 : i32, i32
  }
}

module attributes {stable_mosaic.version = 11 : i64} {
  func.func @residual_layer_kernel(%arg0: i32, %arg1: memref<512x128xf32, #tpu.memory_space<vmem>>, %arg2: memref<128x128xf32, #tpu.memory_space<vmem>>, %arg3: memref<128x128xf32, #tpu.memory_space<vmem>>, %arg4: memref<8x128xf32, #tpu.memory_space<vmem>>, %arg5: memref<512x128xf32, #tpu.memory_space<vmem>>) attributes {dimension_semantics = [#tpu.dimension_semantics<parallel>], iteration_bounds = array<i64: 1>, scalar_prefetch = 0 : i64, scratch_operands = 0 : i64, tpu.core_type = #tpu.core_type<tc>, window_params = [{transform_indices = @transform_0, window_bounds = array<i64: 512, 128>}, {pipeline_mode = #tpu.pipeline_mode<synchronous>, transform_indices = @transform_1, window_bounds = array<i64: 128, 128>}, {pipeline_mode = #tpu.pipeline_mode<synchronous>, transform_indices = @transform_2, window_bounds = array<i64: 128, 128>}, {pipeline_mode = #tpu.pipeline_mode<synchronous>, transform_indices = @transform_3, window_bounds = array<i64: 8, 128>}, {transform_indices = @transform_4, window_bounds = array<i64: 512, 128>}]} {
    %c0 = arith.constant 0 : index
    %c0_0 = arith.constant 0 : index
    %0 = vector.load %arg2[%c0, %c0_0] : memref<128x128xf32, #tpu.memory_space<vmem>>, vector<128x128xf32>
    %c0_1 = arith.constant 0 : index
    %c0_2 = arith.constant 0 : index
    %1 = vector.load %arg3[%c0_1, %c0_2] : memref<128x128xf32, #tpu.memory_space<vmem>>, vector<128x128xf32>
    %c0_3 = arith.constant 0 : index
    %c0_4 = arith.constant 0 : index
    %2 = vector.load %arg1[%c0_3, %c0_4] : memref<512x128xf32, #tpu.memory_space<vmem>>, vector<512x128xf32>
    %c0_5 = arith.constant 0 : index
    %c0_6 = arith.constant 0 : index
    %3 = vector.load %arg4[%c0_5, %c0_6] : memref<8x128xf32, #tpu.memory_space<vmem>>, vector<8x128xf32>
    %4 = vector.extract_strided_slice %3 {offsets = [0, 0], sizes = [1, 128], strides = [1, 1]} : vector<8x128xf32> to vector<1x128xf32>
    %5 = vector.extract_strided_slice %3 {offsets = [1, 0], sizes = [1, 128], strides = [1, 1]} : vector<8x128xf32> to vector<1x128xf32>
    %6 = vector.extract_strided_slice %3 {offsets = [2, 0], sizes = [1, 128], strides = [1, 1]} : vector<8x128xf32> to vector<1x128xf32>
    %7 = vector.extract_strided_slice %3 {offsets = [3, 0], sizes = [1, 128], strides = [1, 1]} : vector<8x128xf32> to vector<1x128xf32>
    %cst = arith.constant dense<0.000000e+00> : vector<512x128xf32>
    %8 = tpu.matmul %2, %0, %cst {dimension_numbers = #tpu.dot_dimension_numbers<[1], [0], [0], [1], [0, 0, 1, 1], [], []>} : vector<512x128xf32>, vector<128x128xf32>, vector<512x128xf32> -> vector<512x128xf32>
    %9 = vector.broadcast %4 : vector<1x128xf32> to vector<512x128xf32>
    %10 = arith.addf %8, %9 : vector<512x128xf32>
    %cst_7 = arith.constant 0.000000e+00 : f32
    %11 = vector.broadcast %cst_7 : f32 to vector<512x128xf32>
    %12 = arith.maximumf %10, %11 : vector<512x128xf32>
    %cst_8 = arith.constant dense<0.000000e+00> : vector<512x128xf32>
    %13 = tpu.matmul %12, %1, %cst_8 {dimension_numbers = #tpu.dot_dimension_numbers<[1], [0], [0], [1], [0, 0, 1, 1], [], []>} : vector<512x128xf32>, vector<128x128xf32>, vector<512x128xf32> -> vector<512x128xf32>
    %14 = vector.broadcast %5 : vector<1x128xf32> to vector<512x128xf32>
    %15 = arith.addf %13, %14 : vector<512x128xf32>
    %cst_9 = arith.constant 0.000000e+00 : f32
    %16 = vector.broadcast %cst_9 : f32 to vector<512x128xf32>
    %17 = arith.maximumf %15, %16 : vector<512x128xf32>
    %18 = arith.addf %17, %12 : vector<512x128xf32>
    %cst_10 = arith.constant dense<0.000000e+00> : vector<512xf32>
    %19 = vector.multi_reduction <add>, %18, %cst_10 [1] : vector<512x128xf32> to vector<512xf32>
    %20 = vector.shape_cast %19 : vector<512xf32> to vector<512x1xf32>
    %cst_11 = arith.constant 0.00999999977 : f32
    %21 = vector.broadcast %cst_11 : f32 to vector<512x1xf32>
    %22 = arith.mulf %20, %21 : vector<512x1xf32>
    %23 = vector.broadcast %22 : vector<512x1xf32> to vector<512x128xf32>
    %24 = arith.subf %18, %23 : vector<512x128xf32>
    %25 = tpu.iota {dimensions = array<i32: 1>} : vector<1x128xi32>
    %c100_i32 = arith.constant 100 : i32
    %26 = vector.broadcast %c100_i32 : i32 to vector<1x128xi32>
    %27 = arith.cmpi slt, %25, %26 : vector<1x128xi32>
    %cst_12 = arith.constant 0.000000e+00 : f32
    %28 = vector.shape_cast %27 : vector<1x128xi1> to vector<1x128xi1>
    %29 = vector.broadcast %28 : vector<1x128xi1> to vector<512x128xi1>
    %30 = vector.broadcast %cst_12 : f32 to vector<512x128xf32>
    %31 = arith.select %29, %24, %30 : vector<512x128xi1>, vector<512x128xf32>
    %32 = arith.mulf %31, %31 : vector<512x128xf32>
    %cst_13 = arith.constant dense<0.000000e+00> : vector<512xf32>
    %33 = vector.multi_reduction <add>, %32, %cst_13 [1] : vector<512x128xf32> to vector<512xf32>
    %34 = vector.shape_cast %33 : vector<512xf32> to vector<512x1xf32>
    %cst_14 = arith.constant 0.00999999977 : f32
    %35 = vector.broadcast %cst_14 : f32 to vector<512x1xf32>
    %36 = arith.mulf %34, %35 : vector<512x1xf32>
    %cst_15 = arith.constant 9.99999974E-6 : f32
    %37 = vector.broadcast %cst_15 : f32 to vector<512x1xf32>
    %38 = arith.addf %36, %37 : vector<512x1xf32>
    %39 = math.rsqrt %38 : vector<512x1xf32>
    %40 = vector.broadcast %39 : vector<512x1xf32> to vector<512x128xf32>
    %41 = arith.mulf %31, %40 : vector<512x128xf32>
    %42 = vector.broadcast %6 : vector<1x128xf32> to vector<512x128xf32>
    %43 = arith.mulf %41, %42 : vector<512x128xf32>
    %44 = vector.broadcast %7 : vector<1x128xf32> to vector<512x128xf32>
    %45 = arith.addf %43, %44 : vector<512x128xf32>
    %c0_16 = arith.constant 0 : index
    %c0_17 = arith.constant 0 : index
    %46 = vector.load %arg5[%c0_16, %c0_17] : memref<512x128xf32, #tpu.memory_space<vmem>>, vector<512x128xf32>
    tpu.vector_store %arg5[%c0_16, %c0_17], %45 {strides = array<i32>} : memref<512x128xf32, #tpu.memory_space<vmem>>, vector<512x128xf32>,
    return
  }
  func.func @transform_0(%arg0: i32) -> (i32, i32) {
    %c0_i32 = arith.constant 0 : i32
    %c0_i32_0 = arith.constant 0 : i32
    return %arg0, %c0_i32 : i32, i32
  }
  func.func @transform_1(%arg0: i32) -> (i32, i32) {
    %c0_i32 = arith.constant 0 : i32
    %c0_i32_0 = arith.constant 0 : i32
    %c0_i32_1 = arith.constant 0 : i32
    return %c0_i32, %c0_i32_0 : i32, i32
  }
  func.func @transform_2(%arg0: i32) -> (i32, i32) {
    %c0_i32 = arith.constant 0 : i32
    %c0_i32_0 = arith.constant 0 : i32
    %c0_i32_1 = arith.constant 0 : i32
    return %c0_i32, %c0_i32_0 : i32, i32
  }
  func.func @transform_3(%arg0: i32) -> (i32, i32) {
    %c0_i32 = arith.constant 0 : i32
    %c0_i32_0 = arith.constant 0 : i32
    %c0_i32_1 = arith.constant 0 : i32
    return %c0_i32, %c0_i32_0 : i32, i32
  }
  func.func @transform_4(%arg0: i32) -> (i32, i32) {
    %c0_i32 = arith.constant 0 : i32
    %c0_i32_0 = arith.constant 0 : i32
    return %arg0, %c0_i32 : i32, i32
  }
}

module attributes {stable_mosaic.version = 11 : i64} {
  func.func @residual_layer_kernel(%arg0: i32, %arg1: memref<512x128xf32, #tpu.memory_space<vmem>>, %arg2: memref<128x128xf32, #tpu.memory_space<vmem>>, %arg3: memref<128x128xf32, #tpu.memory_space<vmem>>, %arg4: memref<8x128xf32, #tpu.memory_space<vmem>>, %arg5: memref<512x128xf32, #tpu.memory_space<vmem>>) attributes {dimension_semantics = [#tpu.dimension_semantics<parallel>], iteration_bounds = array<i64: 1>, scalar_prefetch = 0 : i64, scratch_operands = 0 : i64, tpu.core_type = #tpu.core_type<tc>, window_params = [{transform_indices = @transform_0, window_bounds = array<i64: 512, 128>}, {pipeline_mode = #tpu.pipeline_mode<synchronous>, transform_indices = @transform_1, window_bounds = array<i64: 128, 128>}, {pipeline_mode = #tpu.pipeline_mode<synchronous>, transform_indices = @transform_2, window_bounds = array<i64: 128, 128>}, {pipeline_mode = #tpu.pipeline_mode<synchronous>, transform_indices = @transform_3, window_bounds = array<i64: 8, 128>}, {transform_indices = @transform_4, window_bounds = array<i64: 512, 128>}]} {
    %c0 = arith.constant 0 : index
    %c0_0 = arith.constant 0 : index
    %0 = vector.load %arg2[%c0, %c0_0] : memref<128x128xf32, #tpu.memory_space<vmem>>, vector<128x128xf32>
    %c0_1 = arith.constant 0 : index
    %c0_2 = arith.constant 0 : index
    %1 = vector.load %arg3[%c0_1, %c0_2] : memref<128x128xf32, #tpu.memory_space<vmem>>, vector<128x128xf32>
    %c0_3 = arith.constant 0 : index
    %c0_4 = arith.constant 0 : index
    %2 = vector.load %arg1[%c0_3, %c0_4] : memref<512x128xf32, #tpu.memory_space<vmem>>, vector<512x128xf32>
    %c0_5 = arith.constant 0 : index
    %c0_6 = arith.constant 0 : index
    %3 = vector.load %arg4[%c0_5, %c0_6] : memref<8x128xf32, #tpu.memory_space<vmem>>, vector<8x128xf32>
    %4 = vector.extract_strided_slice %3 {offsets = [0, 0], sizes = [1, 128], strides = [1, 1]} : vector<8x128xf32> to vector<1x128xf32>
    %5 = vector.extract_strided_slice %3 {offsets = [1, 0], sizes = [1, 128], strides = [1, 1]} : vector<8x128xf32> to vector<1x128xf32>
    %6 = vector.extract_strided_slice %3 {offsets = [2, 0], sizes = [1, 128], strides = [1, 1]} : vector<8x128xf32> to vector<1x128xf32>
    %7 = vector.extract_strided_slice %3 {offsets = [3, 0], sizes = [1, 128], strides = [1, 1]} : vector<8x128xf32> to vector<1x128xf32>
    %cst = arith.constant dense<0.000000e+00> : vector<512x128xf32>
    %8 = tpu.matmul %2, %0, %cst {dimension_numbers = #tpu.dot_dimension_numbers<[1], [0], [0], [1], [0, 0, 1, 1], [], []>} : vector<512x128xf32>, vector<128x128xf32>, vector<512x128xf32> -> vector<512x128xf32>
    %9 = vector.broadcast %4 : vector<1x128xf32> to vector<512x128xf32>
    %10 = arith.addf %8, %9 : vector<512x128xf32>
    %cst_7 = arith.constant 0.000000e+00 : f32
    %11 = vector.broadcast %cst_7 : f32 to vector<512x128xf32>
    %12 = arith.maximumf %10, %11 : vector<512x128xf32>
    %cst_8 = arith.constant dense<0.000000e+00> : vector<512x128xf32>
    %13 = tpu.matmul %12, %1, %cst_8 {dimension_numbers = #tpu.dot_dimension_numbers<[1], [0], [0], [1], [0, 0, 1, 1], [], []>} : vector<512x128xf32>, vector<128x128xf32>, vector<512x128xf32> -> vector<512x128xf32>
    %14 = vector.broadcast %5 : vector<1x128xf32> to vector<512x128xf32>
    %15 = arith.addf %13, %14 : vector<512x128xf32>
    %cst_9 = arith.constant 0.000000e+00 : f32
    %16 = vector.broadcast %cst_9 : f32 to vector<512x128xf32>
    %17 = arith.maximumf %15, %16 : vector<512x128xf32>
    %18 = arith.addf %17, %12 : vector<512x128xf32>
    %cst_10 = arith.constant dense<0.000000e+00> : vector<512xf32>
    %19 = vector.multi_reduction <add>, %18, %cst_10 [1] : vector<512x128xf32> to vector<512xf32>
    %20 = vector.shape_cast %19 : vector<512xf32> to vector<512x1xf32>
    %cst_11 = arith.constant 0.00999999977 : f32
    %21 = vector.broadcast %cst_11 : f32 to vector<512x1xf32>
    %22 = arith.mulf %20, %21 : vector<512x1xf32>
    %23 = vector.broadcast %22 : vector<512x1xf32> to vector<512x128xf32>
    %24 = arith.subf %18, %23 : vector<512x128xf32>
    %25 = tpu.iota {dimensions = array<i32: 1>} : vector<1x128xi32>
    %c100_i32 = arith.constant 100 : i32
    %26 = vector.broadcast %c100_i32 : i32 to vector<1x128xi32>
    %27 = arith.cmpi slt, %25, %26 : vector<1x128xi32>
    %cst_12 = arith.constant 0.000000e+00 : f32
    %28 = vector.shape_cast %27 : vector<1x128xi1> to vector<1x128xi1>
    %29 = vector.broadcast %28 : vector<1x128xi1> to vector<512x128xi1>
    %30 = vector.broadcast %cst_12 : f32 to vector<512x128xf32>
    %31 = arith.select %29, %24, %30 : vector<512x128xi1>, vector<512x128xf32>
    %32 = arith.mulf %31, %31 : vector<512x128xf32>
    %cst_13 = arith.constant dense<0.000000e+00> : vector<512xf32>
    %33 = vector.multi_reduction <add>, %32, %cst_13 [1] : vector<512x128xf32> to vector<512xf32>
    %34 = vector.shape_cast %33 : vector<512xf32> to vector<512x1xf32>
    %cst_14 = arith.constant 0.00999999977 : f32
    %35 = vector.broadcast %cst_14 : f32 to vector<512x1xf32>
    %36 = arith.mulf %34, %35 : vector<512x1xf32>
    %cst_15 = arith.constant 9.99999974E-6 : f32
    %37 = vector.broadcast %cst_15 : f32 to vector<512x1xf32>
    %38 = arith.addf %36, %37 : vector<512x1xf32>
    %39 = math.rsqrt %38 : vector<512x1xf32>
    %40 = vector.broadcast %39 : vector<512x1xf32> to vector<512x128xf32>
    %41 = arith.mulf %31, %40 : vector<512x128xf32>
    %42 = vector.broadcast %6 : vector<1x128xf32> to vector<512x128xf32>
    %43 = arith.mulf %41, %42 : vector<512x128xf32>
    %44 = vector.broadcast %7 : vector<1x128xf32> to vector<512x128xf32>
    %45 = arith.addf %43, %44 : vector<512x128xf32>
    %c0_16 = arith.constant 0 : index
    %c0_17 = arith.constant 0 : index
    %46 = vector.load %arg5[%c0_16, %c0_17] : memref<512x128xf32, #tpu.memory_space<vmem>>, vector<512x128xf32>
    tpu.vector_store %arg5[%c0_16, %c0_17], %45 {strides = array<i32>} : memref<512x128xf32, #tpu.memory_space<vmem>>, vector<512x128xf32>,
    return
  }
  func.func @transform_0(%arg0: i32) -> (i32, i32) {
    %c0_i32 = arith.constant 0 : i32
    %c0_i32_0 = arith.constant 0 : i32
    return %arg0, %c0_i32 : i32, i32
  }
  func.func @transform_1(%arg0: i32) -> (i32, i32) {
    %c0_i32 = arith.constant 0 : i32
    %c0_i32_0 = arith.constant 0 : i32
    %c0_i32_1 = arith.constant 0 : i32
    return %c0_i32, %c0_i32_0 : i32, i32
  }
  func.func @transform_2(%arg0: i32) -> (i32, i32) {
    %c0_i32 = arith.constant 0 : i32
    %c0_i32_0 = arith.constant 0 : i32
    %c0_i32_1 = arith.constant 0 : i32
    return %c0_i32, %c0_i32_0 : i32, i32
  }
  func.func @transform_3(%arg0: i32) -> (i32, i32) {
    %c0_i32 = arith.constant 0 : i32
    %c0_i32_0 = arith.constant 0 : i32
    %c0_i32_1 = arith.constant 0 : i32
    return %c0_i32, %c0_i32_0 : i32, i32
  }
  func.func @transform_4(%arg0: i32) -> (i32, i32) {
    %c0_i32 = arith.constant 0 : i32
    %c0_i32_0 = arith.constant 0 : i32
    return %arg0, %c0_i32 : i32, i32
  }
}

</mosaic_0001>

<llo_original>
// kernel: tpu_custom_call.1
$region0: #{tpu_custom_call.1}
  #allocation0 [shape = 'u32[]', space=smem, size = 0x4, offset = 0x4, fixed_abs, tag = 'smem constant byte address 0x4 - core index']
  #allocation1 [shape = 'u32[144,128]{1,0:T(1,128)}', space=vmem, size = 0x12000, scoped, tag = 'internal scratch']
  %s0 = inlined_call_operand.vmem [shape: f32[512,100], index: 0, kind: input, shape index: {}]
  %s1 = inlined_call_operand.vmem [shape: f32[100,128], index: 1, kind: input, shape index: {}]
  %s2 = inlined_call_operand.vmem [shape: f32[128,128], index: 2, kind: input, shape index: {}]
  %s3 = inlined_call_operand.vmem [shape: f32[8,128], index: 3, kind: input, shape index: {}]
  %s4 = inlined_call_operand.hbm [shape: f32[512,128], index: 4, kind: output, shape index: {}]
  %s5 = sld [smem:[#allocation0]]
  $region26: #{tpu_custom_call.1} parent=0
    _
  %s7 = ssub.s32 1, %s5
  %s8 = scalar_select 0, %s7, %s5
  $region1: #{tpu_custom_call.1} parent=0
    #allocation2 [shape = 'u8[262144]{0}', space=vmem, size = 0x40000, scoped, tag = 'output window, operand 0, single buffered']
    #allocation3 [shape = 's32[1]{0}', space=sflag, size = 0x4, scoped, tag = 'scoped memory for tpu_custom_call.1']
    %9 = vsyncpa [#allocation3], 0
    // Predicated region
    $region2: #{tpu_custom_call.1} parent=1 // pred_check
      _
    $region3: #{tpu_custom_call.1} parent=1 // pred_check_branch
      %11 = sbr.rel (0) target = $region5
    $region4: #{tpu_custom_call.1} parent=1 // pred_region
      _
    $region5: #{tpu_custom_call.1} parent=1 // pred_fallthru
      _
    // Predicated region
    $region6: #{tpu_custom_call.1} parent=1 // pred_check
      _
    $region7: #{tpu_custom_call.1} parent=1 // pred_check_branch
      %13 = sbr.rel (0) target = $region9
    $region8: #{tpu_custom_call.1} parent=1 // pred_region
      _
    $region9: #{tpu_custom_call.1} parent=1 // pred_fallthru
      _
    // Predicated region
    $region10: #{tpu_custom_call.1} parent=1 // pred_check
      _
    $region11: #{tpu_custom_call.1} parent=1 // pred_check_branch
      %15 = sbr.rel (0) target = $region13
    $region12: #{tpu_custom_call.1} parent=1 // pred_region
      _
    $region13: #{tpu_custom_call.1} parent=1 // pred_fallthru
      _
    // Predicated region
    $region14: #{tpu_custom_call.1} parent=1 // pred_check
      _
    $region15: #{tpu_custom_call.1} parent=1 // pred_check_branch
      %17 = sbr.rel (0) target = $region17
    $region16: #{tpu_custom_call.1} parent=1 // pred_region
      _
    $region17: #{tpu_custom_call.1} parent=1 // pred_fallthru
      _
    %v18 = vld [vmem:[%s1] sm:$0xff]
    %v19 = vld [vmem:[%s1 + $0x8] sm:$0xff]
    %v20 = vld [vmem:[%s1 + $0x10] sm:$0xff]
    %v21 = vld [vmem:[%s1 + $0x18] sm:$0xff]
    %v22 = vld [vmem:[%s1 + $0x20] sm:$0xff]
    %v23 = vld [vmem:[%s1 + $0x28] sm:$0xff]
    %v24 = vld [vmem:[%s1 + $0x30] sm:$0xff]
    %v25 = vld [vmem:[%s1 + $0x38] sm:$0xff]
    %v26 = vld [vmem:[%s1 + $0x40] sm:$0xff]
    %v27 = vld [vmem:[%s1 + $0x48] sm:$0xff]
    %v28 = vld [vmem:[%s1 + $0x50] sm:$0xff]
    %v29 = vld [vmem:[%s1 + $0x58] sm:$0xff]
    %v30 = vld [vmem:[%s1 + $0x60] sm:$0xf]
    %v31 = vld [vmem:[%s2] sm:$0xff]
    %v32 = vld [vmem:[%s2 + $0x8] sm:$0xff]
    %v33 = vld [vmem:[%s2 + $0x10] sm:$0xff]
    %v34 = vld [vmem:[%s2 + $0x18] sm:$0xff]
    %v35 = vld [vmem:[%s2 + $0x20] sm:$0xff]
    %v36 = vld [vmem:[%s2 + $0x28] sm:$0xff]
    %v37 = vld [vmem:[%s2 + $0x30] sm:$0xff]
    %v38 = vld [vmem:[%s2 + $0x38] sm:$0xff]
    %v39 = vld [vmem:[%s2 + $0x40] sm:$0xff]
    %v40 = vld [vmem:[%s2 + $0x48] sm:$0xff]
    %v41 = vld [vmem:[%s2 + $0x50] sm:$0xff]
    %v42 = vld [vmem:[%s2 + $0x58] sm:$0xff]
    %v43 = vld [vmem:[%s2 + $0x60] sm:$0xff]
    %v44 = vld [vmem:[%s2 + $0x68] sm:$0xff]
    %v45 = vld [vmem:[%s2 + $0x70] sm:$0xff]
    %v46 = vld [vmem:[%s2 + $0x78] sm:$0xff]
    %v47 = vld [vmem:[%s0] sm:$0xff]
    %v48 = vld [vmem:[%s0 + $0x8] sm:$0xff]
    %v49 = vld [vmem:[%s0 + $0x10] sm:$0xff]
    %v50 = vld [vmem:[%s0 + $0x18] sm:$0xff]
    %v51 = vld [vmem:[%s0 + $0x20] sm:$0xff]
    %v52 = vld [vmem:[%s0 + $0x28] sm:$0xff]
    %v53 = vld [vmem:[%s0 + $0x30] sm:$0xff]
    %v54 = vld [vmem:[%s0 + $0x38] sm:$0xff]
    %v55 = vld [vmem:[%s0 + $0x40] sm:$0xff]
    %v56 = vld [vmem:[%s0 + $0x48] sm:$0xff]
    %v57 = vld [vmem:[%s0 + $0x50] sm:$0xff]
    %v58 = vld [vmem:[%s0 + $0x58] sm:$0xff]
    %v59 = vld [vmem:[%s0 + $0x60] sm:$0xff]
    %v60 = vld [vmem:[%s0 + $0x68] sm:$0xff]
    %v61 = vld [vmem:[%s0 + $0x70] sm:$0xff]
    %v62 = vld [vmem:[%s0 + $0x78] sm:$0xff]
    %v63 = vld [vmem:[%s0 + $0x80] sm:$0xff]
    %v64 = vld [vmem:[%s0 + $0x88] sm:$0xff]
    %v65 = vld [vmem:[%s0 + $0x90] sm:$0xff]
    %v66 = vld [vmem:[%s0 + $0x98] sm:$0xff]
    %v67 = vld [vmem:[%s0 + $0xa0] sm:$0xff]
    %v68 = vld [vmem:[%s0 + $0xa8] sm:$0xff]
    %v69 = vld [vmem:[%s0 + $0xb0] sm:$0xff]
    %v70 = vld [vmem:[%s0 + $0xb8] sm:$0xff]
    %v71 = vld [vmem:[%s0 + $0xc0] sm:$0xff]
    %v72 = vld [vmem:[%s0 + $0xc8] sm:$0xff]
    %v73 = vld [vmem:[%s0 + $0xd0] sm:$0xff]
    %v74 = vld [vmem:[%s0 + $0xd8] sm:$0xff]
    %v75 = vld [vmem:[%s0 + $0xe0] sm:$0xff]
    %v76 = vld [vmem:[%s0 + $0xe8] sm:$0xff]
    %v77 = vld [vmem:[%s0 + $0xf0] sm:$0xff]
    %v78 = vld [vmem:[%s0 + $0xf8] sm:$0xff]
    %v79 = vld [vmem:[%s0 + $0x100] sm:$0xff]
    %v80 = vld [vmem:[%s0 + $0x108] sm:$0xff]
    %v81 = vld [vmem:[%s0 + $0x110] sm:$0xff]
    %v82 = vld [vmem:[%s0 + $0x118] sm:$0xff]
    %v83 = vld [vmem:[%s0 + $0x120] sm:$0xff]
    %v84 = vld [vmem:[%s0 + $0x128] sm:$0xff]
    %v85 = vld [vmem:[%s0 + $0x130] sm:$0xff]
    %v86 = vld [vmem:[%s0 + $0x138] sm:$0xff]
    %v87 = vld [vmem:[%s0 + $0x140] sm:$0xff]
    %v88 = vld [vmem:[%s0 + $0x148] sm:$0xff]
    %v89 = vld [vmem:[%s0 + $0x150] sm:$0xff]
    %v90 = vld [vmem:[%s0 + $0x158] sm:$0xff]
    %v91 = vld [vmem:[%s0 + $0x160] sm:$0xff]
    %v92 = vld [vmem:[%s0 + $0x168] sm:$0xff]
    %v93 = vld [vmem:[%s0 + $0x170] sm:$0xff]
    %v94 = vld [vmem:[%s0 + $0x178] sm:$0xff]
    %v95 = vld [vmem:[%s0 + $0x180] sm:$0xff]
    %v96 = vld [vmem:[%s0 + $0x188] sm:$0xff]
    %v97 = vld [vmem:[%s0 + $0x190] sm:$0xff]
    %v98 = vld [vmem:[%s0 + $0x198] sm:$0xff]
    %v99 = vld [vmem:[%s0 + $0x1a0] sm:$0xff]
    %v100 = vld [vmem:[%s0 + $0x1a8] sm:$0xff]
    %v101 = vld [vmem:[%s0 + $0x1b0] sm:$0xff]
    %v102 = vld [vmem:[%s0 + $0x1b8] sm:$0xff]
    %v103 = vld [vmem:[%s0 + $0x1c0] sm:$0xff]
    %v104 = vld [vmem:[%s0 + $0x1c8] sm:$0xff]
    %v105 = vld [vmem:[%s0 + $0x1d0] sm:$0xff]
    %v106 = vld [vmem:[%s0 + $0x1d8] sm:$0xff]
    %v107 = vld [vmem:[%s0 + $0x1e0] sm:$0xff]
    %v108 = vld [vmem:[%s0 + $0x1e8] sm:$0xff]
    %v109 = vld [vmem:[%s0 + $0x1f0] sm:$0xff]
    %v110 = vld [vmem:[%s0 + $0x1f8] sm:$0xff]
    %v111 = vld [vmem:[%s3] sm:$0xff]
    %v112 = vlaneseq
    %v113 = vshrl.u32 %v112, 7
    %v114 = vsub.s32 0, %v113
    %v115 = vrot.slane %v111, %v114
    %vm116 = vcmask 818176
    %v118 = vsel %vm116, %v47, 0
    %v121 = vsel %vm116, %v48, 0
    %v124 = vsel %vm116, %v49, 0
    %v127 = vsel %vm116, %v50, 0
    %v130 = vsel %vm116, %v51, 0
    %v133 = vsel %vm116, %v52, 0
    %v136 = vsel %vm116, %v53, 0
    %v139 = vsel %vm116, %v54, 0
    %v142 = vsel %vm116, %v55, 0
    %v145 = vsel %vm116, %v56, 0
    %v148 = vsel %vm116, %v57, 0
    %v151 = vsel %vm116, %v58, 0
    %v154 = vsel %vm116, %v59, 0
    %v157 = vsel %vm116, %v60, 0
    %v160 = vsel %vm116, %v61, 0
    %v163 = vsel %vm116, %v62, 0
    %v166 = vsel %vm116, %v63, 0
    %v169 = vsel %vm116, %v64, 0
    %v172 = vsel %vm116, %v65, 0
    %v175 = vsel %vm116, %v66, 0
    %v178 = vsel %vm116, %v67, 0
    %v181 = vsel %vm116, %v68, 0
    %v184 = vsel %vm116, %v69, 0
    %v187 = vsel %vm116, %v70, 0
    %v190 = vsel %vm116, %v71, 0
    %v193 = vsel %vm116, %v72, 0
    %v196 = vsel %vm116, %v73, 0
    %v199 = vsel %vm116, %v74, 0
    %v202 = vsel %vm116, %v75, 0
    %v205 = vsel %vm116, %v76, 0
    %v208 = vsel %vm116, %v77, 0
    %v211 = vsel %vm116, %v78, 0
    %v214 = vsel %vm116, %v79, 0
    %v217 = vsel %vm116, %v80, 0
    %v220 = vsel %vm116, %v81, 0
    %v223 = vsel %vm116, %v82, 0
    %v226 = vsel %vm116, %v83, 0
    %v229 = vsel %vm116, %v84, 0
    %v232 = vsel %vm116, %v85, 0
    %v235 = vsel %vm116, %v86, 0
    %v238 = vsel %vm116, %v87, 0
    %v241 = vsel %vm116, %v88, 0
    %v244 = vsel %vm116, %v89, 0
    %v247 = vsel %vm116, %v90, 0
    %v250 = vsel %vm116, %v91, 0
    %v253 = vsel %vm116, %v92, 0
    %v256 = vsel %vm116, %v93, 0
    %v259 = vsel %vm116, %v94, 0
    %v262 = vsel %vm116, %v95, 0
    %v265 = vsel %vm116, %v96, 0
    %v268 = vsel %vm116, %v97, 0
    %v271 = vsel %vm116, %v98, 0
    %v274 = vsel %vm116, %v99, 0
    %v277 = vsel %vm116, %v100, 0
    %v280 = vsel %vm116, %v101, 0
    %v283 = vsel %vm116, %v102, 0
    %v286 = vsel %vm116, %v103, 0
    %v289 = vsel %vm116, %v104, 0
    %v292 = vsel %vm116, %v105, 0
    %v295 = vsel %vm116, %v106, 0
    %v298 = vsel %vm116, %v107, 0
    %v301 = vsel %vm116, %v108, 0
    %v304 = vsel %vm116, %v109, 0
    %v307 = vsel %vm116, %v110, 0
    %vm309 = vcmask 1043456
    %v311 = vsel %vm309, %v30, 0
    %313 = vmatprep.subr.mxu0 0.0
    %314 = vmatpush1.msra.mxu0 %v18
    %315 = vmatprep.subr.mxu0 0.0
    %316 = vmatpush1.msra.mxu0 %v19
    %317 = vmatprep.subr.mxu0 0.0
    %318 = vmatpush1.msra.mxu0 %v20
    %319 = vmatprep.subr.mxu0 0.0
    %320 = vmatpush1.msra.mxu0 %v21
    %321 = vmatprep.subr.mxu0 0.0
    %322 = vmatpush1.msra.mxu0 %v22
    %323 = vmatprep.subr.mxu0 0.0
    %324 = vmatpush1.msra.mxu0 %v23
    %325 = vmatprep.subr.mxu0 0.0
    %326 = vmatpush1.msra.mxu0 %v24
    %327 = vmatprep.subr.mxu0 0.0
    %328 = vmatpush1.msra.mxu0 %v25
    %329 = vmatprep.subr.mxu0 0.0
    %330 = vmatpush1.msra.mxu0 %v26
    %331 = vmatprep.subr.mxu0 0.0
    %332 = vmatpush1.msra.mxu0 %v27
    %333 = vmatprep.subr.mxu0 0.0
    %334 = vmatpush1.msra.mxu0 %v28
    %335 = vmatprep.subr.mxu0 0.0
    %336 = vmatpush1.msra.mxu0 %v29
    %337 = vmatprep.subr.mxu0 0.0
    %338 = vmatpush1.msra.mxu0 %v311
    %339 = vmatprep.subr.mxu0 0.0
    %340 = vmatpush1.msra.mxu0 0.0
    %341 = vmatprep.subr.mxu0 0.0
    %342 = vmatpush1.msra.mxu0 0.0
    %343 = vmatprep.subr.mxu0 0.0
    %344 = vmatpush1.msra.mxu0 0.0
    %345 = vmatprep.subr.mxu0 0.0
    %346 = vmatpush1.msra.mxu0 0.0
    %347 = vmatprep.subr.mxu0 0.0
    %348 = vmatpush1.msra.mxu0 0.0
    %349 = vmatprep.subr.mxu0 0.0
    %350 = vmatpush1.msra.mxu0 0.0
    %351 = vmatprep.subr.mxu0 0.0
    %352 = vmatpush1.msra.mxu0 0.0
    %353 = vmatprep.subr.mxu0 0.0
    %354 = vmatpush1.msra.mxu0 0.0
    %355 = vmatprep.subr.mxu0 0.0
    %356 = vmatpush1.msra.mxu0 0.0
    %357 = vmatprep.subr.mxu0 0.0
    %358 = vmatpush1.msra.mxu0 0.0
    %359 = vmatprep.subr.mxu0 0.0
    %360 = vmatpush1.msra.mxu0 0.0
    %361 = vmatprep.subr.mxu0 0.0
    %362 = vmatpush1.msra.mxu0 0.0
    %363 = vmatprep.subr.mxu0 0.0
    %364 = vmatpush1.msra.mxu0 0.0
    %365 = vmatprep.subr.mxu0 0.0
    %366 = vmatpush1.msra.mxu0 0.0
    %367 = vmatprep.subr.mxu0 0.0
    %368 = vmatpush1.msra.mxu0 0.0
    %369 = vmatprep.subr.mxu0 0.0
    %370 = vmatpush1.msra.mxu0 0.0
    %371 = vmatprep.subr.mxu0 0.0
    %372 = vmatpush1.msra.mxu0 0.0
    %373 = vmatprep.subr.mxu0 0.0
    %374 = vmatpush1.msra.mxu0 0.0
    %375 = vmatprep.subr.mxu0 0.0
    %376 = vmatpush1.msra.mxu0 0.0
    %377 = vmatprep.mubr.f32.mxu0 0.0
    %378 = vmatmul.mubr.f32.gmra.mrb[0].mxu0 %v118
    %v379 = vpop.f32.mrb[0].mxu0
    %v380 = vadd.f32 %v115, %v379
    %v381 = vpop.f32.mrb[0].mxu0
    %382 = vmatprep.mubr.f32.mxu0 0.0
    %383 = vmatmul.mubr.f32.gmra.mrb[0].mxu0 %v121
    %v384 = vpop.f32.mrb[0].mxu0
    %v385 = vadd.f32 %v115, %v384
    %v386 = vpop.f32.mrb[0].mxu0
    %387 = vmatprep.mubr.f32.mxu0 0.0
    %388 = vmatmul.mubr.f32.gmra.mrb[0].mxu0 %v124
    %v389 = vpop.f32.mrb[0].mxu0
    %v390 = vadd.f32 %v115, %v389
    %v391 = vpop.f32.mrb[0].mxu0
    %392 = vmatprep.mubr.f32.mxu0 0.0
    %393 = vmatmul.mubr.f32.gmra.mrb[0].mxu0 %v127
    %v394 = vpop.f32.mrb[0].mxu0
    %v395 = vadd.f32 %v115, %v394
    %v396 = vpop.f32.mrb[0].mxu0
    %397 = vmatprep.mubr.f32.mxu0 0.0
    %398 = vmatmul.mubr.f32.gmra.mrb[0].mxu0 %v130
    %v399 = vpop.f32.mrb[0].mxu0
    %v400 = vadd.f32 %v115, %v399
    %v401 = vpop.f32.mrb[0].mxu0
    %402 = vmatprep.mubr.f32.mxu0 0.0
    %403 = vmatmul.mubr.f32.gmra.mrb[0].mxu0 %v133
    %v404 = vpop.f32.mrb[0].mxu0
    %v405 = vadd.f32 %v115, %v404
    %v406 = vpop.f32.mrb[0].mxu0
    %407 = vmatprep.mubr.f32.mxu0 0.0
    %408 = vmatmul.mubr.f32.gmra.mrb[0].mxu0 %v136
    %v409 = vpop.f32.mrb[0].mxu0
    %v410 = vadd.f32 %v115, %v409
    %v411 = vpop.f32.mrb[0].mxu0
    %412 = vmatprep.mubr.f32.mxu0 0.0
    %413 = vmatmul.mubr.f32.gmra.mrb[0].mxu0 %v139
    %v414 = vpop.f32.mrb[0].mxu0
    %v415 = vadd.f32 %v115, %v414
    %v416 = vpop.f32.mrb[0].mxu0
    %417 = vmatprep.mubr.f32.mxu0 0.0
    %418 = vmatmul.mubr.f32.gmra.mrb[0].mxu0 %v142
    %v419 = vpop.f32.mrb[0].mxu0
    %v420 = vadd.f32 %v115, %v419
    %v421 = vpop.f32.mrb[0].mxu0
    %422 = vmatprep.mubr.f32.mxu0 0.0
    %423 = vmatmul.mubr.f32.gmra.mrb[0].mxu0 %v145
    %v424 = vpop.f32.mrb[0].mxu0
    %v425 = vadd.f32 %v115, %v424
    %v426 = vpop.f32.mrb[0].mxu0
    %427 = vmatprep.mubr.f32.mxu0 0.0
    %428 = vmatmul.mubr.f32.gmra.mrb[0].mxu0 %v148
    %v429 = vpop.f32.mrb[0].mxu0
    %v430 = vadd.f32 %v115, %v429
    %v431 = vpop.f32.mrb[0].mxu0
    %432 = vmatprep.mubr.f32.mxu0 0.0
    %433 = vmatmul.mubr.f32.gmra.mrb[0].mxu0 %v151
    %v434 = vpop.f32.mrb[0].mxu0
    %v435 = vadd.f32 %v115, %v434
    %v436 = vpop.f32.mrb[0].mxu0
    %437 = vmatprep.mubr.f32.mxu0 0.0
    %438 = vmatmul.mubr.f32.gmra.mrb[0].mxu0 %v154
    %v439 = vpop.f32.mrb[0].mxu0
    %v440 = vadd.f32 %v115, %v439
    %v441 = vpop.f32.mrb[0].mxu0
    %442 = vmatprep.mubr.f32.mxu0 0.0
    %443 = vmatmul.mubr.f32.gmra.mrb[0].mxu0 %v157
    %v444 = vpop.f32.mrb[0].mxu0
    %v445 = vadd.f32 %v115, %v444
    %v446 = vpop.f32.mrb[0].mxu0
    %447 = vmatprep.mubr.f32.mxu0 0.0
    %448 = vmatmul.mubr.f32.gmra.mrb[0].mxu0 %v160
    %v449 = vpop.f32.mrb[0].mxu0
    %v450 = vadd.f32 %v115, %v449
    %v451 = vpop.f32.mrb[0].mxu0
    %452 = vmatprep.mubr.f32.mxu0 0.0
    %453 = vmatmul.mubr.f32.gmra.mrb[0].mxu0 %v163
    %v454 = vpop.f32.mrb[0].mxu0
    %v455 = vadd.f32 %v115, %v454
    %v456 = vpop.f32.mrb[0].mxu0
    %457 = vmatprep.mubr.f32.mxu0 0.0
    %458 = vmatmul.mubr.f32.gmra.mrb[0].mxu0 %v166
    %v459 = vpop.f32.mrb[0].mxu0
    %v460 = vadd.f32 %v115, %v459
    %v461 = vpop.f32.mrb[0].mxu0
    %462 = vmatprep.mubr.f32.mxu0 0.0
    %463 = vmatmul.mubr.f32.gmra.mrb[0].mxu0 %v169
    %v464 = vpop.f32.mrb[0].mxu0
    %v465 = vadd.f32 %v115, %v464
    %v466 = vpop.f32.mrb[0].mxu0
    %467 = vmatprep.mubr.f32.mxu0 0.0
    %468 = vmatmul.mubr.f32.gmra.mrb[0].mxu0 %v172
    %v469 = vpop.f32.mrb[0].mxu0
    %v470 = vadd.f32 %v115, %v469
    %v471 = vpop.f32.mrb[0].mxu0
    %472 = vmatprep.mubr.f32.mxu0 0.0
    %473 = vmatmul.mubr.f32.gmra.mrb[0].mxu0 %v175
    %v474 = vpop.f32.mrb[0].mxu0
    %v475 = vadd.f32 %v115, %v474
    %v476 = vpop.f32.mrb[0].mxu0
    %477 = vmatprep.mubr.f32.mxu0 0.0
    %478 = vmatmul.mubr.f32.gmra.mrb[0].mxu0 %v178
    %v479 = vpop.f32.mrb[0].mxu0
    %v480 = vadd.f32 %v115, %v479
    %v481 = vpop.f32.mrb[0].mxu0
    %482 = vmatprep.mubr.f32.mxu0 0.0
    %483 = vmatmul.mubr.f32.gmra.mrb[0].mxu0 %v181
    %v484 = vpop.f32.mrb[0].mxu0
    %v485 = vadd.f32 %v115, %v484
    %v486 = vpop.f32.mrb[0].mxu0
    %487 = vmatprep.mubr.f32.mxu0 0.0
    %488 = vmatmul.mubr.f32.gmra.mrb[0].mxu0 %v184
    %v489 = vpop.f32.mrb[0].mxu0
    %v490 = vadd.f32 %v115, %v489
    %v491 = vpop.f32.mrb[0].mxu0
    %492 = vmatprep.mubr.f32.mxu0 0.0
    %493 = vmatmul.mubr.f32.gmra.mrb[0].mxu0 %v187
    %v494 = vpop.f32.mrb[0].mxu0
    %v495 = vadd.f32 %v115, %v494
    %v496 = vpop.f32.mrb[0].mxu0
    %497 = vmatprep.mubr.f32.mxu0 0.0
    %498 = vmatmul.mubr.f32.gmra.mrb[0].mxu0 %v190
    %v499 = vpop.f32.mrb[0].mxu0
    %v500 = vadd.f32 %v115, %v499
    %v501 = vpop.f32.mrb[0].mxu0
    %502 = vmatprep.mubr.f32.mxu0 0.0
    %503 = vmatmul.mubr.f32.gmra.mrb[0].mxu0 %v193
    %v504 = vpop.f32.mrb[0].mxu0
    %v505 = vadd.f32 %v115, %v504
    %v506 = vpop.f32.mrb[0].mxu0
    %507 = vmatprep.mubr.f32.mxu0 0.0
    %508 = vmatmul.mubr.f32.gmra.mrb[0].mxu0 %v196
    %v509 = vpop.f32.mrb[0].mxu0
    %v510 = vadd.f32 %v115, %v509
    %v511 = vpop.f32.mrb[0].mxu0
    %512 = vmatprep.mubr.f32.mxu0 0.0
    %513 = vmatmul.mubr.f32.gmra.mrb[0].mxu0 %v199
    %v514 = vpop.f32.mrb[0].mxu0
    %v515 = vadd.f32 %v115, %v514
    %v516 = vpop.f32.mrb[0].mxu0
    %517 = vmatprep.mubr.f32.mxu0 0.0
    %518 = vmatmul.mubr.f32.gmra.mrb[0].mxu0 %v202
    %v519 = vpop.f32.mrb[0].mxu0
    %v520 = vadd.f32 %v115, %v519
    %v521 = vpop.f32.mrb[0].mxu0
    %522 = vmatprep.mubr.f32.mxu0 0.0
    %523 = vmatmul.mubr.f32.gmra.mrb[0].mxu0 %v205
    %v524 = vpop.f32.mrb[0].mxu0
    %v525 = vadd.f32 %v115, %v524
    %v526 = vpop.f32.mrb[0].mxu0
    %527 = vmatprep.mubr.f32.mxu0 0.0
    %528 = vmatmul.mubr.f32.gmra.mrb[0].mxu0 %v208
    %v529 = vpop.f32.mrb[0].mxu0
    %v530 = vadd.f32 %v115, %v529
    %v531 = vpop.f32.mrb[0].mxu0
    %532 = vmatprep.mubr.f32.mxu0 0.0
    %533 = vmatmul.mubr.f32.gmra.mrb[0].mxu0 %v211
    %v534 = vpop.f32.mrb[0].mxu0
    %v535 = vadd.f32 %v115, %v534
    %v536 = vpop.f32.mrb[0].mxu0
    %537 = vmatprep.mubr.f32.mxu0 0.0
    %538 = vmatmul.mubr.f32.gmra.mrb[0].mxu0 %v214
    %v539 = vpop.f32.mrb[0].mxu0
    %v540 = vadd.f32 %v115, %v539
    %v541 = vpop.f32.mrb[0].mxu0
    %542 = vmatprep.mubr.f32.mxu0 0.0
    %543 = vmatmul.mubr.f32.gmra.mrb[0].mxu0 %v217
    %v544 = vpop.f32.mrb[0].mxu0
    %v545 = vadd.f32 %v115, %v544
    %v546 = vpop.f32.mrb[0].mxu0
    %547 = vmatprep.mubr.f32.mxu0 0.0
    %548 = vmatmul.mubr.f32.gmra.mrb[0].mxu0 %v220
    %v549 = vpop.f32.mrb[0].mxu0
    %v550 = vadd.f32 %v115, %v549
    %v551 = vpop.f32.mrb[0].mxu0
    %552 = vmatprep.mubr.f32.mxu0 0.0
    %553 = vmatmul.mubr.f32.gmra.mrb[0].mxu0 %v223
    %v554 = vpop.f32.mrb[0].mxu0
    %v555 = vadd.f32 %v115, %v554
    %v556 = vpop.f32.mrb[0].mxu0
    %557 = vmatprep.mubr.f32.mxu0 0.0
    %558 = vmatmul.mubr.f32.gmra.mrb[0].mxu0 %v226
    %v559 = vpop.f32.mrb[0].mxu0
    %v560 = vadd.f32 %v115, %v559
    %v561 = vpop.f32.mrb[0].mxu0
    %562 = vmatprep.mubr.f32.mxu0 0.0
    %563 = vmatmul.mubr.f32.gmra.mrb[0].mxu0 %v229
    %v564 = vpop.f32.mrb[0].mxu0
    %v565 = vadd.f32 %v115, %v564
    %v566 = vpop.f32.mrb[0].mxu0
    %567 = vmatprep.mubr.f32.mxu0 0.0
    %568 = vmatmul.mubr.f32.gmra.mrb[0].mxu0 %v232
    %v569 = vpop.f32.mrb[0].mxu0
    %v570 = vadd.f32 %v115, %v569
    %v571 = vpop.f32.mrb[0].mxu0
    %572 = vmatprep.mubr.f32.mxu0 0.0
    %573 = vmatmul.mubr.f32.gmra.mrb[0].mxu0 %v235
    %v574 = vpop.f32.mrb[0].mxu0
    %v575 = vadd.f32 %v115, %v574
    %v576 = vpop.f32.mrb[0].mxu0
    %577 = vmatprep.mubr.f32.mxu0 0.0
    %578 = vmatmul.mubr.f32.gmra.mrb[0].mxu0 %v238
    %v579 = vpop.f32.mrb[0].mxu0
    %v580 = vadd.f32 %v115, %v579
    %v581 = vpop.f32.mrb[0].mxu0
    %582 = vmatprep.mubr.f32.mxu0 0.0
    %583 = vmatmul.mubr.f32.gmra.mrb[0].mxu0 %v241
    %v584 = vpop.f32.mrb[0].mxu0
    %v585 = vadd.f32 %v115, %v584
    %v586 = vpop.f32.mrb[0].mxu0
    %587 = vmatprep.mubr.f32.mxu0 0.0
    %588 = vmatmul.mubr.f32.gmra.mrb[0].mxu0 %v244
    %v589 = vpop.f32.mrb[0].mxu0
    %v590 = vadd.f32 %v115, %v589
    %v591 = vpop.f32.mrb[0].mxu0
    %592 = vmatprep.mubr.f32.mxu0 0.0
    %593 = vmatmul.mubr.f32.gmra.mrb[0].mxu0 %v247
    %v594 = vpop.f32.mrb[0].mxu0
    %v595 = vadd.f32 %v115, %v594
    %v596 = vpop.f32.mrb[0].mxu0
    %597 = vmatprep.mubr.f32.mxu0 0.0
    %598 = vmatmul.mubr.f32.gmra.mrb[0].mxu0 %v250
    %v599 = vpop.f32.mrb[0].mxu0
    %v600 = vadd.f32 %v115, %v599
    %v601 = vpop.f32.mrb[0].mxu0
    %602 = vmatprep.mubr.f32.mxu0 0.0
    %603 = vmatmul.mubr.f32.gmra.mrb[0].mxu0 %v253
    %v604 = vpop.f32.mrb[0].mxu0
    %v605 = vadd.f32 %v115, %v604
    %v606 = vpop.f32.mrb[0].mxu0
    %607 = vmatprep.mubr.f32.mxu0 0.0
    %608 = vmatmul.mubr.f32.gmra.mrb[0].mxu0 %v256
    %v609 = vpop.f32.mrb[0].mxu0
    %v610 = vadd.f32 %v115, %v609
    %v611 = vpop.f32.mrb[0].mxu0
    %612 = vmatprep.mubr.f32.mxu0 0.0
    %613 = vmatmul.mubr.f32.gmra.mrb[0].mxu0 %v259
    %v614 = vpop.f32.mrb[0].mxu0
    %v615 = vadd.f32 %v115, %v614
    %v616 = vpop.f32.mrb[0].mxu0
    %617 = vmatprep.mubr.f32.mxu0 0.0
    %618 = vmatmul.mubr.f32.gmra.mrb[0].mxu0 %v262
    %v619 = vpop.f32.mrb[0].mxu0
    %v620 = vadd.f32 %v115, %v619
    %v621 = vpop.f32.mrb[0].mxu0
    %622 = vmatprep.mubr.f32.mxu0 0.0
    %623 = vmatmul.mubr.f32.gmra.mrb[0].mxu0 %v265
    %v624 = vpop.f32.mrb[0].mxu0
    %v625 = vadd.f32 %v115, %v624
    %v626 = vpop.f32.mrb[0].mxu0
    %627 = vmatprep.mubr.f32.mxu0 0.0
    %628 = vmatmul.mubr.f32.gmra.mrb[0].mxu0 %v268
    %v629 = vpop.f32.mrb[0].mxu0
    %v630 = vadd.f32 %v115, %v629
    %v631 = vpop.f32.mrb[0].mxu0
    %632 = vmatprep.mubr.f32.mxu0 0.0
    %633 = vmatmul.mubr.f32.gmra.mrb[0].mxu0 %v271
    %v634 = vpop.f32.mrb[0].mxu0
    %v635 = vadd.f32 %v115, %v634
    %v636 = vpop.f32.mrb[0].mxu0
    %637 = vmatprep.mubr.f32.mxu0 0.0
    %638 = vmatmul.mubr.f32.gmra.mrb[0].mxu0 %v274
    %v639 = vpop.f32.mrb[0].mxu0
    %v640 = vadd.f32 %v115, %v639
    %v641 = vpop.f32.mrb[0].mxu0
    %642 = vmatprep.mubr.f32.mxu0 0.0
    %643 = vmatmul.mubr.f32.gmra.mrb[0].mxu0 %v277
    %v644 = vpop.f32.mrb[0].mxu0
    %v645 = vadd.f32 %v115, %v644
    %v646 = vpop.f32.mrb[0].mxu0
    %647 = vmatprep.mubr.f32.mxu0 0.0
    %648 = vmatmul.mubr.f32.gmra.mrb[0].mxu0 %v280
    %v649 = vpop.f32.mrb[0].mxu0
    %v650 = vadd.f32 %v115, %v649
    %v651 = vpop.f32.mrb[0].mxu0
    %652 = vmatprep.mubr.f32.mxu0 0.0
    %653 = vmatmul.mubr.f32.gmra.mrb[0].mxu0 %v283
    %v654 = vpop.f32.mrb[0].mxu0
    %v655 = vadd.f32 %v115, %v654
    %v656 = vpop.f32.mrb[0].mxu0
    %657 = vmatprep.mubr.f32.mxu0 0.0
    %658 = vmatmul.mubr.f32.gmra.mrb[0].mxu0 %v286
    %v659 = vpop.f32.mrb[0].mxu0
    %v660 = vadd.f32 %v115, %v659
    %v661 = vpop.f32.mrb[0].mxu0
    %662 = vmatprep.mubr.f32.mxu0 0.0
    %663 = vmatmul.mubr.f32.gmra.mrb[0].mxu0 %v289
    %v664 = vpop.f32.mrb[0].mxu0
    %v665 = vadd.f32 %v115, %v664
    %v666 = vpop.f32.mrb[0].mxu0
    %667 = vmatprep.mubr.f32.mxu0 0.0
    %668 = vmatmul.mubr.f32.gmra.mrb[0].mxu0 %v292
    %v669 = vpop.f32.mrb[0].mxu0
    %v670 = vadd.f32 %v115, %v669
    %v671 = vpop.f32.mrb[0].mxu0
    %672 = vmatprep.mubr.f32.mxu0 0.0
    %673 = vmatmul.mubr.f32.gmra.mrb[0].mxu0 %v295
    %v674 = vpop.f32.mrb[0].mxu0
    %v675 = vadd.f32 %v115, %v674
    %v676 = vpop.f32.mrb[0].mxu0
    %677 = vmatprep.mubr.f32.mxu0 0.0
    %678 = vmatmul.mubr.f32.gmra.mrb[0].mxu0 %v298
    %v679 = vpop.f32.mrb[0].mxu0
    %v680 = vadd.f32 %v115, %v679
    %v681 = vpop.f32.mrb[0].mxu0
    %682 = vmatprep.mubr.f32.mxu0 0.0
    %683 = vmatmul.mubr.f32.gmra.mrb[0].mxu0 %v301
    %v684 = vpop.f32.mrb[0].mxu0
    %v685 = vadd.f32 %v115, %v684
    %v686 = vpop.f32.mrb[0].mxu0
    %687 = vmatprep.mubr.f32.mxu0 0.0
    %688 = vmatmul.mubr.f32.gmra.mrb[0].mxu0 %v304
    %v689 = vpop.f32.mrb[0].mxu0
    %v690 = vadd.f32 %v115, %v689
    %v691 = vpop.f32.mrb[0].mxu0
    %692 = vmatprep.mubr.f32.mxu0 0.0
    %693 = vmatmul.mubr.f32.gmra.mrb[0].mxu0 %v307
    %v694 = vpop.f32.mrb[0].mxu0
    %v695 = vadd.f32 %v115, %v694
    %v696 = vpop.f32.mrb[0].mxu0
    %697 = vdwg.mxu0
    %v698 = vmax.f32 %v380, 0.0
    %v699 = vmax.f32 %v385, 0.0
    %v700 = vmax.f32 %v390, 0.0
    %v701 = vmax.f32 %v395, 0.0
    %v702 = vmax.f32 %v400, 0.0
    %v703 = vmax.f32 %v405, 0.0
    %v704 = vmax.f32 %v410, 0.0
    %v705 = vmax.f32 %v415, 0.0
    %v706 = vmax.f32 %v420, 0.0
    %v707 = vmax.f32 %v425, 0.0
    %v708 = vmax.f32 %v430, 0.0
    %v709 = vmax.f32 %v435, 0.0
    %v710 = vmax.f32 %v440, 0.0
    %v711 = vmax.f32 %v445, 0.0
    %v712 = vmax.f32 %v450, 0.0
    %v713 = vmax.f32 %v455, 0.0
    %v714 = vmax.f32 %v460, 0.0
    %v715 = vmax.f32 %v465, 0.0
    %v716 = vmax.f32 %v470, 0.0
    %v717 = vmax.f32 %v475, 0.0
    %v718 = vmax.f32 %v480, 0.0
    %v719 = vmax.f32 %v485, 0.0
    %v720 = vmax.f32 %v490, 0.0
    %v721 = vmax.f32 %v495, 0.0
    %v722 = vmax.f32 %v500, 0.0
    %v723 = vmax.f32 %v505, 0.0
    %v724 = vmax.f32 %v510, 0.0
    %v725 = vmax.f32 %v515, 0.0
    %v726 = vmax.f32 %v520, 0.0
    %v727 = vmax.f32 %v525, 0.0
    %v728 = vmax.f32 %v530, 0.0
    %v729 = vmax.f32 %v535, 0.0
    %v730 = vmax.f32 %v540, 0.0
    %v731 = vmax.f32 %v545, 0.0
    %v732 = vmax.f32 %v550, 0.0
    %v733 = vmax.f32 %v555, 0.0
    %v734 = vmax.f32 %v560, 0.0
    %v735 = vmax.f32 %v565, 0.0
    %v736 = vmax.f32 %v570, 0.0
    %v737 = vmax.f32 %v575, 0.0
    %v738 = vmax.f32 %v580, 0.0
    %v739 = vmax.f32 %v585, 0.0
    %v740 = vmax.f32 %v590, 0.0
    %v741 = vmax.f32 %v595, 0.0
    %v742 = vmax.f32 %v600, 0.0
    %v743 = vmax.f32 %v605, 0.0
    %v744 = vmax.f32 %v610, 0.0
    %v745 = vmax.f32 %v615, 0.0
    %v746 = vmax.f32 %v620, 0.0
    %v747 = vmax.f32 %v625, 0.0
    %v748 = vmax.f32 %v630, 0.0
    %v749 = vmax.f32 %v635, 0.0
    %v750 = vmax.f32 %v640, 0.0
    %v751 = vmax.f32 %v645, 0.0
    %v752 = vmax.f32 %v650, 0.0
    %v753 = vmax.f32 %v655, 0.0
    %v754 = vmax.f32 %v660, 0.0
    %v755 = vmax.f32 %v665, 0.0
    %v756 = vmax.f32 %v670, 0.0
    %v757 = vmax.f32 %v675, 0.0
    %v758 = vmax.f32 %v680, 0.0
    %v759 = vmax.f32 %v685, 0.0
    %v760 = vmax.f32 %v690, 0.0
    %v761 = vmax.f32 %v695, 0.0
    %v762 = vlaneseq
    %v763 = vshrl.u32 %v762, 7
    %v764 = vsub.s32 1, %v763
    %v765 = vrot.slane %v111, %v764
    %766 = vmatprep.subr.mxu0 0.0
    %767 = vmatpush1.msra.mxu0 %v31
    %768 = vmatprep.subr.mxu0 0.0
    %769 = vmatpush1.msra.mxu0 %v32
    %770 = vmatprep.subr.mxu0 0.0
    %771 = vmatpush1.msra.mxu0 %v33
    %772 = vmatprep.subr.mxu0 0.0
    %773 = vmatpush1.msra.mxu0 %v34
    %774 = vmatprep.subr.mxu0 0.0
    %775 = vmatpush1.msra.mxu0 %v35
    %776 = vmatprep.subr.mxu0 0.0
    %777 = vmatpush1.msra.mxu0 %v36
    %778 = vmatprep.subr.mxu0 0.0
    %779 = vmatpush1.msra.mxu0 %v37
    %780 = vmatprep.subr.mxu0 0.0
    %781 = vmatpush1.msra.mxu0 %v38
    %782 = vmatprep.subr.mxu0 0.0
    %783 = vmatpush1.msra.mxu0 %v39
    %784 = vmatprep.subr.mxu0 0.0
    %785 = vmatpush1.msra.mxu0 %v40
    %786 = vmatprep.subr.mxu0 0.0
    %787 = vmatpush1.msra.mxu0 %v41
    %788 = vmatprep.subr.mxu0 0.0
    %789 = vmatpush1.msra.mxu0 %v42
    %790 = vmatprep.subr.mxu0 0.0
    %791 = vmatpush1.msra.mxu0 %v43
    %792 = vmatprep.subr.mxu0 0.0
    %793 = vmatpush1.msra.mxu0 %v44
    %794 = vmatprep.subr.mxu0 0.0
    %795 = vmatpush1.msra.mxu0 %v45
    %796 = vmatprep.subr.mxu0 0.0
    %797 = vmatpush1.msra.mxu0 %v46
    %798 = vmatprep.subr.mxu0 0.0
    %799 = vmatpush1.msra.mxu0 0.0
    %800 = vmatprep.subr.mxu0 0.0
    %801 = vmatpush1.msra.mxu0 0.0
    %802 = vmatprep.subr.mxu0 0.0
    %803 = vmatpush1.msra.mxu0 0.0
    %804 = vmatprep.subr.mxu0 0.0
    %805 = vmatpush1.msra.mxu0 0.0
    %806 = vmatprep.subr.mxu0 0.0
    %807 = vmatpush1.msra.mxu0 0.0
    %808 = vmatprep.subr.mxu0 0.0
    %809 = vmatpush1.msra.mxu0 0.0
    %810 = vmatprep.subr.mxu0 0.0
    %811 = vmatpush1.msra.mxu0 0.0
    %812 = vmatprep.subr.mxu0 0.0
    %813 = vmatpush1.msra.mxu0 0.0
    %814 = vmatprep.subr.mxu0 0.0
    %815 = vmatpush1.msra.mxu0 0.0
    %816 = vmatprep.subr.mxu0 0.0
    %817 = vmatpush1.msra.mxu0 0.0
    %818 = vmatprep.subr.mxu0 0.0
    %819 = vmatpush1.msra.mxu0 0.0
    %820 = vmatprep.subr.mxu0 0.0
    %821 = vmatpush1.msra.mxu0 0.0
    %822 = vmatprep.subr.mxu0 0.0
    %823 = vmatpush1.msra.mxu0 0.0
    %824 = vmatprep.subr.mxu0 0.0
    %825 = vmatpush1.msra.mxu0 0.0
    %826 = vmatprep.subr.mxu0 0.0
    %827 = vmatpush1.msra.mxu0 0.0
    %828 = vmatprep.subr.mxu0 0.0
    %829 = vmatpush1.msra.mxu0 0.0
    %830 = vmatprep.mubr.f32.mxu0 0.0
    %831 = vmatmul.mubr.f32.gmra.mrb[0].mxu0 %v698
    %v832 = vpop.f32.mrb[0].mxu0
    %v833 = vadd.f32 %v765, %v832
    %v834 = vpop.f32.mrb[0].mxu0
    %835 = vmatprep.mubr.f32.mxu0 0.0
    %836 = vmatmul.mubr.f32.gmra.mrb[0].mxu0 %v699
    %v837 = vpop.f32.mrb[0].mxu0
    %v838 = vadd.f32 %v765, %v837
    %v839 = vpop.f32.mrb[0].mxu0
    %840 = vmatprep.mubr.f32.mxu0 0.0
    %841 = vmatmul.mubr.f32.gmra.mrb[0].mxu0 %v700
    %v842 = vpop.f32.mrb[0].mxu0
    %v843 = vadd.f32 %v765, %v842
    %v844 = vpop.f32.mrb[0].mxu0
    %845 = vmatprep.mubr.f32.mxu0 0.0
    %846 = vmatmul.mubr.f32.gmra.mrb[0].mxu0 %v701
    %v847 = vpop.f32.mrb[0].mxu0
    %v848 = vadd.f32 %v765, %v847
    %v849 = vpop.f32.mrb[0].mxu0
    %850 = vmatprep.mubr.f32.mxu0 0.0
    %851 = vmatmul.mubr.f32.gmra.mrb[0].mxu0 %v702
    %v852 = vpop.f32.mrb[0].mxu0
    %v853 = vadd.f32 %v765, %v852
    %v854 = vpop.f32.mrb[0].mxu0
    %855 = vmatprep.mubr.f32.mxu0 0.0
    %856 = vmatmul.mubr.f32.gmra.mrb[0].mxu0 %v703
    %v857 = vpop.f32.mrb[0].mxu0
    %v858 = vadd.f32 %v765, %v857
    %v859 = vpop.f32.mrb[0].mxu0
    %860 = vmatprep.mubr.f32.mxu0 0.0
    %861 = vmatmul.mubr.f32.gmra.mrb[0].mxu0 %v704
    %v862 = vpop.f32.mrb[0].mxu0
    %v863 = vadd.f32 %v765, %v862
    %v864 = vpop.f32.mrb[0].mxu0
    %865 = vmatprep.mubr.f32.mxu0 0.0
    %866 = vmatmul.mubr.f32.gmra.mrb[0].mxu0 %v705
    %v867 = vpop.f32.mrb[0].mxu0
    %v868 = vadd.f32 %v765, %v867
    %v869 = vpop.f32.mrb[0].mxu0
    %870 = vmatprep.mubr.f32.mxu0 0.0
    %871 = vmatmul.mubr.f32.gmra.mrb[0].mxu0 %v706
    %v872 = vpop.f32.mrb[0].mxu0
    %v873 = vadd.f32 %v765, %v872
    %v874 = vpop.f32.mrb[0].mxu0
    %875 = vmatprep.mubr.f32.mxu0 0.0
    %876 = vmatmul.mubr.f32.gmra.mrb[0].mxu0 %v707
    %v877 = vpop.f32.mrb[0].mxu0
    %v878 = vadd.f32 %v765, %v877
    %v879 = vpop.f32.mrb[0].mxu0
    %880 = vmatprep.mubr.f32.mxu0 0.0
    %881 = vmatmul.mubr.f32.gmra.mrb[0].mxu0 %v708
    %v882 = vpop.f32.mrb[0].mxu0
    %v883 = vadd.f32 %v765, %v882
    %v884 = vpop.f32.mrb[0].mxu0
    %885 = vmatprep.mubr.f32.mxu0 0.0
    %886 = vmatmul.mubr.f32.gmra.mrb[0].mxu0 %v709
    %v887 = vpop.f32.mrb[0].mxu0
    %v888 = vadd.f32 %v765, %v887
    %v889 = vpop.f32.mrb[0].mxu0
    %890 = vmatprep.mubr.f32.mxu0 0.0
    %891 = vmatmul.mubr.f32.gmra.mrb[0].mxu0 %v710
    %v892 = vpop.f32.mrb[0].mxu0
    %v893 = vadd.f32 %v765, %v892
    %v894 = vpop.f32.mrb[0].mxu0
    %895 = vmatprep.mubr.f32.mxu0 0.0
    %896 = vmatmul.mubr.f32.gmra.mrb[0].mxu0 %v711
    %v897 = vpop.f32.mrb[0].mxu0
    %v898 = vadd.f32 %v765, %v897
    %v899 = vpop.f32.mrb[0].mxu0
    %900 = vmatprep.mubr.f32.mxu0 0.0
    %901 = vmatmul.mubr.f32.gmra.mrb[0].mxu0 %v712
    %v902 = vpop.f32.mrb[0].mxu0
    %v903 = vadd.f32 %v765, %v902
    %v904 = vpop.f32.mrb[0].mxu0
    %905 = vmatprep.mubr.f32.mxu0 0.0
    %906 = vmatmul.mubr.f32.gmra.mrb[0].mxu0 %v713
    %v907 = vpop.f32.mrb[0].mxu0
    %v908 = vadd.f32 %v765, %v907
    %v909 = vpop.f32.mrb[0].mxu0
    %910 = vmatprep.mubr.f32.mxu0 0.0
    %911 = vmatmul.mubr.f32.gmra.mrb[0].mxu0 %v714
    %v912 = vpop.f32.mrb[0].mxu0
    %v913 = vadd.f32 %v765, %v912
    %v914 = vpop.f32.mrb[0].mxu0
    %915 = vmatprep.mubr.f32.mxu0 0.0
    %916 = vmatmul.mubr.f32.gmra.mrb[0].mxu0 %v715
    %v917 = vpop.f32.mrb[0].mxu0
    %v918 = vadd.f32 %v765, %v917
    %v919 = vpop.f32.mrb[0].mxu0
    %920 = vmatprep.mubr.f32.mxu0 0.0
    %921 = vmatmul.mubr.f32.gmra.mrb[0].mxu0 %v716
    %v922 = vpop.f32.mrb[0].mxu0
    %v923 = vadd.f32 %v765, %v922
    %v924 = vpop.f32.mrb[0].mxu0
    %925 = vmatprep.mubr.f32.mxu0 0.0
    %926 = vmatmul.mubr.f32.gmra.mrb[0].mxu0 %v717
    %v927 = vpop.f32.mrb[0].mxu0
    %v928 = vadd.f32 %v765, %v927
    %v929 = vpop.f32.mrb[0].mxu0
    %930 = vmatprep.mubr.f32.mxu0 0.0
    %931 = vmatmul.mubr.f32.gmra.mrb[0].mxu0 %v718
    %v932 = vpop.f32.mrb[0].mxu0
    %v933 = vadd.f32 %v765, %v932
    %v934 = vpop.f32.mrb[0].mxu0
    %935 = vmatprep.mubr.f32.mxu0 0.0
    %936 = vmatmul.mubr.f32.gmra.mrb[0].mxu0 %v719
    %v937 = vpop.f32.mrb[0].mxu0
    %v938 = vadd.f32 %v765, %v937
    %v939 = vpop.f32.mrb[0].mxu0
    %940 = vmatprep.mubr.f32.mxu0 0.0
    %941 = vmatmul.mubr.f32.gmra.mrb[0].mxu0 %v720
    %v942 = vpop.f32.mrb[0].mxu0
    %v943 = vadd.f32 %v765, %v942
    %v944 = vpop.f32.mrb[0].mxu0
    %945 = vmatprep.mubr.f32.mxu0 0.0
    %946 = vmatmul.mubr.f32.gmra.mrb[0].mxu0 %v721
    %v947 = vpop.f32.mrb[0].mxu0
    %v948 = vadd.f32 %v765, %v947
    %v949 = vpop.f32.mrb[0].mxu0
    %950 = vmatprep.mubr.f32.mxu0 0.0
    %951 = vmatmul.mubr.f32.gmra.mrb[0].mxu0 %v722
    %v952 = vpop.f32.mrb[0].mxu0
    %v953 = vadd.f32 %v765, %v952
    %v954 = vpop.f32.mrb[0].mxu0
    %955 = vmatprep.mubr.f32.mxu0 0.0
    %956 = vmatmul.mubr.f32.gmra.mrb[0].mxu0 %v723
    %v957 = vpop.f32.mrb[0].mxu0
    %v958 = vadd.f32 %v765, %v957
    %v959 = vpop.f32.mrb[0].mxu0
    %960 = vmatprep.mubr.f32.mxu0 0.0
    %961 = vmatmul.mubr.f32.gmra.mrb[0].mxu0 %v724
    %v962 = vpop.f32.mrb[0].mxu0
    %v963 = vadd.f32 %v765, %v962
    %v964 = vpop.f32.mrb[0].mxu0
    %965 = vmatprep.mubr.f32.mxu0 0.0
    %966 = vmatmul.mubr.f32.gmra.mrb[0].mxu0 %v725
    %v967 = vpop.f32.mrb[0].mxu0
    %v968 = vadd.f32 %v765, %v967
    %v969 = vpop.f32.mrb[0].mxu0
    %970 = vmatprep.mubr.f32.mxu0 0.0
    %971 = vmatmul.mubr.f32.gmra.mrb[0].mxu0 %v726
    %v972 = vpop.f32.mrb[0].mxu0
    %v973 = vadd.f32 %v765, %v972
    %v974 = vpop.f32.mrb[0].mxu0
    %975 = vmatprep.mubr.f32.mxu0 0.0
    %976 = vmatmul.mubr.f32.gmra.mrb[0].mxu0 %v727
    %v977 = vpop.f32.mrb[0].mxu0
    %v978 = vadd.f32 %v765, %v977
    %v979 = vpop.f32.mrb[0].mxu0
    %980 = vmatprep.mubr.f32.mxu0 0.0
    %981 = vmatmul.mubr.f32.gmra.mrb[0].mxu0 %v728
    %v982 = vpop.f32.mrb[0].mxu0
    %v983 = vadd.f32 %v765, %v982
    %v984 = vpop.f32.mrb[0].mxu0
    %985 = vmatprep.mubr.f32.mxu0 0.0
    %986 = vmatmul.mubr.f32.gmra.mrb[0].mxu0 %v729
    %v987 = vpop.f32.mrb[0].mxu0
    %v988 = vadd.f32 %v765, %v987
    %v989 = vpop.f32.mrb[0].mxu0
    %990 = vmatprep.mubr.f32.mxu0 0.0
    %991 = vmatmul.mubr.f32.gmra.mrb[0].mxu0 %v730
    %v992 = vpop.f32.mrb[0].mxu0
    %v993 = vadd.f32 %v765, %v992
    %v994 = vpop.f32.mrb[0].mxu0
    %995 = vmatprep.mubr.f32.mxu0 0.0
    %996 = vmatmul.mubr.f32.gmra.mrb[0].mxu0 %v731
    %v997 = vpop.f32.mrb[0].mxu0
    %v998 = vadd.f32 %v765, %v997
    %v999 = vpop.f32.mrb[0].mxu0
    %1000 = vmatprep.mubr.f32.mxu0 0.0
    %1001 = vmatmul.mubr.f32.gmra.mrb[0].mxu0 %v732
    %v1002 = vpop.f32.mrb[0].mxu0
    %v1003 = vadd.f32 %v765, %v1002
    %v1004 = vpop.f32.mrb[0].mxu0
    %1005 = vmatprep.mubr.f32.mxu0 0.0
    %1006 = vmatmul.mubr.f32.gmra.mrb[0].mxu0 %v733
    %v1007 = vpop.f32.mrb[0].mxu0
    %v1008 = vadd.f32 %v765, %v1007
    %v1009 = vpop.f32.mrb[0].mxu0
    %1010 = vmatprep.mubr.f32.mxu0 0.0
    %1011 = vmatmul.mubr.f32.gmra.mrb[0].mxu0 %v734
    %v1012 = vpop.f32.mrb[0].mxu0
    %v1013 = vadd.f32 %v765, %v1012
    %v1014 = vpop.f32.mrb[0].mxu0
    %1015 = vmatprep.mubr.f32.mxu0 0.0
    %1016 = vmatmul.mubr.f32.gmra.mrb[0].mxu0 %v735
    %v1017 = vpop.f32.mrb[0].mxu0
    %v1018 = vadd.f32 %v765, %v1017
    %v1019 = vpop.f32.mrb[0].mxu0
    %1020 = vmatprep.mubr.f32.mxu0 0.0
    %1021 = vmatmul.mubr.f32.gmra.mrb[0].mxu0 %v736
    %v1022 = vpop.f32.mrb[0].mxu0
    %v1023 = vadd.f32 %v765, %v1022
    %v1024 = vpop.f32.mrb[0].mxu0
    %1025 = vmatprep.mubr.f32.mxu0 0.0
    %1026 = vmatmul.mubr.f32.gmra.mrb[0].mxu0 %v737
    %v1027 = vpop.f32.mrb[0].mxu0
    %v1028 = vadd.f32 %v765, %v1027
    %v1029 = vpop.f32.mrb[0].mxu0
    %1030 = vmatprep.mubr.f32.mxu0 0.0
    %1031 = vmatmul.mubr.f32.gmra.mrb[0].mxu0 %v738
    %v1032 = vpop.f32.mrb[0].mxu0
    %v1033 = vadd.f32 %v765, %v1032
    %v1034 = vpop.f32.mrb[0].mxu0
    %1035 = vmatprep.mubr.f32.mxu0 0.0
    %1036 = vmatmul.mubr.f32.gmra.mrb[0].mxu0 %v739
    %v1037 = vpop.f32.mrb[0].mxu0
    %v1038 = vadd.f32 %v765, %v1037
    %v1039 = vpop.f32.mrb[0].mxu0
    %1040 = vmatprep.mubr.f32.mxu0 0.0
    %1041 = vmatmul.mubr.f32.gmra.mrb[0].mxu0 %v740
    %v1042 = vpop.f32.mrb[0].mxu0
    %v1043 = vadd.f32 %v765, %v1042
    %v1044 = vpop.f32.mrb[0].mxu0
    %1045 = vmatprep.mubr.f32.mxu0 0.0
    %1046 = vmatmul.mubr.f32.gmra.mrb[0].mxu0 %v741
    %v1047 = vpop.f32.mrb[0].mxu0
    %v1048 = vadd.f32 %v765, %v1047
    %v1049 = vpop.f32.mrb[0].mxu0
    %1050 = vmatprep.mubr.f32.mxu0 0.0
    %1051 = vmatmul.mubr.f32.gmra.mrb[0].mxu0 %v742
    %v1052 = vpop.f32.mrb[0].mxu0
    %v1053 = vadd.f32 %v765, %v1052
    %v1054 = vpop.f32.mrb[0].mxu0
    %1055 = vmatprep.mubr.f32.mxu0 0.0
    %1056 = vmatmul.mubr.f32.gmra.mrb[0].mxu0 %v743
    %v1057 = vpop.f32.mrb[0].mxu0
    %v1058 = vadd.f32 %v765, %v1057
    %v1059 = vpop.f32.mrb[0].mxu0
    %1060 = vmatprep.mubr.f32.mxu0 0.0
    %1061 = vmatmul.mubr.f32.gmra.mrb[0].mxu0 %v744
    %v1062 = vpop.f32.mrb[0].mxu0
    %v1063 = vadd.f32 %v765, %v1062
    %v1064 = vpop.f32.mrb[0].mxu0
    %1065 = vmatprep.mubr.f32.mxu0 0.0
    %1066 = vmatmul.mubr.f32.gmra.mrb[0].mxu0 %v745
    %v1067 = vpop.f32.mrb[0].mxu0
    %v1068 = vadd.f32 %v765, %v1067
    %v1069 = vpop.f32.mrb[0].mxu0
    %1070 = vmatprep.mubr.f32.mxu0 0.0
    %1071 = vmatmul.mubr.f32.gmra.mrb[0].mxu0 %v746
    %v1072 = vpop.f32.mrb[0].mxu0
    %v1073 = vadd.f32 %v765, %v1072
    %v1074 = vpop.f32.mrb[0].mxu0
    %1075 = vmatprep.mubr.f32.mxu0 0.0
    %1076 = vmatmul.mubr.f32.gmra.mrb[0].mxu0 %v747
    %v1077 = vpop.f32.mrb[0].mxu0
    %v1078 = vadd.f32 %v765, %v1077
    %v1079 = vpop.f32.mrb[0].mxu0
    %1080 = vmatprep.mubr.f32.mxu0 0.0
    %1081 = vmatmul.mubr.f32.gmra.mrb[0].mxu0 %v748
    %v1082 = vpop.f32.mrb[0].mxu0
    %v1083 = vadd.f32 %v765, %v1082
    %v1084 = vpop.f32.mrb[0].mxu0
    %1085 = vmatprep.mubr.f32.mxu0 0.0
    %1086 = vmatmul.mubr.f32.gmra.mrb[0].mxu0 %v749
    %v1087 = vpop.f32.mrb[0].mxu0
    %v1088 = vadd.f32 %v765, %v1087
    %v1089 = vpop.f32.mrb[0].mxu0
    %1090 = vmatprep.mubr.f32.mxu0 0.0
    %1091 = vmatmul.mubr.f32.gmra.mrb[0].mxu0 %v750
    %v1092 = vpop.f32.mrb[0].mxu0
    %v1093 = vadd.f32 %v765, %v1092
    %v1094 = vpop.f32.mrb[0].mxu0
    %1095 = vmatprep.mubr.f32.mxu0 0.0
    %1096 = vmatmul.mubr.f32.gmra.mrb[0].mxu0 %v751
    %v1097 = vpop.f32.mrb[0].mxu0
    %v1098 = vadd.f32 %v765, %v1097
    %v1099 = vpop.f32.mrb[0].mxu0
    %1100 = vmatprep.mubr.f32.mxu0 0.0
    %1101 = vmatmul.mubr.f32.gmra.mrb[0].mxu0 %v752
    %v1102 = vpop.f32.mrb[0].mxu0
    %v1103 = vadd.f32 %v765, %v1102
    %v1104 = vpop.f32.mrb[0].mxu0
    %1105 = vmatprep.mubr.f32.mxu0 0.0
    %1106 = vmatmul.mubr.f32.gmra.mrb[0].mxu0 %v753
    %v1107 = vpop.f32.mrb[0].mxu0
    %v1108 = vadd.f32 %v765, %v1107
    %v1109 = vpop.f32.mrb[0].mxu0
    %1110 = vmatprep.mubr.f32.mxu0 0.0
    %1111 = vmatmul.mubr.f32.gmra.mrb[0].mxu0 %v754
    %v1112 = vpop.f32.mrb[0].mxu0
    %v1113 = vadd.f32 %v765, %v1112
    %v1114 = vpop.f32.mrb[0].mxu0
    %1115 = vmatprep.mubr.f32.mxu0 0.0
    %1116 = vmatmul.mubr.f32.gmra.mrb[0].mxu0 %v755
    %v1117 = vpop.f32.mrb[0].mxu0
    %v1118 = vadd.f32 %v765, %v1117
    %v1119 = vpop.f32.mrb[0].mxu0
    %1120 = vmatprep.mubr.f32.mxu0 0.0
    %1121 = vmatmul.mubr.f32.gmra.mrb[0].mxu0 %v756
    %v1122 = vpop.f32.mrb[0].mxu0
    %v1123 = vadd.f32 %v765, %v1122
    %v1124 = vpop.f32.mrb[0].mxu0
    %1125 = vmatprep.mubr.f32.mxu0 0.0
    %1126 = vmatmul.mubr.f32.gmra.mrb[0].mxu0 %v757
    %v1127 = vpop.f32.mrb[0].mxu0
    %v1128 = vadd.f32 %v765, %v1127
    %v1129 = vpop.f32.mrb[0].mxu0
    %1130 = vmatprep.mubr.f32.mxu0 0.0
    %1131 = vmatmul.mubr.f32.gmra.mrb[0].mxu0 %v758
    %v1132 = vpop.f32.mrb[0].mxu0
    %v1133 = vadd.f32 %v765, %v1132
    %v1134 = vpop.f32.mrb[0].mxu0
    %1135 = vmatprep.mubr.f32.mxu0 0.0
    %1136 = vmatmul.mubr.f32.gmra.mrb[0].mxu0 %v759
    %v1137 = vpop.f32.mrb[0].mxu0
    %v1138 = vadd.f32 %v765, %v1137
    %v1139 = vpop.f32.mrb[0].mxu0
    %1140 = vmatprep.mubr.f32.mxu0 0.0
    %1141 = vmatmul.mubr.f32.gmra.mrb[0].mxu0 %v760
    %v1142 = vpop.f32.mrb[0].mxu0
    %v1143 = vadd.f32 %v765, %v1142
    %v1144 = vpop.f32.mrb[0].mxu0
    %1145 = vmatprep.mubr.f32.mxu0 0.0
    %1146 = vmatmul.mubr.f32.gmra.mrb[0].mxu0 %v761
    %v1147 = vpop.f32.mrb[0].mxu0
    %v1148 = vadd.f32 %v765, %v1147
    %v1149 = vpop.f32.mrb[0].mxu0
    %1150 = vdwg.mxu0
    %v1151 = vmax.f32 %v833, 0.0
    %v1152 = vmax.f32 %v838, 0.0
    %v1153 = vmax.f32 %v843, 0.0
    %v1154 = vmax.f32 %v848, 0.0
    %v1155 = vmax.f32 %v853, 0.0
    %v1156 = vmax.f32 %v858, 0.0
    %v1157 = vmax.f32 %v863, 0.0
    %v1158 = vmax.f32 %v868, 0.0
    %v1159 = vmax.f32 %v873, 0.0
    %v1160 = vmax.f32 %v878, 0.0
    %v1161 = vmax.f32 %v883, 0.0
    %v1162 = vmax.f32 %v888, 0.0
    %v1163 = vmax.f32 %v893, 0.0
    %v1164 = vmax.f32 %v898, 0.0
    %v1165 = vmax.f32 %v903, 0.0
    %v1166 = vmax.f32 %v908, 0.0
    %v1167 = vmax.f32 %v913, 0.0
    %v1168 = vmax.f32 %v918, 0.0
    %v1169 = vmax.f32 %v923, 0.0
    %v1170 = vmax.f32 %v928, 0.0
    %v1171 = vmax.f32 %v933, 0.0
    %v1172 = vmax.f32 %v938, 0.0
    %v1173 = vmax.f32 %v943, 0.0
    %v1174 = vmax.f32 %v948, 0.0
    %v1175 = vmax.f32 %v953, 0.0
    %v1176 = vmax.f32 %v958, 0.0
    %v1177 = vmax.f32 %v963, 0.0
    %v1178 = vmax.f32 %v968, 0.0
    %v1179 = vmax.f32 %v973, 0.0
    %v1180 = vmax.f32 %v978, 0.0
    %v1181 = vmax.f32 %v983, 0.0
    %v1182 = vmax.f32 %v988, 0.0
    %v1183 = vmax.f32 %v993, 0.0
    %v1184 = vmax.f32 %v998, 0.0
    %v1185 = vmax.f32 %v1003, 0.0
    %v1186 = vmax.f32 %v1008, 0.0
    %v1187 = vmax.f32 %v1013, 0.0
    %v1188 = vmax.f32 %v1018, 0.0
    %v1189 = vmax.f32 %v1023, 0.0
    %v1190 = vmax.f32 %v1028, 0.0
    %v1191 = vmax.f32 %v1033, 0.0
    %v1192 = vmax.f32 %v1038, 0.0
    %v1193 = vmax.f32 %v1043, 0.0
    %v1194 = vmax.f32 %v1048, 0.0
    %v1195 = vmax.f32 %v1053, 0.0
    %v1196 = vmax.f32 %v1058, 0.0
    %v1197 = vmax.f32 %v1063, 0.0
    %v1198 = vmax.f32 %v1068, 0.0
    %v1199 = vmax.f32 %v1073, 0.0
    %v1200 = vmax.f32 %v1078, 0.0
    %v1201 = vmax.f32 %v1083, 0.0
    %v1202 = vmax.f32 %v1088, 0.0
    %v1203 = vmax.f32 %v1093, 0.0
    %v1204 = vmax.f32 %v1098, 0.0
    %v1205 = vmax.f32 %v1103, 0.0
    %v1206 = vmax.f32 %v1108, 0.0
    %v1207 = vmax.f32 %v1113, 0.0
    %v1208 = vmax.f32 %v1118, 0.0
    %v1209 = vmax.f32 %v1123, 0.0
    %v1210 = vmax.f32 %v1128, 0.0
    %v1211 = vmax.f32 %v1133, 0.0
    %v1212 = vmax.f32 %v1138, 0.0
    %v1213 = vmax.f32 %v1143, 0.0
    %v1214 = vmax.f32 %v1148, 0.0
    %v1215 = vadd.f32 %v1151, %v698
    %v1216 = vadd.f32 %v1152, %v699
    %v1217 = vadd.f32 %v1153, %v700
    %v1218 = vadd.f32 %v1154, %v701
    %v1219 = vadd.f32 %v1155, %v702
    %v1220 = vadd.f32 %v1156, %v703
    %v1221 = vadd.f32 %v1157, %v704
    %v1222 = vadd.f32 %v1158, %v705
    %v1223 = vadd.f32 %v1159, %v706
    %v1224 = vadd.f32 %v1160, %v707
    %v1225 = vadd.f32 %v1161, %v708
    %v1226 = vadd.f32 %v1162, %v709
    %v1227 = vadd.f32 %v1163, %v710
    %v1228 = vadd.f32 %v1164, %v711
    %v1229 = vadd.f32 %v1165, %v712
    %v1230 = vadd.f32 %v1166, %v713
    %v1231 = vadd.f32 %v1167, %v714
    %v1232 = vadd.f32 %v1168, %v715
    %v1233 = vadd.f32 %v1169, %v716
    %v1234 = vadd.f32 %v1170, %v717
    %v1235 = vadd.f32 %v1171, %v718
    %v1236 = vadd.f32 %v1172, %v719
    %v1237 = vadd.f32 %v1173, %v720
    %v1238 = vadd.f32 %v1174, %v721
    %v1239 = vadd.f32 %v1175, %v722
    %v1240 = vadd.f32 %v1176, %v723
    %v1241 = vadd.f32 %v1177, %v724
    %v1242 = vadd.f32 %v1178, %v725
    %v1243 = vadd.f32 %v1179, %v726
    %v1244 = vadd.f32 %v1180, %v727
    %v1245 = vadd.f32 %v1181, %v728
    %v1246 = vadd.f32 %v1182, %v729
    %v1247 = vadd.f32 %v1183, %v730
    %v1248 = vadd.f32 %v1184, %v731
    %v1249 = vadd.f32 %v1185, %v732
    %v1250 = vadd.f32 %v1186, %v733
    %v1251 = vadd.f32 %v1187, %v734
    %v1252 = vadd.f32 %v1188, %v735
    %v1253 = vadd.f32 %v1189, %v736
    %v1254 = vadd.f32 %v1190, %v737
    %v1255 = vadd.f32 %v1191, %v738
    %v1256 = vadd.f32 %v1192, %v739
    %v1257 = vadd.f32 %v1193, %v740
    %v1258 = vadd.f32 %v1194, %v741
    %v1259 = vadd.f32 %v1195, %v742
    %v1260 = vadd.f32 %v1196, %v743
    %v1261 = vadd.f32 %v1197, %v744
    %v1262 = vadd.f32 %v1198, %v745
    %v1263 = vadd.f32 %v1199, %v746
    %v1264 = vadd.f32 %v1200, %v747
    %v1265 = vadd.f32 %v1201, %v748
    %v1266 = vadd.f32 %v1202, %v749
    %v1267 = vadd.f32 %v1203, %v750
    %v1268 = vadd.f32 %v1204, %v751
    %v1269 = vadd.f32 %v1205, %v752
    %v1270 = vadd.f32 %v1206, %v753
    %v1271 = vadd.f32 %v1207, %v754
    %v1272 = vadd.f32 %v1208, %v755
    %v1273 = vadd.f32 %v1209, %v756
    %v1274 = vadd.f32 %v1210, %v757
    %v1275 = vadd.f32 %v1211, %v758
    %v1276 = vadd.f32 %v1212, %v759
    %v1277 = vadd.f32 %v1213, %v760
    %v1278 = vadd.f32 %v1214, %v761
    %1279 = vadd.xlane.f32.xlu0 %v1215
    %v1280 = vpop.xlane.xlu0 %1279
    %1281 = vadd.xlane.f32.xlu0 %v1216
    %v1282 = vpop.xlane.xlu0 %1281
    %1283 = vadd.xlane.f32.xlu0 %v1217
    %v1284 = vpop.xlane.xlu0 %1283
    %1285 = vadd.xlane.f32.xlu0 %v1218
    %v1286 = vpop.xlane.xlu0 %1285
    %1287 = vadd.xlane.f32.xlu0 %v1219
    %v1288 = vpop.xlane.xlu0 %1287
    %1289 = vadd.xlane.f32.xlu0 %v1220
    %v1290 = vpop.xlane.xlu0 %1289
    %1291 = vadd.xlane.f32.xlu0 %v1221
    %v1292 = vpop.xlane.xlu0 %1291
    %1293 = vadd.xlane.f32.xlu0 %v1222
    %v1294 = vpop.xlane.xlu0 %1293
    %1295 = vadd.xlane.f32.xlu0 %v1223
    %v1296 = vpop.xlane.xlu0 %1295
    %1297 = vadd.xlane.f32.xlu0 %v1224
    %v1298 = vpop.xlane.xlu0 %1297
    %1299 = vadd.xlane.f32.xlu0 %v1225
    %v1300 = vpop.xlane.xlu0 %1299
    %1301 = vadd.xlane.f32.xlu0 %v1226
    %v1302 = vpop.xlane.xlu0 %1301
    %1303 = vadd.xlane.f32.xlu0 %v1227
    %v1304 = vpop.xlane.xlu0 %1303
    %1305 = vadd.xlane.f32.xlu0 %v1228
    %v1306 = vpop.xlane.xlu0 %1305
    %1307 = vadd.xlane.f32.xlu0 %v1229
    %v1308 = vpop.xlane.xlu0 %1307
    %1309 = vadd.xlane.f32.xlu0 %v1230
    %v1310 = vpop.xlane.xlu0 %1309
    %1311 = vadd.xlane.f32.xlu0 %v1231
    %v1312 = vpop.xlane.xlu0 %1311
    %1313 = vadd.xlane.f32.xlu0 %v1232
    %v1314 = vpop.xlane.xlu0 %1313
    %1315 = vadd.xlane.f32.xlu0 %v1233
    %v1316 = vpop.xlane.xlu0 %1315
    %1317 = vadd.xlane.f32.xlu0 %v1234
    %v1318 = vpop.xlane.xlu0 %1317
    %1319 = vadd.xlane.f32.xlu0 %v1235
    %v1320 = vpop.xlane.xlu0 %1319
    %1321 = vadd.xlane.f32.xlu0 %v1236
    %v1322 = vpop.xlane.xlu0 %1321
    %1323 = vadd.xlane.f32.xlu0 %v1237
    %v1324 = vpop.xlane.xlu0 %1323
    %1325 = vadd.xlane.f32.xlu0 %v1238
    %v1326 = vpop.xlane.xlu0 %1325
    %1327 = vadd.xlane.f32.xlu0 %v1239
    %v1328 = vpop.xlane.xlu0 %1327
    %1329 = vadd.xlane.f32.xlu0 %v1240
    %v1330 = vpop.xlane.xlu0 %1329
    %1331 = vadd.xlane.f32.xlu0 %v1241
    %v1332 = vpop.xlane.xlu0 %1331
    %1333 = vadd.xlane.f32.xlu0 %v1242
    %v1334 = vpop.xlane.xlu0 %1333
    %1335 = vadd.xlane.f32.xlu0 %v1243
    %v1336 = vpop.xlane.xlu0 %1335
    %1337 = vadd.xlane.f32.xlu0 %v1244
    %v1338 = vpop.xlane.xlu0 %1337
    %1339 = vadd.xlane.f32.xlu0 %v1245
    %v1340 = vpop.xlane.xlu0 %1339
    %1341 = vadd.xlane.f32.xlu0 %v1246
    %v1342 = vpop.xlane.xlu0 %1341
    %1343 = vadd.xlane.f32.xlu0 %v1247
    %v1344 = vpop.xlane.xlu0 %1343
    %1345 = vadd.xlane.f32.xlu0 %v1248
    %v1346 = vpop.xlane.xlu0 %1345
    %1347 = vadd.xlane.f32.xlu0 %v1249
    %v1348 = vpop.xlane.xlu0 %1347
    %1349 = vadd.xlane.f32.xlu0 %v1250
    %v1350 = vpop.xlane.xlu0 %1349
    %1351 = vadd.xlane.f32.xlu0 %v1251
    %v1352 = vpop.xlane.xlu0 %1351
    %1353 = vadd.xlane.f32.xlu0 %v1252
    %v1354 = vpop.xlane.xlu0 %1353
    %1355 = vadd.xlane.f32.xlu0 %v1253
    %v1356 = vpop.xlane.xlu0 %1355
    %1357 = vadd.xlane.f32.xlu0 %v1254
    %v1358 = vpop.xlane.xlu0 %1357
    %1359 = vadd.xlane.f32.xlu0 %v1255
    %v1360 = vpop.xlane.xlu0 %1359
    %1361 = vadd.xlane.f32.xlu0 %v1256
    %v1362 = vpop.xlane.xlu0 %1361
    %1363 = vadd.xlane.f32.xlu0 %v1257
    %v1364 = vpop.xlane.xlu0 %1363
    %1365 = vadd.xlane.f32.xlu0 %v1258
    %v1366 = vpop.xlane.xlu0 %1365
    %1367 = vadd.xlane.f32.xlu0 %v1259
    %v1368 = vpop.xlane.xlu0 %1367
    %1369 = vadd.xlane.f32.xlu0 %v1260
    %v1370 = vpop.xlane.xlu0 %1369
    %1371 = vadd.xlane.f32.xlu0 %v1261
    %v1372 = vpop.xlane.xlu0 %1371
    %1373 = vadd.xlane.f32.xlu0 %v1262
    %v1374 = vpop.xlane.xlu0 %1373
    %1375 = vadd.xlane.f32.xlu0 %v1263
    %v1376 = vpop.xlane.xlu0 %1375
    %1377 = vadd.xlane.f32.xlu0 %v1264
    %v1378 = vpop.xlane.xlu0 %1377
    %1379 = vadd.xlane.f32.xlu0 %v1265
    %v1380 = vpop.xlane.xlu0 %1379
    %1381 = vadd.xlane.f32.xlu0 %v1266
    %v1382 = vpop.xlane.xlu0 %1381
    %1383 = vadd.xlane.f32.xlu0 %v1267
    %v1384 = vpop.xlane.xlu0 %1383
    %1385 = vadd.xlane.f32.xlu0 %v1268
    %v1386 = vpop.xlane.xlu0 %1385
    %1387 = vadd.xlane.f32.xlu0 %v1269
    %v1388 = vpop.xlane.xlu0 %1387
    %1389 = vadd.xlane.f32.xlu0 %v1270
    %v1390 = vpop.xlane.xlu0 %1389
    %1391 = vadd.xlane.f32.xlu0 %v1271
    %v1392 = vpop.xlane.xlu0 %1391
    %1393 = vadd.xlane.f32.xlu0 %v1272
    %v1394 = vpop.xlane.xlu0 %1393
    %1395 = vadd.xlane.f32.xlu0 %v1273
    %v1396 = vpop.xlane.xlu0 %1395
    %1397 = vadd.xlane.f32.xlu0 %v1274
    %v1398 = vpop.xlane.xlu0 %1397
    %1399 = vadd.xlane.f32.xlu0 %v1275
    %v1400 = vpop.xlane.xlu0 %1399
    %1401 = vadd.xlane.f32.xlu0 %v1276
    %v1402 = vpop.xlane.xlu0 %1401
    %1403 = vadd.xlane.f32.xlu0 %v1277
    %v1404 = vpop.xlane.xlu0 %1403
    %1405 = vadd.xlane.f32.xlu0 %v1278
    %v1406 = vpop.xlane.xlu0 %1405
    %v1407 = vmul.f32 %v1280, 0.01
    %v1408 = vmul.f32 %v1282, 0.01
    %v1409 = vmul.f32 %v1284, 0.01
    %v1410 = vmul.f32 %v1286, 0.01
    %v1411 = vmul.f32 %v1288, 0.01
    %v1412 = vmul.f32 %v1290, 0.01
    %v1413 = vmul.f32 %v1292, 0.01
    %v1414 = vmul.f32 %v1294, 0.01
    %v1415 = vmul.f32 %v1296, 0.01
    %v1416 = vmul.f32 %v1298, 0.01
    %v1417 = vmul.f32 %v1300, 0.01
    %v1418 = vmul.f32 %v1302, 0.01
    %v1419 = vmul.f32 %v1304, 0.01
    %v1420 = vmul.f32 %v1306, 0.01
    %v1421 = vmul.f32 %v1308, 0.01
    %v1422 = vmul.f32 %v1310, 0.01
    %v1423 = vmul.f32 %v1312, 0.01
    %v1424 = vmul.f32 %v1314, 0.01
    %v1425 = vmul.f32 %v1316, 0.01
    %v1426 = vmul.f32 %v1318, 0.01
    %v1427 = vmul.f32 %v1320, 0.01
    %v1428 = vmul.f32 %v1322, 0.01
    %v1429 = vmul.f32 %v1324, 0.01
    %v1430 = vmul.f32 %v1326, 0.01
    %v1431 = vmul.f32 %v1328, 0.01
    %v1432 = vmul.f32 %v1330, 0.01
    %v1433 = vmul.f32 %v1332, 0.01
    %v1434 = vmul.f32 %v1334, 0.01
    %v1435 = vmul.f32 %v1336, 0.01
    %v1436 = vmul.f32 %v1338, 0.01
    %v1437 = vmul.f32 %v1340, 0.01
    %v1438 = vmul.f32 %v1342, 0.01
    %v1439 = vmul.f32 %v1344, 0.01
    %v1440 = vmul.f32 %v1346, 0.01
    %v1441 = vmul.f32 %v1348, 0.01
    %v1442 = vmul.f32 %v1350, 0.01
    %v1443 = vmul.f32 %v1352, 0.01
    %v1444 = vmul.f32 %v1354, 0.01
    %v1445 = vmul.f32 %v1356, 0.01
    %v1446 = vmul.f32 %v1358, 0.01
    %v1447 = vmul.f32 %v1360, 0.01
    %v1448 = vmul.f32 %v1362, 0.01
    %v1449 = vmul.f32 %v1364, 0.01
    %v1450 = vmul.f32 %v1366, 0.01
    %v1451 = vmul.f32 %v1368, 0.01
    %v1452 = vmul.f32 %v1370, 0.01
    %v1453 = vmul.f32 %v1372, 0.01
    %v1454 = vmul.f32 %v1374, 0.01
    %v1455 = vmul.f32 %v1376, 0.01
    %v1456 = vmul.f32 %v1378, 0.01
    %v1457 = vmul.f32 %v1380, 0.01
    %v1458 = vmul.f32 %v1382, 0.01
    %v1459 = vmul.f32 %v1384, 0.01
    %v1460 = vmul.f32 %v1386, 0.01
    %v1461 = vmul.f32 %v1388, 0.01
    %v1462 = vmul.f32 %v1390, 0.01
    %v1463 = vmul.f32 %v1392, 0.01
    %v1464 = vmul.f32 %v1394, 0.01
    %v1465 = vmul.f32 %v1396, 0.01
    %v1466 = vmul.f32 %v1398, 0.01
    %v1467 = vmul.f32 %v1400, 0.01
    %v1468 = vmul.f32 %v1402, 0.01
    %v1469 = vmul.f32 %v1404, 0.01
    %v1470 = vmul.f32 %v1406, 0.01
    %v1471 = vsub.f32 %v1215, %v1407
    %v1472 = vsub.f32 %v1216, %v1408
    %v1473 = vsub.f32 %v1217, %v1409
    %v1474 = vsub.f32 %v1218, %v1410
    %v1475 = vsub.f32 %v1219, %v1411
    %v1476 = vsub.f32 %v1220, %v1412
    %v1477 = vsub.f32 %v1221, %v1413
    %v1478 = vsub.f32 %v1222, %v1414
    %v1479 = vsub.f32 %v1223, %v1415
    %v1480 = vsub.f32 %v1224, %v1416
    %v1481 = vsub.f32 %v1225, %v1417
    %v1482 = vsub.f32 %v1226, %v1418
    %v1483 = vsub.f32 %v1227, %v1419
    %v1484 = vsub.f32 %v1228, %v1420
    %v1485 = vsub.f32 %v1229, %v1421
    %v1486 = vsub.f32 %v1230, %v1422
    %v1487 = vsub.f32 %v1231, %v1423
    %v1488 = vsub.f32 %v1232, %v1424
    %v1489 = vsub.f32 %v1233, %v1425
    %v1490 = vsub.f32 %v1234, %v1426
    %v1491 = vsub.f32 %v1235, %v1427
    %v1492 = vsub.f32 %v1236, %v1428
    %v1493 = vsub.f32 %v1237, %v1429
    %v1494 = vsub.f32 %v1238, %v1430
    %v1495 = vsub.f32 %v1239, %v1431
    %v1496 = vsub.f32 %v1240, %v1432
    %v1497 = vsub.f32 %v1241, %v1433
    %v1498 = vsub.f32 %v1242, %v1434
    %v1499 = vsub.f32 %v1243, %v1435
    %v1500 = vsub.f32 %v1244, %v1436
    %v1501 = vsub.f32 %v1245, %v1437
    %v1502 = vsub.f32 %v1246, %v1438
    %v1503 = vsub.f32 %v1247, %v1439
    %v1504 = vsub.f32 %v1248, %v1440
    %v1505 = vsub.f32 %v1249, %v1441
    %v1506 = vsub.f32 %v1250, %v1442
    %v1507 = vsub.f32 %v1251, %v1443
    %v1508 = vsub.f32 %v1252, %v1444
    %v1509 = vsub.f32 %v1253, %v1445
    %v1510 = vsub.f32 %v1254, %v1446
    %v1511 = vsub.f32 %v1255, %v1447
    %v1512 = vsub.f32 %v1256, %v1448
    %v1513 = vsub.f32 %v1257, %v1449
    %v1514 = vsub.f32 %v1258, %v1450
    %v1515 = vsub.f32 %v1259, %v1451
    %v1516 = vsub.f32 %v1260, %v1452
    %v1517 = vsub.f32 %v1261, %v1453
    %v1518 = vsub.f32 %v1262, %v1454
    %v1519 = vsub.f32 %v1263, %v1455
    %v1520 = vsub.f32 %v1264, %v1456
    %v1521 = vsub.f32 %v1265, %v1457
    %v1522 = vsub.f32 %v1266, %v1458
    %v1523 = vsub.f32 %v1267, %v1459
    %v1524 = vsub.f32 %v1268, %v1460
    %v1525 = vsub.f32 %v1269, %v1461
    %v1526 = vsub.f32 %v1270, %v1462
    %v1527 = vsub.f32 %v1271, %v1463
    %v1528 = vsub.f32 %v1272, %v1464
    %v1529 = vsub.f32 %v1273, %v1465
    %v1530 = vsub.f32 %v1274, %v1466
    %v1531 = vsub.f32 %v1275, %v1467
    %v1532 = vsub.f32 %v1276, %v1468
    %v1533 = vsub.f32 %v1277, %v1469
    %v1534 = vsub.f32 %v1278, %v1470
    %v1535 = vlaneseq
    %v1536 = vand.u32 %v1535, 127
    %vm1537 = vcmp.lt.s32.totalorder %v1536, 100
    %v1538 = vsel %vm1537, 1, 0
    %vm1539 = vcmp.eq.s32.totalorder %v1538, 1
    %v1540 = vsel %vm1539, %v1471, 0.0
    %v1541 = vsel %vm1539, %v1472, 0.0
    %v1542 = vsel %vm1539, %v1473, 0.0
    %v1543 = vsel %vm1539, %v1474, 0.0
    %v1544 = vsel %vm1539, %v1475, 0.0
    %v1545 = vsel %vm1539, %v1476, 0.0
    %v1546 = vsel %vm1539, %v1477, 0.0
    %v1547 = vsel %vm1539, %v1478, 0.0
    %v1548 = vsel %vm1539, %v1479, 0.0
    %v1549 = vsel %vm1539, %v1480, 0.0
    %v1550 = vsel %vm1539, %v1481, 0.0
    %v1551 = vsel %vm1539, %v1482, 0.0
    %v1552 = vsel %vm1539, %v1483, 0.0
    %v1553 = vsel %vm1539, %v1484, 0.0
    %v1554 = vsel %vm1539, %v1485, 0.0
    %v1555 = vsel %vm1539, %v1486, 0.0
    %v1556 = vsel %vm1539, %v1487, 0.0
    %v1557 = vsel %vm1539, %v1488, 0.0
    %v1558 = vsel %vm1539, %v1489, 0.0
    %v1559 = vsel %vm1539, %v1490, 0.0
    %v1560 = vsel %vm1539, %v1491, 0.0
    %v1561 = vsel %vm1539, %v1492, 0.0
    %v1562 = vsel %vm1539, %v1493, 0.0
    %v1563 = vsel %vm1539, %v1494, 0.0
    %v1564 = vsel %vm1539, %v1495, 0.0
    %v1565 = vsel %vm1539, %v1496, 0.0
    %v1566 = vsel %vm1539, %v1497, 0.0
    %v1567 = vsel %vm1539, %v1498, 0.0
    %v1568 = vsel %vm1539, %v1499, 0.0
    %v1569 = vsel %vm1539, %v1500, 0.0
    %v1570 = vsel %vm1539, %v1501, 0.0
    %v1571 = vsel %vm1539, %v1502, 0.0
    %v1572 = vsel %vm1539, %v1503, 0.0
    %v1573 = vsel %vm1539, %v1504, 0.0
    %v1574 = vsel %vm1539, %v1505, 0.0
    %v1575 = vsel %vm1539, %v1506, 0.0
    %v1576 = vsel %vm1539, %v1507, 0.0
    %v1577 = vsel %vm1539, %v1508, 0.0
    %v1578 = vsel %vm1539, %v1509, 0.0
    %v1579 = vsel %vm1539, %v1510, 0.0
    %v1580 = vsel %vm1539, %v1511, 0.0
    %v1581 = vsel %vm1539, %v1512, 0.0
    %v1582 = vsel %vm1539, %v1513, 0.0
    %v1583 = vsel %vm1539, %v1514, 0.0
    %v1584 = vsel %vm1539, %v1515, 0.0
    %v1585 = vsel %vm1539, %v1516, 0.0
    %v1586 = vsel %vm1539, %v1517, 0.0
    %v1587 = vsel %vm1539, %v1518, 0.0
    %v1588 = vsel %vm1539, %v1519, 0.0
    %v1589 = vsel %vm1539, %v1520, 0.0
    %v1590 = vsel %vm1539, %v1521, 0.0
    %v1591 = vsel %vm1539, %v1522, 0.0
    %v1592 = vsel %vm1539, %v1523, 0.0
    %v1593 = vsel %vm1539, %v1524, 0.0
    %v1594 = vsel %vm1539, %v1525, 0.0
    %v1595 = vsel %vm1539, %v1526, 0.0
    %v1596 = vsel %vm1539, %v1527, 0.0
    %v1597 = vsel %vm1539, %v1528, 0.0
    %v1598 = vsel %vm1539, %v1529, 0.0
    %v1599 = vsel %vm1539, %v1530, 0.0
    %v1600 = vsel %vm1539, %v1531, 0.0
    %v1601 = vsel %vm1539, %v1532, 0.0
    %v1602 = vsel %vm1539, %v1533, 0.0
    %v1603 = vsel %vm1539, %v1534, 0.0
    %v1604 = vmul.f32 %v1540, %v1540
    %v1605 = vmul.f32 %v1541, %v1541
    %v1606 = vmul.f32 %v1542, %v1542
    %v1607 = vmul.f32 %v1543, %v1543
    %v1608 = vmul.f32 %v1544, %v1544
    %v1609 = vmul.f32 %v1545, %v1545
    %v1610 = vmul.f32 %v1546, %v1546
    %v1611 = vmul.f32 %v1547, %v1547
    %v1612 = vmul.f32 %v1548, %v1548
    %v1613 = vmul.f32 %v1549, %v1549
    %v1614 = vmul.f32 %v1550, %v1550
    %v1615 = vmul.f32 %v1551, %v1551
    %v1616 = vmul.f32 %v1552, %v1552
    %v1617 = vmul.f32 %v1553, %v1553
    %v1618 = vmul.f32 %v1554, %v1554
    %v1619 = vmul.f32 %v1555, %v1555
    %v1620 = vmul.f32 %v1556, %v1556
    %v1621 = vmul.f32 %v1557, %v1557
    %v1622 = vmul.f32 %v1558, %v1558
    %v1623 = vmul.f32 %v1559, %v1559
    %v1624 = vmul.f32 %v1560, %v1560
    %v1625 = vmul.f32 %v1561, %v1561
    %v1626 = vmul.f32 %v1562, %v1562
    %v1627 = vmul.f32 %v1563, %v1563
    %v1628 = vmul.f32 %v1564, %v1564
    %v1629 = vmul.f32 %v1565, %v1565
    %v1630 = vmul.f32 %v1566, %v1566
    %v1631 = vmul.f32 %v1567, %v1567
    %v1632 = vmul.f32 %v1568, %v1568
    %v1633 = vmul.f32 %v1569, %v1569
    %v1634 = vmul.f32 %v1570, %v1570
    %v1635 = vmul.f32 %v1571, %v1571
    %v1636 = vmul.f32 %v1572, %v1572
    %v1637 = vmul.f32 %v1573, %v1573
    %v1638 = vmul.f32 %v1574, %v1574
    %v1639 = vmul.f32 %v1575, %v1575
    %v1640 = vmul.f32 %v1576, %v1576
    %v1641 = vmul.f32 %v1577, %v1577
    %v1642 = vmul.f32 %v1578, %v1578
    %v1643 = vmul.f32 %v1579, %v1579
    %v1644 = vmul.f32 %v1580, %v1580
    %v1645 = vmul.f32 %v1581, %v1581
    %v1646 = vmul.f32 %v1582, %v1582
    %v1647 = vmul.f32 %v1583, %v1583
    %v1648 = vmul.f32 %v1584, %v1584
    %v1649 = vmul.f32 %v1585, %v1585
    %v1650 = vmul.f32 %v1586, %v1586
    %v1651 = vmul.f32 %v1587, %v1587
    %v1652 = vmul.f32 %v1588, %v1588
    %v1653 = vmul.f32 %v1589, %v1589
    %v1654 = vmul.f32 %v1590, %v1590
    %v1655 = vmul.f32 %v1591, %v1591
    %v1656 = vmul.f32 %v1592, %v1592
    %v1657 = vmul.f32 %v1593, %v1593
    %v1658 = vmul.f32 %v1594, %v1594
    %v1659 = vmul.f32 %v1595, %v1595
    %v1660 = vmul.f32 %v1596, %v1596
    %v1661 = vmul.f32 %v1597, %v1597
    %v1662 = vmul.f32 %v1598, %v1598
    %v1663 = vmul.f32 %v1599, %v1599
    %v1664 = vmul.f32 %v1600, %v1600
    %v1665 = vmul.f32 %v1601, %v1601
    %v1666 = vmul.f32 %v1602, %v1602
    %v1667 = vmul.f32 %v1603, %v1603
    %1668 = vadd.xlane.f32.xlu0 %v1604
    %v1669 = vpop.xlane.xlu0 %1668
    %1670 = vadd.xlane.f32.xlu0 %v1605
    %v1671 = vpop.xlane.xlu0 %1670
    %1672 = vadd.xlane.f32.xlu0 %v1606
    %v1673 = vpop.xlane.xlu0 %1672
    %1674 = vadd.xlane.f32.xlu0 %v1607
    %v1675 = vpop.xlane.xlu0 %1674
    %1676 = vadd.xlane.f32.xlu0 %v1608
    %v1677 = vpop.xlane.xlu0 %1676
    %1678 = vadd.xlane.f32.xlu0 %v1609
    %v1679 = vpop.xlane.xlu0 %1678
    %1680 = vadd.xlane.f32.xlu0 %v1610
    %v1681 = vpop.xlane.xlu0 %1680
    %1682 = vadd.xlane.f32.xlu0 %v1611
    %v1683 = vpop.xlane.xlu0 %1682
    %1684 = vadd.xlane.f32.xlu0 %v1612
    %v1685 = vpop.xlane.xlu0 %1684
    %1686 = vadd.xlane.f32.xlu0 %v1613
    %v1687 = vpop.xlane.xlu0 %1686
    %1688 = vadd.xlane.f32.xlu0 %v1614
    %v1689 = vpop.xlane.xlu0 %1688
    %1690 = vadd.xlane.f32.xlu0 %v1615
    %v1691 = vpop.xlane.xlu0 %1690
    %1692 = vadd.xlane.f32.xlu0 %v1616
    %v1693 = vpop.xlane.xlu0 %1692
    %1694 = vadd.xlane.f32.xlu0 %v1617
    %v1695 = vpop.xlane.xlu0 %1694
    %1696 = vadd.xlane.f32.xlu0 %v1618
    %v1697 = vpop.xlane.xlu0 %1696
    %1698 = vadd.xlane.f32.xlu0 %v1619
    %v1699 = vpop.xlane.xlu0 %1698
    %1700 = vadd.xlane.f32.xlu0 %v1620
    %v1701 = vpop.xlane.xlu0 %1700
    %1702 = vadd.xlane.f32.xlu0 %v1621
    %v1703 = vpop.xlane.xlu0 %1702
    %1704 = vadd.xlane.f32.xlu0 %v1622
    %v1705 = vpop.xlane.xlu0 %1704
    %1706 = vadd.xlane.f32.xlu0 %v1623
    %v1707 = vpop.xlane.xlu0 %1706
    %1708 = vadd.xlane.f32.xlu0 %v1624
    %v1709 = vpop.xlane.xlu0 %1708
    %1710 = vadd.xlane.f32.xlu0 %v1625
    %v1711 = vpop.xlane.xlu0 %1710
    %1712 = vadd.xlane.f32.xlu0 %v1626
    %v1713 = vpop.xlane.xlu0 %1712
    %1714 = vadd.xlane.f32.xlu0 %v1627
    %v1715 = vpop.xlane.xlu0 %1714
    %1716 = vadd.xlane.f32.xlu0 %v1628
    %v1717 = vpop.xlane.xlu0 %1716
    %1718 = vadd.xlane.f32.xlu0 %v1629
    %v1719 = vpop.xlane.xlu0 %1718
    %1720 = vadd.xlane.f32.xlu0 %v1630
    %v1721 = vpop.xlane.xlu0 %1720
    %1722 = vadd.xlane.f32.xlu0 %v1631
    %v1723 = vpop.xlane.xlu0 %1722
    %1724 = vadd.xlane.f32.xlu0 %v1632
    %v1725 = vpop.xlane.xlu0 %1724
    %1726 = vadd.xlane.f32.xlu0 %v1633
    %v1727 = vpop.xlane.xlu0 %1726
    %1728 = vadd.xlane.f32.xlu0 %v1634
    %v1729 = vpop.xlane.xlu0 %1728
    %1730 = vadd.xlane.f32.xlu0 %v1635
    %v1731 = vpop.xlane.xlu0 %1730
    %1732 = vadd.xlane.f32.xlu0 %v1636
    %v1733 = vpop.xlane.xlu0 %1732
    %1734 = vadd.xlane.f32.xlu0 %v1637
    %v1735 = vpop.xlane.xlu0 %1734
    %1736 = vadd.xlane.f32.xlu0 %v1638
    %v1737 = vpop.xlane.xlu0 %1736
    %1738 = vadd.xlane.f32.xlu0 %v1639
    %v1739 = vpop.xlane.xlu0 %1738
    %1740 = vadd.xlane.f32.xlu0 %v1640
    %v1741 = vpop.xlane.xlu0 %1740
    %1742 = vadd.xlane.f32.xlu0 %v1641
    %v1743 = vpop.xlane.xlu0 %1742
    %1744 = vadd.xlane.f32.xlu0 %v1642
    %v1745 = vpop.xlane.xlu0 %1744
    %1746 = vadd.xlane.f32.xlu0 %v1643
    %v1747 = vpop.xlane.xlu0 %1746
    %1748 = vadd.xlane.f32.xlu0 %v1644
    %v1749 = vpop.xlane.xlu0 %1748
    %1750 = vadd.xlane.f32.xlu0 %v1645
    %v1751 = vpop.xlane.xlu0 %1750
    %1752 = vadd.xlane.f32.xlu0 %v1646
    %v1753 = vpop.xlane.xlu0 %1752
    %1754 = vadd.xlane.f32.xlu0 %v1647
    %v1755 = vpop.xlane.xlu0 %1754
    %1756 = vadd.xlane.f32.xlu0 %v1648
    %v1757 = vpop.xlane.xlu0 %1756
    %1758 = vadd.xlane.f32.xlu0 %v1649
    %v1759 = vpop.xlane.xlu0 %1758
    %1760 = vadd.xlane.f32.xlu0 %v1650
    %v1761 = vpop.xlane.xlu0 %1760
    %1762 = vadd.xlane.f32.xlu0 %v1651
    %v1763 = vpop.xlane.xlu0 %1762
    %1764 = vadd.xlane.f32.xlu0 %v1652
    %v1765 = vpop.xlane.xlu0 %1764
    %1766 = vadd.xlane.f32.xlu0 %v1653
    %v1767 = vpop.xlane.xlu0 %1766
    %1768 = vadd.xlane.f32.xlu0 %v1654
    %v1769 = vpop.xlane.xlu0 %1768
    %1770 = vadd.xlane.f32.xlu0 %v1655
    %v1771 = vpop.xlane.xlu0 %1770
    %1772 = vadd.xlane.f32.xlu0 %v1656
    %v1773 = vpop.xlane.xlu0 %1772
    %1774 = vadd.xlane.f32.xlu0 %v1657
    %v1775 = vpop.xlane.xlu0 %1774
    %1776 = vadd.xlane.f32.xlu0 %v1658
    %v1777 = vpop.xlane.xlu0 %1776
    %1778 = vadd.xlane.f32.xlu0 %v1659
    %v1779 = vpop.xlane.xlu0 %1778
    %1780 = vadd.xlane.f32.xlu0 %v1660
    %v1781 = vpop.xlane.xlu0 %1780
    %1782 = vadd.xlane.f32.xlu0 %v1661
    %v1783 = vpop.xlane.xlu0 %1782
    %1784 = vadd.xlane.f32.xlu0 %v1662
    %v1785 = vpop.xlane.xlu0 %1784
    %1786 = vadd.xlane.f32.xlu0 %v1663
    %v1787 = vpop.xlane.xlu0 %1786
    %1788 = vadd.xlane.f32.xlu0 %v1664
    %v1789 = vpop.xlane.xlu0 %1788
    %1790 = vadd.xlane.f32.xlu0 %v1665
    %v1791 = vpop.xlane.xlu0 %1790
    %1792 = vadd.xlane.f32.xlu0 %v1666
    %v1793 = vpop.xlane.xlu0 %1792
    %1794 = vadd.xlane.f32.xlu0 %v1667
    %v1795 = vpop.xlane.xlu0 %1794
    %v1796 = vmul.f32 %v1669, 0.01
    %v1797 = vmul.f32 %v1671, 0.01
    %v1798 = vmul.f32 %v1673, 0.01
    %v1799 = vmul.f32 %v1675, 0.01
    %v1800 = vmul.f32 %v1677, 0.01
    %v1801 = vmul.f32 %v1679, 0.01
    %v1802 = vmul.f32 %v1681, 0.01
    %v1803 = vmul.f32 %v1683, 0.01
    %v1804 = vmul.f32 %v1685, 0.01
    %v1805 = vmul.f32 %v1687, 0.01
    %v1806 = vmul.f32 %v1689, 0.01
    %v1807 = vmul.f32 %v1691, 0.01
    %v1808 = vmul.f32 %v1693, 0.01
    %v1809 = vmul.f32 %v1695, 0.01
    %v1810 = vmul.f32 %v1697, 0.01
    %v1811 = vmul.f32 %v1699, 0.01
    %v1812 = vmul.f32 %v1701, 0.01
    %v1813 = vmul.f32 %v1703, 0.01
    %v1814 = vmul.f32 %v1705, 0.01
    %v1815 = vmul.f32 %v1707, 0.01
    %v1816 = vmul.f32 %v1709, 0.01
    %v1817 = vmul.f32 %v1711, 0.01
    %v1818 = vmul.f32 %v1713, 0.01
    %v1819 = vmul.f32 %v1715, 0.01
    %v1820 = vmul.f32 %v1717, 0.01
    %v1821 = vmul.f32 %v1719, 0.01
    %v1822 = vmul.f32 %v1721, 0.01
    %v1823 = vmul.f32 %v1723, 0.01
    %v1824 = vmul.f32 %v1725, 0.01
    %v1825 = vmul.f32 %v1727, 0.01
    %v1826 = vmul.f32 %v1729, 0.01
    %v1827 = vmul.f32 %v1731, 0.01
    %v1828 = vmul.f32 %v1733, 0.01
    %v1829 = vmul.f32 %v1735, 0.01
    %v1830 = vmul.f32 %v1737, 0.01
    %v1831 = vmul.f32 %v1739, 0.01
    %v1832 = vmul.f32 %v1741, 0.01
    %v1833 = vmul.f32 %v1743, 0.01
    %v1834 = vmul.f32 %v1745, 0.01
    %v1835 = vmul.f32 %v1747, 0.01
    %v1836 = vmul.f32 %v1749, 0.01
    %v1837 = vmul.f32 %v1751, 0.01
    %v1838 = vmul.f32 %v1753, 0.01
    %v1839 = vmul.f32 %v1755, 0.01
    %v1840 = vmul.f32 %v1757, 0.01
    %v1841 = vmul.f32 %v1759, 0.01
    %v1842 = vmul.f32 %v1761, 0.01
    %v1843 = vmul.f32 %v1763, 0.01
    %v1844 = vmul.f32 %v1765, 0.01
    %v1845 = vmul.f32 %v1767, 0.01
    %v1846 = vmul.f32 %v1769, 0.01
    %v1847 = vmul.f32 %v1771, 0.01
    %v1848 = vmul.f32 %v1773, 0.01
    %v1849 = vmul.f32 %v1775, 0.01
    %v1850 = vmul.f32 %v1777, 0.01
    %v1851 = vmul.f32 %v1779, 0.01
    %v1852 = vmul.f32 %v1781, 0.01
    %v1853 = vmul.f32 %v1783, 0.01
    %v1854 = vmul.f32 %v1785, 0.01
    %v1855 = vmul.f32 %v1787, 0.01
    %v1856 = vmul.f32 %v1789, 0.01
    %v1857 = vmul.f32 %v1791, 0.01
    %v1858 = vmul.f32 %v1793, 0.01
    %v1859 = vmul.f32 %v1795, 0.01
    %v1860 = vadd.f32 %v1796, 1e-05
    %v1861 = vadd.f32 %v1797, 1e-05
    %v1862 = vadd.f32 %v1798, 1e-05
    %v1863 = vadd.f32 %v1799, 1e-05
    %v1864 = vadd.f32 %v1800, 1e-05
    %v1865 = vadd.f32 %v1801, 1e-05
    %v1866 = vadd.f32 %v1802, 1e-05
    %v1867 = vadd.f32 %v1803, 1e-05
    %v1868 = vadd.f32 %v1804, 1e-05
    %v1869 = vadd.f32 %v1805, 1e-05
    %v1870 = vadd.f32 %v1806, 1e-05
    %v1871 = vadd.f32 %v1807, 1e-05
    %v1872 = vadd.f32 %v1808, 1e-05
    %v1873 = vadd.f32 %v1809, 1e-05
    %v1874 = vadd.f32 %v1810, 1e-05
    %v1875 = vadd.f32 %v1811, 1e-05
    %v1876 = vadd.f32 %v1812, 1e-05
    %v1877 = vadd.f32 %v1813, 1e-05
    %v1878 = vadd.f32 %v1814, 1e-05
    %v1879 = vadd.f32 %v1815, 1e-05
    %v1880 = vadd.f32 %v1816, 1e-05
    %v1881 = vadd.f32 %v1817, 1e-05
    %v1882 = vadd.f32 %v1818, 1e-05
    %v1883 = vadd.f32 %v1819, 1e-05
    %v1884 = vadd.f32 %v1820, 1e-05
    %v1885 = vadd.f32 %v1821, 1e-05
    %v1886 = vadd.f32 %v1822, 1e-05
    %v1887 = vadd.f32 %v1823, 1e-05
    %v1888 = vadd.f32 %v1824, 1e-05
    %v1889 = vadd.f32 %v1825, 1e-05
    %v1890 = vadd.f32 %v1826, 1e-05
    %v1891 = vadd.f32 %v1827, 1e-05
    %v1892 = vadd.f32 %v1828, 1e-05
    %v1893 = vadd.f32 %v1829, 1e-05
    %v1894 = vadd.f32 %v1830, 1e-05
    %v1895 = vadd.f32 %v1831, 1e-05
    %v1896 = vadd.f32 %v1832, 1e-05
    %v1897 = vadd.f32 %v1833, 1e-05
    %v1898 = vadd.f32 %v1834, 1e-05
    %v1899 = vadd.f32 %v1835, 1e-05
    %v1900 = vadd.f32 %v1836, 1e-05
    %v1901 = vadd.f32 %v1837, 1e-05
    %v1902 = vadd.f32 %v1838, 1e-05
    %v1903 = vadd.f32 %v1839, 1e-05
    %v1904 = vadd.f32 %v1840, 1e-05
    %v1905 = vadd.f32 %v1841, 1e-05
    %v1906 = vadd.f32 %v1842, 1e-05
    %v1907 = vadd.f32 %v1843, 1e-05
    %v1908 = vadd.f32 %v1844, 1e-05
    %v1909 = vadd.f32 %v1845, 1e-05
    %v1910 = vadd.f32 %v1846, 1e-05
    %v1911 = vadd.f32 %v1847, 1e-05
    %v1912 = vadd.f32 %v1848, 1e-05
    %v1913 = vadd.f32 %v1849, 1e-05
    %v1914 = vadd.f32 %v1850, 1e-05
    %v1915 = vadd.f32 %v1851, 1e-05
    %v1916 = vadd.f32 %v1852, 1e-05
    %v1917 = vadd.f32 %v1853, 1e-05
    %v1918 = vadd.f32 %v1854, 1e-05
    %v1919 = vadd.f32 %v1855, 1e-05
    %v1920 = vadd.f32 %v1856, 1e-05
    %v1921 = vadd.f32 %v1857, 1e-05
    %v1922 = vadd.f32 %v1858, 1e-05
    %v1923 = vadd.f32 %v1859, 1e-05
    %v1924 = vrsqrt.pop %v1860
    %v1925 = vrsqrt.pop %v1861
    %v1926 = vrsqrt.pop %v1862
    %v1927 = vrsqrt.pop %v1863
    %v1928 = vrsqrt.pop %v1864
    %v1929 = vrsqrt.pop %v1865
    %v1930 = vrsqrt.pop %v1866
    %v1931 = vrsqrt.pop %v1867
    %v1932 = vrsqrt.pop %v1868
    %v1933 = vrsqrt.pop %v1869
    %v1934 = vrsqrt.pop %v1870
    %v1935 = vrsqrt.pop %v1871
    %v1936 = vrsqrt.pop %v1872
    %v1937 = vrsqrt.pop %v1873
    %v1938 = vrsqrt.pop %v1874
    %v1939 = vrsqrt.pop %v1875
    %v1940 = vrsqrt.pop %v1876
    %v1941 = vrsqrt.pop %v1877
    %v1942 = vrsqrt.pop %v1878
    %v1943 = vrsqrt.pop %v1879
    %v1944 = vrsqrt.pop %v1880
    %v1945 = vrsqrt.pop %v1881
    %v1946 = vrsqrt.pop %v1882
    %v1947 = vrsqrt.pop %v1883
    %v1948 = vrsqrt.pop %v1884
    %v1949 = vrsqrt.pop %v1885
    %v1950 = vrsqrt.pop %v1886
    %v1951 = vrsqrt.pop %v1887
    %v1952 = vrsqrt.pop %v1888
    %v1953 = vrsqrt.pop %v1889
    %v1954 = vrsqrt.pop %v1890
    %v1955 = vrsqrt.pop %v1891
    %v1956 = vrsqrt.pop %v1892
    %v1957 = vrsqrt.pop %v1893
    %v1958 = vrsqrt.pop %v1894
    %v1959 = vrsqrt.pop %v1895
    %v1960 = vrsqrt.pop %v1896
    %v1961 = vrsqrt.pop %v1897
    %v1962 = vrsqrt.pop %v1898
    %v1963 = vrsqrt.pop %v1899
    %v1964 = vrsqrt.pop %v1900
    %v1965 = vrsqrt.pop %v1901
    %v1966 = vrsqrt.pop %v1902
    %v1967 = vrsqrt.pop %v1903
    %v1968 = vrsqrt.pop %v1904
    %v1969 = vrsqrt.pop %v1905
    %v1970 = vrsqrt.pop %v1906
    %v1971 = vrsqrt.pop %v1907
    %v1972 = vrsqrt.pop %v1908
    %v1973 = vrsqrt.pop %v1909
    %v1974 = vrsqrt.pop %v1910
    %v1975 = vrsqrt.pop %v1911
    %v1976 = vrsqrt.pop %v1912
    %v1977 = vrsqrt.pop %v1913
    %v1978 = vrsqrt.pop %v1914
    %v1979 = vrsqrt.pop %v1915
    %v1980 = vrsqrt.pop %v1916
    %v1981 = vrsqrt.pop %v1917
    %v1982 = vrsqrt.pop %v1918
    %v1983 = vrsqrt.pop %v1919
    %v1984 = vrsqrt.pop %v1920
    %v1985 = vrsqrt.pop %v1921
    %v1986 = vrsqrt.pop %v1922
    %v1987 = vrsqrt.pop %v1923
    %v1988 = vmul.f32 %v1540, %v1924
    %v1989 = vmul.f32 %v1541, %v1925
    %v1990 = vmul.f32 %v1542, %v1926
    %v1991 = vmul.f32 %v1543, %v1927
    %v1992 = vmul.f32 %v1544, %v1928
    %v1993 = vmul.f32 %v1545, %v1929
    %v1994 = vmul.f32 %v1546, %v1930
    %v1995 = vmul.f32 %v1547, %v1931
    %v1996 = vmul.f32 %v1548, %v1932
    %v1997 = vmul.f32 %v1549, %v1933
    %v1998 = vmul.f32 %v1550, %v1934
    %v1999 = vmul.f32 %v1551, %v1935
    %v2000 = vmul.f32 %v1552, %v1936
    %v2001 = vmul.f32 %v1553, %v1937
    %v2002 = vmul.f32 %v1554, %v1938
    %v2003 = vmul.f32 %v1555, %v1939
    %v2004 = vmul.f32 %v1556, %v1940
    %v2005 = vmul.f32 %v1557, %v1941
    %v2006 = vmul.f32 %v1558, %v1942
    %v2007 = vmul.f32 %v1559, %v1943
    %v2008 = vmul.f32 %v1560, %v1944
    %v2009 = vmul.f32 %v1561, %v1945
    %v2010 = vmul.f32 %v1562, %v1946
    %v2011 = vmul.f32 %v1563, %v1947
    %v2012 = vmul.f32 %v1564, %v1948
    %v2013 = vmul.f32 %v1565, %v1949
    %v2014 = vmul.f32 %v1566, %v1950
    %v2015 = vmul.f32 %v1567, %v1951
    %v2016 = vmul.f32 %v1568, %v1952
    %v2017 = vmul.f32 %v1569, %v1953
    %v2018 = vmul.f32 %v1570, %v1954
    %v2019 = vmul.f32 %v1571, %v1955
    %v2020 = vmul.f32 %v1572, %v1956
    %v2021 = vmul.f32 %v1573, %v1957
    %v2022 = vmul.f32 %v1574, %v1958
    %v2023 = vmul.f32 %v1575, %v1959
    %v2024 = vmul.f32 %v1576, %v1960
    %v2025 = vmul.f32 %v1577, %v1961
    %v2026 = vmul.f32 %v1578, %v1962
    %v2027 = vmul.f32 %v1579, %v1963
    %v2028 = vmul.f32 %v1580, %v1964
    %v2029 = vmul.f32 %v1581, %v1965
    %v2030 = vmul.f32 %v1582, %v1966
    %v2031 = vmul.f32 %v1583, %v1967
    %v2032 = vmul.f32 %v1584, %v1968
    %v2033 = vmul.f32 %v1585, %v1969
    %v2034 = vmul.f32 %v1586, %v1970
    %v2035 = vmul.f32 %v1587, %v1971
    %v2036 = vmul.f32 %v1588, %v1972
    %v2037 = vmul.f32 %v1589, %v1973
    %v2038 = vmul.f32 %v1590, %v1974
    %v2039 = vmul.f32 %v1591, %v1975
    %v2040 = vmul.f32 %v1592, %v1976
    %v2041 = vmul.f32 %v1593, %v1977
    %v2042 = vmul.f32 %v1594, %v1978
    %v2043 = vmul.f32 %v1595, %v1979
    %v2044 = vmul.f32 %v1596, %v1980
    %v2045 = vmul.f32 %v1597, %v1981
    %v2046 = vmul.f32 %v1598, %v1982
    %v2047 = vmul.f32 %v1599, %v1983
    %v2048 = vmul.f32 %v1600, %v1984
    %v2049 = vmul.f32 %v1601, %v1985
    %v2050 = vmul.f32 %v1602, %v1986
    %v2051 = vmul.f32 %v1603, %v1987
    %v2052 = vlaneseq
    %v2053 = vshrl.u32 %v2052, 7
    %v2054 = vsub.s32 2, %v2053
    %v2055 = vrot.slane %v111, %v2054
    %v2056 = vmul.f32 %v1988, %v2055
    %v2057 = vmul.f32 %v1989, %v2055
    %v2058 = vmul.f32 %v1990, %v2055
    %v2059 = vmul.f32 %v1991, %v2055
    %v2060 = vmul.f32 %v1992, %v2055
    %v2061 = vmul.f32 %v1993, %v2055
    %v2062 = vmul.f32 %v1994, %v2055
    %v2063 = vmul.f32 %v1995, %v2055
    %v2064 = vmul.f32 %v1996, %v2055
    %v2065 = vmul.f32 %v1997, %v2055
    %v2066 = vmul.f32 %v1998, %v2055
    %v2067 = vmul.f32 %v1999, %v2055
    %v2068 = vmul.f32 %v2000, %v2055
    %v2069 = vmul.f32 %v2001, %v2055
    %v2070 = vmul.f32 %v2002, %v2055
    %v2071 = vmul.f32 %v2003, %v2055
    %v2072 = vmul.f32 %v2004, %v2055
    %v2073 = vmul.f32 %v2005, %v2055
    %v2074 = vmul.f32 %v2006, %v2055
    %v2075 = vmul.f32 %v2007, %v2055
    %v2076 = vmul.f32 %v2008, %v2055
    %v2077 = vmul.f32 %v2009, %v2055
    %v2078 = vmul.f32 %v2010, %v2055
    %v2079 = vmul.f32 %v2011, %v2055
    %v2080 = vmul.f32 %v2012, %v2055
    %v2081 = vmul.f32 %v2013, %v2055
    %v2082 = vmul.f32 %v2014, %v2055
    %v2083 = vmul.f32 %v2015, %v2055
    %v2084 = vmul.f32 %v2016, %v2055
    %v2085 = vmul.f32 %v2017, %v2055
    %v2086 = vmul.f32 %v2018, %v2055
    %v2087 = vmul.f32 %v2019, %v2055
    %v2088 = vmul.f32 %v2020, %v2055
    %v2089 = vmul.f32 %v2021, %v2055
    %v2090 = vmul.f32 %v2022, %v2055
    %v2091 = vmul.f32 %v2023, %v2055
    %v2092 = vmul.f32 %v2024, %v2055
    %v2093 = vmul.f32 %v2025, %v2055
    %v2094 = vmul.f32 %v2026, %v2055
    %v2095 = vmul.f32 %v2027, %v2055
    %v2096 = vmul.f32 %v2028, %v2055
    %v2097 = vmul.f32 %v2029, %v2055
    %v2098 = vmul.f32 %v2030, %v2055
    %v2099 = vmul.f32 %v2031, %v2055
    %v2100 = vmul.f32 %v2032, %v2055
    %v2101 = vmul.f32 %v2033, %v2055
    %v2102 = vmul.f32 %v2034, %v2055
    %v2103 = vmul.f32 %v2035, %v2055
    %v2104 = vmul.f32 %v2036, %v2055
    %v2105 = vmul.f32 %v2037, %v2055
    %v2106 = vmul.f32 %v2038, %v2055
    %v2107 = vmul.f32 %v2039, %v2055
    %v2108 = vmul.f32 %v2040, %v2055
    %v2109 = vmul.f32 %v2041, %v2055
    %v2110 = vmul.f32 %v2042, %v2055
    %v2111 = vmul.f32 %v2043, %v2055
    %v2112 = vmul.f32 %v2044, %v2055
    %v2113 = vmul.f32 %v2045, %v2055
    %v2114 = vmul.f32 %v2046, %v2055
    %v2115 = vmul.f32 %v2047, %v2055
    %v2116 = vmul.f32 %v2048, %v2055
    %v2117 = vmul.f32 %v2049, %v2055
    %v2118 = vmul.f32 %v2050, %v2055
    %v2119 = vmul.f32 %v2051, %v2055
    %v2120 = vlaneseq
    %v2121 = vshrl.u32 %v2120, 7
    %v2122 = vsub.s32 3, %v2121
    %v2123 = vrot.slane %v111, %v2122
    %v2124 = vadd.f32 %v2056, %v2123
    %v2125 = vadd.f32 %v2057, %v2123
    %v2126 = vadd.f32 %v2058, %v2123
    %v2127 = vadd.f32 %v2059, %v2123
    %v2128 = vadd.f32 %v2060, %v2123
    %v2129 = vadd.f32 %v2061, %v2123
    %v2130 = vadd.f32 %v2062, %v2123
    %v2131 = vadd.f32 %v2063, %v2123
    %v2132 = vadd.f32 %v2064, %v2123
    %v2133 = vadd.f32 %v2065, %v2123
    %v2134 = vadd.f32 %v2066, %v2123
    %v2135 = vadd.f32 %v2067, %v2123
    %v2136 = vadd.f32 %v2068, %v2123
    %v2137 = vadd.f32 %v2069, %v2123
    %v2138 = vadd.f32 %v2070, %v2123
    %v2139 = vadd.f32 %v2071, %v2123
    %v2140 = vadd.f32 %v2072, %v2123
    %v2141 = vadd.f32 %v2073, %v2123
    %v2142 = vadd.f32 %v2074, %v2123
    %v2143 = vadd.f32 %v2075, %v2123
    %v2144 = vadd.f32 %v2076, %v2123
    %v2145 = vadd.f32 %v2077, %v2123
    %v2146 = vadd.f32 %v2078, %v2123
    %v2147 = vadd.f32 %v2079, %v2123
    %v2148 = vadd.f32 %v2080, %v2123
    %v2149 = vadd.f32 %v2081, %v2123
    %v2150 = vadd.f32 %v2082, %v2123
    %v2151 = vadd.f32 %v2083, %v2123
    %v2152 = vadd.f32 %v2084, %v2123
    %v2153 = vadd.f32 %v2085, %v2123
    %v2154 = vadd.f32 %v2086, %v2123
    %v2155 = vadd.f32 %v2087, %v2123
    %v2156 = vadd.f32 %v2088, %v2123
    %v2157 = vadd.f32 %v2089, %v2123
    %v2158 = vadd.f32 %v2090, %v2123
    %v2159 = vadd.f32 %v2091, %v2123
    %v2160 = vadd.f32 %v2092, %v2123
    %v2161 = vadd.f32 %v2093, %v2123
    %v2162 = vadd.f32 %v2094, %v2123
    %v2163 = vadd.f32 %v2095, %v2123
    %v2164 = vadd.f32 %v2096, %v2123
    %v2165 = vadd.f32 %v2097, %v2123
    %v2166 = vadd.f32 %v2098, %v2123
    %v2167 = vadd.f32 %v2099, %v2123
    %v2168 = vadd.f32 %v2100, %v2123
    %v2169 = vadd.f32 %v2101, %v2123
    %v2170 = vadd.f32 %v2102, %v2123
    %v2171 = vadd.f32 %v2103, %v2123
    %v2172 = vadd.f32 %v2104, %v2123
    %v2173 = vadd.f32 %v2105, %v2123
    %v2174 = vadd.f32 %v2106, %v2123
    %v2175 = vadd.f32 %v2107, %v2123
    %v2176 = vadd.f32 %v2108, %v2123
    %v2177 = vadd.f32 %v2109, %v2123
    %v2178 = vadd.f32 %v2110, %v2123
    %v2179 = vadd.f32 %v2111, %v2123
    %v2180 = vadd.f32 %v2112, %v2123
    %v2181 = vadd.f32 %v2113, %v2123
    %v2182 = vadd.f32 %v2114, %v2123
    %v2183 = vadd.f32 %v2115, %v2123
    %v2184 = vadd.f32 %v2116, %v2123
    %v2185 = vadd.f32 %v2117, %v2123
    %v2186 = vadd.f32 %v2118, %v2123
    %v2187 = vadd.f32 %v2119, %v2123
    %2188 = vst [vmem:[#allocation2] sm:$0xff] %v2124
    %2189 = vst [vmem:[#allocation2 + $0x8] sm:$0xff] %v2125
    %2190 = vst [vmem:[#allocation2 + $0x10] sm:$0xff] %v2126
    %2191 = vst [vmem:[#allocation2 + $0x18] sm:$0xff] %v2127
    %2192 = vst [vmem:[#allocation2 + $0x20] sm:$0xff] %v2128
    %2193 = vst [vmem:[#allocation2 + $0x28] sm:$0xff] %v2129
    %2194 = vst [vmem:[#allocation2 + $0x30] sm:$0xff] %v2130
    %2195 = vst [vmem:[#allocation2 + $0x38] sm:$0xff] %v2131
    %2196 = vst [vmem:[#allocation2 + $0x40] sm:$0xff] %v2132
    %2197 = vst [vmem:[#allocation2 + $0x48] sm:$0xff] %v2133
    %2198 = vst [vmem:[#allocation2 + $0x50] sm:$0xff] %v2134
    %2199 = vst [vmem:[#allocation2 + $0x58] sm:$0xff] %v2135
    %2200 = vst [vmem:[#allocation2 + $0x60] sm:$0xff] %v2136
    %2201 = vst [vmem:[#allocation2 + $0x68] sm:$0xff] %v2137
    %2202 = vst [vmem:[#allocation2 + $0x70] sm:$0xff] %v2138
    %2203 = vst [vmem:[#allocation2 + $0x78] sm:$0xff] %v2139
    %2204 = vst [vmem:[#allocation2 + $0x80] sm:$0xff] %v2140
    %2205 = vst [vmem:[#allocation2 + $0x88] sm:$0xff] %v2141
    %2206 = vst [vmem:[#allocation2 + $0x90] sm:$0xff] %v2142
    %2207 = vst [vmem:[#allocation2 + $0x98] sm:$0xff] %v2143
    %2208 = vst [vmem:[#allocation2 + $0xa0] sm:$0xff] %v2144
    %2209 = vst [vmem:[#allocation2 + $0xa8] sm:$0xff] %v2145
    %2210 = vst [vmem:[#allocation2 + $0xb0] sm:$0xff] %v2146
    %2211 = vst [vmem:[#allocation2 + $0xb8] sm:$0xff] %v2147
    %2212 = vst [vmem:[#allocation2 + $0xc0] sm:$0xff] %v2148
    %2213 = vst [vmem:[#allocation2 + $0xc8] sm:$0xff] %v2149
    %2214 = vst [vmem:[#allocation2 + $0xd0] sm:$0xff] %v2150
    %2215 = vst [vmem:[#allocation2 + $0xd8] sm:$0xff] %v2151
    %2216 = vst [vmem:[#allocation2 + $0xe0] sm:$0xff] %v2152
    %2217 = vst [vmem:[#allocation2 + $0xe8] sm:$0xff] %v2153
    %2218 = vst [vmem:[#allocation2 + $0xf0] sm:$0xff] %v2154
    %2219 = vst [vmem:[#allocation2 + $0xf8] sm:$0xff] %v2155
    %2220 = vst [vmem:[#allocation2 + $0x100] sm:$0xff] %v2156
    %2221 = vst [vmem:[#allocation2 + $0x108] sm:$0xff] %v2157
    %2222 = vst [vmem:[#allocation2 + $0x110] sm:$0xff] %v2158
    %2223 = vst [vmem:[#allocation2 + $0x118] sm:$0xff] %v2159
    %2224 = vst [vmem:[#allocation2 + $0x120] sm:$0xff] %v2160
    %2225 = vst [vmem:[#allocation2 + $0x128] sm:$0xff] %v2161
    %2226 = vst [vmem:[#allocation2 + $0x130] sm:$0xff] %v2162
    %2227 = vst [vmem:[#allocation2 + $0x138] sm:$0xff] %v2163
    %2228 = vst [vmem:[#allocation2 + $0x140] sm:$0xff] %v2164
    %2229 = vst [vmem:[#allocation2 + $0x148] sm:$0xff] %v2165
    %2230 = vst [vmem:[#allocation2 + $0x150] sm:$0xff] %v2166
    %2231 = vst [vmem:[#allocation2 + $0x158] sm:$0xff] %v2167
    %2232 = vst [vmem:[#allocation2 + $0x160] sm:$0xff] %v2168
    %2233 = vst [vmem:[#allocation2 + $0x168] sm:$0xff] %v2169
    %2234 = vst [vmem:[#allocation2 + $0x170] sm:$0xff] %v2170
    %2235 = vst [vmem:[#allocation2 + $0x178] sm:$0xff] %v2171
    %2236 = vst [vmem:[#allocation2 + $0x180] sm:$0xff] %v2172
    %2237 = vst [vmem:[#allocation2 + $0x188] sm:$0xff] %v2173
    %2238 = vst [vmem:[#allocation2 + $0x190] sm:$0xff] %v2174
    %2239 = vst [vmem:[#allocation2 + $0x198] sm:$0xff] %v2175
    %2240 = vst [vmem:[#allocation2 + $0x1a0] sm:$0xff] %v2176
    %2241 = vst [vmem:[#allocation2 + $0x1a8] sm:$0xff] %v2177
    %2242 = vst [vmem:[#allocation2 + $0x1b0] sm:$0xff] %v2178
    %2243 = vst [vmem:[#allocation2 + $0x1b8] sm:$0xff] %v2179
    %2244 = vst [vmem:[#allocation2 + $0x1c0] sm:$0xff] %v2180
    %2245 = vst [vmem:[#allocation2 + $0x1c8] sm:$0xff] %v2181
    %2246 = vst [vmem:[#allocation2 + $0x1d0] sm:$0xff] %v2182
    %2247 = vst [vmem:[#allocation2 + $0x1d8] sm:$0xff] %v2183
    %2248 = vst [vmem:[#allocation2 + $0x1e0] sm:$0xff] %v2184
    %2249 = vst [vmem:[#allocation2 + $0x1e8] sm:$0xff] %v2185
    %2250 = vst [vmem:[#allocation2 + $0x1f0] sm:$0xff] %v2186
    %2251 = vst [vmem:[#allocation2 + $0x1f8] sm:$0xff] %v2187
    // Predicated region
    $region18: #{tpu_custom_call.1} parent=1 // pred_check
      _
    $region19: #{tpu_custom_call.1} parent=1 // pred_check_branch
      %2253 = sbr.rel (0) target = $region21
    $region20: #{tpu_custom_call.1} parent=1 // pred_region
      %s2255 = ssub.s32 8192, 8192
      %2256 = vsyncadd [#allocation3], %s2255
      %s2257 = sshll.u32 [#allocation2], 4
      %s2258 = int_to_ptr.vmem [resolvable:$true] %s2257
      %2263 = dma.vmem_to_hbm [thread:$0]  %s2258, 8192, %s4, [#allocation3], 128, 128, 8
    $region21: #{tpu_custom_call.1} parent=1 // pred_fallthru
      _
    // Predicated region
    $region22: #{tpu_custom_call.1} parent=1 // pred_check
      _
    $region23: #{tpu_custom_call.1} parent=1 // pred_check_branch
      %2265 = sbr.rel (0) target = $region25
    $region24: #{tpu_custom_call.1} parent=1 // pred_region
      %2266 = dma.done [#allocation3], 8192
    $region25: #{tpu_custom_call.1} parent=1 // pred_fallthru
      _
    %2267 = vsyncpa [#allocation3], 1

// kernel: tpu_custom_call.1
$region0: #{tpu_custom_call.1}
  #allocation0 [shape = 'u32[]', space=smem, size = 0x4, offset = 0x4, fixed_abs, tag = 'smem constant byte address 0x4 - core index']
  #allocation1 [shape = 'u32[144,128]{1,0:T(1,128)}', space=vmem, size = 0x12000, scoped, tag = 'internal scratch']
  %s0 = inlined_call_operand.vmem [shape: f32[512,100], index: 0, kind: input, shape index: {}]
  %s1 = inlined_call_operand.vmem [shape: f32[100,128], index: 1, kind: input, shape index: {}]
  %s2 = inlined_call_operand.vmem [shape: f32[128,128], index: 2, kind: input, shape index: {}]
  %s3 = inlined_call_operand.vmem [shape: f32[8,128], index: 3, kind: input, shape index: {}]
  %s4 = inlined_call_operand.hbm [shape: f32[512,128], index: 4, kind: output, shape index: {}]
  %s5 = sld [smem:[#allocation0]]
  $region26: #{tpu_custom_call.1} parent=0
    _
  %s7 = ssub.s32 1, %s5
  %s8 = scalar_select 0, %s7, %s5
  $region1: #{tpu_custom_call.1} parent=0
    #allocation2 [shape = 'u8[262144]{0}', space=vmem, size = 0x40000, scoped, tag = 'output window, operand 0, single buffered']
    #allocation3 [shape = 's32[1]{0}', space=sflag, size = 0x4, scoped, tag = 'scoped memory for tpu_custom_call.1']
    %9 = vsyncpa [#allocation3], 0
    // Predicated region
    $region2: #{tpu_custom_call.1} parent=1 // pred_check
      _
    $region3: #{tpu_custom_call.1} parent=1 // pred_check_branch
      %11 = sbr.rel (0) target = $region5
    $region4: #{tpu_custom_call.1} parent=1 // pred_region
      _
    $region5: #{tpu_custom_call.1} parent=1 // pred_fallthru
      _
    // Predicated region
    $region6: #{tpu_custom_call.1} parent=1 // pred_check
      _
    $region7: #{tpu_custom_call.1} parent=1 // pred_check_branch
      %13 = sbr.rel (0) target = $region9
    $region8: #{tpu_custom_call.1} parent=1 // pred_region
      _
    $region9: #{tpu_custom_call.1} parent=1 // pred_fallthru
      _
    // Predicated region
    $region10: #{tpu_custom_call.1} parent=1 // pred_check
      _
    $region11: #{tpu_custom_call.1} parent=1 // pred_check_branch
      %15 = sbr.rel (0) target = $region13
    $region12: #{tpu_custom_call.1} parent=1 // pred_region
      _
    $region13: #{tpu_custom_call.1} parent=1 // pred_fallthru
      _
    // Predicated region
    $region14: #{tpu_custom_call.1} parent=1 // pred_check
      _
    $region15: #{tpu_custom_call.1} parent=1 // pred_check_branch
      %17 = sbr.rel (0) target = $region17
    $region16: #{tpu_custom_call.1} parent=1 // pred_region
      _
    $region17: #{tpu_custom_call.1} parent=1 // pred_fallthru
      _
    %v18 = vld [vmem:[%s1] sm:$0xff]
    %v19 = vld [vmem:[%s1 + $0x8] sm:$0xff]
    %v20 = vld [vmem:[%s1 + $0x10] sm:$0xff]
    %v21 = vld [vmem:[%s1 + $0x18] sm:$0xff]
    %v22 = vld [vmem:[%s1 + $0x20] sm:$0xff]
    %v23 = vld [vmem:[%s1 + $0x28] sm:$0xff]
    %v24 = vld [vmem:[%s1 + $0x30] sm:$0xff]
    %v25 = vld [vmem:[%s1 + $0x38] sm:$0xff]
    %v26 = vld [vmem:[%s1 + $0x40] sm:$0xff]
    %v27 = vld [vmem:[%s1 + $0x48] sm:$0xff]
    %v28 = vld [vmem:[%s1 + $0x50] sm:$0xff]
    %v29 = vld [vmem:[%s1 + $0x58] sm:$0xff]
    %v30 = vld [vmem:[%s1 + $0x60] sm:$0xf]
    %v31 = vld [vmem:[%s2] sm:$0xff]
    %v32 = vld [vmem:[%s2 + $0x8] sm:$0xff]
    %v33 = vld [vmem:[%s2 + $0x10] sm:$0xff]
    %v34 = vld [vmem:[%s2 + $0x18] sm:$0xff]
    %v35 = vld [vmem:[%s2 + $0x20] sm:$0xff]
    %v36 = vld [vmem:[%s2 + $0x28] sm:$0xff]
    %v37 = vld [vmem:[%s2 + $0x30] sm:$0xff]
    %v38 = vld [vmem:[%s2 + $0x38] sm:$0xff]
    %v39 = vld [vmem:[%s2 + $0x40] sm:$0xff]
    %v40 = vld [vmem:[%s2 + $0x48] sm:$0xff]
    %v41 = vld [vmem:[%s2 + $0x50] sm:$0xff]
    %v42 = vld [vmem:[%s2 + $0x58] sm:$0xff]
    %v43 = vld [vmem:[%s2 + $0x60] sm:$0xff]
    %v44 = vld [vmem:[%s2 + $0x68] sm:$0xff]
    %v45 = vld [vmem:[%s2 + $0x70] sm:$0xff]
    %v46 = vld [vmem:[%s2 + $0x78] sm:$0xff]
    %v47 = vld [vmem:[%s0] sm:$0xff]
    %v48 = vld [vmem:[%s0 + $0x8] sm:$0xff]
    %v49 = vld [vmem:[%s0 + $0x10] sm:$0xff]
    %v50 = vld [vmem:[%s0 + $0x18] sm:$0xff]
    %v51 = vld [vmem:[%s0 + $0x20] sm:$0xff]
    %v52 = vld [vmem:[%s0 + $0x28] sm:$0xff]
    %v53 = vld [vmem:[%s0 + $0x30] sm:$0xff]
    %v54 = vld [vmem:[%s0 + $0x38] sm:$0xff]
    %v55 = vld [vmem:[%s0 + $0x40] sm:$0xff]
    %v56 = vld [vmem:[%s0 + $0x48] sm:$0xff]
    %v57 = vld [vmem:[%s0 + $0x50] sm:$0xff]
    %v58 = vld [vmem:[%s0 + $0x58] sm:$0xff]
    %v59 = vld [vmem:[%s0 + $0x60] sm:$0xff]
    %v60 = vld [vmem:[%s0 + $0x68] sm:$0xff]
    %v61 = vld [vmem:[%s0 + $0x70] sm:$0xff]
    %v62 = vld [vmem:[%s0 + $0x78] sm:$0xff]
    %v63 = vld [vmem:[%s0 + $0x80] sm:$0xff]
    %v64 = vld [vmem:[%s0 + $0x88] sm:$0xff]
    %v65 = vld [vmem:[%s0 + $0x90] sm:$0xff]
    %v66 = vld [vmem:[%s0 + $0x98] sm:$0xff]
    %v67 = vld [vmem:[%s0 + $0xa0] sm:$0xff]
    %v68 = vld [vmem:[%s0 + $0xa8] sm:$0xff]
    %v69 = vld [vmem:[%s0 + $0xb0] sm:$0xff]
    %v70 = vld [vmem:[%s0 + $0xb8] sm:$0xff]
    %v71 = vld [vmem:[%s0 + $0xc0] sm:$0xff]
    %v72 = vld [vmem:[%s0 + $0xc8] sm:$0xff]
    %v73 = vld [vmem:[%s0 + $0xd0] sm:$0xff]
    %v74 = vld [vmem:[%s0 + $0xd8] sm:$0xff]
    %v75 = vld [vmem:[%s0 + $0xe0] sm:$0xff]
    %v76 = vld [vmem:[%s0 + $0xe8] sm:$0xff]
    %v77 = vld [vmem:[%s0 + $0xf0] sm:$0xff]
    %v78 = vld [vmem:[%s0 + $0xf8] sm:$0xff]
    %v79 = vld [vmem:[%s0 + $0x100] sm:$0xff]
    %v80 = vld [vmem:[%s0 + $0x108] sm:$0xff]
    %v81 = vld [vmem:[%s0 + $0x110] sm:$0xff]
    %v82 = vld [vmem:[%s0 + $0x118] sm:$0xff]
    %v83 = vld [vmem:[%s0 + $0x120] sm:$0xff]
    %v84 = vld [vmem:[%s0 + $0x128] sm:$0xff]
    %v85 = vld [vmem:[%s0 + $0x130] sm:$0xff]
    %v86 = vld [vmem:[%s0 + $0x138] sm:$0xff]
    %v87 = vld [vmem:[%s0 + $0x140] sm:$0xff]
    %v88 = vld [vmem:[%s0 + $0x148] sm:$0xff]
    %v89 = vld [vmem:[%s0 + $0x150] sm:$0xff]
    %v90 = vld [vmem:[%s0 + $0x158] sm:$0xff]
    %v91 = vld [vmem:[%s0 + $0x160] sm:$0xff]
    %v92 = vld [vmem:[%s0 + $0x168] sm:$0xff]
    %v93 = vld [vmem:[%s0 + $0x170] sm:$0xff]
    %v94 = vld [vmem:[%s0 + $0x178] sm:$0xff]
    %v95 = vld [vmem:[%s0 + $0x180] sm:$0xff]
    %v96 = vld [vmem:[%s0 + $0x188] sm:$0xff]
    %v97 = vld [vmem:[%s0 + $0x190] sm:$0xff]
    %v98 = vld [vmem:[%s0 + $0x198] sm:$0xff]
    %v99 = vld [vmem:[%s0 + $0x1a0] sm:$0xff]
    %v100 = vld [vmem:[%s0 + $0x1a8] sm:$0xff]
    %v101 = vld [vmem:[%s0 + $0x1b0] sm:$0xff]
    %v102 = vld [vmem:[%s0 + $0x1b8] sm:$0xff]
    %v103 = vld [vmem:[%s0 + $0x1c0] sm:$0xff]
    %v104 = vld [vmem:[%s0 + $0x1c8] sm:$0xff]
    %v105 = vld [vmem:[%s0 + $0x1d0] sm:$0xff]
    %v106 = vld [vmem:[%s0 + $0x1d8] sm:$0xff]
    %v107 = vld [vmem:[%s0 + $0x1e0] sm:$0xff]
    %v108 = vld [vmem:[%s0 + $0x1e8] sm:$0xff]
    %v109 = vld [vmem:[%s0 + $0x1f0] sm:$0xff]
    %v110 = vld [vmem:[%s0 + $0x1f8] sm:$0xff]
    %v111 = vld [vmem:[%s3] sm:$0xff]
    %v112 = vlaneseq
    %v113 = vshrl.u32 %v112, 7
    %v114 = vsub.s32 0, %v113
    %v115 = vrot.slane %v111, %v114
    %vm116 = vcmask 818176
    %v118 = vsel %vm116, %v47, 0
    %v121 = vsel %vm116, %v48, 0
    %v124 = vsel %vm116, %v49, 0
    %v127 = vsel %vm116, %v50, 0
    %v130 = vsel %vm116, %v51, 0
    %v133 = vsel %vm116, %v52, 0
    %v136 = vsel %vm116, %v53, 0
    %v139 = vsel %vm116, %v54, 0
    %v142 = vsel %vm116, %v55, 0
    %v145 = vsel %vm116, %v56, 0
    %v148 = vsel %vm116, %v57, 0
    %v151 = vsel %vm116, %v58, 0
    %v154 = vsel %vm116, %v59, 0
    %v157 = vsel %vm116, %v60, 0
    %v160 = vsel %vm116, %v61, 0
    %v163 = vsel %vm116, %v62, 0
    %v166 = vsel %vm116, %v63, 0
    %v169 = vsel %vm116, %v64, 0
    %v172 = vsel %vm116, %v65, 0
    %v175 = vsel %vm116, %v66, 0
    %v178 = vsel %vm116, %v67, 0
    %v181 = vsel %vm116, %v68, 0
    %v184 = vsel %vm116, %v69, 0
    %v187 = vsel %vm116, %v70, 0
    %v190 = vsel %vm116, %v71, 0
    %v193 = vsel %vm116, %v72, 0
    %v196 = vsel %vm116, %v73, 0
    %v199 = vsel %vm116, %v74, 0
    %v202 = vsel %vm116, %v75, 0
    %v205 = vsel %vm116, %v76, 0
    %v208 = vsel %vm116, %v77, 0
    %v211 = vsel %vm116, %v78, 0
    %v214 = vsel %vm116, %v79, 0
    %v217 = vsel %vm116, %v80, 0
    %v220 = vsel %vm116, %v81, 0
    %v223 = vsel %vm116, %v82, 0
    %v226 = vsel %vm116, %v83, 0
    %v229 = vsel %vm116, %v84, 0
    %v232 = vsel %vm116, %v85, 0
    %v235 = vsel %vm116, %v86, 0
    %v238 = vsel %vm116, %v87, 0
    %v241 = vsel %vm116, %v88, 0
    %v244 = vsel %vm116, %v89, 0
    %v247 = vsel %vm116, %v90, 0
    %v250 = vsel %vm116, %v91, 0
    %v253 = vsel %vm116, %v92, 0
    %v256 = vsel %vm116, %v93, 0
    %v259 = vsel %vm116, %v94, 0
    %v262 = vsel %vm116, %v95, 0
    %v265 = vsel %vm116, %v96, 0
    %v268 = vsel %vm116, %v97, 0
    %v271 = vsel %vm116, %v98, 0
    %v274 = vsel %vm116, %v99, 0
    %v277 = vsel %vm116, %v100, 0
    %v280 = vsel %vm116, %v101, 0
    %v283 = vsel %vm116, %v102, 0
    %v286 = vsel %vm116, %v103, 0
    %v289 = vsel %vm116, %v104, 0
    %v292 = vsel %vm116, %v105, 0
    %v295 = vsel %vm116, %v106, 0
    %v298 = vsel %vm116, %v107, 0
    %v301 = vsel %vm116, %v108, 0
    %v304 = vsel %vm116, %v109, 0
    %v307 = vsel %vm116, %v110, 0
    %vm309 = vcmask 1043456
    %v311 = vsel %vm309, %v30, 0
    %313 = vmatprep.subr.mxu0 0.0
    %314 = vmatpush1.msra.mxu0 %v18
    %315 = vmatprep.subr.mxu0 0.0
    %316 = vmatpush1.msra.mxu0 %v19
    %317 = vmatprep.subr.mxu0 0.0
    %318 = vmatpush1.msra.mxu0 %v20
    %319 = vmatprep.subr.mxu0 0.0
    %320 = vmatpush1.msra.mxu0 %v21
    %321 = vmatprep.subr.mxu0 0.0
    %322 = vmatpush1.msra.mxu0 %v22
    %323 = vmatprep.subr.mxu0 0.0
    %324 = vmatpush1.msra.mxu0 %v23
    %325 = vmatprep.subr.mxu0 0.0
    %326 = vmatpush1.msra.mxu0 %v24
    %327 = vmatprep.subr.mxu0 0.0
    %328 = vmatpush1.msra.mxu0 %v25
    %329 = vmatprep.subr.mxu0 0.0
    %330 = vmatpush1.msra.mxu0 %v26
    %331 = vmatprep.subr.mxu0 0.0
    %332 = vmatpush1.msra.mxu0 %v27
    %333 = vmatprep.subr.mxu0 0.0
    %334 = vmatpush1.msra.mxu0 %v28
    %335 = vmatprep.subr.mxu0 0.0
    %336 = vmatpush1.msra.mxu0 %v29
    %337 = vmatprep.subr.mxu0 0.0
    %338 = vmatpush1.msra.mxu0 %v311
    %339 = vmatprep.subr.mxu0 0.0
    %340 = vmatpush1.msra.mxu0 0.0
    %341 = vmatprep.subr.mxu0 0.0
    %342 = vmatpush1.msra.mxu0 0.0
    %343 = vmatprep.subr.mxu0 0.0
    %344 = vmatpush1.msra.mxu0 0.0
    %345 = vmatprep.subr.mxu0 0.0
    %346 = vmatpush1.msra.mxu0 0.0
    %347 = vmatprep.subr.mxu0 0.0
    %348 = vmatpush1.msra.mxu0 0.0
    %349 = vmatprep.subr.mxu0 0.0
    %350 = vmatpush1.msra.mxu0 0.0
    %351 = vmatprep.subr.mxu0 0.0
    %352 = vmatpush1.msra.mxu0 0.0
    %353 = vmatprep.subr.mxu0 0.0
    %354 = vmatpush1.msra.mxu0 0.0
    %355 = vmatprep.subr.mxu0 0.0
    %356 = vmatpush1.msra.mxu0 0.0
    %357 = vmatprep.subr.mxu0 0.0
    %358 = vmatpush1.msra.mxu0 0.0
    %359 = vmatprep.subr.mxu0 0.0
    %360 = vmatpush1.msra.mxu0 0.0
    %361 = vmatprep.subr.mxu0 0.0
    %362 = vmatpush1.msra.mxu0 0.0
    %363 = vmatprep.subr.mxu0 0.0
    %364 = vmatpush1.msra.mxu0 0.0
    %365 = vmatprep.subr.mxu0 0.0
    %366 = vmatpush1.msra.mxu0 0.0
    %367 = vmatprep.subr.mxu0 0.0
    %368 = vmatpush1.msra.mxu0 0.0
    %369 = vmatprep.subr.mxu0 0.0
    %370 = vmatpush1.msra.mxu0 0.0
    %371 = vmatprep.subr.mxu0 0.0
    %372 = vmatpush1.msra.mxu0 0.0
    %373 = vmatprep.subr.mxu0 0.0
    %374 = vmatpush1.msra.mxu0 0.0
    %375 = vmatprep.subr.mxu0 0.0
    %376 = vmatpush1.msra.mxu0 0.0
    %377 = vmatprep.mubr.f32.mxu0 0.0
    %378 = vmatmul.mubr.f32.gmra.mrb[0].mxu0 %v118
    %v379 = vpop.f32.mrb[0].mxu0
    %v380 = vadd.f32 %v115, %v379
    %v381 = vpop.f32.mrb[0].mxu0
    %382 = vmatprep.mubr.f32.mxu0 0.0
    %383 = vmatmul.mubr.f32.gmra.mrb[0].mxu0 %v121
    %v384 = vpop.f32.mrb[0].mxu0
    %v385 = vadd.f32 %v115, %v384
    %v386 = vpop.f32.mrb[0].mxu0
    %387 = vmatprep.mubr.f32.mxu0 0.0
    %388 = vmatmul.mubr.f32.gmra.mrb[0].mxu0 %v124
    %v389 = vpop.f32.mrb[0].mxu0
    %v390 = vadd.f32 %v115, %v389
    %v391 = vpop.f32.mrb[0].mxu0
    %392 = vmatprep.mubr.f32.mxu0 0.0
    %393 = vmatmul.mubr.f32.gmra.mrb[0].mxu0 %v127
    %v394 = vpop.f32.mrb[0].mxu0
    %v395 = vadd.f32 %v115, %v394
    %v396 = vpop.f32.mrb[0].mxu0
    %397 = vmatprep.mubr.f32.mxu0 0.0
    %398 = vmatmul.mubr.f32.gmra.mrb[0].mxu0 %v130
    %v399 = vpop.f32.mrb[0].mxu0
    %v400 = vadd.f32 %v115, %v399
    %v401 = vpop.f32.mrb[0].mxu0
    %402 = vmatprep.mubr.f32.mxu0 0.0
    %403 = vmatmul.mubr.f32.gmra.mrb[0].mxu0 %v133
    %v404 = vpop.f32.mrb[0].mxu0
    %v405 = vadd.f32 %v115, %v404
    %v406 = vpop.f32.mrb[0].mxu0
    %407 = vmatprep.mubr.f32.mxu0 0.0
    %408 = vmatmul.mubr.f32.gmra.mrb[0].mxu0 %v136
    %v409 = vpop.f32.mrb[0].mxu0
    %v410 = vadd.f32 %v115, %v409
    %v411 = vpop.f32.mrb[0].mxu0
    %412 = vmatprep.mubr.f32.mxu0 0.0
    %413 = vmatmul.mubr.f32.gmra.mrb[0].mxu0 %v139
    %v414 = vpop.f32.mrb[0].mxu0
    %v415 = vadd.f32 %v115, %v414
    %v416 = vpop.f32.mrb[0].mxu0
    %417 = vmatprep.mubr.f32.mxu0 0.0
    %418 = vmatmul.mubr.f32.gmra.mrb[0].mxu0 %v142
    %v419 = vpop.f32.mrb[0].mxu0
    %v420 = vadd.f32 %v115, %v419
    %v421 = vpop.f32.mrb[0].mxu0
    %422 = vmatprep.mubr.f32.mxu0 0.0
    %423 = vmatmul.mubr.f32.gmra.mrb[0].mxu0 %v145
    %v424 = vpop.f32.mrb[0].mxu0
    %v425 = vadd.f32 %v115, %v424
    %v426 = vpop.f32.mrb[0].mxu0
    %427 = vmatprep.mubr.f32.mxu0 0.0
    %428 = vmatmul.mubr.f32.gmra.mrb[0].mxu0 %v148
    %v429 = vpop.f32.mrb[0].mxu0
    %v430 = vadd.f32 %v115, %v429
    %v431 = vpop.f32.mrb[0].mxu0
    %432 = vmatprep.mubr.f32.mxu0 0.0
    %433 = vmatmul.mubr.f32.gmra.mrb[0].mxu0 %v151
    %v434 = vpop.f32.mrb[0].mxu0
    %v435 = vadd.f32 %v115, %v434
    %v436 = vpop.f32.mrb[0].mxu0
    %437 = vmatprep.mubr.f32.mxu0 0.0
    %438 = vmatmul.mubr.f32.gmra.mrb[0].mxu0 %v154
    %v439 = vpop.f32.mrb[0].mxu0
    %v440 = vadd.f32 %v115, %v439
    %v441 = vpop.f32.mrb[0].mxu0
    %442 = vmatprep.mubr.f32.mxu0 0.0
    %443 = vmatmul.mubr.f32.gmra.mrb[0].mxu0 %v157
    %v444 = vpop.f32.mrb[0].mxu0
    %v445 = vadd.f32 %v115, %v444
    %v446 = vpop.f32.mrb[0].mxu0
    %447 = vmatprep.mubr.f32.mxu0 0.0
    %448 = vmatmul.mubr.f32.gmra.mrb[0].mxu0 %v160
    %v449 = vpop.f32.mrb[0].mxu0
    %v450 = vadd.f32 %v115, %v449
    %v451 = vpop.f32.mrb[0].mxu0
    %452 = vmatprep.mubr.f32.mxu0 0.0
    %453 = vmatmul.mubr.f32.gmra.mrb[0].mxu0 %v163
    %v454 = vpop.f32.mrb[0].mxu0
    %v455 = vadd.f32 %v115, %v454
    %v456 = vpop.f32.mrb[0].mxu0
    %457 = vmatprep.mubr.f32.mxu0 0.0
    %458 = vmatmul.mubr.f32.gmra.mrb[0].mxu0 %v166
    %v459 = vpop.f32.mrb[0].mxu0
    %v460 = vadd.f32 %v115, %v459
    %v461 = vpop.f32.mrb[0].mxu0
    %462 = vmatprep.mubr.f32.mxu0 0.0
    %463 = vmatmul.mubr.f32.gmra.mrb[0].mxu0 %v169
    %v464 = vpop.f32.mrb[0].mxu0
    %v465 = vadd.f32 %v115, %v464
    %v466 = vpop.f32.mrb[0].mxu0
    %467 = vmatprep.mubr.f32.mxu0 0.0
    %468 = vmatmul.mubr.f32.gmra.mrb[0].mxu0 %v172
    %v469 = vpop.f32.mrb[0].mxu0
    %v470 = vadd.f32 %v115, %v469
    %v471 = vpop.f32.mrb[0].mxu0
    %472 = vmatprep.mubr.f32.mxu0 0.0
    %473 = vmatmul.mubr.f32.gmra.mrb[0].mxu0 %v175
    %v474 = vpop.f32.mrb[0].mxu0
    %v475 = vadd.f32 %v115, %v474
    %v476 = vpop.f32.mrb[0].mxu0
    %477 = vmatprep.mubr.f32.mxu0 0.0
    %478 = vmatmul.mubr.f32.gmra.mrb[0].mxu0 %v178
    %v479 = vpop.f32.mrb[0].mxu0
    %v480 = vadd.f32 %v115, %v479
    %v481 = vpop.f32.mrb[0].mxu0
    %482 = vmatprep.mubr.f32.mxu0 0.0
    %483 = vmatmul.mubr.f32.gmra.mrb[0].mxu0 %v181
    %v484 = vpop.f32.mrb[0].mxu0
    %v485 = vadd.f32 %v115, %v484
    %v486 = vpop.f32.mrb[0].mxu0
    %487 = vmatprep.mubr.f32.mxu0 0.0
    %488 = vmatmul.mubr.f32.gmra.mrb[0].mxu0 %v184
    %v489 = vpop.f32.mrb[0].mxu0
    %v490 = vadd.f32 %v115, %v489
    %v491 = vpop.f32.mrb[0].mxu0
    %492 = vmatprep.mubr.f32.mxu0 0.0
    %493 = vmatmul.mubr.f32.gmra.mrb[0].mxu0 %v187
    %v494 = vpop.f32.mrb[0].mxu0
    %v495 = vadd.f32 %v115, %v494
    %v496 = vpop.f32.mrb[0].mxu0
    %497 = vmatprep.mubr.f32.mxu0 0.0
    %498 = vmatmul.mubr.f32.gmra.mrb[0].mxu0 %v190
    %v499 = vpop.f32.mrb[0].mxu0
    %v500 = vadd.f32 %v115, %v499
    %v501 = vpop.f32.mrb[0].mxu0
    %502 = vmatprep.mubr.f32.mxu0 0.0
    %503 = vmatmul.mubr.f32.gmra.mrb[0].mxu0 %v193
    %v504 = vpop.f32.mrb[0].mxu0
    %v505 = vadd.f32 %v115, %v504
    %v506 = vpop.f32.mrb[0].mxu0
    %507 = vmatprep.mubr.f32.mxu0 0.0
    %508 = vmatmul.mubr.f32.gmra.mrb[0].mxu0 %v196
    %v509 = vpop.f32.mrb[0].mxu0
    %v510 = vadd.f32 %v115, %v509
    %v511 = vpop.f32.mrb[0].mxu0
    %512 = vmatprep.mubr.f32.mxu0 0.0
    %513 = vmatmul.mubr.f32.gmra.mrb[0].mxu0 %v199
    %v514 = vpop.f32.mrb[0].mxu0
    %v515 = vadd.f32 %v115, %v514
    %v516 = vpop.f32.mrb[0].mxu0
    %517 = vmatprep.mubr.f32.mxu0 0.0
    %518 = vmatmul.mubr.f32.gmra.mrb[0].mxu0 %v202
    %v519 = vpop.f32.mrb[0].mxu0
    %v520 = vadd.f32 %v115, %v519
    %v521 = vpop.f32.mrb[0].mxu0
    %522 = vmatprep.mubr.f32.mxu0 0.0
    %523 = vmatmul.mubr.f32.gmra.mrb[0].mxu0 %v205
    %v524 = vpop.f32.mrb[0].mxu0
    %v525 = vadd.f32 %v115, %v524
    %v526 = vpop.f32.mrb[0].mxu0
    %527 = vmatprep.mubr.f32.mxu0 0.0
    %528 = vmatmul.mubr.f32.gmra.mrb[0].mxu0 %v208
    %v529 = vpop.f32.mrb[0].mxu0
    %v530 = vadd.f32 %v115, %v529
    %v531 = vpop.f32.mrb[0].mxu0
    %532 = vmatprep.mubr.f32.mxu0 0.0
    %533 = vmatmul.mubr.f32.gmra.mrb[0].mxu0 %v211
    %v534 = vpop.f32.mrb[0].mxu0
    %v535 = vadd.f32 %v115, %v534
    %v536 = vpop.f32.mrb[0].mxu0
    %537 = vmatprep.mubr.f32.mxu0 0.0
    %538 = vmatmul.mubr.f32.gmra.mrb[0].mxu0 %v214
    %v539 = vpop.f32.mrb[0].mxu0
    %v540 = vadd.f32 %v115, %v539
    %v541 = vpop.f32.mrb[0].mxu0
    %542 = vmatprep.mubr.f32.mxu0 0.0
    %543 = vmatmul.mubr.f32.gmra.mrb[0].mxu0 %v217
    %v544 = vpop.f32.mrb[0].mxu0
    %v545 = vadd.f32 %v115, %v544
    %v546 = vpop.f32.mrb[0].mxu0
    %547 = vmatprep.mubr.f32.mxu0 0.0
    %548 = vmatmul.mubr.f32.gmra.mrb[0].mxu0 %v220
    %v549 = vpop.f32.mrb[0].mxu0
    %v550 = vadd.f32 %v115, %v549
    %v551 = vpop.f32.mrb[0].mxu0
    %552 = vmatprep.mubr.f32.mxu0 0.0
    %553 = vmatmul.mubr.f32.gmra.mrb[0].mxu0 %v223
    %v554 = vpop.f32.mrb[0].mxu0
    %v555 = vadd.f32 %v115, %v554
    %v556 = vpop.f32.mrb[0].mxu0
    %557 = vmatprep.mubr.f32.mxu0 0.0
    %558 = vmatmul.mubr.f32.gmra.mrb[0].mxu0 %v226
    %v559 = vpop.f32.mrb[0].mxu0
    %v560 = vadd.f32 %v115, %v559
    %v561 = vpop.f32.mrb[0].mxu0
    %562 = vmatprep.mubr.f32.mxu0 0.0
    %563 = vmatmul.mubr.f32.gmra.mrb[0].mxu0 %v229
    %v564 = vpop.f32.mrb[0].mxu0
    %v565 = vadd.f32 %v115, %v564
    %v566 = vpop.f32.mrb[0].mxu0
    %567 = vmatprep.mubr.f32.mxu0 0.0
    %568 = vmatmul.mubr.f32.gmra.mrb[0].mxu0 %v232
    %v569 = vpop.f32.mrb[0].mxu0
    %v570 = vadd.f32 %v115, %v569
    %v571 = vpop.f32.mrb[0].mxu0
    %572 = vmatprep.mubr.f32.mxu0 0.0
    %573 = vmatmul.mubr.f32.gmra.mrb[0].mxu0 %v235
    %v574 = vpop.f32.mrb[0].mxu0
    %v575 = vadd.f32 %v115, %v574
    %v576 = vpop.f32.mrb[0].mxu0
    %577 = vmatprep.mubr.f32.mxu0 0.0
    %578 = vmatmul.mubr.f32.gmra.mrb[0].mxu0 %v238
    %v579 = vpop.f32.mrb[0].mxu0
    %v580 = vadd.f32 %v115, %v579
    %v581 = vpop.f32.mrb[0].mxu0
    %582 = vmatprep.mubr.f32.mxu0 0.0
    %583 = vmatmul.mubr.f32.gmra.mrb[0].mxu0 %v241
    %v584 = vpop.f32.mrb[0].mxu0
    %v585 = vadd.f32 %v115, %v584
    %v586 = vpop.f32.mrb[0].mxu0
    %587 = vmatprep.mubr.f32.mxu0 0.0
    %588 = vmatmul.mubr.f32.gmra.mrb[0].mxu0 %v244
    %v589 = vpop.f32.mrb[0].mxu0
    %v590 = vadd.f32 %v115, %v589
    %v591 = vpop.f32.mrb[0].mxu0
    %592 = vmatprep.mubr.f32.mxu0 0.0
    %593 = vmatmul.mubr.f32.gmra.mrb[0].mxu0 %v247
    %v594 = vpop.f32.mrb[0].mxu0
    %v595 = vadd.f32 %v115, %v594
    %v596 = vpop.f32.mrb[0].mxu0
    %597 = vmatprep.mubr.f32.mxu0 0.0
    %598 = vmatmul.mubr.f32.gmra.mrb[0].mxu0 %v250
    %v599 = vpop.f32.mrb[0].mxu0
    %v600 = vadd.f32 %v115, %v599
    %v601 = vpop.f32.mrb[0].mxu0
    %602 = vmatprep.mubr.f32.mxu0 0.0
    %603 = vmatmul.mubr.f32.gmra.mrb[0].mxu0 %v253
    %v604 = vpop.f32.mrb[0].mxu0
    %v605 = vadd.f32 %v115, %v604
    %v606 = vpop.f32.mrb[0].mxu0
    %607 = vmatprep.mubr.f32.mxu0 0.0
    %608 = vmatmul.mubr.f32.gmra.mrb[0].mxu0 %v256
    %v609 = vpop.f32.mrb[0].mxu0
    %v610 = vadd.f32 %v115, %v609
    %v611 = vpop.f32.mrb[0].mxu0
    %612 = vmatprep.mubr.f32.mxu0 0.0
    %613 = vmatmul.mubr.f32.gmra.mrb[0].mxu0 %v259
    %v614 = vpop.f32.mrb[0].mxu0
    %v615 = vadd.f32 %v115, %v614
    %v616 = vpop.f32.mrb[0].mxu0
    %617 = vmatprep.mubr.f32.mxu0 0.0
    %618 = vmatmul.mubr.f32.gmra.mrb[0].mxu0 %v262
    %v619 = vpop.f32.mrb[0].mxu0
    %v620 = vadd.f32 %v115, %v619
    %v621 = vpop.f32.mrb[0].mxu0
    %622 = vmatprep.mubr.f32.mxu0 0.0
    %623 = vmatmul.mubr.f32.gmra.mrb[0].mxu0 %v265
    %v624 = vpop.f32.mrb[0].mxu0
    %v625 = vadd.f32 %v115, %v624
    %v626 = vpop.f32.mrb[0].mxu0
    %627 = vmatprep.mubr.f32.mxu0 0.0
    %628 = vmatmul.mubr.f32.gmra.mrb[0].mxu0 %v268
    %v629 = vpop.f32.mrb[0].mxu0
    %v630 = vadd.f32 %v115, %v629
    %v631 = vpop.f32.mrb[0].mxu0
    %632 = vmatprep.mubr.f32.mxu0 0.0
    %633 = vmatmul.mubr.f32.gmra.mrb[0].mxu0 %v271
    %v634 = vpop.f32.mrb[0].mxu0
    %v635 = vadd.f32 %v115, %v634
    %v636 = vpop.f32.mrb[0].mxu0
    %637 = vmatprep.mubr.f32.mxu0 0.0
    %638 = vmatmul.mubr.f32.gmra.mrb[0].mxu0 %v274
    %v639 = vpop.f32.mrb[0].mxu0
    %v640 = vadd.f32 %v115, %v639
    %v641 = vpop.f32.mrb[0].mxu0
    %642 = vmatprep.mubr.f32.mxu0 0.0
    %643 = vmatmul.mubr.f32.gmra.mrb[0].mxu0 %v277
    %v644 = vpop.f32.mrb[0].mxu0
    %v645 = vadd.f32 %v115, %v644
    %v646 = vpop.f32.mrb[0].mxu0
    %647 = vmatprep.mubr.f32.mxu0 0.0
    %648 = vmatmul.mubr.f32.gmra.mrb[0].mxu0 %v280
    %v649 = vpop.f32.mrb[0].mxu0
    %v650 = vadd.f32 %v115, %v649
    %v651 = vpop.f32.mrb[0].mxu0
    %652 = vmatprep.mubr.f32.mxu0 0.0
    %653 = vmatmul.mubr.f32.gmra.mrb[0].mxu0 %v283
    %v654 = vpop.f32.mrb[0].mxu0
    %v655 = vadd.f32 %v115, %v654
    %v656 = vpop.f32.mrb[0].mxu0
    %657 = vmatprep.mubr.f32.mxu0 0.0
    %658 = vmatmul.mubr.f32.gmra.mrb[0].mxu0 %v286
    %v659 = vpop.f32.mrb[0].mxu0
    %v660 = vadd.f32 %v115, %v659
    %v661 = vpop.f32.mrb[0].mxu0
    %662 = vmatprep.mubr.f32.mxu0 0.0
    %663 = vmatmul.mubr.f32.gmra.mrb[0].mxu0 %v289
    %v664 = vpop.f32.mrb[0].mxu0
    %v665 = vadd.f32 %v115, %v664
    %v666 = vpop.f32.mrb[0].mxu0
    %667 = vmatprep.mubr.f32.mxu0 0.0
    %668 = vmatmul.mubr.f32.gmra.mrb[0].mxu0 %v292
    %v669 = vpop.f32.mrb[0].mxu0
    %v670 = vadd.f32 %v115, %v669
    %v671 = vpop.f32.mrb[0].mxu0
    %672 = vmatprep.mubr.f32.mxu0 0.0
    %673 = vmatmul.mubr.f32.gmra.mrb[0].mxu0 %v295
    %v674 = vpop.f32.mrb[0].mxu0
    %v675 = vadd.f32 %v115, %v674
    %v676 = vpop.f32.mrb[0].mxu0
    %677 = vmatprep.mubr.f32.mxu0 0.0
    %678 = vmatmul.mubr.f32.gmra.mrb[0].mxu0 %v298
    %v679 = vpop.f32.mrb[0].mxu0
    %v680 = vadd.f32 %v115, %v679
    %v681 = vpop.f32.mrb[0].mxu0
    %682 = vmatprep.mubr.f32.mxu0 0.0
    %683 = vmatmul.mubr.f32.gmra.mrb[0].mxu0 %v301
    %v684 = vpop.f32.mrb[0].mxu0
    %v685 = vadd.f32 %v115, %v684
    %v686 = vpop.f32.mrb[0].mxu0
    %687 = vmatprep.mubr.f32.mxu0 0.0
    %688 = vmatmul.mubr.f32.gmra.mrb[0].mxu0 %v304
    %v689 = vpop.f32.mrb[0].mxu0
    %v690 = vadd.f32 %v115, %v689
    %v691 = vpop.f32.mrb[0].mxu0
    %692 = vmatprep.mubr.f32.mxu0 0.0
    %693 = vmatmul.mubr.f32.gmra.mrb[0].mxu0 %v307
    %v694 = vpop.f32.mrb[0].mxu0
    %v695 = vadd.f32 %v115, %v694
    %v696 = vpop.f32.mrb[0].mxu0
    %697 = vdwg.mxu0
    %v698 = vmax.f32 %v380, 0.0
    %v699 = vmax.f32 %v385, 0.0
    %v700 = vmax.f32 %v390, 0.0
    %v701 = vmax.f32 %v395, 0.0
    %v702 = vmax.f32 %v400, 0.0
    %v703 = vmax.f32 %v405, 0.0
    %v704 = vmax.f32 %v410, 0.0
    %v705 = vmax.f32 %v415, 0.0
    %v706 = vmax.f32 %v420, 0.0
    %v707 = vmax.f32 %v425, 0.0
    %v708 = vmax.f32 %v430, 0.0
    %v709 = vmax.f32 %v435, 0.0
    %v710 = vmax.f32 %v440, 0.0
    %v711 = vmax.f32 %v445, 0.0
    %v712 = vmax.f32 %v450, 0.0
    %v713 = vmax.f32 %v455, 0.0
    %v714 = vmax.f32 %v460, 0.0
    %v715 = vmax.f32 %v465, 0.0
    %v716 = vmax.f32 %v470, 0.0
    %v717 = vmax.f32 %v475, 0.0
    %v718 = vmax.f32 %v480, 0.0
    %v719 = vmax.f32 %v485, 0.0
    %v720 = vmax.f32 %v490, 0.0
    %v721 = vmax.f32 %v495, 0.0
    %v722 = vmax.f32 %v500, 0.0
    %v723 = vmax.f32 %v505, 0.0
    %v724 = vmax.f32 %v510, 0.0
    %v725 = vmax.f32 %v515, 0.0
    %v726 = vmax.f32 %v520, 0.0
    %v727 = vmax.f32 %v525, 0.0
    %v728 = vmax.f32 %v530, 0.0
    %v729 = vmax.f32 %v535, 0.0
    %v730 = vmax.f32 %v540, 0.0
    %v731 = vmax.f32 %v545, 0.0
    %v732 = vmax.f32 %v550, 0.0
    %v733 = vmax.f32 %v555, 0.0
    %v734 = vmax.f32 %v560, 0.0
    %v735 = vmax.f32 %v565, 0.0
    %v736 = vmax.f32 %v570, 0.0
    %v737 = vmax.f32 %v575, 0.0
    %v738 = vmax.f32 %v580, 0.0
    %v739 = vmax.f32 %v585, 0.0
    %v740 = vmax.f32 %v590, 0.0
    %v741 = vmax.f32 %v595, 0.0
    %v742 = vmax.f32 %v600, 0.0
    %v743 = vmax.f32 %v605, 0.0
    %v744 = vmax.f32 %v610, 0.0
    %v745 = vmax.f32 %v615, 0.0
    %v746 = vmax.f32 %v620, 0.0
    %v747 = vmax.f32 %v625, 0.0
    %v748 = vmax.f32 %v630, 0.0
    %v749 = vmax.f32 %v635, 0.0
    %v750 = vmax.f32 %v640, 0.0
    %v751 = vmax.f32 %v645, 0.0
    %v752 = vmax.f32 %v650, 0.0
    %v753 = vmax.f32 %v655, 0.0
    %v754 = vmax.f32 %v660, 0.0
    %v755 = vmax.f32 %v665, 0.0
    %v756 = vmax.f32 %v670, 0.0
    %v757 = vmax.f32 %v675, 0.0
    %v758 = vmax.f32 %v680, 0.0
    %v759 = vmax.f32 %v685, 0.0
    %v760 = vmax.f32 %v690, 0.0
    %v761 = vmax.f32 %v695, 0.0
    %v762 = vlaneseq
    %v763 = vshrl.u32 %v762, 7
    %v764 = vsub.s32 1, %v763
    %v765 = vrot.slane %v111, %v764
    %766 = vmatprep.subr.mxu0 0.0
    %767 = vmatpush1.msra.mxu0 %v31
    %768 = vmatprep.subr.mxu0 0.0
    %769 = vmatpush1.msra.mxu0 %v32
    %770 = vmatprep.subr.mxu0 0.0
    %771 = vmatpush1.msra.mxu0 %v33
    %772 = vmatprep.subr.mxu0 0.0
    %773 = vmatpush1.msra.mxu0 %v34
    %774 = vmatprep.subr.mxu0 0.0
    %775 = vmatpush1.msra.mxu0 %v35
    %776 = vmatprep.subr.mxu0 0.0
    %777 = vmatpush1.msra.mxu0 %v36
    %778 = vmatprep.subr.mxu0 0.0
    %779 = vmatpush1.msra.mxu0 %v37
    %780 = vmatprep.subr.mxu0 0.0
    %781 = vmatpush1.msra.mxu0 %v38
    %782 = vmatprep.subr.mxu0 0.0
    %783 = vmatpush1.msra.mxu0 %v39
    %784 = vmatprep.subr.mxu0 0.0
    %785 = vmatpush1.msra.mxu0 %v40
    %786 = vmatprep.subr.mxu0 0.0
    %787 = vmatpush1.msra.mxu0 %v41
    %788 = vmatprep.subr.mxu0 0.0
    %789 = vmatpush1.msra.mxu0 %v42
    %790 = vmatprep.subr.mxu0 0.0
    %791 = vmatpush1.msra.mxu0 %v43
    %792 = vmatprep.subr.mxu0 0.0
    %793 = vmatpush1.msra.mxu0 %v44
    %794 = vmatprep.subr.mxu0 0.0
    %795 = vmatpush1.msra.mxu0 %v45
    %796 = vmatprep.subr.mxu0 0.0
    %797 = vmatpush1.msra.mxu0 %v46
    %798 = vmatprep.subr.mxu0 0.0
    %799 = vmatpush1.msra.mxu0 0.0
    %800 = vmatprep.subr.mxu0 0.0
    %801 = vmatpush1.msra.mxu0 0.0
    %802 = vmatprep.subr.mxu0 0.0
    %803 = vmatpush1.msra.mxu0 0.0
    %804 = vmatprep.subr.mxu0 0.0
    %805 = vmatpush1.msra.mxu0 0.0
    %806 = vmatprep.subr.mxu0 0.0
    %807 = vmatpush1.msra.mxu0 0.0
    %808 = vmatprep.subr.mxu0 0.0
    %809 = vmatpush1.msra.mxu0 0.0
    %810 = vmatprep.subr.mxu0 0.0
    %811 = vmatpush1.msra.mxu0 0.0
    %812 = vmatprep.subr.mxu0 0.0
    %813 = vmatpush1.msra.mxu0 0.0
    %814 = vmatprep.subr.mxu0 0.0
    %815 = vmatpush1.msra.mxu0 0.0
    %816 = vmatprep.subr.mxu0 0.0
    %817 = vmatpush1.msra.mxu0 0.0
    %818 = vmatprep.subr.mxu0 0.0
    %819 = vmatpush1.msra.mxu0 0.0
    %820 = vmatprep.subr.mxu0 0.0
    %821 = vmatpush1.msra.mxu0 0.0
    %822 = vmatprep.subr.mxu0 0.0
    %823 = vmatpush1.msra.mxu0 0.0
    %824 = vmatprep.subr.mxu0 0.0
    %825 = vmatpush1.msra.mxu0 0.0
    %826 = vmatprep.subr.mxu0 0.0
    %827 = vmatpush1.msra.mxu0 0.0
    %828 = vmatprep.subr.mxu0 0.0
    %829 = vmatpush1.msra.mxu0 0.0
    %830 = vmatprep.mubr.f32.mxu0 0.0
    %831 = vmatmul.mubr.f32.gmra.mrb[0].mxu0 %v698
    %v832 = vpop.f32.mrb[0].mxu0
    %v833 = vadd.f32 %v765, %v832
    %v834 = vpop.f32.mrb[0].mxu0
    %835 = vmatprep.mubr.f32.mxu0 0.0
    %836 = vmatmul.mubr.f32.gmra.mrb[0].mxu0 %v699
    %v837 = vpop.f32.mrb[0].mxu0
    %v838 = vadd.f32 %v765, %v837
    %v839 = vpop.f32.mrb[0].mxu0
    %840 = vmatprep.mubr.f32.mxu0 0.0
    %841 = vmatmul.mubr.f32.gmra.mrb[0].mxu0 %v700
    %v842 = vpop.f32.mrb[0].mxu0
    %v843 = vadd.f32 %v765, %v842
    %v844 = vpop.f32.mrb[0].mxu0
    %845 = vmatprep.mubr.f32.mxu0 0.0
    %846 = vmatmul.mubr.f32.gmra.mrb[0].mxu0 %v701
    %v847 = vpop.f32.mrb[0].mxu0
    %v848 = vadd.f32 %v765, %v847
    %v849 = vpop.f32.mrb[0].mxu0
    %850 = vmatprep.mubr.f32.mxu0 0.0
    %851 = vmatmul.mubr.f32.gmra.mrb[0].mxu0 %v702
    %v852 = vpop.f32.mrb[0].mxu0
    %v853 = vadd.f32 %v765, %v852
    %v854 = vpop.f32.mrb[0].mxu0
    %855 = vmatprep.mubr.f32.mxu0 0.0
    %856 = vmatmul.mubr.f32.gmra.mrb[0].mxu0 %v703
    %v857 = vpop.f32.mrb[0].mxu0
    %v858 = vadd.f32 %v765, %v857
    %v859 = vpop.f32.mrb[0].mxu0
    %860 = vmatprep.mubr.f32.mxu0 0.0
    %861 = vmatmul.mubr.f32.gmra.mrb[0].mxu0 %v704
    %v862 = vpop.f32.mrb[0].mxu0
    %v863 = vadd.f32 %v765, %v862
    %v864 = vpop.f32.mrb[0].mxu0
    %865 = vmatprep.mubr.f32.mxu0 0.0
    %866 = vmatmul.mubr.f32.gmra.mrb[0].mxu0 %v705
    %v867 = vpop.f32.mrb[0].mxu0
    %v868 = vadd.f32 %v765, %v867
    %v869 = vpop.f32.mrb[0].mxu0
    %870 = vmatprep.mubr.f32.mxu0 0.0
    %871 = vmatmul.mubr.f32.gmra.mrb[0].mxu0 %v706
    %v872 = vpop.f32.mrb[0].mxu0
    %v873 = vadd.f32 %v765, %v872
    %v874 = vpop.f32.mrb[0].mxu0
    %875 = vmatprep.mubr.f32.mxu0 0.0
    %876 = vmatmul.mubr.f32.gmra.mrb[0].mxu0 %v707
    %v877 = vpop.f32.mrb[0].mxu0
    %v878 = vadd.f32 %v765, %v877
    %v879 = vpop.f32.mrb[0].mxu0
    %880 = vmatprep.mubr.f32.mxu0 0.0
    %881 = vmatmul.mubr.f32.gmra.mrb[0].mxu0 %v708
    %v882 = vpop.f32.mrb[0].mxu0
    %v883 = vadd.f32 %v765, %v882
    %v884 = vpop.f32.mrb[0].mxu0
    %885 = vmatprep.mubr.f32.mxu0 0.0
    %886 = vmatmul.mubr.f32.gmra.mrb[0].mxu0 %v709
    %v887 = vpop.f32.mrb[0].mxu0
    %v888 = vadd.f32 %v765, %v887
    %v889 = vpop.f32.mrb[0].mxu0
    %890 = vmatprep.mubr.f32.mxu0 0.0
    %891 = vmatmul.mubr.f32.gmra.mrb[0].mxu0 %v710
    %v892 = vpop.f32.mrb[0].mxu0
    %v893 = vadd.f32 %v765, %v892
    %v894 = vpop.f32.mrb[0].mxu0
    %895 = vmatprep.mubr.f32.mxu0 0.0
    %896 = vmatmul.mubr.f32.gmra.mrb[0].mxu0 %v711
    %v897 = vpop.f32.mrb[0].mxu0
    %v898 = vadd.f32 %v765, %v897
    %v899 = vpop.f32.mrb[0].mxu0
    %900 = vmatprep.mubr.f32.mxu0 0.0
    %901 = vmatmul.mubr.f32.gmra.mrb[0].mxu0 %v712
    %v902 = vpop.f32.mrb[0].mxu0
    %v903 = vadd.f32 %v765, %v902
    %v904 = vpop.f32.mrb[0].mxu0
    %905 = vmatprep.mubr.f32.mxu0 0.0
    %906 = vmatmul.mubr.f32.gmra.mrb[0].mxu0 %v713
    %v907 = vpop.f32.mrb[0].mxu0
    %v908 = vadd.f32 %v765, %v907
    %v909 = vpop.f32.mrb[0].mxu0
    %910 = vmatprep.mubr.f32.mxu0 0.0
    %911 = vmatmul.mubr.f32.gmra.mrb[0].mxu0 %v714
    %v912 = vpop.f32.mrb[0].mxu0
    %v913 = vadd.f32 %v765, %v912
    %v914 = vpop.f32.mrb[0].mxu0
    %915 = vmatprep.mubr.f32.mxu0 0.0
    %916 = vmatmul.mubr.f32.gmra.mrb[0].mxu0 %v715
    %v917 = vpop.f32.mrb[0].mxu0
    %v918 = vadd.f32 %v765, %v917
    %v919 = vpop.f32.mrb[0].mxu0
    %920 = vmatprep.mubr.f32.mxu0 0.0
    %921 = vmatmul.mubr.f32.gmra.mrb[0].mxu0 %v716
    %v922 = vpop.f32.mrb[0].mxu0
    %v923 = vadd.f32 %v765, %v922
    %v924 = vpop.f32.mrb[0].mxu0
    %925 = vmatprep.mubr.f32.mxu0 0.0
    %926 = vmatmul.mubr.f32.gmra.mrb[0].mxu0 %v717
    %v927 = vpop.f32.mrb[0].mxu0
    %v928 = vadd.f32 %v765, %v927
    %v929 = vpop.f32.mrb[0].mxu0
    %930 = vmatprep.mubr.f32.mxu0 0.0
    %931 = vmatmul.mubr.f32.gmra.mrb[0].mxu0 %v718
    %v932 = vpop.f32.mrb[0].mxu0
    %v933 = vadd.f32 %v765, %v932
    %v934 = vpop.f32.mrb[0].mxu0
    %935 = vmatprep.mubr.f32.mxu0 0.0
    %936 = vmatmul.mubr.f32.gmra.mrb[0].mxu0 %v719
    %v937 = vpop.f32.mrb[0].mxu0
    %v938 = vadd.f32 %v765, %v937
    %v939 = vpop.f32.mrb[0].mxu0
    %940 = vmatprep.mubr.f32.mxu0 0.0
    %941 = vmatmul.mubr.f32.gmra.mrb[0].mxu0 %v720
    %v942 = vpop.f32.mrb[0].mxu0
    %v943 = vadd.f32 %v765, %v942
    %v944 = vpop.f32.mrb[0].mxu0
    %945 = vmatprep.mubr.f32.mxu0 0.0
    %946 = vmatmul.mubr.f32.gmra.mrb[0].mxu0 %v721
    %v947 = vpop.f32.mrb[0].mxu0
    %v948 = vadd.f32 %v765, %v947
    %v949 = vpop.f32.mrb[0].mxu0
    %950 = vmatprep.mubr.f32.mxu0 0.0
    %951 = vmatmul.mubr.f32.gmra.mrb[0].mxu0 %v722
    %v952 = vpop.f32.mrb[0].mxu0
    %v953 = vadd.f32 %v765, %v952
    %v954 = vpop.f32.mrb[0].mxu0
    %955 = vmatprep.mubr.f32.mxu0 0.0
    %956 = vmatmul.mubr.f32.gmra.mrb[0].mxu0 %v723
    %v957 = vpop.f32.mrb[0].mxu0
    %v958 = vadd.f32 %v765, %v957
    %v959 = vpop.f32.mrb[0].mxu0
    %960 = vmatprep.mubr.f32.mxu0 0.0
    %961 = vmatmul.mubr.f32.gmra.mrb[0].mxu0 %v724
    %v962 = vpop.f32.mrb[0].mxu0
    %v963 = vadd.f32 %v765, %v962
    %v964 = vpop.f32.mrb[0].mxu0
    %965 = vmatprep.mubr.f32.mxu0 0.0
    %966 = vmatmul.mubr.f32.gmra.mrb[0].mxu0 %v725
    %v967 = vpop.f32.mrb[0].mxu0
    %v968 = vadd.f32 %v765, %v967
    %v969 = vpop.f32.mrb[0].mxu0
    %970 = vmatprep.mubr.f32.mxu0 0.0
    %971 = vmatmul.mubr.f32.gmra.mrb[0].mxu0 %v726
    %v972 = vpop.f32.mrb[0].mxu0
    %v973 = vadd.f32 %v765, %v972
    %v974 = vpop.f32.mrb[0].mxu0
    %975 = vmatprep.mubr.f32.mxu0 0.0
    %976 = vmatmul.mubr.f32.gmra.mrb[0].mxu0 %v727
    %v977 = vpop.f32.mrb[0].mxu0
    %v978 = vadd.f32 %v765, %v977
    %v979 = vpop.f32.mrb[0].mxu0
    %980 = vmatprep.mubr.f32.mxu0 0.0
    %981 = vmatmul.mubr.f32.gmra.mrb[0].mxu0 %v728
    %v982 = vpop.f32.mrb[0].mxu0
    %v983 = vadd.f32 %v765, %v982
    %v984 = vpop.f32.mrb[0].mxu0
    %985 = vmatprep.mubr.f32.mxu0 0.0
    %986 = vmatmul.mubr.f32.gmra.mrb[0].mxu0 %v729
    %v987 = vpop.f32.mrb[0].mxu0
    %v988 = vadd.f32 %v765, %v987
    %v989 = vpop.f32.mrb[0].mxu0
    %990 = vmatprep.mubr.f32.mxu0 0.0
    %991 = vmatmul.mubr.f32.gmra.mrb[0].mxu0 %v730
    %v992 = vpop.f32.mrb[0].mxu0
    %v993 = vadd.f32 %v765, %v992
    %v994 = vpop.f32.mrb[0].mxu0
    %995 = vmatprep.mubr.f32.mxu0 0.0
    %996 = vmatmul.mubr.f32.gmra.mrb[0].mxu0 %v731
    %v997 = vpop.f32.mrb[0].mxu0
    %v998 = vadd.f32 %v765, %v997
    %v999 = vpop.f32.mrb[0].mxu0
    %1000 = vmatprep.mubr.f32.mxu0 0.0
    %1001 = vmatmul.mubr.f32.gmra.mrb[0].mxu0 %v732
    %v1002 = vpop.f32.mrb[0].mxu0
    %v1003 = vadd.f32 %v765, %v1002
    %v1004 = vpop.f32.mrb[0].mxu0
    %1005 = vmatprep.mubr.f32.mxu0 0.0
    %1006 = vmatmul.mubr.f32.gmra.mrb[0].mxu0 %v733
    %v1007 = vpop.f32.mrb[0].mxu0
    %v1008 = vadd.f32 %v765, %v1007
    %v1009 = vpop.f32.mrb[0].mxu0
    %1010 = vmatprep.mubr.f32.mxu0 0.0
    %1011 = vmatmul.mubr.f32.gmra.mrb[0].mxu0 %v734
    %v1012 = vpop.f32.mrb[0].mxu0
    %v1013 = vadd.f32 %v765, %v1012
    %v1014 = vpop.f32.mrb[0].mxu0
    %1015 = vmatprep.mubr.f32.mxu0 0.0
    %1016 = vmatmul.mubr.f32.gmra.mrb[0].mxu0 %v735
    %v1017 = vpop.f32.mrb[0].mxu0
    %v1018 = vadd.f32 %v765, %v1017
    %v1019 = vpop.f32.mrb[0].mxu0
    %1020 = vmatprep.mubr.f32.mxu0 0.0
    %1021 = vmatmul.mubr.f32.gmra.mrb[0].mxu0 %v736
    %v1022 = vpop.f32.mrb[0].mxu0
    %v1023 = vadd.f32 %v765, %v1022
    %v1024 = vpop.f32.mrb[0].mxu0
    %1025 = vmatprep.mubr.f32.mxu0 0.0
    %1026 = vmatmul.mubr.f32.gmra.mrb[0].mxu0 %v737
    %v1027 = vpop.f32.mrb[0].mxu0
    %v1028 = vadd.f32 %v765, %v1027
    %v1029 = vpop.f32.mrb[0].mxu0
    %1030 = vmatprep.mubr.f32.mxu0 0.0
    %1031 = vmatmul.mubr.f32.gmra.mrb[0].mxu0 %v738
    %v1032 = vpop.f32.mrb[0].mxu0
    %v1033 = vadd.f32 %v765, %v1032
    %v1034 = vpop.f32.mrb[0].mxu0
    %1035 = vmatprep.mubr.f32.mxu0 0.0
    %1036 = vmatmul.mubr.f32.gmra.mrb[0].mxu0 %v739
    %v1037 = vpop.f32.mrb[0].mxu0
    %v1038 = vadd.f32 %v765, %v1037
    %v1039 = vpop.f32.mrb[0].mxu0
    %1040 = vmatprep.mubr.f32.mxu0 0.0
    %1041 = vmatmul.mubr.f32.gmra.mrb[0].mxu0 %v740
    %v1042 = vpop.f32.mrb[0].mxu0
    %v1043 = vadd.f32 %v765, %v1042
    %v1044 = vpop.f32.mrb[0].mxu0
    %1045 = vmatprep.mubr.f32.mxu0 0.0
    %1046 = vmatmul.mubr.f32.gmra.mrb[0].mxu0 %v741
    %v1047 = vpop.f32.mrb[0].mxu0
    %v1048 = vadd.f32 %v765, %v1047
    %v1049 = vpop.f32.mrb[0].mxu0
    %1050 = vmatprep.mubr.f32.mxu0 0.0
    %1051 = vmatmul.mubr.f32.gmra.mrb[0].mxu0 %v742
    %v1052 = vpop.f32.mrb[0].mxu0
    %v1053 = vadd.f32 %v765, %v1052
    %v1054 = vpop.f32.mrb[0].mxu0
    %1055 = vmatprep.mubr.f32.mxu0 0.0
    %1056 = vmatmul.mubr.f32.gmra.mrb[0].mxu0 %v743
    %v1057 = vpop.f32.mrb[0].mxu0
    %v1058 = vadd.f32 %v765, %v1057
    %v1059 = vpop.f32.mrb[0].mxu0
    %1060 = vmatprep.mubr.f32.mxu0 0.0
    %1061 = vmatmul.mubr.f32.gmra.mrb[0].mxu0 %v744
    %v1062 = vpop.f32.mrb[0].mxu0
    %v1063 = vadd.f32 %v765, %v1062
    %v1064 = vpop.f32.mrb[0].mxu0
    %1065 = vmatprep.mubr.f32.mxu0 0.0
    %1066 = vmatmul.mubr.f32.gmra.mrb[0].mxu0 %v745
    %v1067 = vpop.f32.mrb[0].mxu0
    %v1068 = vadd.f32 %v765, %v1067
    %v1069 = vpop.f32.mrb[0].mxu0
    %1070 = vmatprep.mubr.f32.mxu0 0.0
    %1071 = vmatmul.mubr.f32.gmra.mrb[0].mxu0 %v746
    %v1072 = vpop.f32.mrb[0].mxu0
    %v1073 = vadd.f32 %v765, %v1072
    %v1074 = vpop.f32.mrb[0].mxu0
    %1075 = vmatprep.mubr.f32.mxu0 0.0
    %1076 = vmatmul.mubr.f32.gmra.mrb[0].mxu0 %v747
    %v1077 = vpop.f32.mrb[0].mxu0
    %v1078 = vadd.f32 %v765, %v1077
    %v1079 = vpop.f32.mrb[0].mxu0
    %1080 = vmatprep.mubr.f32.mxu0 0.0
    %1081 = vmatmul.mubr.f32.gmra.mrb[0].mxu0 %v748
    %v1082 = vpop.f32.mrb[0].mxu0
    %v1083 = vadd.f32 %v765, %v1082
    %v1084 = vpop.f32.mrb[0].mxu0
    %1085 = vmatprep.mubr.f32.mxu0 0.0
    %1086 = vmatmul.mubr.f32.gmra.mrb[0].mxu0 %v749
    %v1087 = vpop.f32.mrb[0].mxu0
    %v1088 = vadd.f32 %v765, %v1087
    %v1089 = vpop.f32.mrb[0].mxu0
    %1090 = vmatprep.mubr.f32.mxu0 0.0
    %1091 = vmatmul.mubr.f32.gmra.mrb[0].mxu0 %v750
    %v1092 = vpop.f32.mrb[0].mxu0
    %v1093 = vadd.f32 %v765, %v1092
    %v1094 = vpop.f32.mrb[0].mxu0
    %1095 = vmatprep.mubr.f32.mxu0 0.0
    %1096 = vmatmul.mubr.f32.gmra.mrb[0].mxu0 %v751
    %v1097 = vpop.f32.mrb[0].mxu0
    %v1098 = vadd.f32 %v765, %v1097
    %v1099 = vpop.f32.mrb[0].mxu0
    %1100 = vmatprep.mubr.f32.mxu0 0.0
    %1101 = vmatmul.mubr.f32.gmra.mrb[0].mxu0 %v752
    %v1102 = vpop.f32.mrb[0].mxu0
    %v1103 = vadd.f32 %v765, %v1102
    %v1104 = vpop.f32.mrb[0].mxu0
    %1105 = vmatprep.mubr.f32.mxu0 0.0
    %1106 = vmatmul.mubr.f32.gmra.mrb[0].mxu0 %v753
    %v1107 = vpop.f32.mrb[0].mxu0
    %v1108 = vadd.f32 %v765, %v1107
    %v1109 = vpop.f32.mrb[0].mxu0
    %1110 = vmatprep.mubr.f32.mxu0 0.0
    %1111 = vmatmul.mubr.f32.gmra.mrb[0].mxu0 %v754
    %v1112 = vpop.f32.mrb[0].mxu0
    %v1113 = vadd.f32 %v765, %v1112
    %v1114 = vpop.f32.mrb[0].mxu0
    %1115 = vmatprep.mubr.f32.mxu0 0.0
    %1116 = vmatmul.mubr.f32.gmra.mrb[0].mxu0 %v755
    %v1117 = vpop.f32.mrb[0].mxu0
    %v1118 = vadd.f32 %v765, %v1117
    %v1119 = vpop.f32.mrb[0].mxu0
    %1120 = vmatprep.mubr.f32.mxu0 0.0
    %1121 = vmatmul.mubr.f32.gmra.mrb[0].mxu0 %v756
    %v1122 = vpop.f32.mrb[0].mxu0
    %v1123 = vadd.f32 %v765, %v1122
    %v1124 = vpop.f32.mrb[0].mxu0
    %1125 = vmatprep.mubr.f32.mxu0 0.0
    %1126 = vmatmul.mubr.f32.gmra.mrb[0].mxu0 %v757
    %v1127 = vpop.f32.mrb[0].mxu0
    %v1128 = vadd.f32 %v765, %v1127
    %v1129 = vpop.f32.mrb[0].mxu0
    %1130 = vmatprep.mubr.f32.mxu0 0.0
    %1131 = vmatmul.mubr.f32.gmra.mrb[0].mxu0 %v758
    %v1132 = vpop.f32.mrb[0].mxu0
    %v1133 = vadd.f32 %v765, %v1132
    %v1134 = vpop.f32.mrb[0].mxu0
    %1135 = vmatprep.mubr.f32.mxu0 0.0
    %1136 = vmatmul.mubr.f32.gmra.mrb[0].mxu0 %v759
    %v1137 = vpop.f32.mrb[0].mxu0
    %v1138 = vadd.f32 %v765, %v1137
    %v1139 = vpop.f32.mrb[0].mxu0
    %1140 = vmatprep.mubr.f32.mxu0 0.0
    %1141 = vmatmul.mubr.f32.gmra.mrb[0].mxu0 %v760
    %v1142 = vpop.f32.mrb[0].mxu0
    %v1143 = vadd.f32 %v765, %v1142
    %v1144 = vpop.f32.mrb[0].mxu0
    %1145 = vmatprep.mubr.f32.mxu0 0.0
    %1146 = vmatmul.mubr.f32.gmra.mrb[0].mxu0 %v761
    %v1147 = vpop.f32.mrb[0].mxu0
    %v1148 = vadd.f32 %v765, %v1147
    %v1149 = vpop.f32.mrb[0].mxu0
    %1150 = vdwg.mxu0
    %v1151 = vmax.f32 %v833, 0.0
    %v1152 = vmax.f32 %v838, 0.0
    %v1153 = vmax.f32 %v843, 0.0
    %v1154 = vmax.f32 %v848, 0.0
    %v1155 = vmax.f32 %v853, 0.0
    %v1156 = vmax.f32 %v858, 0.0
    %v1157 = vmax.f32 %v863, 0.0
    %v1158 = vmax.f32 %v868, 0.0
    %v1159 = vmax.f32 %v873, 0.0
    %v1160 = vmax.f32 %v878, 0.0
    %v1161 = vmax.f32 %v883, 0.0
    %v1162 = vmax.f32 %v888, 0.0
    %v1163 = vmax.f32 %v893, 0.0
    %v1164 = vmax.f32 %v898, 0.0
    %v1165 = vmax.f32 %v903, 0.0
    %v1166 = vmax.f32 %v908, 0.0
    %v1167 = vmax.f32 %v913, 0.0
    %v1168 = vmax.f32 %v918, 0.0
    %v1169 = vmax.f32 %v923, 0.0
    %v1170 = vmax.f32 %v928, 0.0
    %v1171 = vmax.f32 %v933, 0.0
    %v1172 = vmax.f32 %v938, 0.0
    %v1173 = vmax.f32 %v943, 0.0
    %v1174 = vmax.f32 %v948, 0.0
    %v1175 = vmax.f32 %v953, 0.0
    %v1176 = vmax.f32 %v958, 0.0
    %v1177 = vmax.f32 %v963, 0.0
    %v1178 = vmax.f32 %v968, 0.0
    %v1179 = vmax.f32 %v973, 0.0
    %v1180 = vmax.f32 %v978, 0.0
    %v1181 = vmax.f32 %v983, 0.0
    %v1182 = vmax.f32 %v988, 0.0
    %v1183 = vmax.f32 %v993, 0.0
    %v1184 = vmax.f32 %v998, 0.0
    %v1185 = vmax.f32 %v1003, 0.0
    %v1186 = vmax.f32 %v1008, 0.0
    %v1187 = vmax.f32 %v1013, 0.0
    %v1188 = vmax.f32 %v1018, 0.0
    %v1189 = vmax.f32 %v1023, 0.0
    %v1190 = vmax.f32 %v1028, 0.0
    %v1191 = vmax.f32 %v1033, 0.0
    %v1192 = vmax.f32 %v1038, 0.0
    %v1193 = vmax.f32 %v1043, 0.0
    %v1194 = vmax.f32 %v1048, 0.0
    %v1195 = vmax.f32 %v1053, 0.0
    %v1196 = vmax.f32 %v1058, 0.0
    %v1197 = vmax.f32 %v1063, 0.0
    %v1198 = vmax.f32 %v1068, 0.0
    %v1199 = vmax.f32 %v1073, 0.0
    %v1200 = vmax.f32 %v1078, 0.0
    %v1201 = vmax.f32 %v1083, 0.0
    %v1202 = vmax.f32 %v1088, 0.0
    %v1203 = vmax.f32 %v1093, 0.0
    %v1204 = vmax.f32 %v1098, 0.0
    %v1205 = vmax.f32 %v1103, 0.0
    %v1206 = vmax.f32 %v1108, 0.0
    %v1207 = vmax.f32 %v1113, 0.0
    %v1208 = vmax.f32 %v1118, 0.0
    %v1209 = vmax.f32 %v1123, 0.0
    %v1210 = vmax.f32 %v1128, 0.0
    %v1211 = vmax.f32 %v1133, 0.0
    %v1212 = vmax.f32 %v1138, 0.0
    %v1213 = vmax.f32 %v1143, 0.0
    %v1214 = vmax.f32 %v1148, 0.0
    %v1215 = vadd.f32 %v1151, %v698
    %v1216 = vadd.f32 %v1152, %v699
    %v1217 = vadd.f32 %v1153, %v700
    %v1218 = vadd.f32 %v1154, %v701
    %v1219 = vadd.f32 %v1155, %v702
    %v1220 = vadd.f32 %v1156, %v703
    %v1221 = vadd.f32 %v1157, %v704
    %v1222 = vadd.f32 %v1158, %v705
    %v1223 = vadd.f32 %v1159, %v706
    %v1224 = vadd.f32 %v1160, %v707
    %v1225 = vadd.f32 %v1161, %v708
    %v1226 = vadd.f32 %v1162, %v709
    %v1227 = vadd.f32 %v1163, %v710
    %v1228 = vadd.f32 %v1164, %v711
    %v1229 = vadd.f32 %v1165, %v712
    %v1230 = vadd.f32 %v1166, %v713
    %v1231 = vadd.f32 %v1167, %v714
    %v1232 = vadd.f32 %v1168, %v715
    %v1233 = vadd.f32 %v1169, %v716
    %v1234 = vadd.f32 %v1170, %v717
    %v1235 = vadd.f32 %v1171, %v718
    %v1236 = vadd.f32 %v1172, %v719
    %v1237 = vadd.f32 %v1173, %v720
    %v1238 = vadd.f32 %v1174, %v721
    %v1239 = vadd.f32 %v1175, %v722
    %v1240 = vadd.f32 %v1176, %v723
    %v1241 = vadd.f32 %v1177, %v724
    %v1242 = vadd.f32 %v1178, %v725
    %v1243 = vadd.f32 %v1179, %v726
    %v1244 = vadd.f32 %v1180, %v727
    %v1245 = vadd.f32 %v1181, %v728
    %v1246 = vadd.f32 %v1182, %v729
    %v1247 = vadd.f32 %v1183, %v730
    %v1248 = vadd.f32 %v1184, %v731
    %v1249 = vadd.f32 %v1185, %v732
    %v1250 = vadd.f32 %v1186, %v733
    %v1251 = vadd.f32 %v1187, %v734
    %v1252 = vadd.f32 %v1188, %v735
    %v1253 = vadd.f32 %v1189, %v736
    %v1254 = vadd.f32 %v1190, %v737
    %v1255 = vadd.f32 %v1191, %v738
    %v1256 = vadd.f32 %v1192, %v739
    %v1257 = vadd.f32 %v1193, %v740
    %v1258 = vadd.f32 %v1194, %v741
    %v1259 = vadd.f32 %v1195, %v742
    %v1260 = vadd.f32 %v1196, %v743
    %v1261 = vadd.f32 %v1197, %v744
    %v1262 = vadd.f32 %v1198, %v745
    %v1263 = vadd.f32 %v1199, %v746
    %v1264 = vadd.f32 %v1200, %v747
    %v1265 = vadd.f32 %v1201, %v748
    %v1266 = vadd.f32 %v1202, %v749
    %v1267 = vadd.f32 %v1203, %v750
    %v1268 = vadd.f32 %v1204, %v751
    %v1269 = vadd.f32 %v1205, %v752
    %v1270 = vadd.f32 %v1206, %v753
    %v1271 = vadd.f32 %v1207, %v754
    %v1272 = vadd.f32 %v1208, %v755
    %v1273 = vadd.f32 %v1209, %v756
    %v1274 = vadd.f32 %v1210, %v757
    %v1275 = vadd.f32 %v1211, %v758
    %v1276 = vadd.f32 %v1212, %v759
    %v1277 = vadd.f32 %v1213, %v760
    %v1278 = vadd.f32 %v1214, %v761
    %1279 = vadd.xlane.f32.xlu0 %v1215
    %v1280 = vpop.xlane.xlu0 %1279
    %1281 = vadd.xlane.f32.xlu0 %v1216
    %v1282 = vpop.xlane.xlu0 %1281
    %1283 = vadd.xlane.f32.xlu0 %v1217
    %v1284 = vpop.xlane.xlu0 %1283
    %1285 = vadd.xlane.f32.xlu0 %v1218
    %v1286 = vpop.xlane.xlu0 %1285
    %1287 = vadd.xlane.f32.xlu0 %v1219
    %v1288 = vpop.xlane.xlu0 %1287
    %1289 = vadd.xlane.f32.xlu0 %v1220
    %v1290 = vpop.xlane.xlu0 %1289
    %1291 = vadd.xlane.f32.xlu0 %v1221
    %v1292 = vpop.xlane.xlu0 %1291
    %1293 = vadd.xlane.f32.xlu0 %v1222
    %v1294 = vpop.xlane.xlu0 %1293
    %1295 = vadd.xlane.f32.xlu0 %v1223
    %v1296 = vpop.xlane.xlu0 %1295
    %1297 = vadd.xlane.f32.xlu0 %v1224
    %v1298 = vpop.xlane.xlu0 %1297
    %1299 = vadd.xlane.f32.xlu0 %v1225
    %v1300 = vpop.xlane.xlu0 %1299
    %1301 = vadd.xlane.f32.xlu0 %v1226
    %v1302 = vpop.xlane.xlu0 %1301
    %1303 = vadd.xlane.f32.xlu0 %v1227
    %v1304 = vpop.xlane.xlu0 %1303
    %1305 = vadd.xlane.f32.xlu0 %v1228
    %v1306 = vpop.xlane.xlu0 %1305
    %1307 = vadd.xlane.f32.xlu0 %v1229
    %v1308 = vpop.xlane.xlu0 %1307
    %1309 = vadd.xlane.f32.xlu0 %v1230
    %v1310 = vpop.xlane.xlu0 %1309
    %1311 = vadd.xlane.f32.xlu0 %v1231
    %v1312 = vpop.xlane.xlu0 %1311
    %1313 = vadd.xlane.f32.xlu0 %v1232
    %v1314 = vpop.xlane.xlu0 %1313
    %1315 = vadd.xlane.f32.xlu0 %v1233
    %v1316 = vpop.xlane.xlu0 %1315
    %1317 = vadd.xlane.f32.xlu0 %v1234
    %v1318 = vpop.xlane.xlu0 %1317
    %1319 = vadd.xlane.f32.xlu0 %v1235
    %v1320 = vpop.xlane.xlu0 %1319
    %1321 = vadd.xlane.f32.xlu0 %v1236
    %v1322 = vpop.xlane.xlu0 %1321
    %1323 = vadd.xlane.f32.xlu0 %v1237
    %v1324 = vpop.xlane.xlu0 %1323
    %1325 = vadd.xlane.f32.xlu0 %v1238
    %v1326 = vpop.xlane.xlu0 %1325
    %1327 = vadd.xlane.f32.xlu0 %v1239
    %v1328 = vpop.xlane.xlu0 %1327
    %1329 = vadd.xlane.f32.xlu0 %v1240
    %v1330 = vpop.xlane.xlu0 %1329
    %1331 = vadd.xlane.f32.xlu0 %v1241
    %v1332 = vpop.xlane.xlu0 %1331
    %1333 = vadd.xlane.f32.xlu0 %v1242
    %v1334 = vpop.xlane.xlu0 %1333
    %1335 = vadd.xlane.f32.xlu0 %v1243
    %v1336 = vpop.xlane.xlu0 %1335
    %1337 = vadd.xlane.f32.xlu0 %v1244
    %v1338 = vpop.xlane.xlu0 %1337
    %1339 = vadd.xlane.f32.xlu0 %v1245
    %v1340 = vpop.xlane.xlu0 %1339
    %1341 = vadd.xlane.f32.xlu0 %v1246
    %v1342 = vpop.xlane.xlu0 %1341
    %1343 = vadd.xlane.f32.xlu0 %v1247
    %v1344 = vpop.xlane.xlu0 %1343
    %1345 = vadd.xlane.f32.xlu0 %v1248
    %v1346 = vpop.xlane.xlu0 %1345
    %1347 = vadd.xlane.f32.xlu0 %v1249
    %v1348 = vpop.xlane.xlu0 %1347
    %1349 = vadd.xlane.f32.xlu0 %v1250
    %v1350 = vpop.xlane.xlu0 %1349
    %1351 = vadd.xlane.f32.xlu0 %v1251
    %v1352 = vpop.xlane.xlu0 %1351
    %1353 = vadd.xlane.f32.xlu0 %v1252
    %v1354 = vpop.xlane.xlu0 %1353
    %1355 = vadd.xlane.f32.xlu0 %v1253
    %v1356 = vpop.xlane.xlu0 %1355
    %1357 = vadd.xlane.f32.xlu0 %v1254
    %v1358 = vpop.xlane.xlu0 %1357
    %1359 = vadd.xlane.f32.xlu0 %v1255
    %v1360 = vpop.xlane.xlu0 %1359
    %1361 = vadd.xlane.f32.xlu0 %v1256
    %v1362 = vpop.xlane.xlu0 %1361
    %1363 = vadd.xlane.f32.xlu0 %v1257
    %v1364 = vpop.xlane.xlu0 %1363
    %1365 = vadd.xlane.f32.xlu0 %v1258
    %v1366 = vpop.xlane.xlu0 %1365
    %1367 = vadd.xlane.f32.xlu0 %v1259
    %v1368 = vpop.xlane.xlu0 %1367
    %1369 = vadd.xlane.f32.xlu0 %v1260
    %v1370 = vpop.xlane.xlu0 %1369
    %1371 = vadd.xlane.f32.xlu0 %v1261
    %v1372 = vpop.xlane.xlu0 %1371
    %1373 = vadd.xlane.f32.xlu0 %v1262
    %v1374 = vpop.xlane.xlu0 %1373
    %1375 = vadd.xlane.f32.xlu0 %v1263
    %v1376 = vpop.xlane.xlu0 %1375
    %1377 = vadd.xlane.f32.xlu0 %v1264
    %v1378 = vpop.xlane.xlu0 %1377
    %1379 = vadd.xlane.f32.xlu0 %v1265
    %v1380 = vpop.xlane.xlu0 %1379
    %1381 = vadd.xlane.f32.xlu0 %v1266
    %v1382 = vpop.xlane.xlu0 %1381
    %1383 = vadd.xlane.f32.xlu0 %v1267
    %v1384 = vpop.xlane.xlu0 %1383
    %1385 = vadd.xlane.f32.xlu0 %v1268
    %v1386 = vpop.xlane.xlu0 %1385
    %1387 = vadd.xlane.f32.xlu0 %v1269
    %v1388 = vpop.xlane.xlu0 %1387
    %1389 = vadd.xlane.f32.xlu0 %v1270
    %v1390 = vpop.xlane.xlu0 %1389
    %1391 = vadd.xlane.f32.xlu0 %v1271
    %v1392 = vpop.xlane.xlu0 %1391
    %1393 = vadd.xlane.f32.xlu0 %v1272
    %v1394 = vpop.xlane.xlu0 %1393
    %1395 = vadd.xlane.f32.xlu0 %v1273
    %v1396 = vpop.xlane.xlu0 %1395
    %1397 = vadd.xlane.f32.xlu0 %v1274
    %v1398 = vpop.xlane.xlu0 %1397
    %1399 = vadd.xlane.f32.xlu0 %v1275
    %v1400 = vpop.xlane.xlu0 %1399
    %1401 = vadd.xlane.f32.xlu0 %v1276
    %v1402 = vpop.xlane.xlu0 %1401
    %1403 = vadd.xlane.f32.xlu0 %v1277
    %v1404 = vpop.xlane.xlu0 %1403
    %1405 = vadd.xlane.f32.xlu0 %v1278
    %v1406 = vpop.xlane.xlu0 %1405
    %v1407 = vmul.f32 %v1280, 0.01
    %v1408 = vmul.f32 %v1282, 0.01
    %v1409 = vmul.f32 %v1284, 0.01
    %v1410 = vmul.f32 %v1286, 0.01
    %v1411 = vmul.f32 %v1288, 0.01
    %v1412 = vmul.f32 %v1290, 0.01
    %v1413 = vmul.f32 %v1292, 0.01
    %v1414 = vmul.f32 %v1294, 0.01
    %v1415 = vmul.f32 %v1296, 0.01
    %v1416 = vmul.f32 %v1298, 0.01
    %v1417 = vmul.f32 %v1300, 0.01
    %v1418 = vmul.f32 %v1302, 0.01
    %v1419 = vmul.f32 %v1304, 0.01
    %v1420 = vmul.f32 %v1306, 0.01
    %v1421 = vmul.f32 %v1308, 0.01
    %v1422 = vmul.f32 %v1310, 0.01
    %v1423 = vmul.f32 %v1312, 0.01
    %v1424 = vmul.f32 %v1314, 0.01
    %v1425 = vmul.f32 %v1316, 0.01
    %v1426 = vmul.f32 %v1318, 0.01
    %v1427 = vmul.f32 %v1320, 0.01
    %v1428 = vmul.f32 %v1322, 0.01
    %v1429 = vmul.f32 %v1324, 0.01
    %v1430 = vmul.f32 %v1326, 0.01
    %v1431 = vmul.f32 %v1328, 0.01
    %v1432 = vmul.f32 %v1330, 0.01
    %v1433 = vmul.f32 %v1332, 0.01
    %v1434 = vmul.f32 %v1334, 0.01
    %v1435 = vmul.f32 %v1336, 0.01
    %v1436 = vmul.f32 %v1338, 0.01
    %v1437 = vmul.f32 %v1340, 0.01
    %v1438 = vmul.f32 %v1342, 0.01
    %v1439 = vmul.f32 %v1344, 0.01
    %v1440 = vmul.f32 %v1346, 0.01
    %v1441 = vmul.f32 %v1348, 0.01
    %v1442 = vmul.f32 %v1350, 0.01
    %v1443 = vmul.f32 %v1352, 0.01
    %v1444 = vmul.f32 %v1354, 0.01
    %v1445 = vmul.f32 %v1356, 0.01
    %v1446 = vmul.f32 %v1358, 0.01
    %v1447 = vmul.f32 %v1360, 0.01
    %v1448 = vmul.f32 %v1362, 0.01
    %v1449 = vmul.f32 %v1364, 0.01
    %v1450 = vmul.f32 %v1366, 0.01
    %v1451 = vmul.f32 %v1368, 0.01
    %v1452 = vmul.f32 %v1370, 0.01
    %v1453 = vmul.f32 %v1372, 0.01
    %v1454 = vmul.f32 %v1374, 0.01
    %v1455 = vmul.f32 %v1376, 0.01
    %v1456 = vmul.f32 %v1378, 0.01
    %v1457 = vmul.f32 %v1380, 0.01
    %v1458 = vmul.f32 %v1382, 0.01
    %v1459 = vmul.f32 %v1384, 0.01
    %v1460 = vmul.f32 %v1386, 0.01
    %v1461 = vmul.f32 %v1388, 0.01
    %v1462 = vmul.f32 %v1390, 0.01
    %v1463 = vmul.f32 %v1392, 0.01
    %v1464 = vmul.f32 %v1394, 0.01
    %v1465 = vmul.f32 %v1396, 0.01
    %v1466 = vmul.f32 %v1398, 0.01
    %v1467 = vmul.f32 %v1400, 0.01
    %v1468 = vmul.f32 %v1402, 0.01
    %v1469 = vmul.f32 %v1404, 0.01
    %v1470 = vmul.f32 %v1406, 0.01
    %v1471 = vsub.f32 %v1215, %v1407
    %v1472 = vsub.f32 %v1216, %v1408
    %v1473 = vsub.f32 %v1217, %v1409
    %v1474 = vsub.f32 %v1218, %v1410
    %v1475 = vsub.f32 %v1219, %v1411
    %v1476 = vsub.f32 %v1220, %v1412
    %v1477 = vsub.f32 %v1221, %v1413
    %v1478 = vsub.f32 %v1222, %v1414
    %v1479 = vsub.f32 %v1223, %v1415
    %v1480 = vsub.f32 %v1224, %v1416
    %v1481 = vsub.f32 %v1225, %v1417
    %v1482 = vsub.f32 %v1226, %v1418
    %v1483 = vsub.f32 %v1227, %v1419
    %v1484 = vsub.f32 %v1228, %v1420
    %v1485 = vsub.f32 %v1229, %v1421
    %v1486 = vsub.f32 %v1230, %v1422
    %v1487 = vsub.f32 %v1231, %v1423
    %v1488 = vsub.f32 %v1232, %v1424
    %v1489 = vsub.f32 %v1233, %v1425
    %v1490 = vsub.f32 %v1234, %v1426
    %v1491 = vsub.f32 %v1235, %v1427
    %v1492 = vsub.f32 %v1236, %v1428
    %v1493 = vsub.f32 %v1237, %v1429
    %v1494 = vsub.f32 %v1238, %v1430
    %v1495 = vsub.f32 %v1239, %v1431
    %v1496 = vsub.f32 %v1240, %v1432
    %v1497 = vsub.f32 %v1241, %v1433
    %v1498 = vsub.f32 %v1242, %v1434
    %v1499 = vsub.f32 %v1243, %v1435
    %v1500 = vsub.f32 %v1244, %v1436
    %v1501 = vsub.f32 %v1245, %v1437
    %v1502 = vsub.f32 %v1246, %v1438
    %v1503 = vsub.f32 %v1247, %v1439
    %v1504 = vsub.f32 %v1248, %v1440
    %v1505 = vsub.f32 %v1249, %v1441
    %v1506 = vsub.f32 %v1250, %v1442
    %v1507 = vsub.f32 %v1251, %v1443
    %v1508 = vsub.f32 %v1252, %v1444
    %v1509 = vsub.f32 %v1253, %v1445
    %v1510 = vsub.f32 %v1254, %v1446
    %v1511 = vsub.f32 %v1255, %v1447
    %v1512 = vsub.f32 %v1256, %v1448
    %v1513 = vsub.f32 %v1257, %v1449
    %v1514 = vsub.f32 %v1258, %v1450
    %v1515 = vsub.f32 %v1259, %v1451
    %v1516 = vsub.f32 %v1260, %v1452
    %v1517 = vsub.f32 %v1261, %v1453
    %v1518 = vsub.f32 %v1262, %v1454
    %v1519 = vsub.f32 %v1263, %v1455
    %v1520 = vsub.f32 %v1264, %v1456
    %v1521 = vsub.f32 %v1265, %v1457
    %v1522 = vsub.f32 %v1266, %v1458
    %v1523 = vsub.f32 %v1267, %v1459
    %v1524 = vsub.f32 %v1268, %v1460
    %v1525 = vsub.f32 %v1269, %v1461
    %v1526 = vsub.f32 %v1270, %v1462
    %v1527 = vsub.f32 %v1271, %v1463
    %v1528 = vsub.f32 %v1272, %v1464
    %v1529 = vsub.f32 %v1273, %v1465
    %v1530 = vsub.f32 %v1274, %v1466
    %v1531 = vsub.f32 %v1275, %v1467
    %v1532 = vsub.f32 %v1276, %v1468
    %v1533 = vsub.f32 %v1277, %v1469
    %v1534 = vsub.f32 %v1278, %v1470
    %v1535 = vlaneseq
    %v1536 = vand.u32 %v1535, 127
    %vm1537 = vcmp.lt.s32.totalorder %v1536, 100
    %v1538 = vsel %vm1537, 1, 0
    %vm1539 = vcmp.eq.s32.totalorder %v1538, 1
    %v1540 = vsel %vm1539, %v1471, 0.0
    %v1541 = vsel %vm1539, %v1472, 0.0
    %v1542 = vsel %vm1539, %v1473, 0.0
    %v1543 = vsel %vm1539, %v1474, 0.0
    %v1544 = vsel %vm1539, %v1475, 0.0
    %v1545 = vsel %vm1539, %v1476, 0.0
    %v1546 = vsel %vm1539, %v1477, 0.0
    %v1547 = vsel %vm1539, %v1478, 0.0
    %v1548 = vsel %vm1539, %v1479, 0.0
    %v1549 = vsel %vm1539, %v1480, 0.0
    %v1550 = vsel %vm1539, %v1481, 0.0
    %v1551 = vsel %vm1539, %v1482, 0.0
    %v1552 = vsel %vm1539, %v1483, 0.0
    %v1553 = vsel %vm1539, %v1484, 0.0
    %v1554 = vsel %vm1539, %v1485, 0.0
    %v1555 = vsel %vm1539, %v1486, 0.0
    %v1556 = vsel %vm1539, %v1487, 0.0
    %v1557 = vsel %vm1539, %v1488, 0.0
    %v1558 = vsel %vm1539, %v1489, 0.0
    %v1559 = vsel %vm1539, %v1490, 0.0
    %v1560 = vsel %vm1539, %v1491, 0.0
    %v1561 = vsel %vm1539, %v1492, 0.0
    %v1562 = vsel %vm1539, %v1493, 0.0
    %v1563 = vsel %vm1539, %v1494, 0.0
    %v1564 = vsel %vm1539, %v1495, 0.0
    %v1565 = vsel %vm1539, %v1496, 0.0
    %v1566 = vsel %vm1539, %v1497, 0.0
    %v1567 = vsel %vm1539, %v1498, 0.0
    %v1568 = vsel %vm1539, %v1499, 0.0
    %v1569 = vsel %vm1539, %v1500, 0.0
    %v1570 = vsel %vm1539, %v1501, 0.0
    %v1571 = vsel %vm1539, %v1502, 0.0
    %v1572 = vsel %vm1539, %v1503, 0.0
    %v1573 = vsel %vm1539, %v1504, 0.0
    %v1574 = vsel %vm1539, %v1505, 0.0
    %v1575 = vsel %vm1539, %v1506, 0.0
    %v1576 = vsel %vm1539, %v1507, 0.0
    %v1577 = vsel %vm1539, %v1508, 0.0
    %v1578 = vsel %vm1539, %v1509, 0.0
    %v1579 = vsel %vm1539, %v1510, 0.0
    %v1580 = vsel %vm1539, %v1511, 0.0
    %v1581 = vsel %vm1539, %v1512, 0.0
    %v1582 = vsel %vm1539, %v1513, 0.0
    %v1583 = vsel %vm1539, %v1514, 0.0
    %v1584 = vsel %vm1539, %v1515, 0.0
    %v1585 = vsel %vm1539, %v1516, 0.0
    %v1586 = vsel %vm1539, %v1517, 0.0
    %v1587 = vsel %vm1539, %v1518, 0.0
    %v1588 = vsel %vm1539, %v1519, 0.0
    %v1589 = vsel %vm1539, %v1520, 0.0
    %v1590 = vsel %vm1539, %v1521, 0.0
    %v1591 = vsel %vm1539, %v1522, 0.0
    %v1592 = vsel %vm1539, %v1523, 0.0
    %v1593 = vsel %vm1539, %v1524, 0.0
    %v1594 = vsel %vm1539, %v1525, 0.0
    %v1595 = vsel %vm1539, %v1526, 0.0
    %v1596 = vsel %vm1539, %v1527, 0.0
    %v1597 = vsel %vm1539, %v1528, 0.0
    %v1598 = vsel %vm1539, %v1529, 0.0
    %v1599 = vsel %vm1539, %v1530, 0.0
    %v1600 = vsel %vm1539, %v1531, 0.0
    %v1601 = vsel %vm1539, %v1532, 0.0
    %v1602 = vsel %vm1539, %v1533, 0.0
    %v1603 = vsel %vm1539, %v1534, 0.0
    %v1604 = vmul.f32 %v1540, %v1540
    %v1605 = vmul.f32 %v1541, %v1541
    %v1606 = vmul.f32 %v1542, %v1542
    %v1607 = vmul.f32 %v1543, %v1543
    %v1608 = vmul.f32 %v1544, %v1544
    %v1609 = vmul.f32 %v1545, %v1545
    %v1610 = vmul.f32 %v1546, %v1546
    %v1611 = vmul.f32 %v1547, %v1547
    %v1612 = vmul.f32 %v1548, %v1548
    %v1613 = vmul.f32 %v1549, %v1549
    %v1614 = vmul.f32 %v1550, %v1550
    %v1615 = vmul.f32 %v1551, %v1551
    %v1616 = vmul.f32 %v1552, %v1552
    %v1617 = vmul.f32 %v1553, %v1553
    %v1618 = vmul.f32 %v1554, %v1554
    %v1619 = vmul.f32 %v1555, %v1555
    %v1620 = vmul.f32 %v1556, %v1556
    %v1621 = vmul.f32 %v1557, %v1557
    %v1622 = vmul.f32 %v1558, %v1558
    %v1623 = vmul.f32 %v1559, %v1559
    %v1624 = vmul.f32 %v1560, %v1560
    %v1625 = vmul.f32 %v1561, %v1561
    %v1626 = vmul.f32 %v1562, %v1562
    %v1627 = vmul.f32 %v1563, %v1563
    %v1628 = vmul.f32 %v1564, %v1564
    %v1629 = vmul.f32 %v1565, %v1565
    %v1630 = vmul.f32 %v1566, %v1566
    %v1631 = vmul.f32 %v1567, %v1567
    %v1632 = vmul.f32 %v1568, %v1568
    %v1633 = vmul.f32 %v1569, %v1569
    %v1634 = vmul.f32 %v1570, %v1570
    %v1635 = vmul.f32 %v1571, %v1571
    %v1636 = vmul.f32 %v1572, %v1572
    %v1637 = vmul.f32 %v1573, %v1573
    %v1638 = vmul.f32 %v1574, %v1574
    %v1639 = vmul.f32 %v1575, %v1575
    %v1640 = vmul.f32 %v1576, %v1576
    %v1641 = vmul.f32 %v1577, %v1577
    %v1642 = vmul.f32 %v1578, %v1578
    %v1643 = vmul.f32 %v1579, %v1579
    %v1644 = vmul.f32 %v1580, %v1580
    %v1645 = vmul.f32 %v1581, %v1581
    %v1646 = vmul.f32 %v1582, %v1582
    %v1647 = vmul.f32 %v1583, %v1583
    %v1648 = vmul.f32 %v1584, %v1584
    %v1649 = vmul.f32 %v1585, %v1585
    %v1650 = vmul.f32 %v1586, %v1586
    %v1651 = vmul.f32 %v1587, %v1587
    %v1652 = vmul.f32 %v1588, %v1588
    %v1653 = vmul.f32 %v1589, %v1589
    %v1654 = vmul.f32 %v1590, %v1590
    %v1655 = vmul.f32 %v1591, %v1591
    %v1656 = vmul.f32 %v1592, %v1592
    %v1657 = vmul.f32 %v1593, %v1593
    %v1658 = vmul.f32 %v1594, %v1594
    %v1659 = vmul.f32 %v1595, %v1595
    %v1660 = vmul.f32 %v1596, %v1596
    %v1661 = vmul.f32 %v1597, %v1597
    %v1662 = vmul.f32 %v1598, %v1598
    %v1663 = vmul.f32 %v1599, %v1599
    %v1664 = vmul.f32 %v1600, %v1600
    %v1665 = vmul.f32 %v1601, %v1601
    %v1666 = vmul.f32 %v1602, %v1602
    %v1667 = vmul.f32 %v1603, %v1603
    %1668 = vadd.xlane.f32.xlu0 %v1604
    %v1669 = vpop.xlane.xlu0 %1668
    %1670 = vadd.xlane.f32.xlu0 %v1605
    %v1671 = vpop.xlane.xlu0 %1670
    %1672 = vadd.xlane.f32.xlu0 %v1606
    %v1673 = vpop.xlane.xlu0 %1672
    %1674 = vadd.xlane.f32.xlu0 %v1607
    %v1675 = vpop.xlane.xlu0 %1674
    %1676 = vadd.xlane.f32.xlu0 %v1608
    %v1677 = vpop.xlane.xlu0 %1676
    %1678 = vadd.xlane.f32.xlu0 %v1609
    %v1679 = vpop.xlane.xlu0 %1678
    %1680 = vadd.xlane.f32.xlu0 %v1610
    %v1681 = vpop.xlane.xlu0 %1680
    %1682 = vadd.xlane.f32.xlu0 %v1611
    %v1683 = vpop.xlane.xlu0 %1682
    %1684 = vadd.xlane.f32.xlu0 %v1612
    %v1685 = vpop.xlane.xlu0 %1684
    %1686 = vadd.xlane.f32.xlu0 %v1613
    %v1687 = vpop.xlane.xlu0 %1686
    %1688 = vadd.xlane.f32.xlu0 %v1614
    %v1689 = vpop.xlane.xlu0 %1688
    %1690 = vadd.xlane.f32.xlu0 %v1615
    %v1691 = vpop.xlane.xlu0 %1690
    %1692 = vadd.xlane.f32.xlu0 %v1616
    %v1693 = vpop.xlane.xlu0 %1692
    %1694 = vadd.xlane.f32.xlu0 %v1617
    %v1695 = vpop.xlane.xlu0 %1694
    %1696 = vadd.xlane.f32.xlu0 %v1618
    %v1697 = vpop.xlane.xlu0 %1696
    %1698 = vadd.xlane.f32.xlu0 %v1619
    %v1699 = vpop.xlane.xlu0 %1698
    %1700 = vadd.xlane.f32.xlu0 %v1620
    %v1701 = vpop.xlane.xlu0 %1700
    %1702 = vadd.xlane.f32.xlu0 %v1621
    %v1703 = vpop.xlane.xlu0 %1702
    %1704 = vadd.xlane.f32.xlu0 %v1622
    %v1705 = vpop.xlane.xlu0 %1704
    %1706 = vadd.xlane.f32.xlu0 %v1623
    %v1707 = vpop.xlane.xlu0 %1706
    %1708 = vadd.xlane.f32.xlu0 %v1624
    %v1709 = vpop.xlane.xlu0 %1708
    %1710 = vadd.xlane.f32.xlu0 %v1625
    %v1711 = vpop.xlane.xlu0 %1710
    %1712 = vadd.xlane.f32.xlu0 %v1626
    %v1713 = vpop.xlane.xlu0 %1712
    %1714 = vadd.xlane.f32.xlu0 %v1627
    %v1715 = vpop.xlane.xlu0 %1714
    %1716 = vadd.xlane.f32.xlu0 %v1628
    %v1717 = vpop.xlane.xlu0 %1716
    %1718 = vadd.xlane.f32.xlu0 %v1629
    %v1719 = vpop.xlane.xlu0 %1718
    %1720 = vadd.xlane.f32.xlu0 %v1630
    %v1721 = vpop.xlane.xlu0 %1720
    %1722 = vadd.xlane.f32.xlu0 %v1631
    %v1723 = vpop.xlane.xlu0 %1722
    %1724 = vadd.xlane.f32.xlu0 %v1632
    %v1725 = vpop.xlane.xlu0 %1724
    %1726 = vadd.xlane.f32.xlu0 %v1633
    %v1727 = vpop.xlane.xlu0 %1726
    %1728 = vadd.xlane.f32.xlu0 %v1634
    %v1729 = vpop.xlane.xlu0 %1728
    %1730 = vadd.xlane.f32.xlu0 %v1635
    %v1731 = vpop.xlane.xlu0 %1730
    %1732 = vadd.xlane.f32.xlu0 %v1636
    %v1733 = vpop.xlane.xlu0 %1732
    %1734 = vadd.xlane.f32.xlu0 %v1637
    %v1735 = vpop.xlane.xlu0 %1734
    %1736 = vadd.xlane.f32.xlu0 %v1638
    %v1737 = vpop.xlane.xlu0 %1736
    %1738 = vadd.xlane.f32.xlu0 %v1639
    %v1739 = vpop.xlane.xlu0 %1738
    %1740 = vadd.xlane.f32.xlu0 %v1640
    %v1741 = vpop.xlane.xlu0 %1740
    %1742 = vadd.xlane.f32.xlu0 %v1641
    %v1743 = vpop.xlane.xlu0 %1742
    %1744 = vadd.xlane.f32.xlu0 %v1642
    %v1745 = vpop.xlane.xlu0 %1744
    %1746 = vadd.xlane.f32.xlu0 %v1643
    %v1747 = vpop.xlane.xlu0 %1746
    %1748 = vadd.xlane.f32.xlu0 %v1644
    %v1749 = vpop.xlane.xlu0 %1748
    %1750 = vadd.xlane.f32.xlu0 %v1645
    %v1751 = vpop.xlane.xlu0 %1750
    %1752 = vadd.xlane.f32.xlu0 %v1646
    %v1753 = vpop.xlane.xlu0 %1752
    %1754 = vadd.xlane.f32.xlu0 %v1647
    %v1755 = vpop.xlane.xlu0 %1754
    %1756 = vadd.xlane.f32.xlu0 %v1648
    %v1757 = vpop.xlane.xlu0 %1756
    %1758 = vadd.xlane.f32.xlu0 %v1649
    %v1759 = vpop.xlane.xlu0 %1758
    %1760 = vadd.xlane.f32.xlu0 %v1650
    %v1761 = vpop.xlane.xlu0 %1760
    %1762 = vadd.xlane.f32.xlu0 %v1651
    %v1763 = vpop.xlane.xlu0 %1762
    %1764 = vadd.xlane.f32.xlu0 %v1652
    %v1765 = vpop.xlane.xlu0 %1764
    %1766 = vadd.xlane.f32.xlu0 %v1653
    %v1767 = vpop.xlane.xlu0 %1766
    %1768 = vadd.xlane.f32.xlu0 %v1654
    %v1769 = vpop.xlane.xlu0 %1768
    %1770 = vadd.xlane.f32.xlu0 %v1655
    %v1771 = vpop.xlane.xlu0 %1770
    %1772 = vadd.xlane.f32.xlu0 %v1656
    %v1773 = vpop.xlane.xlu0 %1772
    %1774 = vadd.xlane.f32.xlu0 %v1657
    %v1775 = vpop.xlane.xlu0 %1774
    %1776 = vadd.xlane.f32.xlu0 %v1658
    %v1777 = vpop.xlane.xlu0 %1776
    %1778 = vadd.xlane.f32.xlu0 %v1659
    %v1779 = vpop.xlane.xlu0 %1778
    %1780 = vadd.xlane.f32.xlu0 %v1660
    %v1781 = vpop.xlane.xlu0 %1780
    %1782 = vadd.xlane.f32.xlu0 %v1661
    %v1783 = vpop.xlane.xlu0 %1782
    %1784 = vadd.xlane.f32.xlu0 %v1662
    %v1785 = vpop.xlane.xlu0 %1784
    %1786 = vadd.xlane.f32.xlu0 %v1663
    %v1787 = vpop.xlane.xlu0 %1786
    %1788 = vadd.xlane.f32.xlu0 %v1664
    %v1789 = vpop.xlane.xlu0 %1788
    %1790 = vadd.xlane.f32.xlu0 %v1665
    %v1791 = vpop.xlane.xlu0 %1790
    %1792 = vadd.xlane.f32.xlu0 %v1666
    %v1793 = vpop.xlane.xlu0 %1792
    %1794 = vadd.xlane.f32.xlu0 %v1667
    %v1795 = vpop.xlane.xlu0 %1794
    %v1796 = vmul.f32 %v1669, 0.01
    %v1797 = vmul.f32 %v1671, 0.01
    %v1798 = vmul.f32 %v1673, 0.01
    %v1799 = vmul.f32 %v1675, 0.01
    %v1800 = vmul.f32 %v1677, 0.01
    %v1801 = vmul.f32 %v1679, 0.01
    %v1802 = vmul.f32 %v1681, 0.01
    %v1803 = vmul.f32 %v1683, 0.01
    %v1804 = vmul.f32 %v1685, 0.01
    %v1805 = vmul.f32 %v1687, 0.01
    %v1806 = vmul.f32 %v1689, 0.01
    %v1807 = vmul.f32 %v1691, 0.01
    %v1808 = vmul.f32 %v1693, 0.01
    %v1809 = vmul.f32 %v1695, 0.01
    %v1810 = vmul.f32 %v1697, 0.01
    %v1811 = vmul.f32 %v1699, 0.01
    %v1812 = vmul.f32 %v1701, 0.01
    %v1813 = vmul.f32 %v1703, 0.01
    %v1814 = vmul.f32 %v1705, 0.01
    %v1815 = vmul.f32 %v1707, 0.01
    %v1816 = vmul.f32 %v1709, 0.01
    %v1817 = vmul.f32 %v1711, 0.01
    %v1818 = vmul.f32 %v1713, 0.01
    %v1819 = vmul.f32 %v1715, 0.01
    %v1820 = vmul.f32 %v1717, 0.01
    %v1821 = vmul.f32 %v1719, 0.01
    %v1822 = vmul.f32 %v1721, 0.01
    %v1823 = vmul.f32 %v1723, 0.01
    %v1824 = vmul.f32 %v1725, 0.01
    %v1825 = vmul.f32 %v1727, 0.01
    %v1826 = vmul.f32 %v1729, 0.01
    %v1827 = vmul.f32 %v1731, 0.01
    %v1828 = vmul.f32 %v1733, 0.01
    %v1829 = vmul.f32 %v1735, 0.01
    %v1830 = vmul.f32 %v1737, 0.01
    %v1831 = vmul.f32 %v1739, 0.01
    %v1832 = vmul.f32 %v1741, 0.01
    %v1833 = vmul.f32 %v1743, 0.01
    %v1834 = vmul.f32 %v1745, 0.01
    %v1835 = vmul.f32 %v1747, 0.01
    %v1836 = vmul.f32 %v1749, 0.01
    %v1837 = vmul.f32 %v1751, 0.01
    %v1838 = vmul.f32 %v1753, 0.01
    %v1839 = vmul.f32 %v1755, 0.01
    %v1840 = vmul.f32 %v1757, 0.01
    %v1841 = vmul.f32 %v1759, 0.01
    %v1842 = vmul.f32 %v1761, 0.01
    %v1843 = vmul.f32 %v1763, 0.01
    %v1844 = vmul.f32 %v1765, 0.01
    %v1845 = vmul.f32 %v1767, 0.01
    %v1846 = vmul.f32 %v1769, 0.01
    %v1847 = vmul.f32 %v1771, 0.01
    %v1848 = vmul.f32 %v1773, 0.01
    %v1849 = vmul.f32 %v1775, 0.01
    %v1850 = vmul.f32 %v1777, 0.01
    %v1851 = vmul.f32 %v1779, 0.01
    %v1852 = vmul.f32 %v1781, 0.01
    %v1853 = vmul.f32 %v1783, 0.01
    %v1854 = vmul.f32 %v1785, 0.01
    %v1855 = vmul.f32 %v1787, 0.01
    %v1856 = vmul.f32 %v1789, 0.01
    %v1857 = vmul.f32 %v1791, 0.01
    %v1858 = vmul.f32 %v1793, 0.01
    %v1859 = vmul.f32 %v1795, 0.01
    %v1860 = vadd.f32 %v1796, 1e-05
    %v1861 = vadd.f32 %v1797, 1e-05
    %v1862 = vadd.f32 %v1798, 1e-05
    %v1863 = vadd.f32 %v1799, 1e-05
    %v1864 = vadd.f32 %v1800, 1e-05
    %v1865 = vadd.f32 %v1801, 1e-05
    %v1866 = vadd.f32 %v1802, 1e-05
    %v1867 = vadd.f32 %v1803, 1e-05
    %v1868 = vadd.f32 %v1804, 1e-05
    %v1869 = vadd.f32 %v1805, 1e-05
    %v1870 = vadd.f32 %v1806, 1e-05
    %v1871 = vadd.f32 %v1807, 1e-05
    %v1872 = vadd.f32 %v1808, 1e-05
    %v1873 = vadd.f32 %v1809, 1e-05
    %v1874 = vadd.f32 %v1810, 1e-05
    %v1875 = vadd.f32 %v1811, 1e-05
    %v1876 = vadd.f32 %v1812, 1e-05
    %v1877 = vadd.f32 %v1813, 1e-05
    %v1878 = vadd.f32 %v1814, 1e-05
    %v1879 = vadd.f32 %v1815, 1e-05
    %v1880 = vadd.f32 %v1816, 1e-05
    %v1881 = vadd.f32 %v1817, 1e-05
    %v1882 = vadd.f32 %v1818, 1e-05
    %v1883 = vadd.f32 %v1819, 1e-05
    %v1884 = vadd.f32 %v1820, 1e-05
    %v1885 = vadd.f32 %v1821, 1e-05
    %v1886 = vadd.f32 %v1822, 1e-05
    %v1887 = vadd.f32 %v1823, 1e-05
    %v1888 = vadd.f32 %v1824, 1e-05
    %v1889 = vadd.f32 %v1825, 1e-05
    %v1890 = vadd.f32 %v1826, 1e-05
    %v1891 = vadd.f32 %v1827, 1e-05
    %v1892 = vadd.f32 %v1828, 1e-05
    %v1893 = vadd.f32 %v1829, 1e-05
    %v1894 = vadd.f32 %v1830, 1e-05
    %v1895 = vadd.f32 %v1831, 1e-05
    %v1896 = vadd.f32 %v1832, 1e-05
    %v1897 = vadd.f32 %v1833, 1e-05
    %v1898 = vadd.f32 %v1834, 1e-05
    %v1899 = vadd.f32 %v1835, 1e-05
    %v1900 = vadd.f32 %v1836, 1e-05
    %v1901 = vadd.f32 %v1837, 1e-05
    %v1902 = vadd.f32 %v1838, 1e-05
    %v1903 = vadd.f32 %v1839, 1e-05
    %v1904 = vadd.f32 %v1840, 1e-05
    %v1905 = vadd.f32 %v1841, 1e-05
    %v1906 = vadd.f32 %v1842, 1e-05
    %v1907 = vadd.f32 %v1843, 1e-05
    %v1908 = vadd.f32 %v1844, 1e-05
    %v1909 = vadd.f32 %v1845, 1e-05
    %v1910 = vadd.f32 %v1846, 1e-05
    %v1911 = vadd.f32 %v1847, 1e-05
    %v1912 = vadd.f32 %v1848, 1e-05
    %v1913 = vadd.f32 %v1849, 1e-05
    %v1914 = vadd.f32 %v1850, 1e-05
    %v1915 = vadd.f32 %v1851, 1e-05
    %v1916 = vadd.f32 %v1852, 1e-05
    %v1917 = vadd.f32 %v1853, 1e-05
    %v1918 = vadd.f32 %v1854, 1e-05
    %v1919 = vadd.f32 %v1855, 1e-05
    %v1920 = vadd.f32 %v1856, 1e-05
    %v1921 = vadd.f32 %v1857, 1e-05
    %v1922 = vadd.f32 %v1858, 1e-05
    %v1923 = vadd.f32 %v1859, 1e-05
    %v1924 = vrsqrt.pop %v1860
    %v1925 = vrsqrt.pop %v1861
    %v1926 = vrsqrt.pop %v1862
    %v1927 = vrsqrt.pop %v1863
    %v1928 = vrsqrt.pop %v1864
    %v1929 = vrsqrt.pop %v1865
    %v1930 = vrsqrt.pop %v1866
    %v1931 = vrsqrt.pop %v1867
    %v1932 = vrsqrt.pop %v1868
    %v1933 = vrsqrt.pop %v1869
    %v1934 = vrsqrt.pop %v1870
    %v1935 = vrsqrt.pop %v1871
    %v1936 = vrsqrt.pop %v1872
    %v1937 = vrsqrt.pop %v1873
    %v1938 = vrsqrt.pop %v1874
    %v1939 = vrsqrt.pop %v1875
    %v1940 = vrsqrt.pop %v1876
    %v1941 = vrsqrt.pop %v1877
    %v1942 = vrsqrt.pop %v1878
    %v1943 = vrsqrt.pop %v1879
    %v1944 = vrsqrt.pop %v1880
    %v1945 = vrsqrt.pop %v1881
    %v1946 = vrsqrt.pop %v1882
    %v1947 = vrsqrt.pop %v1883
    %v1948 = vrsqrt.pop %v1884
    %v1949 = vrsqrt.pop %v1885
    %v1950 = vrsqrt.pop %v1886
    %v1951 = vrsqrt.pop %v1887
    %v1952 = vrsqrt.pop %v1888
    %v1953 = vrsqrt.pop %v1889
    %v1954 = vrsqrt.pop %v1890
    %v1955 = vrsqrt.pop %v1891
    %v1956 = vrsqrt.pop %v1892
    %v1957 = vrsqrt.pop %v1893
    %v1958 = vrsqrt.pop %v1894
    %v1959 = vrsqrt.pop %v1895
    %v1960 = vrsqrt.pop %v1896
    %v1961 = vrsqrt.pop %v1897
    %v1962 = vrsqrt.pop %v1898
    %v1963 = vrsqrt.pop %v1899
    %v1964 = vrsqrt.pop %v1900
    %v1965 = vrsqrt.pop %v1901
    %v1966 = vrsqrt.pop %v1902
    %v1967 = vrsqrt.pop %v1903
    %v1968 = vrsqrt.pop %v1904
    %v1969 = vrsqrt.pop %v1905
    %v1970 = vrsqrt.pop %v1906
    %v1971 = vrsqrt.pop %v1907
    %v1972 = vrsqrt.pop %v1908
    %v1973 = vrsqrt.pop %v1909
    %v1974 = vrsqrt.pop %v1910
    %v1975 = vrsqrt.pop %v1911
    %v1976 = vrsqrt.pop %v1912
    %v1977 = vrsqrt.pop %v1913
    %v1978 = vrsqrt.pop %v1914
    %v1979 = vrsqrt.pop %v1915
    %v1980 = vrsqrt.pop %v1916
    %v1981 = vrsqrt.pop %v1917
    %v1982 = vrsqrt.pop %v1918
    %v1983 = vrsqrt.pop %v1919
    %v1984 = vrsqrt.pop %v1920
    %v1985 = vrsqrt.pop %v1921
    %v1986 = vrsqrt.pop %v1922
    %v1987 = vrsqrt.pop %v1923
    %v1988 = vmul.f32 %v1540, %v1924
    %v1989 = vmul.f32 %v1541, %v1925
    %v1990 = vmul.f32 %v1542, %v1926
    %v1991 = vmul.f32 %v1543, %v1927
    %v1992 = vmul.f32 %v1544, %v1928
    %v1993 = vmul.f32 %v1545, %v1929
    %v1994 = vmul.f32 %v1546, %v1930
    %v1995 = vmul.f32 %v1547, %v1931
    %v1996 = vmul.f32 %v1548, %v1932
    %v1997 = vmul.f32 %v1549, %v1933
    %v1998 = vmul.f32 %v1550, %v1934
    %v1999 = vmul.f32 %v1551, %v1935
    %v2000 = vmul.f32 %v1552, %v1936
    %v2001 = vmul.f32 %v1553, %v1937
    %v2002 = vmul.f32 %v1554, %v1938
    %v2003 = vmul.f32 %v1555, %v1939
    %v2004 = vmul.f32 %v1556, %v1940
    %v2005 = vmul.f32 %v1557, %v1941
    %v2006 = vmul.f32 %v1558, %v1942
    %v2007 = vmul.f32 %v1559, %v1943
    %v2008 = vmul.f32 %v1560, %v1944
    %v2009 = vmul.f32 %v1561, %v1945
    %v2010 = vmul.f32 %v1562, %v1946
    %v2011 = vmul.f32 %v1563, %v1947
    %v2012 = vmul.f32 %v1564, %v1948
    %v2013 = vmul.f32 %v1565, %v1949
    %v2014 = vmul.f32 %v1566, %v1950
    %v2015 = vmul.f32 %v1567, %v1951
    %v2016 = vmul.f32 %v1568, %v1952
    %v2017 = vmul.f32 %v1569, %v1953
    %v2018 = vmul.f32 %v1570, %v1954
    %v2019 = vmul.f32 %v1571, %v1955
    %v2020 = vmul.f32 %v1572, %v1956
    %v2021 = vmul.f32 %v1573, %v1957
    %v2022 = vmul.f32 %v1574, %v1958
    %v2023 = vmul.f32 %v1575, %v1959
    %v2024 = vmul.f32 %v1576, %v1960
    %v2025 = vmul.f32 %v1577, %v1961
    %v2026 = vmul.f32 %v1578, %v1962
    %v2027 = vmul.f32 %v1579, %v1963
    %v2028 = vmul.f32 %v1580, %v1964
    %v2029 = vmul.f32 %v1581, %v1965
    %v2030 = vmul.f32 %v1582, %v1966
    %v2031 = vmul.f32 %v1583, %v1967
    %v2032 = vmul.f32 %v1584, %v1968
    %v2033 = vmul.f32 %v1585, %v1969
    %v2034 = vmul.f32 %v1586, %v1970
    %v2035 = vmul.f32 %v1587, %v1971
    %v2036 = vmul.f32 %v1588, %v1972
    %v2037 = vmul.f32 %v1589, %v1973
    %v2038 = vmul.f32 %v1590, %v1974
    %v2039 = vmul.f32 %v1591, %v1975
    %v2040 = vmul.f32 %v1592, %v1976
    %v2041 = vmul.f32 %v1593, %v1977
    %v2042 = vmul.f32 %v1594, %v1978
    %v2043 = vmul.f32 %v1595, %v1979
    %v2044 = vmul.f32 %v1596, %v1980
    %v2045 = vmul.f32 %v1597, %v1981
    %v2046 = vmul.f32 %v1598, %v1982
    %v2047 = vmul.f32 %v1599, %v1983
    %v2048 = vmul.f32 %v1600, %v1984
    %v2049 = vmul.f32 %v1601, %v1985
    %v2050 = vmul.f32 %v1602, %v1986
    %v2051 = vmul.f32 %v1603, %v1987
    %v2052 = vlaneseq
    %v2053 = vshrl.u32 %v2052, 7
    %v2054 = vsub.s32 2, %v2053
    %v2055 = vrot.slane %v111, %v2054
    %v2056 = vmul.f32 %v1988, %v2055
    %v2057 = vmul.f32 %v1989, %v2055
    %v2058 = vmul.f32 %v1990, %v2055
    %v2059 = vmul.f32 %v1991, %v2055
    %v2060 = vmul.f32 %v1992, %v2055
    %v2061 = vmul.f32 %v1993, %v2055
    %v2062 = vmul.f32 %v1994, %v2055
    %v2063 = vmul.f32 %v1995, %v2055
    %v2064 = vmul.f32 %v1996, %v2055
    %v2065 = vmul.f32 %v1997, %v2055
    %v2066 = vmul.f32 %v1998, %v2055
    %v2067 = vmul.f32 %v1999, %v2055
    %v2068 = vmul.f32 %v2000, %v2055
    %v2069 = vmul.f32 %v2001, %v2055
    %v2070 = vmul.f32 %v2002, %v2055
    %v2071 = vmul.f32 %v2003, %v2055
    %v2072 = vmul.f32 %v2004, %v2055
    %v2073 = vmul.f32 %v2005, %v2055
    %v2074 = vmul.f32 %v2006, %v2055
    %v2075 = vmul.f32 %v2007, %v2055
    %v2076 = vmul.f32 %v2008, %v2055
    %v2077 = vmul.f32 %v2009, %v2055
    %v2078 = vmul.f32 %v2010, %v2055
    %v2079 = vmul.f32 %v2011, %v2055
    %v2080 = vmul.f32 %v2012, %v2055
    %v2081 = vmul.f32 %v2013, %v2055
    %v2082 = vmul.f32 %v2014, %v2055
    %v2083 = vmul.f32 %v2015, %v2055
    %v2084 = vmul.f32 %v2016, %v2055
    %v2085 = vmul.f32 %v2017, %v2055
    %v2086 = vmul.f32 %v2018, %v2055
    %v2087 = vmul.f32 %v2019, %v2055
    %v2088 = vmul.f32 %v2020, %v2055
    %v2089 = vmul.f32 %v2021, %v2055
    %v2090 = vmul.f32 %v2022, %v2055
    %v2091 = vmul.f32 %v2023, %v2055
    %v2092 = vmul.f32 %v2024, %v2055
    %v2093 = vmul.f32 %v2025, %v2055
    %v2094 = vmul.f32 %v2026, %v2055
    %v2095 = vmul.f32 %v2027, %v2055
    %v2096 = vmul.f32 %v2028, %v2055
    %v2097 = vmul.f32 %v2029, %v2055
    %v2098 = vmul.f32 %v2030, %v2055
    %v2099 = vmul.f32 %v2031, %v2055
    %v2100 = vmul.f32 %v2032, %v2055
    %v2101 = vmul.f32 %v2033, %v2055
    %v2102 = vmul.f32 %v2034, %v2055
    %v2103 = vmul.f32 %v2035, %v2055
    %v2104 = vmul.f32 %v2036, %v2055
    %v2105 = vmul.f32 %v2037, %v2055
    %v2106 = vmul.f32 %v2038, %v2055
    %v2107 = vmul.f32 %v2039, %v2055
    %v2108 = vmul.f32 %v2040, %v2055
    %v2109 = vmul.f32 %v2041, %v2055
    %v2110 = vmul.f32 %v2042, %v2055
    %v2111 = vmul.f32 %v2043, %v2055
    %v2112 = vmul.f32 %v2044, %v2055
    %v2113 = vmul.f32 %v2045, %v2055
    %v2114 = vmul.f32 %v2046, %v2055
    %v2115 = vmul.f32 %v2047, %v2055
    %v2116 = vmul.f32 %v2048, %v2055
    %v2117 = vmul.f32 %v2049, %v2055
    %v2118 = vmul.f32 %v2050, %v2055
    %v2119 = vmul.f32 %v2051, %v2055
    %v2120 = vlaneseq
    %v2121 = vshrl.u32 %v2120, 7
    %v2122 = vsub.s32 3, %v2121
    %v2123 = vrot.slane %v111, %v2122
    %v2124 = vadd.f32 %v2056, %v2123
    %v2125 = vadd.f32 %v2057, %v2123
    %v2126 = vadd.f32 %v2058, %v2123
    %v2127 = vadd.f32 %v2059, %v2123
    %v2128 = vadd.f32 %v2060, %v2123
    %v2129 = vadd.f32 %v2061, %v2123
    %v2130 = vadd.f32 %v2062, %v2123
    %v2131 = vadd.f32 %v2063, %v2123
    %v2132 = vadd.f32 %v2064, %v2123
    %v2133 = vadd.f32 %v2065, %v2123
    %v2134 = vadd.f32 %v2066, %v2123
    %v2135 = vadd.f32 %v2067, %v2123
    %v2136 = vadd.f32 %v2068, %v2123
    %v2137 = vadd.f32 %v2069, %v2123
    %v2138 = vadd.f32 %v2070, %v2123
    %v2139 = vadd.f32 %v2071, %v2123
    %v2140 = vadd.f32 %v2072, %v2123
    %v2141 = vadd.f32 %v2073, %v2123
    %v2142 = vadd.f32 %v2074, %v2123
    %v2143 = vadd.f32 %v2075, %v2123
    %v2144 = vadd.f32 %v2076, %v2123
    %v2145 = vadd.f32 %v2077, %v2123
    %v2146 = vadd.f32 %v2078, %v2123
    %v2147 = vadd.f32 %v2079, %v2123
    %v2148 = vadd.f32 %v2080, %v2123
    %v2149 = vadd.f32 %v2081, %v2123
    %v2150 = vadd.f32 %v2082, %v2123
    %v2151 = vadd.f32 %v2083, %v2123
    %v2152 = vadd.f32 %v2084, %v2123
    %v2153 = vadd.f32 %v2085, %v2123
    %v2154 = vadd.f32 %v2086, %v2123
    %v2155 = vadd.f32 %v2087, %v2123
    %v2156 = vadd.f32 %v2088, %v2123
    %v2157 = vadd.f32 %v2089, %v2123
    %v2158 = vadd.f32 %v2090, %v2123
    %v2159 = vadd.f32 %v2091, %v2123
    %v2160 = vadd.f32 %v2092, %v2123
    %v2161 = vadd.f32 %v2093, %v2123
    %v2162 = vadd.f32 %v2094, %v2123
    %v2163 = vadd.f32 %v2095, %v2123
    %v2164 = vadd.f32 %v2096, %v2123
    %v2165 = vadd.f32 %v2097, %v2123
    %v2166 = vadd.f32 %v2098, %v2123
    %v2167 = vadd.f32 %v2099, %v2123
    %v2168 = vadd.f32 %v2100, %v2123
    %v2169 = vadd.f32 %v2101, %v2123
    %v2170 = vadd.f32 %v2102, %v2123
    %v2171 = vadd.f32 %v2103, %v2123
    %v2172 = vadd.f32 %v2104, %v2123
    %v2173 = vadd.f32 %v2105, %v2123
    %v2174 = vadd.f32 %v2106, %v2123
    %v2175 = vadd.f32 %v2107, %v2123
    %v2176 = vadd.f32 %v2108, %v2123
    %v2177 = vadd.f32 %v2109, %v2123
    %v2178 = vadd.f32 %v2110, %v2123
    %v2179 = vadd.f32 %v2111, %v2123
    %v2180 = vadd.f32 %v2112, %v2123
    %v2181 = vadd.f32 %v2113, %v2123
    %v2182 = vadd.f32 %v2114, %v2123
    %v2183 = vadd.f32 %v2115, %v2123
    %v2184 = vadd.f32 %v2116, %v2123
    %v2185 = vadd.f32 %v2117, %v2123
    %v2186 = vadd.f32 %v2118, %v2123
    %v2187 = vadd.f32 %v2119, %v2123
    %2188 = vst [vmem:[#allocation2] sm:$0xff] %v2124
    %2189 = vst [vmem:[#allocation2 + $0x8] sm:$0xff] %v2125
    %2190 = vst [vmem:[#allocation2 + $0x10] sm:$0xff] %v2126
    %2191 = vst [vmem:[#allocation2 + $0x18] sm:$0xff] %v2127
    %2192 = vst [vmem:[#allocation2 + $0x20] sm:$0xff] %v2128
    %2193 = vst [vmem:[#allocation2 + $0x28] sm:$0xff] %v2129
    %2194 = vst [vmem:[#allocation2 + $0x30] sm:$0xff] %v2130
    %2195 = vst [vmem:[#allocation2 + $0x38] sm:$0xff] %v2131
    %2196 = vst [vmem:[#allocation2 + $0x40] sm:$0xff] %v2132
    %2197 = vst [vmem:[#allocation2 + $0x48] sm:$0xff] %v2133
    %2198 = vst [vmem:[#allocation2 + $0x50] sm:$0xff] %v2134
    %2199 = vst [vmem:[#allocation2 + $0x58] sm:$0xff] %v2135
    %2200 = vst [vmem:[#allocation2 + $0x60] sm:$0xff] %v2136
    %2201 = vst [vmem:[#allocation2 + $0x68] sm:$0xff] %v2137
    %2202 = vst [vmem:[#allocation2 + $0x70] sm:$0xff] %v2138
    %2203 = vst [vmem:[#allocation2 + $0x78] sm:$0xff] %v2139
    %2204 = vst [vmem:[#allocation2 + $0x80] sm:$0xff] %v2140
    %2205 = vst [vmem:[#allocation2 + $0x88] sm:$0xff] %v2141
    %2206 = vst [vmem:[#allocation2 + $0x90] sm:$0xff] %v2142
    %2207 = vst [vmem:[#allocation2 + $0x98] sm:$0xff] %v2143
    %2208 = vst [vmem:[#allocation2 + $0xa0] sm:$0xff] %v2144
    %2209 = vst [vmem:[#allocation2 + $0xa8] sm:$0xff] %v2145
    %2210 = vst [vmem:[#allocation2 + $0xb0] sm:$0xff] %v2146
    %2211 = vst [vmem:[#allocation2 + $0xb8] sm:$0xff] %v2147
    %2212 = vst [vmem:[#allocation2 + $0xc0] sm:$0xff] %v2148
    %2213 = vst [vmem:[#allocation2 + $0xc8] sm:$0xff] %v2149
    %2214 = vst [vmem:[#allocation2 + $0xd0] sm:$0xff] %v2150
    %2215 = vst [vmem:[#allocation2 + $0xd8] sm:$0xff] %v2151
    %2216 = vst [vmem:[#allocation2 + $0xe0] sm:$0xff] %v2152
    %2217 = vst [vmem:[#allocation2 + $0xe8] sm:$0xff] %v2153
    %2218 = vst [vmem:[#allocation2 + $0xf0] sm:$0xff] %v2154
    %2219 = vst [vmem:[#allocation2 + $0xf8] sm:$0xff] %v2155
    %2220 = vst [vmem:[#allocation2 + $0x100] sm:$0xff] %v2156
    %2221 = vst [vmem:[#allocation2 + $0x108] sm:$0xff] %v2157
    %2222 = vst [vmem:[#allocation2 + $0x110] sm:$0xff] %v2158
    %2223 = vst [vmem:[#allocation2 + $0x118] sm:$0xff] %v2159
    %2224 = vst [vmem:[#allocation2 + $0x120] sm:$0xff] %v2160
    %2225 = vst [vmem:[#allocation2 + $0x128] sm:$0xff] %v2161
    %2226 = vst [vmem:[#allocation2 + $0x130] sm:$0xff] %v2162
    %2227 = vst [vmem:[#allocation2 + $0x138] sm:$0xff] %v2163
    %2228 = vst [vmem:[#allocation2 + $0x140] sm:$0xff] %v2164
    %2229 = vst [vmem:[#allocation2 + $0x148] sm:$0xff] %v2165
    %2230 = vst [vmem:[#allocation2 + $0x150] sm:$0xff] %v2166
    %2231 = vst [vmem:[#allocation2 + $0x158] sm:$0xff] %v2167
    %2232 = vst [vmem:[#allocation2 + $0x160] sm:$0xff] %v2168
    %2233 = vst [vmem:[#allocation2 + $0x168] sm:$0xff] %v2169
    %2234 = vst [vmem:[#allocation2 + $0x170] sm:$0xff] %v2170
    %2235 = vst [vmem:[#allocation2 + $0x178] sm:$0xff] %v2171
    %2236 = vst [vmem:[#allocation2 + $0x180] sm:$0xff] %v2172
    %2237 = vst [vmem:[#allocation2 + $0x188] sm:$0xff] %v2173
    %2238 = vst [vmem:[#allocation2 + $0x190] sm:$0xff] %v2174
    %2239 = vst [vmem:[#allocation2 + $0x198] sm:$0xff] %v2175
    %2240 = vst [vmem:[#allocation2 + $0x1a0] sm:$0xff] %v2176
    %2241 = vst [vmem:[#allocation2 + $0x1a8] sm:$0xff] %v2177
    %2242 = vst [vmem:[#allocation2 + $0x1b0] sm:$0xff] %v2178
    %2243 = vst [vmem:[#allocation2 + $0x1b8] sm:$0xff] %v2179
    %2244 = vst [vmem:[#allocation2 + $0x1c0] sm:$0xff] %v2180
    %2245 = vst [vmem:[#allocation2 + $0x1c8] sm:$0xff] %v2181
    %2246 = vst [vmem:[#allocation2 + $0x1d0] sm:$0xff] %v2182
    %2247 = vst [vmem:[#allocation2 + $0x1d8] sm:$0xff] %v2183
    %2248 = vst [vmem:[#allocation2 + $0x1e0] sm:$0xff] %v2184
    %2249 = vst [vmem:[#allocation2 + $0x1e8] sm:$0xff] %v2185
    %2250 = vst [vmem:[#allocation2 + $0x1f0] sm:$0xff] %v2186
    %2251 = vst [vmem:[#allocation2 + $0x1f8] sm:$0xff] %v2187
    // Predicated region
    $region18: #{tpu_custom_call.1} parent=1 // pred_check
      _
    $region19: #{tpu_custom_call.1} parent=1 // pred_check_branch
      %2253 = sbr.rel (0) target = $region21
    $region20: #{tpu_custom_call.1} parent=1 // pred_region
      %s2255 = ssub.s32 8192, 8192
      %2256 = vsyncadd [#allocation3], %s2255
      %s2257 = sshll.u32 [#allocation2], 4
      %s2258 = int_to_ptr.vmem [resolvable:$true] %s2257
      %2263 = dma.vmem_to_hbm [thread:$0]  %s2258, 8192, %s4, [#allocation3], 128, 128, 8
    $region21: #{tpu_custom_call.1} parent=1 // pred_fallthru
      _
    // Predicated region
    $region22: #{tpu_custom_call.1} parent=1 // pred_check
      _
    $region23: #{tpu_custom_call.1} parent=1 // pred_check_branch
      %2265 = sbr.rel (0) target = $region25
    $region24: #{tpu_custom_call.1} parent=1 // pred_region
      %2266 = dma.done [#allocation3], 8192
    $region25: #{tpu_custom_call.1} parent=1 // pred_fallthru
      _
    %2267 = vsyncpa [#allocation3], 1

// kernel: tpu_custom_call.1
$region0: #{tpu_custom_call.1}
  #allocation0 [shape = 'u32[]', space=smem, size = 0x4, offset = 0x4, fixed_abs, tag = 'smem constant byte address 0x4 - core index']
  #allocation1 [shape = 'u32[144,128]{1,0:T(1,128)}', space=vmem, size = 0x12000, scoped, tag = 'internal scratch']
  %s0 = inlined_call_operand.hbm [shape: f32[512,128], index: 0, kind: input, shape index: {}]
  %s1 = inlined_call_operand.hbm [shape: f32[128,128], index: 1, kind: input, shape index: {}]
  %s2 = inlined_call_operand.hbm [shape: f32[128,128], index: 2, kind: input, shape index: {}]
  %s3 = inlined_call_operand.vmem [shape: f32[8,128], index: 3, kind: input, shape index: {}]
  %s4 = inlined_call_operand.hbm [shape: f32[512,128], index: 4, kind: output, shape index: {}]
  %s5 = sld [smem:[#allocation0]]
  $region38: #{tpu_custom_call.1} parent=0
    _
  %s7 = ssub.s32 1, %s5
  %s8 = scalar_select 0, %s7, %s5
  $region1: #{tpu_custom_call.1} parent=0
    #allocation2 [shape = 'u8[262144]{0}', space=vmem, size = 0x40000, scoped, tag = 'input window, operand 0, single buffered']
    #allocation3 [shape = 's32[1]{0}', space=sflag, size = 0x4, scoped, tag = 'scoped memory for tpu_custom_call.1']
    #allocation4 [shape = 's32[1]{0}', space=sflag, size = 0x4, scoped, tag = 'scoped memory for tpu_custom_call.1']
    #allocation5 [shape = 'u8[65536]{0}', space=vmem, size = 0x10000, scoped, tag = 'input window, operand 1, single buffered']
    #allocation6 [shape = 's32[1]{0}', space=sflag, size = 0x4, scoped, tag = 'scoped memory for tpu_custom_call.1']
    #allocation7 [shape = 'u8[65536]{0}', space=vmem, size = 0x10000, scoped, tag = 'input window, operand 2, single buffered']
    #allocation8 [shape = 'u8[262144]{0}', space=vmem, size = 0x40000, scoped, tag = 'output window, operand 0, single buffered']
    %9 = vsyncpa [#allocation3], 0
    %10 = vsyncpa [#allocation6], 0
    %11 = vsyncpa [#allocation4], 0
    // Predicated region
    $region2: #{tpu_custom_call.1} parent=1 // pred_check
      _
    $region3: #{tpu_custom_call.1} parent=1 // pred_check_branch
      %13 = sbr.rel (0) target = $region5
    $region4: #{tpu_custom_call.1} parent=1 // pred_region
      %s15 = ssub.s32 8192, 8192
      %16 = vsyncadd [#allocation3], %s15
      %s17 = sshll.u32 [#allocation2], 4
      %s18 = int_to_ptr.vmem [resolvable:$true] %s17
      %23 = dma.hbm_to_vmem [thread:$0]  %s0, 8192, %s18, [#allocation3], 128, 128, 8
    $region5: #{tpu_custom_call.1} parent=1 // pred_fallthru
      _
    // Predicated region
    $region6: #{tpu_custom_call.1} parent=1 // pred_check
      _
    $region7: #{tpu_custom_call.1} parent=1 // pred_check_branch
      %25 = sbr.rel (0) target = $region9
    $region8: #{tpu_custom_call.1} parent=1 // pred_region
      %s27 = ssub.s32 2048, 2048
      %28 = vsyncadd [#allocation6], %s27
      %s29 = sshll.u32 [#allocation5], 4
      %s30 = int_to_ptr.vmem [resolvable:$true] %s29
      %35 = dma.hbm_to_vmem [thread:$0]  %s1, 2048, %s30, [#allocation6], 128, 128, 8
    $region9: #{tpu_custom_call.1} parent=1 // pred_fallthru
      _
    // Predicated region
    $region10: #{tpu_custom_call.1} parent=1 // pred_check
      _
    $region11: #{tpu_custom_call.1} parent=1 // pred_check_branch
      %37 = sbr.rel (0) target = $region13
    $region12: #{tpu_custom_call.1} parent=1 // pred_region
      %s39 = ssub.s32 2048, 2048
      %40 = vsyncadd [#allocation6], %s39
      %s41 = sshll.u32 [#allocation7], 4
      %s42 = int_to_ptr.vmem [resolvable:$true] %s41
      %47 = dma.hbm_to_vmem [thread:$0]  %s2, 2048, %s42, [#allocation6], 128, 128, 8
    $region13: #{tpu_custom_call.1} parent=1 // pred_fallthru
      _
    // Predicated region
    $region14: #{tpu_custom_call.1} parent=1 // pred_check
      _
    $region15: #{tpu_custom_call.1} parent=1 // pred_check_branch
      %49 = sbr.rel (0) target = $region17
    $region16: #{tpu_custom_call.1} parent=1 // pred_region
      _
    $region17: #{tpu_custom_call.1} parent=1 // pred_fallthru
      _
    // Predicated region
    $region18: #{tpu_custom_call.1} parent=1 // pred_check
      _
    $region19: #{tpu_custom_call.1} parent=1 // pred_check_branch
      %51 = sbr.rel (0) target = $region21
    $region20: #{tpu_custom_call.1} parent=1 // pred_region
      %52 = dma.done [#allocation3], 8192
    $region21: #{tpu_custom_call.1} parent=1 // pred_fallthru
      _
    // Predicated region
    $region22: #{tpu_custom_call.1} parent=1 // pred_check
      _
    $region23: #{tpu_custom_call.1} parent=1 // pred_check_branch
      %54 = sbr.rel (0) target = $region25
    $region24: #{tpu_custom_call.1} parent=1 // pred_region
      %55 = dma.done [#allocation6], 2048
    $region25: #{tpu_custom_call.1} parent=1 // pred_fallthru
      _
    // Predicated region
    $region26: #{tpu_custom_call.1} parent=1 // pred_check
      _
    $region27: #{tpu_custom_call.1} parent=1 // pred_check_branch
      %57 = sbr.rel (0) target = $region29
    $region28: #{tpu_custom_call.1} parent=1 // pred_region
      %58 = dma.done [#allocation6], 2048
    $region29: #{tpu_custom_call.1} parent=1 // pred_fallthru
      _
    %v59 = vld [vmem:[#allocation5] sm:$0xff]
    %v60 = vld [vmem:[#allocation5 + $0x8] sm:$0xff]
    %v61 = vld [vmem:[#allocation5 + $0x10] sm:$0xff]
    %v62 = vld [vmem:[#allocation5 + $0x18] sm:$0xff]
    %v63 = vld [vmem:[#allocation5 + $0x20] sm:$0xff]
    %v64 = vld [vmem:[#allocation5 + $0x28] sm:$0xff]
    %v65 = vld [vmem:[#allocation5 + $0x30] sm:$0xff]
    %v66 = vld [vmem:[#allocation5 + $0x38] sm:$0xff]
    %v67 = vld [vmem:[#allocation5 + $0x40] sm:$0xff]
    %v68 = vld [vmem:[#allocation5 + $0x48] sm:$0xff]
    %v69 = vld [vmem:[#allocation5 + $0x50] sm:$0xff]
    %v70 = vld [vmem:[#allocation5 + $0x58] sm:$0xff]
    %v71 = vld [vmem:[#allocation5 + $0x60] sm:$0xff]
    %v72 = vld [vmem:[#allocation5 + $0x68] sm:$0xff]
    %v73 = vld [vmem:[#allocation5 + $0x70] sm:$0xff]
    %v74 = vld [vmem:[#allocation5 + $0x78] sm:$0xff]
    %v75 = vld [vmem:[#allocation7] sm:$0xff]
    %v76 = vld [vmem:[#allocation7 + $0x8] sm:$0xff]
    %v77 = vld [vmem:[#allocation7 + $0x10] sm:$0xff]
    %v78 = vld [vmem:[#allocation7 + $0x18] sm:$0xff]
    %v79 = vld [vmem:[#allocation7 + $0x20] sm:$0xff]
    %v80 = vld [vmem:[#allocation7 + $0x28] sm:$0xff]
    %v81 = vld [vmem:[#allocation7 + $0x30] sm:$0xff]
    %v82 = vld [vmem:[#allocation7 + $0x38] sm:$0xff]
    %v83 = vld [vmem:[#allocation7 + $0x40] sm:$0xff]
    %v84 = vld [vmem:[#allocation7 + $0x48] sm:$0xff]
    %v85 = vld [vmem:[#allocation7 + $0x50] sm:$0xff]
    %v86 = vld [vmem:[#allocation7 + $0x58] sm:$0xff]
    %v87 = vld [vmem:[#allocation7 + $0x60] sm:$0xff]
    %v88 = vld [vmem:[#allocation7 + $0x68] sm:$0xff]
    %v89 = vld [vmem:[#allocation7 + $0x70] sm:$0xff]
    %v90 = vld [vmem:[#allocation7 + $0x78] sm:$0xff]
    %v91 = vld [vmem:[#allocation2] sm:$0xff]
    %v92 = vld [vmem:[#allocation2 + $0x8] sm:$0xff]
    %v93 = vld [vmem:[#allocation2 + $0x10] sm:$0xff]
    %v94 = vld [vmem:[#allocation2 + $0x18] sm:$0xff]
    %v95 = vld [vmem:[#allocation2 + $0x20] sm:$0xff]
    %v96 = vld [vmem:[#allocation2 + $0x28] sm:$0xff]
    %v97 = vld [vmem:[#allocation2 + $0x30] sm:$0xff]
    %v98 = vld [vmem:[#allocation2 + $0x38] sm:$0xff]
    %v99 = vld [vmem:[#allocation2 + $0x40] sm:$0xff]
    %v100 = vld [vmem:[#allocation2 + $0x48] sm:$0xff]
    %v101 = vld [vmem:[#allocation2 + $0x50] sm:$0xff]
    %v102 = vld [vmem:[#allocation2 + $0x58] sm:$0xff]
    %v103 = vld [vmem:[#allocation2 + $0x60] sm:$0xff]
    %v104 = vld [vmem:[#allocation2 + $0x68] sm:$0xff]
    %v105 = vld [vmem:[#allocation2 + $0x70] sm:$0xff]
    %v106 = vld [vmem:[#allocation2 + $0x78] sm:$0xff]
    %v107 = vld [vmem:[#allocation2 + $0x80] sm:$0xff]
    %v108 = vld [vmem:[#allocation2 + $0x88] sm:$0xff]
    %v109 = vld [vmem:[#allocation2 + $0x90] sm:$0xff]
    %v110 = vld [vmem:[#allocation2 + $0x98] sm:$0xff]
    %v111 = vld [vmem:[#allocation2 + $0xa0] sm:$0xff]
    %v112 = vld [vmem:[#allocation2 + $0xa8] sm:$0xff]
    %v113 = vld [vmem:[#allocation2 + $0xb0] sm:$0xff]
    %v114 = vld [vmem:[#allocation2 + $0xb8] sm:$0xff]
    %v115 = vld [vmem:[#allocation2 + $0xc0] sm:$0xff]
    %v116 = vld [vmem:[#allocation2 + $0xc8] sm:$0xff]
    %v117 = vld [vmem:[#allocation2 + $0xd0] sm:$0xff]
    %v118 = vld [vmem:[#allocation2 + $0xd8] sm:$0xff]
    %v119 = vld [vmem:[#allocation2 + $0xe0] sm:$0xff]
    %v120 = vld [vmem:[#allocation2 + $0xe8] sm:$0xff]
    %v121 = vld [vmem:[#allocation2 + $0xf0] sm:$0xff]
    %v122 = vld [vmem:[#allocation2 + $0xf8] sm:$0xff]
    %v123 = vld [vmem:[#allocation2 + $0x100] sm:$0xff]
    %v124 = vld [vmem:[#allocation2 + $0x108] sm:$0xff]
    %v125 = vld [vmem:[#allocation2 + $0x110] sm:$0xff]
    %v126 = vld [vmem:[#allocation2 + $0x118] sm:$0xff]
    %v127 = vld [vmem:[#allocation2 + $0x120] sm:$0xff]
    %v128 = vld [vmem:[#allocation2 + $0x128] sm:$0xff]
    %v129 = vld [vmem:[#allocation2 + $0x130] sm:$0xff]
    %v130 = vld [vmem:[#allocation2 + $0x138] sm:$0xff]
    %v131 = vld [vmem:[#allocation2 + $0x140] sm:$0xff]
    %v132 = vld [vmem:[#allocation2 + $0x148] sm:$0xff]
    %v133 = vld [vmem:[#allocation2 + $0x150] sm:$0xff]
    %v134 = vld [vmem:[#allocation2 + $0x158] sm:$0xff]
    %v135 = vld [vmem:[#allocation2 + $0x160] sm:$0xff]
    %v136 = vld [vmem:[#allocation2 + $0x168] sm:$0xff]
    %v137 = vld [vmem:[#allocation2 + $0x170] sm:$0xff]
    %v138 = vld [vmem:[#allocation2 + $0x178] sm:$0xff]
    %v139 = vld [vmem:[#allocation2 + $0x180] sm:$0xff]
    %v140 = vld [vmem:[#allocation2 + $0x188] sm:$0xff]
    %v141 = vld [vmem:[#allocation2 + $0x190] sm:$0xff]
    %v142 = vld [vmem:[#allocation2 + $0x198] sm:$0xff]
    %v143 = vld [vmem:[#allocation2 + $0x1a0] sm:$0xff]
    %v144 = vld [vmem:[#allocation2 + $0x1a8] sm:$0xff]
    %v145 = vld [vmem:[#allocation2 + $0x1b0] sm:$0xff]
    %v146 = vld [vmem:[#allocation2 + $0x1b8] sm:$0xff]
    %v147 = vld [vmem:[#allocation2 + $0x1c0] sm:$0xff]
    %v148 = vld [vmem:[#allocation2 + $0x1c8] sm:$0xff]
    %v149 = vld [vmem:[#allocation2 + $0x1d0] sm:$0xff]
    %v150 = vld [vmem:[#allocation2 + $0x1d8] sm:$0xff]
    %v151 = vld [vmem:[#allocation2 + $0x1e0] sm:$0xff]
    %v152 = vld [vmem:[#allocation2 + $0x1e8] sm:$0xff]
    %v153 = vld [vmem:[#allocation2 + $0x1f0] sm:$0xff]
    %v154 = vld [vmem:[#allocation2 + $0x1f8] sm:$0xff]
    %v155 = vld [vmem:[%s3] sm:$0xff]
    %v156 = vlaneseq
    %v157 = vshrl.u32 %v156, 7
    %v158 = vsub.s32 0, %v157
    %v159 = vrot.slane %v155, %v158
    %160 = vmatprep.subr.mxu0 0.0
    %161 = vmatpush1.msra.mxu0 %v59
    %162 = vmatprep.subr.mxu0 0.0
    %163 = vmatpush1.msra.mxu0 %v60
    %164 = vmatprep.subr.mxu0 0.0
    %165 = vmatpush1.msra.mxu0 %v61
    %166 = vmatprep.subr.mxu0 0.0
    %167 = vmatpush1.msra.mxu0 %v62
    %168 = vmatprep.subr.mxu0 0.0
    %169 = vmatpush1.msra.mxu0 %v63
    %170 = vmatprep.subr.mxu0 0.0
    %171 = vmatpush1.msra.mxu0 %v64
    %172 = vmatprep.subr.mxu0 0.0
    %173 = vmatpush1.msra.mxu0 %v65
    %174 = vmatprep.subr.mxu0 0.0
    %175 = vmatpush1.msra.mxu0 %v66
    %176 = vmatprep.subr.mxu0 0.0
    %177 = vmatpush1.msra.mxu0 %v67
    %178 = vmatprep.subr.mxu0 0.0
    %179 = vmatpush1.msra.mxu0 %v68
    %180 = vmatprep.subr.mxu0 0.0
    %181 = vmatpush1.msra.mxu0 %v69
    %182 = vmatprep.subr.mxu0 0.0
    %183 = vmatpush1.msra.mxu0 %v70
    %184 = vmatprep.subr.mxu0 0.0
    %185 = vmatpush1.msra.mxu0 %v71
    %186 = vmatprep.subr.mxu0 0.0
    %187 = vmatpush1.msra.mxu0 %v72
    %188 = vmatprep.subr.mxu0 0.0
    %189 = vmatpush1.msra.mxu0 %v73
    %190 = vmatprep.subr.mxu0 0.0
    %191 = vmatpush1.msra.mxu0 %v74
    %192 = vmatprep.subr.mxu0 0.0
    %193 = vmatpush1.msra.mxu0 0.0
    %194 = vmatprep.subr.mxu0 0.0
    %195 = vmatpush1.msra.mxu0 0.0
    %196 = vmatprep.subr.mxu0 0.0
    %197 = vmatpush1.msra.mxu0 0.0
    %198 = vmatprep.subr.mxu0 0.0
    %199 = vmatpush1.msra.mxu0 0.0
    %200 = vmatprep.subr.mxu0 0.0
    %201 = vmatpush1.msra.mxu0 0.0
    %202 = vmatprep.subr.mxu0 0.0
    %203 = vmatpush1.msra.mxu0 0.0
    %204 = vmatprep.subr.mxu0 0.0
    %205 = vmatpush1.msra.mxu0 0.0
    %206 = vmatprep.subr.mxu0 0.0
    %207 = vmatpush1.msra.mxu0 0.0
    %208 = vmatprep.subr.mxu0 0.0
    %209 = vmatpush1.msra.mxu0 0.0
    %210 = vmatprep.subr.mxu0 0.0
    %211 = vmatpush1.msra.mxu0 0.0
    %212 = vmatprep.subr.mxu0 0.0
    %213 = vmatpush1.msra.mxu0 0.0
    %214 = vmatprep.subr.mxu0 0.0
    %215 = vmatpush1.msra.mxu0 0.0
    %216 = vmatprep.subr.mxu0 0.0
    %217 = vmatpush1.msra.mxu0 0.0
    %218 = vmatprep.subr.mxu0 0.0
    %219 = vmatpush1.msra.mxu0 0.0
    %220 = vmatprep.subr.mxu0 0.0
    %221 = vmatpush1.msra.mxu0 0.0
    %222 = vmatprep.subr.mxu0 0.0
    %223 = vmatpush1.msra.mxu0 0.0
    %224 = vmatprep.mubr.f32.mxu0 0.0
    %225 = vmatmul.mubr.f32.gmra.mrb[0].mxu0 %v91
    %v226 = vpop.f32.mrb[0].mxu0
    %v227 = vadd.f32 %v159, %v226
    %v228 = vpop.f32.mrb[0].mxu0
    %229 = vmatprep.mubr.f32.mxu0 0.0
    %230 = vmatmul.mubr.f32.gmra.mrb[0].mxu0 %v92
    %v231 = vpop.f32.mrb[0].mxu0
    %v232 = vadd.f32 %v159, %v231
    %v233 = vpop.f32.mrb[0].mxu0
    %234 = vmatprep.mubr.f32.mxu0 0.0
    %235 = vmatmul.mubr.f32.gmra.mrb[0].mxu0 %v93
    %v236 = vpop.f32.mrb[0].mxu0
    %v237 = vadd.f32 %v159, %v236
    %v238 = vpop.f32.mrb[0].mxu0
    %239 = vmatprep.mubr.f32.mxu0 0.0
    %240 = vmatmul.mubr.f32.gmra.mrb[0].mxu0 %v94
    %v241 = vpop.f32.mrb[0].mxu0
    %v242 = vadd.f32 %v159, %v241
    %v243 = vpop.f32.mrb[0].mxu0
    %244 = vmatprep.mubr.f32.mxu0 0.0
    %245 = vmatmul.mubr.f32.gmra.mrb[0].mxu0 %v95
    %v246 = vpop.f32.mrb[0].mxu0
    %v247 = vadd.f32 %v159, %v246
    %v248 = vpop.f32.mrb[0].mxu0
    %249 = vmatprep.mubr.f32.mxu0 0.0
    %250 = vmatmul.mubr.f32.gmra.mrb[0].mxu0 %v96
    %v251 = vpop.f32.mrb[0].mxu0
    %v252 = vadd.f32 %v159, %v251
    %v253 = vpop.f32.mrb[0].mxu0
    %254 = vmatprep.mubr.f32.mxu0 0.0
    %255 = vmatmul.mubr.f32.gmra.mrb[0].mxu0 %v97
    %v256 = vpop.f32.mrb[0].mxu0
    %v257 = vadd.f32 %v159, %v256
    %v258 = vpop.f32.mrb[0].mxu0
    %259 = vmatprep.mubr.f32.mxu0 0.0
    %260 = vmatmul.mubr.f32.gmra.mrb[0].mxu0 %v98
    %v261 = vpop.f32.mrb[0].mxu0
    %v262 = vadd.f32 %v159, %v261
    %v263 = vpop.f32.mrb[0].mxu0
    %264 = vmatprep.mubr.f32.mxu0 0.0
    %265 = vmatmul.mubr.f32.gmra.mrb[0].mxu0 %v99
    %v266 = vpop.f32.mrb[0].mxu0
    %v267 = vadd.f32 %v159, %v266
    %v268 = vpop.f32.mrb[0].mxu0
    %269 = vmatprep.mubr.f32.mxu0 0.0
    %270 = vmatmul.mubr.f32.gmra.mrb[0].mxu0 %v100
    %v271 = vpop.f32.mrb[0].mxu0
    %v272 = vadd.f32 %v159, %v271
    %v273 = vpop.f32.mrb[0].mxu0
    %274 = vmatprep.mubr.f32.mxu0 0.0
    %275 = vmatmul.mubr.f32.gmra.mrb[0].mxu0 %v101
    %v276 = vpop.f32.mrb[0].mxu0
    %v277 = vadd.f32 %v159, %v276
    %v278 = vpop.f32.mrb[0].mxu0
    %279 = vmatprep.mubr.f32.mxu0 0.0
    %280 = vmatmul.mubr.f32.gmra.mrb[0].mxu0 %v102
    %v281 = vpop.f32.mrb[0].mxu0
    %v282 = vadd.f32 %v159, %v281
    %v283 = vpop.f32.mrb[0].mxu0
    %284 = vmatprep.mubr.f32.mxu0 0.0
    %285 = vmatmul.mubr.f32.gmra.mrb[0].mxu0 %v103
    %v286 = vpop.f32.mrb[0].mxu0
    %v287 = vadd.f32 %v159, %v286
    %v288 = vpop.f32.mrb[0].mxu0
    %289 = vmatprep.mubr.f32.mxu0 0.0
    %290 = vmatmul.mubr.f32.gmra.mrb[0].mxu0 %v104
    %v291 = vpop.f32.mrb[0].mxu0
    %v292 = vadd.f32 %v159, %v291
    %v293 = vpop.f32.mrb[0].mxu0
    %294 = vmatprep.mubr.f32.mxu0 0.0
    %295 = vmatmul.mubr.f32.gmra.mrb[0].mxu0 %v105
    %v296 = vpop.f32.mrb[0].mxu0
    %v297 = vadd.f32 %v159, %v296
    %v298 = vpop.f32.mrb[0].mxu0
    %299 = vmatprep.mubr.f32.mxu0 0.0
    %300 = vmatmul.mubr.f32.gmra.mrb[0].mxu0 %v106
    %v301 = vpop.f32.mrb[0].mxu0
    %v302 = vadd.f32 %v159, %v301
    %v303 = vpop.f32.mrb[0].mxu0
    %304 = vmatprep.mubr.f32.mxu0 0.0
    %305 = vmatmul.mubr.f32.gmra.mrb[0].mxu0 %v107
    %v306 = vpop.f32.mrb[0].mxu0
    %v307 = vadd.f32 %v159, %v306
    %v308 = vpop.f32.mrb[0].mxu0
    %309 = vmatprep.mubr.f32.mxu0 0.0
    %310 = vmatmul.mubr.f32.gmra.mrb[0].mxu0 %v108
    %v311 = vpop.f32.mrb[0].mxu0
    %v312 = vadd.f32 %v159, %v311
    %v313 = vpop.f32.mrb[0].mxu0
    %314 = vmatprep.mubr.f32.mxu0 0.0
    %315 = vmatmul.mubr.f32.gmra.mrb[0].mxu0 %v109
    %v316 = vpop.f32.mrb[0].mxu0
    %v317 = vadd.f32 %v159, %v316
    %v318 = vpop.f32.mrb[0].mxu0
    %319 = vmatprep.mubr.f32.mxu0 0.0
    %320 = vmatmul.mubr.f32.gmra.mrb[0].mxu0 %v110
    %v321 = vpop.f32.mrb[0].mxu0
    %v322 = vadd.f32 %v159, %v321
    %v323 = vpop.f32.mrb[0].mxu0
    %324 = vmatprep.mubr.f32.mxu0 0.0
    %325 = vmatmul.mubr.f32.gmra.mrb[0].mxu0 %v111
    %v326 = vpop.f32.mrb[0].mxu0
    %v327 = vadd.f32 %v159, %v326
    %v328 = vpop.f32.mrb[0].mxu0
    %329 = vmatprep.mubr.f32.mxu0 0.0
    %330 = vmatmul.mubr.f32.gmra.mrb[0].mxu0 %v112
    %v331 = vpop.f32.mrb[0].mxu0
    %v332 = vadd.f32 %v159, %v331
    %v333 = vpop.f32.mrb[0].mxu0
    %334 = vmatprep.mubr.f32.mxu0 0.0
    %335 = vmatmul.mubr.f32.gmra.mrb[0].mxu0 %v113
    %v336 = vpop.f32.mrb[0].mxu0
    %v337 = vadd.f32 %v159, %v336
    %v338 = vpop.f32.mrb[0].mxu0
    %339 = vmatprep.mubr.f32.mxu0 0.0
    %340 = vmatmul.mubr.f32.gmra.mrb[0].mxu0 %v114
    %v341 = vpop.f32.mrb[0].mxu0
    %v342 = vadd.f32 %v159, %v341
    %v343 = vpop.f32.mrb[0].mxu0
    %344 = vmatprep.mubr.f32.mxu0 0.0
    %345 = vmatmul.mubr.f32.gmra.mrb[0].mxu0 %v115
    %v346 = vpop.f32.mrb[0].mxu0
    %v347 = vadd.f32 %v159, %v346
    %v348 = vpop.f32.mrb[0].mxu0
    %349 = vmatprep.mubr.f32.mxu0 0.0
    %350 = vmatmul.mubr.f32.gmra.mrb[0].mxu0 %v116
    %v351 = vpop.f32.mrb[0].mxu0
    %v352 = vadd.f32 %v159, %v351
    %v353 = vpop.f32.mrb[0].mxu0
    %354 = vmatprep.mubr.f32.mxu0 0.0
    %355 = vmatmul.mubr.f32.gmra.mrb[0].mxu0 %v117
    %v356 = vpop.f32.mrb[0].mxu0
    %v357 = vadd.f32 %v159, %v356
    %v358 = vpop.f32.mrb[0].mxu0
    %359 = vmatprep.mubr.f32.mxu0 0.0
    %360 = vmatmul.mubr.f32.gmra.mrb[0].mxu0 %v118
    %v361 = vpop.f32.mrb[0].mxu0
    %v362 = vadd.f32 %v159, %v361
    %v363 = vpop.f32.mrb[0].mxu0
    %364 = vmatprep.mubr.f32.mxu0 0.0
    %365 = vmatmul.mubr.f32.gmra.mrb[0].mxu0 %v119
    %v366 = vpop.f32.mrb[0].mxu0
    %v367 = vadd.f32 %v159, %v366
    %v368 = vpop.f32.mrb[0].mxu0
    %369 = vmatprep.mubr.f32.mxu0 0.0
    %370 = vmatmul.mubr.f32.gmra.mrb[0].mxu0 %v120
    %v371 = vpop.f32.mrb[0].mxu0
    %v372 = vadd.f32 %v159, %v371
    %v373 = vpop.f32.mrb[0].mxu0
    %374 = vmatprep.mubr.f32.mxu0 0.0
    %375 = vmatmul.mubr.f32.gmra.mrb[0].mxu0 %v121
    %v376 = vpop.f32.mrb[0].mxu0
    %v377 = vadd.f32 %v159, %v376
    %v378 = vpop.f32.mrb[0].mxu0
    %379 = vmatprep.mubr.f32.mxu0 0.0
    %380 = vmatmul.mubr.f32.gmra.mrb[0].mxu0 %v122
    %v381 = vpop.f32.mrb[0].mxu0
    %v382 = vadd.f32 %v159, %v381
    %v383 = vpop.f32.mrb[0].mxu0
    %384 = vmatprep.mubr.f32.mxu0 0.0
    %385 = vmatmul.mubr.f32.gmra.mrb[0].mxu0 %v123
    %v386 = vpop.f32.mrb[0].mxu0
    %v387 = vadd.f32 %v159, %v386
    %v388 = vpop.f32.mrb[0].mxu0
    %389 = vmatprep.mubr.f32.mxu0 0.0
    %390 = vmatmul.mubr.f32.gmra.mrb[0].mxu0 %v124
    %v391 = vpop.f32.mrb[0].mxu0
    %v392 = vadd.f32 %v159, %v391
    %v393 = vpop.f32.mrb[0].mxu0
    %394 = vmatprep.mubr.f32.mxu0 0.0
    %395 = vmatmul.mubr.f32.gmra.mrb[0].mxu0 %v125
    %v396 = vpop.f32.mrb[0].mxu0
    %v397 = vadd.f32 %v159, %v396
    %v398 = vpop.f32.mrb[0].mxu0
    %399 = vmatprep.mubr.f32.mxu0 0.0
    %400 = vmatmul.mubr.f32.gmra.mrb[0].mxu0 %v126
    %v401 = vpop.f32.mrb[0].mxu0
    %v402 = vadd.f32 %v159, %v401
    %v403 = vpop.f32.mrb[0].mxu0
    %404 = vmatprep.mubr.f32.mxu0 0.0
    %405 = vmatmul.mubr.f32.gmra.mrb[0].mxu0 %v127
    %v406 = vpop.f32.mrb[0].mxu0
    %v407 = vadd.f32 %v159, %v406
    %v408 = vpop.f32.mrb[0].mxu0
    %409 = vmatprep.mubr.f32.mxu0 0.0
    %410 = vmatmul.mubr.f32.gmra.mrb[0].mxu0 %v128
    %v411 = vpop.f32.mrb[0].mxu0
    %v412 = vadd.f32 %v159, %v411
    %v413 = vpop.f32.mrb[0].mxu0
    %414 = vmatprep.mubr.f32.mxu0 0.0
    %415 = vmatmul.mubr.f32.gmra.mrb[0].mxu0 %v129
    %v416 = vpop.f32.mrb[0].mxu0
    %v417 = vadd.f32 %v159, %v416
    %v418 = vpop.f32.mrb[0].mxu0
    %419 = vmatprep.mubr.f32.mxu0 0.0
    %420 = vmatmul.mubr.f32.gmra.mrb[0].mxu0 %v130
    %v421 = vpop.f32.mrb[0].mxu0
    %v422 = vadd.f32 %v159, %v421
    %v423 = vpop.f32.mrb[0].mxu0
    %424 = vmatprep.mubr.f32.mxu0 0.0
    %425 = vmatmul.mubr.f32.gmra.mrb[0].mxu0 %v131
    %v426 = vpop.f32.mrb[0].mxu0
    %v427 = vadd.f32 %v159, %v426
    %v428 = vpop.f32.mrb[0].mxu0
    %429 = vmatprep.mubr.f32.mxu0 0.0
    %430 = vmatmul.mubr.f32.gmra.mrb[0].mxu0 %v132
    %v431 = vpop.f32.mrb[0].mxu0
    %v432 = vadd.f32 %v159, %v431
    %v433 = vpop.f32.mrb[0].mxu0
    %434 = vmatprep.mubr.f32.mxu0 0.0
    %435 = vmatmul.mubr.f32.gmra.mrb[0].mxu0 %v133
    %v436 = vpop.f32.mrb[0].mxu0
    %v437 = vadd.f32 %v159, %v436
    %v438 = vpop.f32.mrb[0].mxu0
    %439 = vmatprep.mubr.f32.mxu0 0.0
    %440 = vmatmul.mubr.f32.gmra.mrb[0].mxu0 %v134
    %v441 = vpop.f32.mrb[0].mxu0
    %v442 = vadd.f32 %v159, %v441
    %v443 = vpop.f32.mrb[0].mxu0
    %444 = vmatprep.mubr.f32.mxu0 0.0
    %445 = vmatmul.mubr.f32.gmra.mrb[0].mxu0 %v135
    %v446 = vpop.f32.mrb[0].mxu0
    %v447 = vadd.f32 %v159, %v446
    %v448 = vpop.f32.mrb[0].mxu0
    %449 = vmatprep.mubr.f32.mxu0 0.0
    %450 = vmatmul.mubr.f32.gmra.mrb[0].mxu0 %v136
    %v451 = vpop.f32.mrb[0].mxu0
    %v452 = vadd.f32 %v159, %v451
    %v453 = vpop.f32.mrb[0].mxu0
    %454 = vmatprep.mubr.f32.mxu0 0.0
    %455 = vmatmul.mubr.f32.gmra.mrb[0].mxu0 %v137
    %v456 = vpop.f32.mrb[0].mxu0
    %v457 = vadd.f32 %v159, %v456
    %v458 = vpop.f32.mrb[0].mxu0
    %459 = vmatprep.mubr.f32.mxu0 0.0
    %460 = vmatmul.mubr.f32.gmra.mrb[0].mxu0 %v138
    %v461 = vpop.f32.mrb[0].mxu0
    %v462 = vadd.f32 %v159, %v461
    %v463 = vpop.f32.mrb[0].mxu0
    %464 = vmatprep.mubr.f32.mxu0 0.0
    %465 = vmatmul.mubr.f32.gmra.mrb[0].mxu0 %v139
    %v466 = vpop.f32.mrb[0].mxu0
    %v467 = vadd.f32 %v159, %v466
    %v468 = vpop.f32.mrb[0].mxu0
    %469 = vmatprep.mubr.f32.mxu0 0.0
    %470 = vmatmul.mubr.f32.gmra.mrb[0].mxu0 %v140
    %v471 = vpop.f32.mrb[0].mxu0
    %v472 = vadd.f32 %v159, %v471
    %v473 = vpop.f32.mrb[0].mxu0
    %474 = vmatprep.mubr.f32.mxu0 0.0
    %475 = vmatmul.mubr.f32.gmra.mrb[0].mxu0 %v141
    %v476 = vpop.f32.mrb[0].mxu0
    %v477 = vadd.f32 %v159, %v476
    %v478 = vpop.f32.mrb[0].mxu0
    %479 = vmatprep.mubr.f32.mxu0 0.0
    %480 = vmatmul.mubr.f32.gmra.mrb[0].mxu0 %v142
    %v481 = vpop.f32.mrb[0].mxu0
    %v482 = vadd.f32 %v159, %v481
    %v483 = vpop.f32.mrb[0].mxu0
    %484 = vmatprep.mubr.f32.mxu0 0.0
    %485 = vmatmul.mubr.f32.gmra.mrb[0].mxu0 %v143
    %v486 = vpop.f32.mrb[0].mxu0
    %v487 = vadd.f32 %v159, %v486
    %v488 = vpop.f32.mrb[0].mxu0
    %489 = vmatprep.mubr.f32.mxu0 0.0
    %490 = vmatmul.mubr.f32.gmra.mrb[0].mxu0 %v144
    %v491 = vpop.f32.mrb[0].mxu0
    %v492 = vadd.f32 %v159, %v491
    %v493 = vpop.f32.mrb[0].mxu0
    %494 = vmatprep.mubr.f32.mxu0 0.0
    %495 = vmatmul.mubr.f32.gmra.mrb[0].mxu0 %v145
    %v496 = vpop.f32.mrb[0].mxu0
    %v497 = vadd.f32 %v159, %v496
    %v498 = vpop.f32.mrb[0].mxu0
    %499 = vmatprep.mubr.f32.mxu0 0.0
    %500 = vmatmul.mubr.f32.gmra.mrb[0].mxu0 %v146
    %v501 = vpop.f32.mrb[0].mxu0
    %v502 = vadd.f32 %v159, %v501
    %v503 = vpop.f32.mrb[0].mxu0
    %504 = vmatprep.mubr.f32.mxu0 0.0
    %505 = vmatmul.mubr.f32.gmra.mrb[0].mxu0 %v147
    %v506 = vpop.f32.mrb[0].mxu0
    %v507 = vadd.f32 %v159, %v506
    %v508 = vpop.f32.mrb[0].mxu0
    %509 = vmatprep.mubr.f32.mxu0 0.0
    %510 = vmatmul.mubr.f32.gmra.mrb[0].mxu0 %v148
    %v511 = vpop.f32.mrb[0].mxu0
    %v512 = vadd.f32 %v159, %v511
    %v513 = vpop.f32.mrb[0].mxu0
    %514 = vmatprep.mubr.f32.mxu0 0.0
    %515 = vmatmul.mubr.f32.gmra.mrb[0].mxu0 %v149
    %v516 = vpop.f32.mrb[0].mxu0
    %v517 = vadd.f32 %v159, %v516
    %v518 = vpop.f32.mrb[0].mxu0
    %519 = vmatprep.mubr.f32.mxu0 0.0
    %520 = vmatmul.mubr.f32.gmra.mrb[0].mxu0 %v150
    %v521 = vpop.f32.mrb[0].mxu0
    %v522 = vadd.f32 %v159, %v521
    %v523 = vpop.f32.mrb[0].mxu0
    %524 = vmatprep.mubr.f32.mxu0 0.0
    %525 = vmatmul.mubr.f32.gmra.mrb[0].mxu0 %v151
    %v526 = vpop.f32.mrb[0].mxu0
    %v527 = vadd.f32 %v159, %v526
    %v528 = vpop.f32.mrb[0].mxu0
    %529 = vmatprep.mubr.f32.mxu0 0.0
    %530 = vmatmul.mubr.f32.gmra.mrb[0].mxu0 %v152
    %v531 = vpop.f32.mrb[0].mxu0
    %v532 = vadd.f32 %v159, %v531
    %v533 = vpop.f32.mrb[0].mxu0
    %534 = vmatprep.mubr.f32.mxu0 0.0
    %535 = vmatmul.mubr.f32.gmra.mrb[0].mxu0 %v153
    %v536 = vpop.f32.mrb[0].mxu0
    %v537 = vadd.f32 %v159, %v536
    %v538 = vpop.f32.mrb[0].mxu0
    %539 = vmatprep.mubr.f32.mxu0 0.0
    %540 = vmatmul.mubr.f32.gmra.mrb[0].mxu0 %v154
    %v541 = vpop.f32.mrb[0].mxu0
    %v542 = vadd.f32 %v159, %v541
    %v543 = vpop.f32.mrb[0].mxu0
    %544 = vdwg.mxu0
    %v545 = vmax.f32 %v227, 0.0
    %v546 = vmax.f32 %v232, 0.0
    %v547 = vmax.f32 %v237, 0.0
    %v548 = vmax.f32 %v242, 0.0
    %v549 = vmax.f32 %v247, 0.0
    %v550 = vmax.f32 %v252, 0.0
    %v551 = vmax.f32 %v257, 0.0
    %v552 = vmax.f32 %v262, 0.0
    %v553 = vmax.f32 %v267, 0.0
    %v554 = vmax.f32 %v272, 0.0
    %v555 = vmax.f32 %v277, 0.0
    %v556 = vmax.f32 %v282, 0.0
    %v557 = vmax.f32 %v287, 0.0
    %v558 = vmax.f32 %v292, 0.0
    %v559 = vmax.f32 %v297, 0.0
    %v560 = vmax.f32 %v302, 0.0
    %v561 = vmax.f32 %v307, 0.0
    %v562 = vmax.f32 %v312, 0.0
    %v563 = vmax.f32 %v317, 0.0
    %v564 = vmax.f32 %v322, 0.0
    %v565 = vmax.f32 %v327, 0.0
    %v566 = vmax.f32 %v332, 0.0
    %v567 = vmax.f32 %v337, 0.0
    %v568 = vmax.f32 %v342, 0.0
    %v569 = vmax.f32 %v347, 0.0
    %v570 = vmax.f32 %v352, 0.0
    %v571 = vmax.f32 %v357, 0.0
    %v572 = vmax.f32 %v362, 0.0
    %v573 = vmax.f32 %v367, 0.0
    %v574 = vmax.f32 %v372, 0.0
    %v575 = vmax.f32 %v377, 0.0
    %v576 = vmax.f32 %v382, 0.0
    %v577 = vmax.f32 %v387, 0.0
    %v578 = vmax.f32 %v392, 0.0
    %v579 = vmax.f32 %v397, 0.0
    %v580 = vmax.f32 %v402, 0.0
    %v581 = vmax.f32 %v407, 0.0
    %v582 = vmax.f32 %v412, 0.0
    %v583 = vmax.f32 %v417, 0.0
    %v584 = vmax.f32 %v422, 0.0
    %v585 = vmax.f32 %v427, 0.0
    %v586 = vmax.f32 %v432, 0.0
    %v587 = vmax.f32 %v437, 0.0
    %v588 = vmax.f32 %v442, 0.0
    %v589 = vmax.f32 %v447, 0.0
    %v590 = vmax.f32 %v452, 0.0
    %v591 = vmax.f32 %v457, 0.0
    %v592 = vmax.f32 %v462, 0.0
    %v593 = vmax.f32 %v467, 0.0
    %v594 = vmax.f32 %v472, 0.0
    %v595 = vmax.f32 %v477, 0.0
    %v596 = vmax.f32 %v482, 0.0
    %v597 = vmax.f32 %v487, 0.0
    %v598 = vmax.f32 %v492, 0.0
    %v599 = vmax.f32 %v497, 0.0
    %v600 = vmax.f32 %v502, 0.0
    %v601 = vmax.f32 %v507, 0.0
    %v602 = vmax.f32 %v512, 0.0
    %v603 = vmax.f32 %v517, 0.0
    %v604 = vmax.f32 %v522, 0.0
    %v605 = vmax.f32 %v527, 0.0
    %v606 = vmax.f32 %v532, 0.0
    %v607 = vmax.f32 %v537, 0.0
    %v608 = vmax.f32 %v542, 0.0
    %v609 = vlaneseq
    %v610 = vshrl.u32 %v609, 7
    %v611 = vsub.s32 1, %v610
    %v612 = vrot.slane %v155, %v611
    %613 = vmatprep.subr.mxu0 0.0
    %614 = vmatpush1.msra.mxu0 %v75
    %615 = vmatprep.subr.mxu0 0.0
    %616 = vmatpush1.msra.mxu0 %v76
    %617 = vmatprep.subr.mxu0 0.0
    %618 = vmatpush1.msra.mxu0 %v77
    %619 = vmatprep.subr.mxu0 0.0
    %620 = vmatpush1.msra.mxu0 %v78
    %621 = vmatprep.subr.mxu0 0.0
    %622 = vmatpush1.msra.mxu0 %v79
    %623 = vmatprep.subr.mxu0 0.0
    %624 = vmatpush1.msra.mxu0 %v80
    %625 = vmatprep.subr.mxu0 0.0
    %626 = vmatpush1.msra.mxu0 %v81
    %627 = vmatprep.subr.mxu0 0.0
    %628 = vmatpush1.msra.mxu0 %v82
    %629 = vmatprep.subr.mxu0 0.0
    %630 = vmatpush1.msra.mxu0 %v83
    %631 = vmatprep.subr.mxu0 0.0
    %632 = vmatpush1.msra.mxu0 %v84
    %633 = vmatprep.subr.mxu0 0.0
    %634 = vmatpush1.msra.mxu0 %v85
    %635 = vmatprep.subr.mxu0 0.0
    %636 = vmatpush1.msra.mxu0 %v86
    %637 = vmatprep.subr.mxu0 0.0
    %638 = vmatpush1.msra.mxu0 %v87
    %639 = vmatprep.subr.mxu0 0.0
    %640 = vmatpush1.msra.mxu0 %v88
    %641 = vmatprep.subr.mxu0 0.0
    %642 = vmatpush1.msra.mxu0 %v89
    %643 = vmatprep.subr.mxu0 0.0
    %644 = vmatpush1.msra.mxu0 %v90
    %645 = vmatprep.subr.mxu0 0.0
    %646 = vmatpush1.msra.mxu0 0.0
    %647 = vmatprep.subr.mxu0 0.0
    %648 = vmatpush1.msra.mxu0 0.0
    %649 = vmatprep.subr.mxu0 0.0
    %650 = vmatpush1.msra.mxu0 0.0
    %651 = vmatprep.subr.mxu0 0.0
    %652 = vmatpush1.msra.mxu0 0.0
    %653 = vmatprep.subr.mxu0 0.0
    %654 = vmatpush1.msra.mxu0 0.0
    %655 = vmatprep.subr.mxu0 0.0
    %656 = vmatpush1.msra.mxu0 0.0
    %657 = vmatprep.subr.mxu0 0.0
    %658 = vmatpush1.msra.mxu0 0.0
    %659 = vmatprep.subr.mxu0 0.0
    %660 = vmatpush1.msra.mxu0 0.0
    %661 = vmatprep.subr.mxu0 0.0
    %662 = vmatpush1.msra.mxu0 0.0
    %663 = vmatprep.subr.mxu0 0.0
    %664 = vmatpush1.msra.mxu0 0.0
    %665 = vmatprep.subr.mxu0 0.0
    %666 = vmatpush1.msra.mxu0 0.0
    %667 = vmatprep.subr.mxu0 0.0
    %668 = vmatpush1.msra.mxu0 0.0
    %669 = vmatprep.subr.mxu0 0.0
    %670 = vmatpush1.msra.mxu0 0.0
    %671 = vmatprep.subr.mxu0 0.0
    %672 = vmatpush1.msra.mxu0 0.0
    %673 = vmatprep.subr.mxu0 0.0
    %674 = vmatpush1.msra.mxu0 0.0
    %675 = vmatprep.subr.mxu0 0.0
    %676 = vmatpush1.msra.mxu0 0.0
    %677 = vmatprep.mubr.f32.mxu0 0.0
    %678 = vmatmul.mubr.f32.gmra.mrb[0].mxu0 %v545
    %v679 = vpop.f32.mrb[0].mxu0
    %v680 = vadd.f32 %v612, %v679
    %v681 = vpop.f32.mrb[0].mxu0
    %682 = vmatprep.mubr.f32.mxu0 0.0
    %683 = vmatmul.mubr.f32.gmra.mrb[0].mxu0 %v546
    %v684 = vpop.f32.mrb[0].mxu0
    %v685 = vadd.f32 %v612, %v684
    %v686 = vpop.f32.mrb[0].mxu0
    %687 = vmatprep.mubr.f32.mxu0 0.0
    %688 = vmatmul.mubr.f32.gmra.mrb[0].mxu0 %v547
    %v689 = vpop.f32.mrb[0].mxu0
    %v690 = vadd.f32 %v612, %v689
    %v691 = vpop.f32.mrb[0].mxu0
    %692 = vmatprep.mubr.f32.mxu0 0.0
    %693 = vmatmul.mubr.f32.gmra.mrb[0].mxu0 %v548
    %v694 = vpop.f32.mrb[0].mxu0
    %v695 = vadd.f32 %v612, %v694
    %v696 = vpop.f32.mrb[0].mxu0
    %697 = vmatprep.mubr.f32.mxu0 0.0
    %698 = vmatmul.mubr.f32.gmra.mrb[0].mxu0 %v549
    %v699 = vpop.f32.mrb[0].mxu0
    %v700 = vadd.f32 %v612, %v699
    %v701 = vpop.f32.mrb[0].mxu0
    %702 = vmatprep.mubr.f32.mxu0 0.0
    %703 = vmatmul.mubr.f32.gmra.mrb[0].mxu0 %v550
    %v704 = vpop.f32.mrb[0].mxu0
    %v705 = vadd.f32 %v612, %v704
    %v706 = vpop.f32.mrb[0].mxu0
    %707 = vmatprep.mubr.f32.mxu0 0.0
    %708 = vmatmul.mubr.f32.gmra.mrb[0].mxu0 %v551
    %v709 = vpop.f32.mrb[0].mxu0
    %v710 = vadd.f32 %v612, %v709
    %v711 = vpop.f32.mrb[0].mxu0
    %712 = vmatprep.mubr.f32.mxu0 0.0
    %713 = vmatmul.mubr.f32.gmra.mrb[0].mxu0 %v552
    %v714 = vpop.f32.mrb[0].mxu0
    %v715 = vadd.f32 %v612, %v714
    %v716 = vpop.f32.mrb[0].mxu0
    %717 = vmatprep.mubr.f32.mxu0 0.0
    %718 = vmatmul.mubr.f32.gmra.mrb[0].mxu0 %v553
    %v719 = vpop.f32.mrb[0].mxu0
    %v720 = vadd.f32 %v612, %v719
    %v721 = vpop.f32.mrb[0].mxu0
    %722 = vmatprep.mubr.f32.mxu0 0.0
    %723 = vmatmul.mubr.f32.gmra.mrb[0].mxu0 %v554
    %v724 = vpop.f32.mrb[0].mxu0
    %v725 = vadd.f32 %v612, %v724
    %v726 = vpop.f32.mrb[0].mxu0
    %727 = vmatprep.mubr.f32.mxu0 0.0
    %728 = vmatmul.mubr.f32.gmra.mrb[0].mxu0 %v555
    %v729 = vpop.f32.mrb[0].mxu0
    %v730 = vadd.f32 %v612, %v729
    %v731 = vpop.f32.mrb[0].mxu0
    %732 = vmatprep.mubr.f32.mxu0 0.0
    %733 = vmatmul.mubr.f32.gmra.mrb[0].mxu0 %v556
    %v734 = vpop.f32.mrb[0].mxu0
    %v735 = vadd.f32 %v612, %v734
    %v736 = vpop.f32.mrb[0].mxu0
    %737 = vmatprep.mubr.f32.mxu0 0.0
    %738 = vmatmul.mubr.f32.gmra.mrb[0].mxu0 %v557
    %v739 = vpop.f32.mrb[0].mxu0
    %v740 = vadd.f32 %v612, %v739
    %v741 = vpop.f32.mrb[0].mxu0
    %742 = vmatprep.mubr.f32.mxu0 0.0
    %743 = vmatmul.mubr.f32.gmra.mrb[0].mxu0 %v558
    %v744 = vpop.f32.mrb[0].mxu0
    %v745 = vadd.f32 %v612, %v744
    %v746 = vpop.f32.mrb[0].mxu0
    %747 = vmatprep.mubr.f32.mxu0 0.0
    %748 = vmatmul.mubr.f32.gmra.mrb[0].mxu0 %v559
    %v749 = vpop.f32.mrb[0].mxu0
    %v750 = vadd.f32 %v612, %v749
    %v751 = vpop.f32.mrb[0].mxu0
    %752 = vmatprep.mubr.f32.mxu0 0.0
    %753 = vmatmul.mubr.f32.gmra.mrb[0].mxu0 %v560
    %v754 = vpop.f32.mrb[0].mxu0
    %v755 = vadd.f32 %v612, %v754
    %v756 = vpop.f32.mrb[0].mxu0
    %757 = vmatprep.mubr.f32.mxu0 0.0
    %758 = vmatmul.mubr.f32.gmra.mrb[0].mxu0 %v561
    %v759 = vpop.f32.mrb[0].mxu0
    %v760 = vadd.f32 %v612, %v759
    %v761 = vpop.f32.mrb[0].mxu0
    %762 = vmatprep.mubr.f32.mxu0 0.0
    %763 = vmatmul.mubr.f32.gmra.mrb[0].mxu0 %v562
    %v764 = vpop.f32.mrb[0].mxu0
    %v765 = vadd.f32 %v612, %v764
    %v766 = vpop.f32.mrb[0].mxu0
    %767 = vmatprep.mubr.f32.mxu0 0.0
    %768 = vmatmul.mubr.f32.gmra.mrb[0].mxu0 %v563
    %v769 = vpop.f32.mrb[0].mxu0
    %v770 = vadd.f32 %v612, %v769
    %v771 = vpop.f32.mrb[0].mxu0
    %772 = vmatprep.mubr.f32.mxu0 0.0
    %773 = vmatmul.mubr.f32.gmra.mrb[0].mxu0 %v564
    %v774 = vpop.f32.mrb[0].mxu0
    %v775 = vadd.f32 %v612, %v774
    %v776 = vpop.f32.mrb[0].mxu0
    %777 = vmatprep.mubr.f32.mxu0 0.0
    %778 = vmatmul.mubr.f32.gmra.mrb[0].mxu0 %v565
    %v779 = vpop.f32.mrb[0].mxu0
    %v780 = vadd.f32 %v612, %v779
    %v781 = vpop.f32.mrb[0].mxu0
    %782 = vmatprep.mubr.f32.mxu0 0.0
    %783 = vmatmul.mubr.f32.gmra.mrb[0].mxu0 %v566
    %v784 = vpop.f32.mrb[0].mxu0
    %v785 = vadd.f32 %v612, %v784
    %v786 = vpop.f32.mrb[0].mxu0
    %787 = vmatprep.mubr.f32.mxu0 0.0
    %788 = vmatmul.mubr.f32.gmra.mrb[0].mxu0 %v567
    %v789 = vpop.f32.mrb[0].mxu0
    %v790 = vadd.f32 %v612, %v789
    %v791 = vpop.f32.mrb[0].mxu0
    %792 = vmatprep.mubr.f32.mxu0 0.0
    %793 = vmatmul.mubr.f32.gmra.mrb[0].mxu0 %v568
    %v794 = vpop.f32.mrb[0].mxu0
    %v795 = vadd.f32 %v612, %v794
    %v796 = vpop.f32.mrb[0].mxu0
    %797 = vmatprep.mubr.f32.mxu0 0.0
    %798 = vmatmul.mubr.f32.gmra.mrb[0].mxu0 %v569
    %v799 = vpop.f32.mrb[0].mxu0
    %v800 = vadd.f32 %v612, %v799
    %v801 = vpop.f32.mrb[0].mxu0
    %802 = vmatprep.mubr.f32.mxu0 0.0
    %803 = vmatmul.mubr.f32.gmra.mrb[0].mxu0 %v570
    %v804 = vpop.f32.mrb[0].mxu0
    %v805 = vadd.f32 %v612, %v804
    %v806 = vpop.f32.mrb[0].mxu0
    %807 = vmatprep.mubr.f32.mxu0 0.0
    %808 = vmatmul.mubr.f32.gmra.mrb[0].mxu0 %v571
    %v809 = vpop.f32.mrb[0].mxu0
    %v810 = vadd.f32 %v612, %v809
    %v811 = vpop.f32.mrb[0].mxu0
    %812 = vmatprep.mubr.f32.mxu0 0.0
    %813 = vmatmul.mubr.f32.gmra.mrb[0].mxu0 %v572
    %v814 = vpop.f32.mrb[0].mxu0
    %v815 = vadd.f32 %v612, %v814
    %v816 = vpop.f32.mrb[0].mxu0
    %817 = vmatprep.mubr.f32.mxu0 0.0
    %818 = vmatmul.mubr.f32.gmra.mrb[0].mxu0 %v573
    %v819 = vpop.f32.mrb[0].mxu0
    %v820 = vadd.f32 %v612, %v819
    %v821 = vpop.f32.mrb[0].mxu0
    %822 = vmatprep.mubr.f32.mxu0 0.0
    %823 = vmatmul.mubr.f32.gmra.mrb[0].mxu0 %v574
    %v824 = vpop.f32.mrb[0].mxu0
    %v825 = vadd.f32 %v612, %v824
    %v826 = vpop.f32.mrb[0].mxu0
    %827 = vmatprep.mubr.f32.mxu0 0.0
    %828 = vmatmul.mubr.f32.gmra.mrb[0].mxu0 %v575
    %v829 = vpop.f32.mrb[0].mxu0
    %v830 = vadd.f32 %v612, %v829
    %v831 = vpop.f32.mrb[0].mxu0
    %832 = vmatprep.mubr.f32.mxu0 0.0
    %833 = vmatmul.mubr.f32.gmra.mrb[0].mxu0 %v576
    %v834 = vpop.f32.mrb[0].mxu0
    %v835 = vadd.f32 %v612, %v834
    %v836 = vpop.f32.mrb[0].mxu0
    %837 = vmatprep.mubr.f32.mxu0 0.0
    %838 = vmatmul.mubr.f32.gmra.mrb[0].mxu0 %v577
    %v839 = vpop.f32.mrb[0].mxu0
    %v840 = vadd.f32 %v612, %v839
    %v841 = vpop.f32.mrb[0].mxu0
    %842 = vmatprep.mubr.f32.mxu0 0.0
    %843 = vmatmul.mubr.f32.gmra.mrb[0].mxu0 %v578
    %v844 = vpop.f32.mrb[0].mxu0
    %v845 = vadd.f32 %v612, %v844
    %v846 = vpop.f32.mrb[0].mxu0
    %847 = vmatprep.mubr.f32.mxu0 0.0
    %848 = vmatmul.mubr.f32.gmra.mrb[0].mxu0 %v579
    %v849 = vpop.f32.mrb[0].mxu0
    %v850 = vadd.f32 %v612, %v849
    %v851 = vpop.f32.mrb[0].mxu0
    %852 = vmatprep.mubr.f32.mxu0 0.0
    %853 = vmatmul.mubr.f32.gmra.mrb[0].mxu0 %v580
    %v854 = vpop.f32.mrb[0].mxu0
    %v855 = vadd.f32 %v612, %v854
    %v856 = vpop.f32.mrb[0].mxu0
    %857 = vmatprep.mubr.f32.mxu0 0.0
    %858 = vmatmul.mubr.f32.gmra.mrb[0].mxu0 %v581
    %v859 = vpop.f32.mrb[0].mxu0
    %v860 = vadd.f32 %v612, %v859
    %v861 = vpop.f32.mrb[0].mxu0
    %862 = vmatprep.mubr.f32.mxu0 0.0
    %863 = vmatmul.mubr.f32.gmra.mrb[0].mxu0 %v582
    %v864 = vpop.f32.mrb[0].mxu0
    %v865 = vadd.f32 %v612, %v864
    %v866 = vpop.f32.mrb[0].mxu0
    %867 = vmatprep.mubr.f32.mxu0 0.0
    %868 = vmatmul.mubr.f32.gmra.mrb[0].mxu0 %v583
    %v869 = vpop.f32.mrb[0].mxu0
    %v870 = vadd.f32 %v612, %v869
    %v871 = vpop.f32.mrb[0].mxu0
    %872 = vmatprep.mubr.f32.mxu0 0.0
    %873 = vmatmul.mubr.f32.gmra.mrb[0].mxu0 %v584
    %v874 = vpop.f32.mrb[0].mxu0
    %v875 = vadd.f32 %v612, %v874
    %v876 = vpop.f32.mrb[0].mxu0
    %877 = vmatprep.mubr.f32.mxu0 0.0
    %878 = vmatmul.mubr.f32.gmra.mrb[0].mxu0 %v585
    %v879 = vpop.f32.mrb[0].mxu0
    %v880 = vadd.f32 %v612, %v879
    %v881 = vpop.f32.mrb[0].mxu0
    %882 = vmatprep.mubr.f32.mxu0 0.0
    %883 = vmatmul.mubr.f32.gmra.mrb[0].mxu0 %v586
    %v884 = vpop.f32.mrb[0].mxu0
    %v885 = vadd.f32 %v612, %v884
    %v886 = vpop.f32.mrb[0].mxu0
    %887 = vmatprep.mubr.f32.mxu0 0.0
    %888 = vmatmul.mubr.f32.gmra.mrb[0].mxu0 %v587
    %v889 = vpop.f32.mrb[0].mxu0
    %v890 = vadd.f32 %v612, %v889
    %v891 = vpop.f32.mrb[0].mxu0
    %892 = vmatprep.mubr.f32.mxu0 0.0
    %893 = vmatmul.mubr.f32.gmra.mrb[0].mxu0 %v588
    %v894 = vpop.f32.mrb[0].mxu0
    %v895 = vadd.f32 %v612, %v894
    %v896 = vpop.f32.mrb[0].mxu0
    %897 = vmatprep.mubr.f32.mxu0 0.0
    %898 = vmatmul.mubr.f32.gmra.mrb[0].mxu0 %v589
    %v899 = vpop.f32.mrb[0].mxu0
    %v900 = vadd.f32 %v612, %v899
    %v901 = vpop.f32.mrb[0].mxu0
    %902 = vmatprep.mubr.f32.mxu0 0.0
    %903 = vmatmul.mubr.f32.gmra.mrb[0].mxu0 %v590
    %v904 = vpop.f32.mrb[0].mxu0
    %v905 = vadd.f32 %v612, %v904
    %v906 = vpop.f32.mrb[0].mxu0
    %907 = vmatprep.mubr.f32.mxu0 0.0
    %908 = vmatmul.mubr.f32.gmra.mrb[0].mxu0 %v591
    %v909 = vpop.f32.mrb[0].mxu0
    %v910 = vadd.f32 %v612, %v909
    %v911 = vpop.f32.mrb[0].mxu0
    %912 = vmatprep.mubr.f32.mxu0 0.0
    %913 = vmatmul.mubr.f32.gmra.mrb[0].mxu0 %v592
    %v914 = vpop.f32.mrb[0].mxu0
    %v915 = vadd.f32 %v612, %v914
    %v916 = vpop.f32.mrb[0].mxu0
    %917 = vmatprep.mubr.f32.mxu0 0.0
    %918 = vmatmul.mubr.f32.gmra.mrb[0].mxu0 %v593
    %v919 = vpop.f32.mrb[0].mxu0
    %v920 = vadd.f32 %v612, %v919
    %v921 = vpop.f32.mrb[0].mxu0
    %922 = vmatprep.mubr.f32.mxu0 0.0
    %923 = vmatmul.mubr.f32.gmra.mrb[0].mxu0 %v594
    %v924 = vpop.f32.mrb[0].mxu0
    %v925 = vadd.f32 %v612, %v924
    %v926 = vpop.f32.mrb[0].mxu0
    %927 = vmatprep.mubr.f32.mxu0 0.0
    %928 = vmatmul.mubr.f32.gmra.mrb[0].mxu0 %v595
    %v929 = vpop.f32.mrb[0].mxu0
    %v930 = vadd.f32 %v612, %v929
    %v931 = vpop.f32.mrb[0].mxu0
    %932 = vmatprep.mubr.f32.mxu0 0.0
    %933 = vmatmul.mubr.f32.gmra.mrb[0].mxu0 %v596
    %v934 = vpop.f32.mrb[0].mxu0
    %v935 = vadd.f32 %v612, %v934
    %v936 = vpop.f32.mrb[0].mxu0
    %937 = vmatprep.mubr.f32.mxu0 0.0
    %938 = vmatmul.mubr.f32.gmra.mrb[0].mxu0 %v597
    %v939 = vpop.f32.mrb[0].mxu0
    %v940 = vadd.f32 %v612, %v939
    %v941 = vpop.f32.mrb[0].mxu0
    %942 = vmatprep.mubr.f32.mxu0 0.0
    %943 = vmatmul.mubr.f32.gmra.mrb[0].mxu0 %v598
    %v944 = vpop.f32.mrb[0].mxu0
    %v945 = vadd.f32 %v612, %v944
    %v946 = vpop.f32.mrb[0].mxu0
    %947 = vmatprep.mubr.f32.mxu0 0.0
    %948 = vmatmul.mubr.f32.gmra.mrb[0].mxu0 %v599
    %v949 = vpop.f32.mrb[0].mxu0
    %v950 = vadd.f32 %v612, %v949
    %v951 = vpop.f32.mrb[0].mxu0
    %952 = vmatprep.mubr.f32.mxu0 0.0
    %953 = vmatmul.mubr.f32.gmra.mrb[0].mxu0 %v600
    %v954 = vpop.f32.mrb[0].mxu0
    %v955 = vadd.f32 %v612, %v954
    %v956 = vpop.f32.mrb[0].mxu0
    %957 = vmatprep.mubr.f32.mxu0 0.0
    %958 = vmatmul.mubr.f32.gmra.mrb[0].mxu0 %v601
    %v959 = vpop.f32.mrb[0].mxu0
    %v960 = vadd.f32 %v612, %v959
    %v961 = vpop.f32.mrb[0].mxu0
    %962 = vmatprep.mubr.f32.mxu0 0.0
    %963 = vmatmul.mubr.f32.gmra.mrb[0].mxu0 %v602
    %v964 = vpop.f32.mrb[0].mxu0
    %v965 = vadd.f32 %v612, %v964
    %v966 = vpop.f32.mrb[0].mxu0
    %967 = vmatprep.mubr.f32.mxu0 0.0
    %968 = vmatmul.mubr.f32.gmra.mrb[0].mxu0 %v603
    %v969 = vpop.f32.mrb[0].mxu0
    %v970 = vadd.f32 %v612, %v969
    %v971 = vpop.f32.mrb[0].mxu0
    %972 = vmatprep.mubr.f32.mxu0 0.0
    %973 = vmatmul.mubr.f32.gmra.mrb[0].mxu0 %v604
    %v974 = vpop.f32.mrb[0].mxu0
    %v975 = vadd.f32 %v612, %v974
    %v976 = vpop.f32.mrb[0].mxu0
    %977 = vmatprep.mubr.f32.mxu0 0.0
    %978 = vmatmul.mubr.f32.gmra.mrb[0].mxu0 %v605
    %v979 = vpop.f32.mrb[0].mxu0
    %v980 = vadd.f32 %v612, %v979
    %v981 = vpop.f32.mrb[0].mxu0
    %982 = vmatprep.mubr.f32.mxu0 0.0
    %983 = vmatmul.mubr.f32.gmra.mrb[0].mxu0 %v606
    %v984 = vpop.f32.mrb[0].mxu0
    %v985 = vadd.f32 %v612, %v984
    %v986 = vpop.f32.mrb[0].mxu0
    %987 = vmatprep.mubr.f32.mxu0 0.0
    %988 = vmatmul.mubr.f32.gmra.mrb[0].mxu0 %v607
    %v989 = vpop.f32.mrb[0].mxu0
    %v990 = vadd.f32 %v612, %v989
    %v991 = vpop.f32.mrb[0].mxu0
    %992 = vmatprep.mubr.f32.mxu0 0.0
    %993 = vmatmul.mubr.f32.gmra.mrb[0].mxu0 %v608
    %v994 = vpop.f32.mrb[0].mxu0
    %v995 = vadd.f32 %v612, %v994
    %v996 = vpop.f32.mrb[0].mxu0
    %997 = vdwg.mxu0
    %v998 = vmax.f32 %v680, 0.0
    %v999 = vmax.f32 %v685, 0.0
    %v1000 = vmax.f32 %v690, 0.0
    %v1001 = vmax.f32 %v695, 0.0
    %v1002 = vmax.f32 %v700, 0.0
    %v1003 = vmax.f32 %v705, 0.0
    %v1004 = vmax.f32 %v710, 0.0
    %v1005 = vmax.f32 %v715, 0.0
    %v1006 = vmax.f32 %v720, 0.0
    %v1007 = vmax.f32 %v725, 0.0
    %v1008 = vmax.f32 %v730, 0.0
    %v1009 = vmax.f32 %v735, 0.0
    %v1010 = vmax.f32 %v740, 0.0
    %v1011 = vmax.f32 %v745, 0.0
    %v1012 = vmax.f32 %v750, 0.0
    %v1013 = vmax.f32 %v755, 0.0
    %v1014 = vmax.f32 %v760, 0.0
    %v1015 = vmax.f32 %v765, 0.0
    %v1016 = vmax.f32 %v770, 0.0
    %v1017 = vmax.f32 %v775, 0.0
    %v1018 = vmax.f32 %v780, 0.0
    %v1019 = vmax.f32 %v785, 0.0
    %v1020 = vmax.f32 %v790, 0.0
    %v1021 = vmax.f32 %v795, 0.0
    %v1022 = vmax.f32 %v800, 0.0
    %v1023 = vmax.f32 %v805, 0.0
    %v1024 = vmax.f32 %v810, 0.0
    %v1025 = vmax.f32 %v815, 0.0
    %v1026 = vmax.f32 %v820, 0.0
    %v1027 = vmax.f32 %v825, 0.0
    %v1028 = vmax.f32 %v830, 0.0
    %v1029 = vmax.f32 %v835, 0.0
    %v1030 = vmax.f32 %v840, 0.0
    %v1031 = vmax.f32 %v845, 0.0
    %v1032 = vmax.f32 %v850, 0.0
    %v1033 = vmax.f32 %v855, 0.0
    %v1034 = vmax.f32 %v860, 0.0
    %v1035 = vmax.f32 %v865, 0.0
    %v1036 = vmax.f32 %v870, 0.0
    %v1037 = vmax.f32 %v875, 0.0
    %v1038 = vmax.f32 %v880, 0.0
    %v1039 = vmax.f32 %v885, 0.0
    %v1040 = vmax.f32 %v890, 0.0
    %v1041 = vmax.f32 %v895, 0.0
    %v1042 = vmax.f32 %v900, 0.0
    %v1043 = vmax.f32 %v905, 0.0
    %v1044 = vmax.f32 %v910, 0.0
    %v1045 = vmax.f32 %v915, 0.0
    %v1046 = vmax.f32 %v920, 0.0
    %v1047 = vmax.f32 %v925, 0.0
    %v1048 = vmax.f32 %v930, 0.0
    %v1049 = vmax.f32 %v935, 0.0
    %v1050 = vmax.f32 %v940, 0.0
    %v1051 = vmax.f32 %v945, 0.0
    %v1052 = vmax.f32 %v950, 0.0
    %v1053 = vmax.f32 %v955, 0.0
    %v1054 = vmax.f32 %v960, 0.0
    %v1055 = vmax.f32 %v965, 0.0
    %v1056 = vmax.f32 %v970, 0.0
    %v1057 = vmax.f32 %v975, 0.0
    %v1058 = vmax.f32 %v980, 0.0
    %v1059 = vmax.f32 %v985, 0.0
    %v1060 = vmax.f32 %v990, 0.0
    %v1061 = vmax.f32 %v995, 0.0
    %v1062 = vadd.f32 %v998, %v545
    %v1063 = vadd.f32 %v999, %v546
    %v1064 = vadd.f32 %v1000, %v547
    %v1065 = vadd.f32 %v1001, %v548
    %v1066 = vadd.f32 %v1002, %v549
    %v1067 = vadd.f32 %v1003, %v550
    %v1068 = vadd.f32 %v1004, %v551
    %v1069 = vadd.f32 %v1005, %v552
    %v1070 = vadd.f32 %v1006, %v553
    %v1071 = vadd.f32 %v1007, %v554
    %v1072 = vadd.f32 %v1008, %v555
    %v1073 = vadd.f32 %v1009, %v556
    %v1074 = vadd.f32 %v1010, %v557
    %v1075 = vadd.f32 %v1011, %v558
    %v1076 = vadd.f32 %v1012, %v559
    %v1077 = vadd.f32 %v1013, %v560
    %v1078 = vadd.f32 %v1014, %v561
    %v1079 = vadd.f32 %v1015, %v562
    %v1080 = vadd.f32 %v1016, %v563
    %v1081 = vadd.f32 %v1017, %v564
    %v1082 = vadd.f32 %v1018, %v565
    %v1083 = vadd.f32 %v1019, %v566
    %v1084 = vadd.f32 %v1020, %v567
    %v1085 = vadd.f32 %v1021, %v568
    %v1086 = vadd.f32 %v1022, %v569
    %v1087 = vadd.f32 %v1023, %v570
    %v1088 = vadd.f32 %v1024, %v571
    %v1089 = vadd.f32 %v1025, %v572
    %v1090 = vadd.f32 %v1026, %v573
    %v1091 = vadd.f32 %v1027, %v574
    %v1092 = vadd.f32 %v1028, %v575
    %v1093 = vadd.f32 %v1029, %v576
    %v1094 = vadd.f32 %v1030, %v577
    %v1095 = vadd.f32 %v1031, %v578
    %v1096 = vadd.f32 %v1032, %v579
    %v1097 = vadd.f32 %v1033, %v580
    %v1098 = vadd.f32 %v1034, %v581
    %v1099 = vadd.f32 %v1035, %v582
    %v1100 = vadd.f32 %v1036, %v583
    %v1101 = vadd.f32 %v1037, %v584
    %v1102 = vadd.f32 %v1038, %v585
    %v1103 = vadd.f32 %v1039, %v586
    %v1104 = vadd.f32 %v1040, %v587
    %v1105 = vadd.f32 %v1041, %v588
    %v1106 = vadd.f32 %v1042, %v589
    %v1107 = vadd.f32 %v1043, %v590
    %v1108 = vadd.f32 %v1044, %v591
    %v1109 = vadd.f32 %v1045, %v592
    %v1110 = vadd.f32 %v1046, %v593
    %v1111 = vadd.f32 %v1047, %v594
    %v1112 = vadd.f32 %v1048, %v595
    %v1113 = vadd.f32 %v1049, %v596
    %v1114 = vadd.f32 %v1050, %v597
    %v1115 = vadd.f32 %v1051, %v598
    %v1116 = vadd.f32 %v1052, %v599
    %v1117 = vadd.f32 %v1053, %v600
    %v1118 = vadd.f32 %v1054, %v601
    %v1119 = vadd.f32 %v1055, %v602
    %v1120 = vadd.f32 %v1056, %v603
    %v1121 = vadd.f32 %v1057, %v604
    %v1122 = vadd.f32 %v1058, %v605
    %v1123 = vadd.f32 %v1059, %v606
    %v1124 = vadd.f32 %v1060, %v607
    %v1125 = vadd.f32 %v1061, %v608
    %1126 = vadd.xlane.f32.xlu0 %v1062
    %v1127 = vpop.xlane.xlu0 %1126
    %1128 = vadd.xlane.f32.xlu0 %v1063
    %v1129 = vpop.xlane.xlu0 %1128
    %1130 = vadd.xlane.f32.xlu0 %v1064
    %v1131 = vpop.xlane.xlu0 %1130
    %1132 = vadd.xlane.f32.xlu0 %v1065
    %v1133 = vpop.xlane.xlu0 %1132
    %1134 = vadd.xlane.f32.xlu0 %v1066
    %v1135 = vpop.xlane.xlu0 %1134
    %1136 = vadd.xlane.f32.xlu0 %v1067
    %v1137 = vpop.xlane.xlu0 %1136
    %1138 = vadd.xlane.f32.xlu0 %v1068
    %v1139 = vpop.xlane.xlu0 %1138
    %1140 = vadd.xlane.f32.xlu0 %v1069
    %v1141 = vpop.xlane.xlu0 %1140
    %1142 = vadd.xlane.f32.xlu0 %v1070
    %v1143 = vpop.xlane.xlu0 %1142
    %1144 = vadd.xlane.f32.xlu0 %v1071
    %v1145 = vpop.xlane.xlu0 %1144
    %1146 = vadd.xlane.f32.xlu0 %v1072
    %v1147 = vpop.xlane.xlu0 %1146
    %1148 = vadd.xlane.f32.xlu0 %v1073
    %v1149 = vpop.xlane.xlu0 %1148
    %1150 = vadd.xlane.f32.xlu0 %v1074
    %v1151 = vpop.xlane.xlu0 %1150
    %1152 = vadd.xlane.f32.xlu0 %v1075
    %v1153 = vpop.xlane.xlu0 %1152
    %1154 = vadd.xlane.f32.xlu0 %v1076
    %v1155 = vpop.xlane.xlu0 %1154
    %1156 = vadd.xlane.f32.xlu0 %v1077
    %v1157 = vpop.xlane.xlu0 %1156
    %1158 = vadd.xlane.f32.xlu0 %v1078
    %v1159 = vpop.xlane.xlu0 %1158
    %1160 = vadd.xlane.f32.xlu0 %v1079
    %v1161 = vpop.xlane.xlu0 %1160
    %1162 = vadd.xlane.f32.xlu0 %v1080
    %v1163 = vpop.xlane.xlu0 %1162
    %1164 = vadd.xlane.f32.xlu0 %v1081
    %v1165 = vpop.xlane.xlu0 %1164
    %1166 = vadd.xlane.f32.xlu0 %v1082
    %v1167 = vpop.xlane.xlu0 %1166
    %1168 = vadd.xlane.f32.xlu0 %v1083
    %v1169 = vpop.xlane.xlu0 %1168
    %1170 = vadd.xlane.f32.xlu0 %v1084
    %v1171 = vpop.xlane.xlu0 %1170
    %1172 = vadd.xlane.f32.xlu0 %v1085
    %v1173 = vpop.xlane.xlu0 %1172
    %1174 = vadd.xlane.f32.xlu0 %v1086
    %v1175 = vpop.xlane.xlu0 %1174
    %1176 = vadd.xlane.f32.xlu0 %v1087
    %v1177 = vpop.xlane.xlu0 %1176
    %1178 = vadd.xlane.f32.xlu0 %v1088
    %v1179 = vpop.xlane.xlu0 %1178
    %1180 = vadd.xlane.f32.xlu0 %v1089
    %v1181 = vpop.xlane.xlu0 %1180
    %1182 = vadd.xlane.f32.xlu0 %v1090
    %v1183 = vpop.xlane.xlu0 %1182
    %1184 = vadd.xlane.f32.xlu0 %v1091
    %v1185 = vpop.xlane.xlu0 %1184
    %1186 = vadd.xlane.f32.xlu0 %v1092
    %v1187 = vpop.xlane.xlu0 %1186
    %1188 = vadd.xlane.f32.xlu0 %v1093
    %v1189 = vpop.xlane.xlu0 %1188
    %1190 = vadd.xlane.f32.xlu0 %v1094
    %v1191 = vpop.xlane.xlu0 %1190
    %1192 = vadd.xlane.f32.xlu0 %v1095
    %v1193 = vpop.xlane.xlu0 %1192
    %1194 = vadd.xlane.f32.xlu0 %v1096
    %v1195 = vpop.xlane.xlu0 %1194
    %1196 = vadd.xlane.f32.xlu0 %v1097
    %v1197 = vpop.xlane.xlu0 %1196
    %1198 = vadd.xlane.f32.xlu0 %v1098
    %v1199 = vpop.xlane.xlu0 %1198
    %1200 = vadd.xlane.f32.xlu0 %v1099
    %v1201 = vpop.xlane.xlu0 %1200
    %1202 = vadd.xlane.f32.xlu0 %v1100
    %v1203 = vpop.xlane.xlu0 %1202
    %1204 = vadd.xlane.f32.xlu0 %v1101
    %v1205 = vpop.xlane.xlu0 %1204
    %1206 = vadd.xlane.f32.xlu0 %v1102
    %v1207 = vpop.xlane.xlu0 %1206
    %1208 = vadd.xlane.f32.xlu0 %v1103
    %v1209 = vpop.xlane.xlu0 %1208
    %1210 = vadd.xlane.f32.xlu0 %v1104
    %v1211 = vpop.xlane.xlu0 %1210
    %1212 = vadd.xlane.f32.xlu0 %v1105
    %v1213 = vpop.xlane.xlu0 %1212
    %1214 = vadd.xlane.f32.xlu0 %v1106
    %v1215 = vpop.xlane.xlu0 %1214
    %1216 = vadd.xlane.f32.xlu0 %v1107
    %v1217 = vpop.xlane.xlu0 %1216
    %1218 = vadd.xlane.f32.xlu0 %v1108
    %v1219 = vpop.xlane.xlu0 %1218
    %1220 = vadd.xlane.f32.xlu0 %v1109
    %v1221 = vpop.xlane.xlu0 %1220
    %1222 = vadd.xlane.f32.xlu0 %v1110
    %v1223 = vpop.xlane.xlu0 %1222
    %1224 = vadd.xlane.f32.xlu0 %v1111
    %v1225 = vpop.xlane.xlu0 %1224
    %1226 = vadd.xlane.f32.xlu0 %v1112
    %v1227 = vpop.xlane.xlu0 %1226
    %1228 = vadd.xlane.f32.xlu0 %v1113
    %v1229 = vpop.xlane.xlu0 %1228
    %1230 = vadd.xlane.f32.xlu0 %v1114
    %v1231 = vpop.xlane.xlu0 %1230
    %1232 = vadd.xlane.f32.xlu0 %v1115
    %v1233 = vpop.xlane.xlu0 %1232
    %1234 = vadd.xlane.f32.xlu0 %v1116
    %v1235 = vpop.xlane.xlu0 %1234
    %1236 = vadd.xlane.f32.xlu0 %v1117
    %v1237 = vpop.xlane.xlu0 %1236
    %1238 = vadd.xlane.f32.xlu0 %v1118
    %v1239 = vpop.xlane.xlu0 %1238
    %1240 = vadd.xlane.f32.xlu0 %v1119
    %v1241 = vpop.xlane.xlu0 %1240
    %1242 = vadd.xlane.f32.xlu0 %v1120
    %v1243 = vpop.xlane.xlu0 %1242
    %1244 = vadd.xlane.f32.xlu0 %v1121
    %v1245 = vpop.xlane.xlu0 %1244
    %1246 = vadd.xlane.f32.xlu0 %v1122
    %v1247 = vpop.xlane.xlu0 %1246
    %1248 = vadd.xlane.f32.xlu0 %v1123
    %v1249 = vpop.xlane.xlu0 %1248
    %1250 = vadd.xlane.f32.xlu0 %v1124
    %v1251 = vpop.xlane.xlu0 %1250
    %1252 = vadd.xlane.f32.xlu0 %v1125
    %v1253 = vpop.xlane.xlu0 %1252
    %v1254 = vmul.f32 %v1127, 0.01
    %v1255 = vmul.f32 %v1129, 0.01
    %v1256 = vmul.f32 %v1131, 0.01
    %v1257 = vmul.f32 %v1133, 0.01
    %v1258 = vmul.f32 %v1135, 0.01
    %v1259 = vmul.f32 %v1137, 0.01
    %v1260 = vmul.f32 %v1139, 0.01
    %v1261 = vmul.f32 %v1141, 0.01
    %v1262 = vmul.f32 %v1143, 0.01
    %v1263 = vmul.f32 %v1145, 0.01
    %v1264 = vmul.f32 %v1147, 0.01
    %v1265 = vmul.f32 %v1149, 0.01
    %v1266 = vmul.f32 %v1151, 0.01
    %v1267 = vmul.f32 %v1153, 0.01
    %v1268 = vmul.f32 %v1155, 0.01
    %v1269 = vmul.f32 %v1157, 0.01
    %v1270 = vmul.f32 %v1159, 0.01
    %v1271 = vmul.f32 %v1161, 0.01
    %v1272 = vmul.f32 %v1163, 0.01
    %v1273 = vmul.f32 %v1165, 0.01
    %v1274 = vmul.f32 %v1167, 0.01
    %v1275 = vmul.f32 %v1169, 0.01
    %v1276 = vmul.f32 %v1171, 0.01
    %v1277 = vmul.f32 %v1173, 0.01
    %v1278 = vmul.f32 %v1175, 0.01
    %v1279 = vmul.f32 %v1177, 0.01
    %v1280 = vmul.f32 %v1179, 0.01
    %v1281 = vmul.f32 %v1181, 0.01
    %v1282 = vmul.f32 %v1183, 0.01
    %v1283 = vmul.f32 %v1185, 0.01
    %v1284 = vmul.f32 %v1187, 0.01
    %v1285 = vmul.f32 %v1189, 0.01
    %v1286 = vmul.f32 %v1191, 0.01
    %v1287 = vmul.f32 %v1193, 0.01
    %v1288 = vmul.f32 %v1195, 0.01
    %v1289 = vmul.f32 %v1197, 0.01
    %v1290 = vmul.f32 %v1199, 0.01
    %v1291 = vmul.f32 %v1201, 0.01
    %v1292 = vmul.f32 %v1203, 0.01
    %v1293 = vmul.f32 %v1205, 0.01
    %v1294 = vmul.f32 %v1207, 0.01
    %v1295 = vmul.f32 %v1209, 0.01
    %v1296 = vmul.f32 %v1211, 0.01
    %v1297 = vmul.f32 %v1213, 0.01
    %v1298 = vmul.f32 %v1215, 0.01
    %v1299 = vmul.f32 %v1217, 0.01
    %v1300 = vmul.f32 %v1219, 0.01
    %v1301 = vmul.f32 %v1221, 0.01
    %v1302 = vmul.f32 %v1223, 0.01
    %v1303 = vmul.f32 %v1225, 0.01
    %v1304 = vmul.f32 %v1227, 0.01
    %v1305 = vmul.f32 %v1229, 0.01
    %v1306 = vmul.f32 %v1231, 0.01
    %v1307 = vmul.f32 %v1233, 0.01
    %v1308 = vmul.f32 %v1235, 0.01
    %v1309 = vmul.f32 %v1237, 0.01
    %v1310 = vmul.f32 %v1239, 0.01
    %v1311 = vmul.f32 %v1241, 0.01
    %v1312 = vmul.f32 %v1243, 0.01
    %v1313 = vmul.f32 %v1245, 0.01
    %v1314 = vmul.f32 %v1247, 0.01
    %v1315 = vmul.f32 %v1249, 0.01
    %v1316 = vmul.f32 %v1251, 0.01
    %v1317 = vmul.f32 %v1253, 0.01
    %v1318 = vsub.f32 %v1062, %v1254
    %v1319 = vsub.f32 %v1063, %v1255
    %v1320 = vsub.f32 %v1064, %v1256
    %v1321 = vsub.f32 %v1065, %v1257
    %v1322 = vsub.f32 %v1066, %v1258
    %v1323 = vsub.f32 %v1067, %v1259
    %v1324 = vsub.f32 %v1068, %v1260
    %v1325 = vsub.f32 %v1069, %v1261
    %v1326 = vsub.f32 %v1070, %v1262
    %v1327 = vsub.f32 %v1071, %v1263
    %v1328 = vsub.f32 %v1072, %v1264
    %v1329 = vsub.f32 %v1073, %v1265
    %v1330 = vsub.f32 %v1074, %v1266
    %v1331 = vsub.f32 %v1075, %v1267
    %v1332 = vsub.f32 %v1076, %v1268
    %v1333 = vsub.f32 %v1077, %v1269
    %v1334 = vsub.f32 %v1078, %v1270
    %v1335 = vsub.f32 %v1079, %v1271
    %v1336 = vsub.f32 %v1080, %v1272
    %v1337 = vsub.f32 %v1081, %v1273
    %v1338 = vsub.f32 %v1082, %v1274
    %v1339 = vsub.f32 %v1083, %v1275
    %v1340 = vsub.f32 %v1084, %v1276
    %v1341 = vsub.f32 %v1085, %v1277
    %v1342 = vsub.f32 %v1086, %v1278
    %v1343 = vsub.f32 %v1087, %v1279
    %v1344 = vsub.f32 %v1088, %v1280
    %v1345 = vsub.f32 %v1089, %v1281
    %v1346 = vsub.f32 %v1090, %v1282
    %v1347 = vsub.f32 %v1091, %v1283
    %v1348 = vsub.f32 %v1092, %v1284
    %v1349 = vsub.f32 %v1093, %v1285
    %v1350 = vsub.f32 %v1094, %v1286
    %v1351 = vsub.f32 %v1095, %v1287
    %v1352 = vsub.f32 %v1096, %v1288
    %v1353 = vsub.f32 %v1097, %v1289
    %v1354 = vsub.f32 %v1098, %v1290
    %v1355 = vsub.f32 %v1099, %v1291
    %v1356 = vsub.f32 %v1100, %v1292
    %v1357 = vsub.f32 %v1101, %v1293
    %v1358 = vsub.f32 %v1102, %v1294
    %v1359 = vsub.f32 %v1103, %v1295
    %v1360 = vsub.f32 %v1104, %v1296
    %v1361 = vsub.f32 %v1105, %v1297
    %v1362 = vsub.f32 %v1106, %v1298
    %v1363 = vsub.f32 %v1107, %v1299
    %v1364 = vsub.f32 %v1108, %v1300
    %v1365 = vsub.f32 %v1109, %v1301
    %v1366 = vsub.f32 %v1110, %v1302
    %v1367 = vsub.f32 %v1111, %v1303
    %v1368 = vsub.f32 %v1112, %v1304
    %v1369 = vsub.f32 %v1113, %v1305
    %v1370 = vsub.f32 %v1114, %v1306
    %v1371 = vsub.f32 %v1115, %v1307
    %v1372 = vsub.f32 %v1116, %v1308
    %v1373 = vsub.f32 %v1117, %v1309
    %v1374 = vsub.f32 %v1118, %v1310
    %v1375 = vsub.f32 %v1119, %v1311
    %v1376 = vsub.f32 %v1120, %v1312
    %v1377 = vsub.f32 %v1121, %v1313
    %v1378 = vsub.f32 %v1122, %v1314
    %v1379 = vsub.f32 %v1123, %v1315
    %v1380 = vsub.f32 %v1124, %v1316
    %v1381 = vsub.f32 %v1125, %v1317
    %v1382 = vlaneseq
    %v1383 = vand.u32 %v1382, 127
    %vm1384 = vcmp.lt.s32.totalorder %v1383, 100
    %v1385 = vsel %vm1384, 1, 0
    %vm1386 = vcmp.eq.s32.totalorder %v1385, 1
    %v1387 = vsel %vm1386, %v1318, 0.0
    %v1388 = vsel %vm1386, %v1319, 0.0
    %v1389 = vsel %vm1386, %v1320, 0.0
    %v1390 = vsel %vm1386, %v1321, 0.0
    %v1391 = vsel %vm1386, %v1322, 0.0
    %v1392 = vsel %vm1386, %v1323, 0.0
    %v1393 = vsel %vm1386, %v1324, 0.0
    %v1394 = vsel %vm1386, %v1325, 0.0
    %v1395 = vsel %vm1386, %v1326, 0.0
    %v1396 = vsel %vm1386, %v1327, 0.0
    %v1397 = vsel %vm1386, %v1328, 0.0
    %v1398 = vsel %vm1386, %v1329, 0.0
    %v1399 = vsel %vm1386, %v1330, 0.0
    %v1400 = vsel %vm1386, %v1331, 0.0
    %v1401 = vsel %vm1386, %v1332, 0.0
    %v1402 = vsel %vm1386, %v1333, 0.0
    %v1403 = vsel %vm1386, %v1334, 0.0
    %v1404 = vsel %vm1386, %v1335, 0.0
    %v1405 = vsel %vm1386, %v1336, 0.0
    %v1406 = vsel %vm1386, %v1337, 0.0
    %v1407 = vsel %vm1386, %v1338, 0.0
    %v1408 = vsel %vm1386, %v1339, 0.0
    %v1409 = vsel %vm1386, %v1340, 0.0
    %v1410 = vsel %vm1386, %v1341, 0.0
    %v1411 = vsel %vm1386, %v1342, 0.0
    %v1412 = vsel %vm1386, %v1343, 0.0
    %v1413 = vsel %vm1386, %v1344, 0.0
    %v1414 = vsel %vm1386, %v1345, 0.0
    %v1415 = vsel %vm1386, %v1346, 0.0
    %v1416 = vsel %vm1386, %v1347, 0.0
    %v1417 = vsel %vm1386, %v1348, 0.0
    %v1418 = vsel %vm1386, %v1349, 0.0
    %v1419 = vsel %vm1386, %v1350, 0.0
    %v1420 = vsel %vm1386, %v1351, 0.0
    %v1421 = vsel %vm1386, %v1352, 0.0
    %v1422 = vsel %vm1386, %v1353, 0.0
    %v1423 = vsel %vm1386, %v1354, 0.0
    %v1424 = vsel %vm1386, %v1355, 0.0
    %v1425 = vsel %vm1386, %v1356, 0.0
    %v1426 = vsel %vm1386, %v1357, 0.0
    %v1427 = vsel %vm1386, %v1358, 0.0
    %v1428 = vsel %vm1386, %v1359, 0.0
    %v1429 = vsel %vm1386, %v1360, 0.0
    %v1430 = vsel %vm1386, %v1361, 0.0
    %v1431 = vsel %vm1386, %v1362, 0.0
    %v1432 = vsel %vm1386, %v1363, 0.0
    %v1433 = vsel %vm1386, %v1364, 0.0
    %v1434 = vsel %vm1386, %v1365, 0.0
    %v1435 = vsel %vm1386, %v1366, 0.0
    %v1436 = vsel %vm1386, %v1367, 0.0
    %v1437 = vsel %vm1386, %v1368, 0.0
    %v1438 = vsel %vm1386, %v1369, 0.0
    %v1439 = vsel %vm1386, %v1370, 0.0
    %v1440 = vsel %vm1386, %v1371, 0.0
    %v1441 = vsel %vm1386, %v1372, 0.0
    %v1442 = vsel %vm1386, %v1373, 0.0
    %v1443 = vsel %vm1386, %v1374, 0.0
    %v1444 = vsel %vm1386, %v1375, 0.0
    %v1445 = vsel %vm1386, %v1376, 0.0
    %v1446 = vsel %vm1386, %v1377, 0.0
    %v1447 = vsel %vm1386, %v1378, 0.0
    %v1448 = vsel %vm1386, %v1379, 0.0
    %v1449 = vsel %vm1386, %v1380, 0.0
    %v1450 = vsel %vm1386, %v1381, 0.0
    %v1451 = vmul.f32 %v1387, %v1387
    %v1452 = vmul.f32 %v1388, %v1388
    %v1453 = vmul.f32 %v1389, %v1389
    %v1454 = vmul.f32 %v1390, %v1390
    %v1455 = vmul.f32 %v1391, %v1391
    %v1456 = vmul.f32 %v1392, %v1392
    %v1457 = vmul.f32 %v1393, %v1393
    %v1458 = vmul.f32 %v1394, %v1394
    %v1459 = vmul.f32 %v1395, %v1395
    %v1460 = vmul.f32 %v1396, %v1396
    %v1461 = vmul.f32 %v1397, %v1397
    %v1462 = vmul.f32 %v1398, %v1398
    %v1463 = vmul.f32 %v1399, %v1399
    %v1464 = vmul.f32 %v1400, %v1400
    %v1465 = vmul.f32 %v1401, %v1401
    %v1466 = vmul.f32 %v1402, %v1402
    %v1467 = vmul.f32 %v1403, %v1403
    %v1468 = vmul.f32 %v1404, %v1404
    %v1469 = vmul.f32 %v1405, %v1405
    %v1470 = vmul.f32 %v1406, %v1406
    %v1471 = vmul.f32 %v1407, %v1407
    %v1472 = vmul.f32 %v1408, %v1408
    %v1473 = vmul.f32 %v1409, %v1409
    %v1474 = vmul.f32 %v1410, %v1410
    %v1475 = vmul.f32 %v1411, %v1411
    %v1476 = vmul.f32 %v1412, %v1412
    %v1477 = vmul.f32 %v1413, %v1413
    %v1478 = vmul.f32 %v1414, %v1414
    %v1479 = vmul.f32 %v1415, %v1415
    %v1480 = vmul.f32 %v1416, %v1416
    %v1481 = vmul.f32 %v1417, %v1417
    %v1482 = vmul.f32 %v1418, %v1418
    %v1483 = vmul.f32 %v1419, %v1419
    %v1484 = vmul.f32 %v1420, %v1420
    %v1485 = vmul.f32 %v1421, %v1421
    %v1486 = vmul.f32 %v1422, %v1422
    %v1487 = vmul.f32 %v1423, %v1423
    %v1488 = vmul.f32 %v1424, %v1424
    %v1489 = vmul.f32 %v1425, %v1425
    %v1490 = vmul.f32 %v1426, %v1426
    %v1491 = vmul.f32 %v1427, %v1427
    %v1492 = vmul.f32 %v1428, %v1428
    %v1493 = vmul.f32 %v1429, %v1429
    %v1494 = vmul.f32 %v1430, %v1430
    %v1495 = vmul.f32 %v1431, %v1431
    %v1496 = vmul.f32 %v1432, %v1432
    %v1497 = vmul.f32 %v1433, %v1433
    %v1498 = vmul.f32 %v1434, %v1434
    %v1499 = vmul.f32 %v1435, %v1435
    %v1500 = vmul.f32 %v1436, %v1436
    %v1501 = vmul.f32 %v1437, %v1437
    %v1502 = vmul.f32 %v1438, %v1438
    %v1503 = vmul.f32 %v1439, %v1439
    %v1504 = vmul.f32 %v1440, %v1440
    %v1505 = vmul.f32 %v1441, %v1441
    %v1506 = vmul.f32 %v1442, %v1442
    %v1507 = vmul.f32 %v1443, %v1443
    %v1508 = vmul.f32 %v1444, %v1444
    %v1509 = vmul.f32 %v1445, %v1445
    %v1510 = vmul.f32 %v1446, %v1446
    %v1511 = vmul.f32 %v1447, %v1447
    %v1512 = vmul.f32 %v1448, %v1448
    %v1513 = vmul.f32 %v1449, %v1449
    %v1514 = vmul.f32 %v1450, %v1450
    %1515 = vadd.xlane.f32.xlu0 %v1451
    %v1516 = vpop.xlane.xlu0 %1515
    %1517 = vadd.xlane.f32.xlu0 %v1452
    %v1518 = vpop.xlane.xlu0 %1517
    %1519 = vadd.xlane.f32.xlu0 %v1453
    %v1520 = vpop.xlane.xlu0 %1519
    %1521 = vadd.xlane.f32.xlu0 %v1454
    %v1522 = vpop.xlane.xlu0 %1521
    %1523 = vadd.xlane.f32.xlu0 %v1455
    %v1524 = vpop.xlane.xlu0 %1523
    %1525 = vadd.xlane.f32.xlu0 %v1456
    %v1526 = vpop.xlane.xlu0 %1525
    %1527 = vadd.xlane.f32.xlu0 %v1457
    %v1528 = vpop.xlane.xlu0 %1527
    %1529 = vadd.xlane.f32.xlu0 %v1458
    %v1530 = vpop.xlane.xlu0 %1529
    %1531 = vadd.xlane.f32.xlu0 %v1459
    %v1532 = vpop.xlane.xlu0 %1531
    %1533 = vadd.xlane.f32.xlu0 %v1460
    %v1534 = vpop.xlane.xlu0 %1533
    %1535 = vadd.xlane.f32.xlu0 %v1461
    %v1536 = vpop.xlane.xlu0 %1535
    %1537 = vadd.xlane.f32.xlu0 %v1462
    %v1538 = vpop.xlane.xlu0 %1537
    %1539 = vadd.xlane.f32.xlu0 %v1463
    %v1540 = vpop.xlane.xlu0 %1539
    %1541 = vadd.xlane.f32.xlu0 %v1464
    %v1542 = vpop.xlane.xlu0 %1541
    %1543 = vadd.xlane.f32.xlu0 %v1465
    %v1544 = vpop.xlane.xlu0 %1543
    %1545 = vadd.xlane.f32.xlu0 %v1466
    %v1546 = vpop.xlane.xlu0 %1545
    %1547 = vadd.xlane.f32.xlu0 %v1467
    %v1548 = vpop.xlane.xlu0 %1547
    %1549 = vadd.xlane.f32.xlu0 %v1468
    %v1550 = vpop.xlane.xlu0 %1549
    %1551 = vadd.xlane.f32.xlu0 %v1469
    %v1552 = vpop.xlane.xlu0 %1551
    %1553 = vadd.xlane.f32.xlu0 %v1470
    %v1554 = vpop.xlane.xlu0 %1553
    %1555 = vadd.xlane.f32.xlu0 %v1471
    %v1556 = vpop.xlane.xlu0 %1555
    %1557 = vadd.xlane.f32.xlu0 %v1472
    %v1558 = vpop.xlane.xlu0 %1557
    %1559 = vadd.xlane.f32.xlu0 %v1473
    %v1560 = vpop.xlane.xlu0 %1559
    %1561 = vadd.xlane.f32.xlu0 %v1474
    %v1562 = vpop.xlane.xlu0 %1561
    %1563 = vadd.xlane.f32.xlu0 %v1475
    %v1564 = vpop.xlane.xlu0 %1563
    %1565 = vadd.xlane.f32.xlu0 %v1476
    %v1566 = vpop.xlane.xlu0 %1565
    %1567 = vadd.xlane.f32.xlu0 %v1477
    %v1568 = vpop.xlane.xlu0 %1567
    %1569 = vadd.xlane.f32.xlu0 %v1478
    %v1570 = vpop.xlane.xlu0 %1569
    %1571 = vadd.xlane.f32.xlu0 %v1479
    %v1572 = vpop.xlane.xlu0 %1571
    %1573 = vadd.xlane.f32.xlu0 %v1480
    %v1574 = vpop.xlane.xlu0 %1573
    %1575 = vadd.xlane.f32.xlu0 %v1481
    %v1576 = vpop.xlane.xlu0 %1575
    %1577 = vadd.xlane.f32.xlu0 %v1482
    %v1578 = vpop.xlane.xlu0 %1577
    %1579 = vadd.xlane.f32.xlu0 %v1483
    %v1580 = vpop.xlane.xlu0 %1579
    %1581 = vadd.xlane.f32.xlu0 %v1484
    %v1582 = vpop.xlane.xlu0 %1581
    %1583 = vadd.xlane.f32.xlu0 %v1485
    %v1584 = vpop.xlane.xlu0 %1583
    %1585 = vadd.xlane.f32.xlu0 %v1486
    %v1586 = vpop.xlane.xlu0 %1585
    %1587 = vadd.xlane.f32.xlu0 %v1487
    %v1588 = vpop.xlane.xlu0 %1587
    %1589 = vadd.xlane.f32.xlu0 %v1488
    %v1590 = vpop.xlane.xlu0 %1589
    %1591 = vadd.xlane.f32.xlu0 %v1489
    %v1592 = vpop.xlane.xlu0 %1591
    %1593 = vadd.xlane.f32.xlu0 %v1490
    %v1594 = vpop.xlane.xlu0 %1593
    %1595 = vadd.xlane.f32.xlu0 %v1491
    %v1596 = vpop.xlane.xlu0 %1595
    %1597 = vadd.xlane.f32.xlu0 %v1492
    %v1598 = vpop.xlane.xlu0 %1597
    %1599 = vadd.xlane.f32.xlu0 %v1493
    %v1600 = vpop.xlane.xlu0 %1599
    %1601 = vadd.xlane.f32.xlu0 %v1494
    %v1602 = vpop.xlane.xlu0 %1601
    %1603 = vadd.xlane.f32.xlu0 %v1495
    %v1604 = vpop.xlane.xlu0 %1603
    %1605 = vadd.xlane.f32.xlu0 %v1496
    %v1606 = vpop.xlane.xlu0 %1605
    %1607 = vadd.xlane.f32.xlu0 %v1497
    %v1608 = vpop.xlane.xlu0 %1607
    %1609 = vadd.xlane.f32.xlu0 %v1498
    %v1610 = vpop.xlane.xlu0 %1609
    %1611 = vadd.xlane.f32.xlu0 %v1499
    %v1612 = vpop.xlane.xlu0 %1611
    %1613 = vadd.xlane.f32.xlu0 %v1500
    %v1614 = vpop.xlane.xlu0 %1613
    %1615 = vadd.xlane.f32.xlu0 %v1501
    %v1616 = vpop.xlane.xlu0 %1615
    %1617 = vadd.xlane.f32.xlu0 %v1502
    %v1618 = vpop.xlane.xlu0 %1617
    %1619 = vadd.xlane.f32.xlu0 %v1503
    %v1620 = vpop.xlane.xlu0 %1619
    %1621 = vadd.xlane.f32.xlu0 %v1504
    %v1622 = vpop.xlane.xlu0 %1621
    %1623 = vadd.xlane.f32.xlu0 %v1505
    %v1624 = vpop.xlane.xlu0 %1623
    %1625 = vadd.xlane.f32.xlu0 %v1506
    %v1626 = vpop.xlane.xlu0 %1625
    %1627 = vadd.xlane.f32.xlu0 %v1507
    %v1628 = vpop.xlane.xlu0 %1627
    %1629 = vadd.xlane.f32.xlu0 %v1508
    %v1630 = vpop.xlane.xlu0 %1629
    %1631 = vadd.xlane.f32.xlu0 %v1509
    %v1632 = vpop.xlane.xlu0 %1631
    %1633 = vadd.xlane.f32.xlu0 %v1510
    %v1634 = vpop.xlane.xlu0 %1633
    %1635 = vadd.xlane.f32.xlu0 %v1511
    %v1636 = vpop.xlane.xlu0 %1635
    %1637 = vadd.xlane.f32.xlu0 %v1512
    %v1638 = vpop.xlane.xlu0 %1637
    %1639 = vadd.xlane.f32.xlu0 %v1513
    %v1640 = vpop.xlane.xlu0 %1639
    %1641 = vadd.xlane.f32.xlu0 %v1514
    %v1642 = vpop.xlane.xlu0 %1641
    %v1643 = vmul.f32 %v1516, 0.01
    %v1644 = vmul.f32 %v1518, 0.01
    %v1645 = vmul.f32 %v1520, 0.01
    %v1646 = vmul.f32 %v1522, 0.01
    %v1647 = vmul.f32 %v1524, 0.01
    %v1648 = vmul.f32 %v1526, 0.01
    %v1649 = vmul.f32 %v1528, 0.01
    %v1650 = vmul.f32 %v1530, 0.01
    %v1651 = vmul.f32 %v1532, 0.01
    %v1652 = vmul.f32 %v1534, 0.01
    %v1653 = vmul.f32 %v1536, 0.01
    %v1654 = vmul.f32 %v1538, 0.01
    %v1655 = vmul.f32 %v1540, 0.01
    %v1656 = vmul.f32 %v1542, 0.01
    %v1657 = vmul.f32 %v1544, 0.01
    %v1658 = vmul.f32 %v1546, 0.01
    %v1659 = vmul.f32 %v1548, 0.01
    %v1660 = vmul.f32 %v1550, 0.01
    %v1661 = vmul.f32 %v1552, 0.01
    %v1662 = vmul.f32 %v1554, 0.01
    %v1663 = vmul.f32 %v1556, 0.01
    %v1664 = vmul.f32 %v1558, 0.01
    %v1665 = vmul.f32 %v1560, 0.01
    %v1666 = vmul.f32 %v1562, 0.01
    %v1667 = vmul.f32 %v1564, 0.01
    %v1668 = vmul.f32 %v1566, 0.01
    %v1669 = vmul.f32 %v1568, 0.01
    %v1670 = vmul.f32 %v1570, 0.01
    %v1671 = vmul.f32 %v1572, 0.01
    %v1672 = vmul.f32 %v1574, 0.01
    %v1673 = vmul.f32 %v1576, 0.01
    %v1674 = vmul.f32 %v1578, 0.01
    %v1675 = vmul.f32 %v1580, 0.01
    %v1676 = vmul.f32 %v1582, 0.01
    %v1677 = vmul.f32 %v1584, 0.01
    %v1678 = vmul.f32 %v1586, 0.01
    %v1679 = vmul.f32 %v1588, 0.01
    %v1680 = vmul.f32 %v1590, 0.01
    %v1681 = vmul.f32 %v1592, 0.01
    %v1682 = vmul.f32 %v1594, 0.01
    %v1683 = vmul.f32 %v1596, 0.01
    %v1684 = vmul.f32 %v1598, 0.01
    %v1685 = vmul.f32 %v1600, 0.01
    %v1686 = vmul.f32 %v1602, 0.01
    %v1687 = vmul.f32 %v1604, 0.01
    %v1688 = vmul.f32 %v1606, 0.01
    %v1689 = vmul.f32 %v1608, 0.01
    %v1690 = vmul.f32 %v1610, 0.01
    %v1691 = vmul.f32 %v1612, 0.01
    %v1692 = vmul.f32 %v1614, 0.01
    %v1693 = vmul.f32 %v1616, 0.01
    %v1694 = vmul.f32 %v1618, 0.01
    %v1695 = vmul.f32 %v1620, 0.01
    %v1696 = vmul.f32 %v1622, 0.01
    %v1697 = vmul.f32 %v1624, 0.01
    %v1698 = vmul.f32 %v1626, 0.01
    %v1699 = vmul.f32 %v1628, 0.01
    %v1700 = vmul.f32 %v1630, 0.01
    %v1701 = vmul.f32 %v1632, 0.01
    %v1702 = vmul.f32 %v1634, 0.01
    %v1703 = vmul.f32 %v1636, 0.01
    %v1704 = vmul.f32 %v1638, 0.01
    %v1705 = vmul.f32 %v1640, 0.01
    %v1706 = vmul.f32 %v1642, 0.01
    %v1707 = vadd.f32 %v1643, 1e-05
    %v1708 = vadd.f32 %v1644, 1e-05
    %v1709 = vadd.f32 %v1645, 1e-05
    %v1710 = vadd.f32 %v1646, 1e-05
    %v1711 = vadd.f32 %v1647, 1e-05
    %v1712 = vadd.f32 %v1648, 1e-05
    %v1713 = vadd.f32 %v1649, 1e-05
    %v1714 = vadd.f32 %v1650, 1e-05
    %v1715 = vadd.f32 %v1651, 1e-05
    %v1716 = vadd.f32 %v1652, 1e-05
    %v1717 = vadd.f32 %v1653, 1e-05
    %v1718 = vadd.f32 %v1654, 1e-05
    %v1719 = vadd.f32 %v1655, 1e-05
    %v1720 = vadd.f32 %v1656, 1e-05
    %v1721 = vadd.f32 %v1657, 1e-05
    %v1722 = vadd.f32 %v1658, 1e-05
    %v1723 = vadd.f32 %v1659, 1e-05
    %v1724 = vadd.f32 %v1660, 1e-05
    %v1725 = vadd.f32 %v1661, 1e-05
    %v1726 = vadd.f32 %v1662, 1e-05
    %v1727 = vadd.f32 %v1663, 1e-05
    %v1728 = vadd.f32 %v1664, 1e-05
    %v1729 = vadd.f32 %v1665, 1e-05
    %v1730 = vadd.f32 %v1666, 1e-05
    %v1731 = vadd.f32 %v1667, 1e-05
    %v1732 = vadd.f32 %v1668, 1e-05
    %v1733 = vadd.f32 %v1669, 1e-05
    %v1734 = vadd.f32 %v1670, 1e-05
    %v1735 = vadd.f32 %v1671, 1e-05
    %v1736 = vadd.f32 %v1672, 1e-05
    %v1737 = vadd.f32 %v1673, 1e-05
    %v1738 = vadd.f32 %v1674, 1e-05
    %v1739 = vadd.f32 %v1675, 1e-05
    %v1740 = vadd.f32 %v1676, 1e-05
    %v1741 = vadd.f32 %v1677, 1e-05
    %v1742 = vadd.f32 %v1678, 1e-05
    %v1743 = vadd.f32 %v1679, 1e-05
    %v1744 = vadd.f32 %v1680, 1e-05
    %v1745 = vadd.f32 %v1681, 1e-05
    %v1746 = vadd.f32 %v1682, 1e-05
    %v1747 = vadd.f32 %v1683, 1e-05
    %v1748 = vadd.f32 %v1684, 1e-05
    %v1749 = vadd.f32 %v1685, 1e-05
    %v1750 = vadd.f32 %v1686, 1e-05
    %v1751 = vadd.f32 %v1687, 1e-05
    %v1752 = vadd.f32 %v1688, 1e-05
    %v1753 = vadd.f32 %v1689, 1e-05
    %v1754 = vadd.f32 %v1690, 1e-05
    %v1755 = vadd.f32 %v1691, 1e-05
    %v1756 = vadd.f32 %v1692, 1e-05
    %v1757 = vadd.f32 %v1693, 1e-05
    %v1758 = vadd.f32 %v1694, 1e-05
    %v1759 = vadd.f32 %v1695, 1e-05
    %v1760 = vadd.f32 %v1696, 1e-05
    %v1761 = vadd.f32 %v1697, 1e-05
    %v1762 = vadd.f32 %v1698, 1e-05
    %v1763 = vadd.f32 %v1699, 1e-05
    %v1764 = vadd.f32 %v1700, 1e-05
    %v1765 = vadd.f32 %v1701, 1e-05
    %v1766 = vadd.f32 %v1702, 1e-05
    %v1767 = vadd.f32 %v1703, 1e-05
    %v1768 = vadd.f32 %v1704, 1e-05
    %v1769 = vadd.f32 %v1705, 1e-05
    %v1770 = vadd.f32 %v1706, 1e-05
    %v1771 = vrsqrt.pop %v1707
    %v1772 = vrsqrt.pop %v1708
    %v1773 = vrsqrt.pop %v1709
    %v1774 = vrsqrt.pop %v1710
    %v1775 = vrsqrt.pop %v1711
    %v1776 = vrsqrt.pop %v1712
    %v1777 = vrsqrt.pop %v1713
    %v1778 = vrsqrt.pop %v1714
    %v1779 = vrsqrt.pop %v1715
    %v1780 = vrsqrt.pop %v1716
    %v1781 = vrsqrt.pop %v1717
    %v1782 = vrsqrt.pop %v1718
    %v1783 = vrsqrt.pop %v1719
    %v1784 = vrsqrt.pop %v1720
    %v1785 = vrsqrt.pop %v1721
    %v1786 = vrsqrt.pop %v1722
    %v1787 = vrsqrt.pop %v1723
    %v1788 = vrsqrt.pop %v1724
    %v1789 = vrsqrt.pop %v1725
    %v1790 = vrsqrt.pop %v1726
    %v1791 = vrsqrt.pop %v1727
    %v1792 = vrsqrt.pop %v1728
    %v1793 = vrsqrt.pop %v1729
    %v1794 = vrsqrt.pop %v1730
    %v1795 = vrsqrt.pop %v1731
    %v1796 = vrsqrt.pop %v1732
    %v1797 = vrsqrt.pop %v1733
    %v1798 = vrsqrt.pop %v1734
    %v1799 = vrsqrt.pop %v1735
    %v1800 = vrsqrt.pop %v1736
    %v1801 = vrsqrt.pop %v1737
    %v1802 = vrsqrt.pop %v1738
    %v1803 = vrsqrt.pop %v1739
    %v1804 = vrsqrt.pop %v1740
    %v1805 = vrsqrt.pop %v1741
    %v1806 = vrsqrt.pop %v1742
    %v1807 = vrsqrt.pop %v1743
    %v1808 = vrsqrt.pop %v1744
    %v1809 = vrsqrt.pop %v1745
    %v1810 = vrsqrt.pop %v1746
    %v1811 = vrsqrt.pop %v1747
    %v1812 = vrsqrt.pop %v1748
    %v1813 = vrsqrt.pop %v1749
    %v1814 = vrsqrt.pop %v1750
    %v1815 = vrsqrt.pop %v1751
    %v1816 = vrsqrt.pop %v1752
    %v1817 = vrsqrt.pop %v1753
    %v1818 = vrsqrt.pop %v1754
    %v1819 = vrsqrt.pop %v1755
    %v1820 = vrsqrt.pop %v1756
    %v1821 = vrsqrt.pop %v1757
    %v1822 = vrsqrt.pop %v1758
    %v1823 = vrsqrt.pop %v1759
    %v1824 = vrsqrt.pop %v1760
    %v1825 = vrsqrt.pop %v1761
    %v1826 = vrsqrt.pop %v1762
    %v1827 = vrsqrt.pop %v1763
    %v1828 = vrsqrt.pop %v1764
    %v1829 = vrsqrt.pop %v1765
    %v1830 = vrsqrt.pop %v1766
    %v1831 = vrsqrt.pop %v1767
    %v1832 = vrsqrt.pop %v1768
    %v1833 = vrsqrt.pop %v1769
    %v1834 = vrsqrt.pop %v1770
    %v1835 = vmul.f32 %v1387, %v1771
    %v1836 = vmul.f32 %v1388, %v1772
    %v1837 = vmul.f32 %v1389, %v1773
    %v1838 = vmul.f32 %v1390, %v1774
    %v1839 = vmul.f32 %v1391, %v1775
    %v1840 = vmul.f32 %v1392, %v1776
    %v1841 = vmul.f32 %v1393, %v1777
    %v1842 = vmul.f32 %v1394, %v1778
    %v1843 = vmul.f32 %v1395, %v1779
    %v1844 = vmul.f32 %v1396, %v1780
    %v1845 = vmul.f32 %v1397, %v1781
    %v1846 = vmul.f32 %v1398, %v1782
    %v1847 = vmul.f32 %v1399, %v1783
    %v1848 = vmul.f32 %v1400, %v1784
    %v1849 = vmul.f32 %v1401, %v1785
    %v1850 = vmul.f32 %v1402, %v1786
    %v1851 = vmul.f32 %v1403, %v1787
    %v1852 = vmul.f32 %v1404, %v1788
    %v1853 = vmul.f32 %v1405, %v1789
    %v1854 = vmul.f32 %v1406, %v1790
    %v1855 = vmul.f32 %v1407, %v1791
    %v1856 = vmul.f32 %v1408, %v1792
    %v1857 = vmul.f32 %v1409, %v1793
    %v1858 = vmul.f32 %v1410, %v1794
    %v1859 = vmul.f32 %v1411, %v1795
    %v1860 = vmul.f32 %v1412, %v1796
    %v1861 = vmul.f32 %v1413, %v1797
    %v1862 = vmul.f32 %v1414, %v1798
    %v1863 = vmul.f32 %v1415, %v1799
    %v1864 = vmul.f32 %v1416, %v1800
    %v1865 = vmul.f32 %v1417, %v1801
    %v1866 = vmul.f32 %v1418, %v1802
    %v1867 = vmul.f32 %v1419, %v1803
    %v1868 = vmul.f32 %v1420, %v1804
    %v1869 = vmul.f32 %v1421, %v1805
    %v1870 = vmul.f32 %v1422, %v1806
    %v1871 = vmul.f32 %v1423, %v1807
    %v1872 = vmul.f32 %v1424, %v1808
    %v1873 = vmul.f32 %v1425, %v1809
    %v1874 = vmul.f32 %v1426, %v1810
    %v1875 = vmul.f32 %v1427, %v1811
    %v1876 = vmul.f32 %v1428, %v1812
    %v1877 = vmul.f32 %v1429, %v1813
    %v1878 = vmul.f32 %v1430, %v1814
    %v1879 = vmul.f32 %v1431, %v1815
    %v1880 = vmul.f32 %v1432, %v1816
    %v1881 = vmul.f32 %v1433, %v1817
    %v1882 = vmul.f32 %v1434, %v1818
    %v1883 = vmul.f32 %v1435, %v1819
    %v1884 = vmul.f32 %v1436, %v1820
    %v1885 = vmul.f32 %v1437, %v1821
    %v1886 = vmul.f32 %v1438, %v1822
    %v1887 = vmul.f32 %v1439, %v1823
    %v1888 = vmul.f32 %v1440, %v1824
    %v1889 = vmul.f32 %v1441, %v1825
    %v1890 = vmul.f32 %v1442, %v1826
    %v1891 = vmul.f32 %v1443, %v1827
    %v1892 = vmul.f32 %v1444, %v1828
    %v1893 = vmul.f32 %v1445, %v1829
    %v1894 = vmul.f32 %v1446, %v1830
    %v1895 = vmul.f32 %v1447, %v1831
    %v1896 = vmul.f32 %v1448, %v1832
    %v1897 = vmul.f32 %v1449, %v1833
    %v1898 = vmul.f32 %v1450, %v1834
    %v1899 = vlaneseq
    %v1900 = vshrl.u32 %v1899, 7
    %v1901 = vsub.s32 2, %v1900
    %v1902 = vrot.slane %v155, %v1901
    %v1903 = vmul.f32 %v1835, %v1902
    %v1904 = vmul.f32 %v1836, %v1902
    %v1905 = vmul.f32 %v1837, %v1902
    %v1906 = vmul.f32 %v1838, %v1902
    %v1907 = vmul.f32 %v1839, %v1902
    %v1908 = vmul.f32 %v1840, %v1902
    %v1909 = vmul.f32 %v1841, %v1902
    %v1910 = vmul.f32 %v1842, %v1902
    %v1911 = vmul.f32 %v1843, %v1902
    %v1912 = vmul.f32 %v1844, %v1902
    %v1913 = vmul.f32 %v1845, %v1902
    %v1914 = vmul.f32 %v1846, %v1902
    %v1915 = vmul.f32 %v1847, %v1902
    %v1916 = vmul.f32 %v1848, %v1902
    %v1917 = vmul.f32 %v1849, %v1902
    %v1918 = vmul.f32 %v1850, %v1902
    %v1919 = vmul.f32 %v1851, %v1902
    %v1920 = vmul.f32 %v1852, %v1902
    %v1921 = vmul.f32 %v1853, %v1902
    %v1922 = vmul.f32 %v1854, %v1902
    %v1923 = vmul.f32 %v1855, %v1902
    %v1924 = vmul.f32 %v1856, %v1902
    %v1925 = vmul.f32 %v1857, %v1902
    %v1926 = vmul.f32 %v1858, %v1902
    %v1927 = vmul.f32 %v1859, %v1902
    %v1928 = vmul.f32 %v1860, %v1902
    %v1929 = vmul.f32 %v1861, %v1902
    %v1930 = vmul.f32 %v1862, %v1902
    %v1931 = vmul.f32 %v1863, %v1902
    %v1932 = vmul.f32 %v1864, %v1902
    %v1933 = vmul.f32 %v1865, %v1902
    %v1934 = vmul.f32 %v1866, %v1902
    %v1935 = vmul.f32 %v1867, %v1902
    %v1936 = vmul.f32 %v1868, %v1902
    %v1937 = vmul.f32 %v1869, %v1902
    %v1938 = vmul.f32 %v1870, %v1902
    %v1939 = vmul.f32 %v1871, %v1902
    %v1940 = vmul.f32 %v1872, %v1902
    %v1941 = vmul.f32 %v1873, %v1902
    %v1942 = vmul.f32 %v1874, %v1902
    %v1943 = vmul.f32 %v1875, %v1902
    %v1944 = vmul.f32 %v1876, %v1902
    %v1945 = vmul.f32 %v1877, %v1902
    %v1946 = vmul.f32 %v1878, %v1902
    %v1947 = vmul.f32 %v1879, %v1902
    %v1948 = vmul.f32 %v1880, %v1902
    %v1949 = vmul.f32 %v1881, %v1902
    %v1950 = vmul.f32 %v1882, %v1902
    %v1951 = vmul.f32 %v1883, %v1902
    %v1952 = vmul.f32 %v1884, %v1902
    %v1953 = vmul.f32 %v1885, %v1902
    %v1954 = vmul.f32 %v1886, %v1902
    %v1955 = vmul.f32 %v1887, %v1902
    %v1956 = vmul.f32 %v1888, %v1902
    %v1957 = vmul.f32 %v1889, %v1902
    %v1958 = vmul.f32 %v1890, %v1902
    %v1959 = vmul.f32 %v1891, %v1902
    %v1960 = vmul.f32 %v1892, %v1902
    %v1961 = vmul.f32 %v1893, %v1902
    %v1962 = vmul.f32 %v1894, %v1902
    %v1963 = vmul.f32 %v1895, %v1902
    %v1964 = vmul.f32 %v1896, %v1902
    %v1965 = vmul.f32 %v1897, %v1902
    %v1966 = vmul.f32 %v1898, %v1902
    %v1967 = vlaneseq
    %v1968 = vshrl.u32 %v1967, 7
    %v1969 = vsub.s32 3, %v1968
    %v1970 = vrot.slane %v155, %v1969
    %v1971 = vadd.f32 %v1903, %v1970
    %v1972 = vadd.f32 %v1904, %v1970
    %v1973 = vadd.f32 %v1905, %v1970
    %v1974 = vadd.f32 %v1906, %v1970
    %v1975 = vadd.f32 %v1907, %v1970
    %v1976 = vadd.f32 %v1908, %v1970
    %v1977 = vadd.f32 %v1909, %v1970
    %v1978 = vadd.f32 %v1910, %v1970
    %v1979 = vadd.f32 %v1911, %v1970
    %v1980 = vadd.f32 %v1912, %v1970
    %v1981 = vadd.f32 %v1913, %v1970
    %v1982 = vadd.f32 %v1914, %v1970
    %v1983 = vadd.f32 %v1915, %v1970
    %v1984 = vadd.f32 %v1916, %v1970
    %v1985 = vadd.f32 %v1917, %v1970
    %v1986 = vadd.f32 %v1918, %v1970
    %v1987 = vadd.f32 %v1919, %v1970
    %v1988 = vadd.f32 %v1920, %v1970
    %v1989 = vadd.f32 %v1921, %v1970
    %v1990 = vadd.f32 %v1922, %v1970
    %v1991 = vadd.f32 %v1923, %v1970
    %v1992 = vadd.f32 %v1924, %v1970
    %v1993 = vadd.f32 %v1925, %v1970
    %v1994 = vadd.f32 %v1926, %v1970
    %v1995 = vadd.f32 %v1927, %v1970
    %v1996 = vadd.f32 %v1928, %v1970
    %v1997 = vadd.f32 %v1929, %v1970
    %v1998 = vadd.f32 %v1930, %v1970
    %v1999 = vadd.f32 %v1931, %v1970
    %v2000 = vadd.f32 %v1932, %v1970
    %v2001 = vadd.f32 %v1933, %v1970
    %v2002 = vadd.f32 %v1934, %v1970
    %v2003 = vadd.f32 %v1935, %v1970
    %v2004 = vadd.f32 %v1936, %v1970
    %v2005 = vadd.f32 %v1937, %v1970
    %v2006 = vadd.f32 %v1938, %v1970
    %v2007 = vadd.f32 %v1939, %v1970
    %v2008 = vadd.f32 %v1940, %v1970
    %v2009 = vadd.f32 %v1941, %v1970
    %v2010 = vadd.f32 %v1942, %v1970
    %v2011 = vadd.f32 %v1943, %v1970
    %v2012 = vadd.f32 %v1944, %v1970
    %v2013 = vadd.f32 %v1945, %v1970
    %v2014 = vadd.f32 %v1946, %v1970
    %v2015 = vadd.f32 %v1947, %v1970
    %v2016 = vadd.f32 %v1948, %v1970
    %v2017 = vadd.f32 %v1949, %v1970
    %v2018 = vadd.f32 %v1950, %v1970
    %v2019 = vadd.f32 %v1951, %v1970
    %v2020 = vadd.f32 %v1952, %v1970
    %v2021 = vadd.f32 %v1953, %v1970
    %v2022 = vadd.f32 %v1954, %v1970
    %v2023 = vadd.f32 %v1955, %v1970
    %v2024 = vadd.f32 %v1956, %v1970
    %v2025 = vadd.f32 %v1957, %v1970
    %v2026 = vadd.f32 %v1958, %v1970
    %v2027 = vadd.f32 %v1959, %v1970
    %v2028 = vadd.f32 %v1960, %v1970
    %v2029 = vadd.f32 %v1961, %v1970
    %v2030 = vadd.f32 %v1962, %v1970
    %v2031 = vadd.f32 %v1963, %v1970
    %v2032 = vadd.f32 %v1964, %v1970
    %v2033 = vadd.f32 %v1965, %v1970
    %v2034 = vadd.f32 %v1966, %v1970
    %2035 = vst [vmem:[#allocation8] sm:$0xff] %v1971
    %2036 = vst [vmem:[#allocation8 + $0x8] sm:$0xff] %v1972
    %2037 = vst [vmem:[#allocation8 + $0x10] sm:$0xff] %v1973
    %2038 = vst [vmem:[#allocation8 + $0x18] sm:$0xff] %v1974
    %2039 = vst [vmem:[#allocation8 + $0x20] sm:$0xff] %v1975
    %2040 = vst [vmem:[#allocation8 + $0x28] sm:$0xff] %v1976
    %2041 = vst [vmem:[#allocation8 + $0x30] sm:$0xff] %v1977
    %2042 = vst [vmem:[#allocation8 + $0x38] sm:$0xff] %v1978
    %2043 = vst [vmem:[#allocation8 + $0x40] sm:$0xff] %v1979
    %2044 = vst [vmem:[#allocation8 + $0x48] sm:$0xff] %v1980
    %2045 = vst [vmem:[#allocation8 + $0x50] sm:$0xff] %v1981
    %2046 = vst [vmem:[#allocation8 + $0x58] sm:$0xff] %v1982
    %2047 = vst [vmem:[#allocation8 + $0x60] sm:$0xff] %v1983
    %2048 = vst [vmem:[#allocation8 + $0x68] sm:$0xff] %v1984
    %2049 = vst [vmem:[#allocation8 + $0x70] sm:$0xff] %v1985
    %2050 = vst [vmem:[#allocation8 + $0x78] sm:$0xff] %v1986
    %2051 = vst [vmem:[#allocation8 + $0x80] sm:$0xff] %v1987
    %2052 = vst [vmem:[#allocation8 + $0x88] sm:$0xff] %v1988
    %2053 = vst [vmem:[#allocation8 + $0x90] sm:$0xff] %v1989
    %2054 = vst [vmem:[#allocation8 + $0x98] sm:$0xff] %v1990
    %2055 = vst [vmem:[#allocation8 + $0xa0] sm:$0xff] %v1991
    %2056 = vst [vmem:[#allocation8 + $0xa8] sm:$0xff] %v1992
    %2057 = vst [vmem:[#allocation8 + $0xb0] sm:$0xff] %v1993
    %2058 = vst [vmem:[#allocation8 + $0xb8] sm:$0xff] %v1994
    %2059 = vst [vmem:[#allocation8 + $0xc0] sm:$0xff] %v1995
    %2060 = vst [vmem:[#allocation8 + $0xc8] sm:$0xff] %v1996
    %2061 = vst [vmem:[#allocation8 + $0xd0] sm:$0xff] %v1997
    %2062 = vst [vmem:[#allocation8 + $0xd8] sm:$0xff] %v1998
    %2063 = vst [vmem:[#allocation8 + $0xe0] sm:$0xff] %v1999
    %2064 = vst [vmem:[#allocation8 + $0xe8] sm:$0xff] %v2000
    %2065 = vst [vmem:[#allocation8 + $0xf0] sm:$0xff] %v2001
    %2066 = vst [vmem:[#allocation8 + $0xf8] sm:$0xff] %v2002
    %2067 = vst [vmem:[#allocation8 + $0x100] sm:$0xff] %v2003
    %2068 = vst [vmem:[#allocation8 + $0x108] sm:$0xff] %v2004
    %2069 = vst [vmem:[#allocation8 + $0x110] sm:$0xff] %v2005
    %2070 = vst [vmem:[#allocation8 + $0x118] sm:$0xff] %v2006
    %2071 = vst [vmem:[#allocation8 + $0x120] sm:$0xff] %v2007
    %2072 = vst [vmem:[#allocation8 + $0x128] sm:$0xff] %v2008
    %2073 = vst [vmem:[#allocation8 + $0x130] sm:$0xff] %v2009
    %2074 = vst [vmem:[#allocation8 + $0x138] sm:$0xff] %v2010
    %2075 = vst [vmem:[#allocation8 + $0x140] sm:$0xff] %v2011
    %2076 = vst [vmem:[#allocation8 + $0x148] sm:$0xff] %v2012
    %2077 = vst [vmem:[#allocation8 + $0x150] sm:$0xff] %v2013
    %2078 = vst [vmem:[#allocation8 + $0x158] sm:$0xff] %v2014
    %2079 = vst [vmem:[#allocation8 + $0x160] sm:$0xff] %v2015
    %2080 = vst [vmem:[#allocation8 + $0x168] sm:$0xff] %v2016
    %2081 = vst [vmem:[#allocation8 + $0x170] sm:$0xff] %v2017
    %2082 = vst [vmem:[#allocation8 + $0x178] sm:$0xff] %v2018
    %2083 = vst [vmem:[#allocation8 + $0x180] sm:$0xff] %v2019
    %2084 = vst [vmem:[#allocation8 + $0x188] sm:$0xff] %v2020
    %2085 = vst [vmem:[#allocation8 + $0x190] sm:$0xff] %v2021
    %2086 = vst [vmem:[#allocation8 + $0x198] sm:$0xff] %v2022
    %2087 = vst [vmem:[#allocation8 + $0x1a0] sm:$0xff] %v2023
    %2088 = vst [vmem:[#allocation8 + $0x1a8] sm:$0xff] %v2024
    %2089 = vst [vmem:[#allocation8 + $0x1b0] sm:$0xff] %v2025
    %2090 = vst [vmem:[#allocation8 + $0x1b8] sm:$0xff] %v2026
    %2091 = vst [vmem:[#allocation8 + $0x1c0] sm:$0xff] %v2027
    %2092 = vst [vmem:[#allocation8 + $0x1c8] sm:$0xff] %v2028
    %2093 = vst [vmem:[#allocation8 + $0x1d0] sm:$0xff] %v2029
    %2094 = vst [vmem:[#allocation8 + $0x1d8] sm:$0xff] %v2030
    %2095 = vst [vmem:[#allocation8 + $0x1e0] sm:$0xff] %v2031
    %2096 = vst [vmem:[#allocation8 + $0x1e8] sm:$0xff] %v2032
    %2097 = vst [vmem:[#allocation8 + $0x1f0] sm:$0xff] %v2033
    %2098 = vst [vmem:[#allocation8 + $0x1f8] sm:$0xff] %v2034
    // Predicated region
    $region30: #{tpu_custom_call.1} parent=1 // pred_check
      _
    $region31: #{tpu_custom_call.1} parent=1 // pred_check_branch
      %2100 = sbr.rel (0) target = $region33
    $region32: #{tpu_custom_call.1} parent=1 // pred_region
      %s2102 = ssub.s32 8192, 8192
      %2103 = vsyncadd [#allocation4], %s2102
      %s2104 = sshll.u32 [#allocation8], 4
      %s2105 = int_to_ptr.vmem [resolvable:$true] %s2104
      %2110 = dma.vmem_to_hbm [thread:$0]  %s2105, 8192, %s4, [#allocation4], 128, 128, 8
    $region33: #{tpu_custom_call.1} parent=1 // pred_fallthru
      _
    // Predicated region
    $region34: #{tpu_custom_call.1} parent=1 // pred_check
      _
    $region35: #{tpu_custom_call.1} parent=1 // pred_check_branch
      %2112 = sbr.rel (0) target = $region37
    $region36: #{tpu_custom_call.1} parent=1 // pred_region
      %2113 = dma.done [#allocation4], 8192
    $region37: #{tpu_custom_call.1} parent=1 // pred_fallthru
      _
    %2114 = vsyncpa [#allocation3], 1
    %2115 = vsyncpa [#allocation6], 1
    %2116 = vsyncpa [#allocation4], 1

// kernel: tpu_custom_call.1
$region0: #{tpu_custom_call.1}
  #allocation0 [shape = 'u32[]', space=smem, size = 0x4, offset = 0x4, fixed_abs, tag = 'smem constant byte address 0x4 - core index']
  #allocation1 [shape = 'u32[144,128]{1,0:T(1,128)}', space=vmem, size = 0x12000, scoped, tag = 'internal scratch']
  %s0 = inlined_call_operand.hbm [shape: f32[512,128], index: 0, kind: input, shape index: {}]
  %s1 = inlined_call_operand.hbm [shape: f32[128,128], index: 1, kind: input, shape index: {}]
  %s2 = inlined_call_operand.hbm [shape: f32[128,128], index: 2, kind: input, shape index: {}]
  %s3 = inlined_call_operand.vmem [shape: f32[8,128], index: 3, kind: input, shape index: {}]
  %s4 = inlined_call_operand.hbm [shape: f32[512,128], index: 4, kind: output, shape index: {}]
  %s5 = sld [smem:[#allocation0]]
  $region38: #{tpu_custom_call.1} parent=0
    _
  %s7 = ssub.s32 1, %s5
  %s8 = scalar_select 0, %s7, %s5
  $region1: #{tpu_custom_call.1} parent=0
    #allocation2 [shape = 'u8[262144]{0}', space=vmem, size = 0x40000, scoped, tag = 'input window, operand 0, single buffered']
    #allocation3 [shape = 's32[1]{0}', space=sflag, size = 0x4, scoped, tag = 'scoped memory for tpu_custom_call.1']
    #allocation4 [shape = 's32[1]{0}', space=sflag, size = 0x4, scoped, tag = 'scoped memory for tpu_custom_call.1']
    #allocation5 [shape = 'u8[65536]{0}', space=vmem, size = 0x10000, scoped, tag = 'input window, operand 1, single buffered']
    #allocation6 [shape = 's32[1]{0}', space=sflag, size = 0x4, scoped, tag = 'scoped memory for tpu_custom_call.1']
    #allocation7 [shape = 'u8[65536]{0}', space=vmem, size = 0x10000, scoped, tag = 'input window, operand 2, single buffered']
    #allocation8 [shape = 'u8[262144]{0}', space=vmem, size = 0x40000, scoped, tag = 'output window, operand 0, single buffered']
    %9 = vsyncpa [#allocation3], 0
    %10 = vsyncpa [#allocation6], 0
    %11 = vsyncpa [#allocation4], 0
    // Predicated region
    $region2: #{tpu_custom_call.1} parent=1 // pred_check
      _
    $region3: #{tpu_custom_call.1} parent=1 // pred_check_branch
      %13 = sbr.rel (0) target = $region5
    $region4: #{tpu_custom_call.1} parent=1 // pred_region
      %s15 = ssub.s32 8192, 8192
      %16 = vsyncadd [#allocation3], %s15
      %s17 = sshll.u32 [#allocation2], 4
      %s18 = int_to_ptr.vmem [resolvable:$true] %s17
      %23 = dma.hbm_to_vmem [thread:$0]  %s0, 8192, %s18, [#allocation3], 128, 128, 8
    $region5: #{tpu_custom_call.1} parent=1 // pred_fallthru
      _
    // Predicated region
    $region6: #{tpu_custom_call.1} parent=1 // pred_check
      _
    $region7: #{tpu_custom_call.1} parent=1 // pred_check_branch
      %25 = sbr.rel (0) target = $region9
    $region8: #{tpu_custom_call.1} parent=1 // pred_region
      %s27 = ssub.s32 2048, 2048
      %28 = vsyncadd [#allocation6], %s27
      %s29 = sshll.u32 [#allocation5], 4
      %s30 = int_to_ptr.vmem [resolvable:$true] %s29
      %35 = dma.hbm_to_vmem [thread:$0]  %s1, 2048, %s30, [#allocation6], 128, 128, 8
    $region9: #{tpu_custom_call.1} parent=1 // pred_fallthru
      _
    // Predicated region
    $region10: #{tpu_custom_call.1} parent=1 // pred_check
      _
    $region11: #{tpu_custom_call.1} parent=1 // pred_check_branch
      %37 = sbr.rel (0) target = $region13
    $region12: #{tpu_custom_call.1} parent=1 // pred_region
      %s39 = ssub.s32 2048, 2048
      %40 = vsyncadd [#allocation6], %s39
      %s41 = sshll.u32 [#allocation7], 4
      %s42 = int_to_ptr.vmem [resolvable:$true] %s41
      %47 = dma.hbm_to_vmem [thread:$0]  %s2, 2048, %s42, [#allocation6], 128, 128, 8
    $region13: #{tpu_custom_call.1} parent=1 // pred_fallthru
      _
    // Predicated region
    $region14: #{tpu_custom_call.1} parent=1 // pred_check
      _
    $region15: #{tpu_custom_call.1} parent=1 // pred_check_branch
      %49 = sbr.rel (0) target = $region17
    $region16: #{tpu_custom_call.1} parent=1 // pred_region
      _
    $region17: #{tpu_custom_call.1} parent=1 // pred_fallthru
      _
    // Predicated region
    $region18: #{tpu_custom_call.1} parent=1 // pred_check
      _
    $region19: #{tpu_custom_call.1} parent=1 // pred_check_branch
      %51 = sbr.rel (0) target = $region21
    $region20: #{tpu_custom_call.1} parent=1 // pred_region
      %52 = dma.done [#allocation3], 8192
    $region21: #{tpu_custom_call.1} parent=1 // pred_fallthru
      _
    // Predicated region
    $region22: #{tpu_custom_call.1} parent=1 // pred_check
      _
    $region23: #{tpu_custom_call.1} parent=1 // pred_check_branch
      %54 = sbr.rel (0) target = $region25
    $region24: #{tpu_custom_call.1} parent=1 // pred_region
      %55 = dma.done [#allocation6], 2048
    $region25: #{tpu_custom_call.1} parent=1 // pred_fallthru
      _
    // Predicated region
    $region26: #{tpu_custom_call.1} parent=1 // pred_check
      _
    $region27: #{tpu_custom_call.1} parent=1 // pred_check_branch
      %57 = sbr.rel (0) target = $region29
    $region28: #{tpu_custom_call.1} parent=1 // pred_region
      %58 = dma.done [#allocation6], 2048
    $region29: #{tpu_custom_call.1} parent=1 // pred_fallthru
      _
    %v59 = vld [vmem:[#allocation5] sm:$0xff]
    %v60 = vld [vmem:[#allocation5 + $0x8] sm:$0xff]
    %v61 = vld [vmem:[#allocation5 + $0x10] sm:$0xff]
    %v62 = vld [vmem:[#allocation5 + $0x18] sm:$0xff]
    %v63 = vld [vmem:[#allocation5 + $0x20] sm:$0xff]
    %v64 = vld [vmem:[#allocation5 + $0x28] sm:$0xff]
    %v65 = vld [vmem:[#allocation5 + $0x30] sm:$0xff]
    %v66 = vld [vmem:[#allocation5 + $0x38] sm:$0xff]
    %v67 = vld [vmem:[#allocation5 + $0x40] sm:$0xff]
    %v68 = vld [vmem:[#allocation5 + $0x48] sm:$0xff]
    %v69 = vld [vmem:[#allocation5 + $0x50] sm:$0xff]
    %v70 = vld [vmem:[#allocation5 + $0x58] sm:$0xff]
    %v71 = vld [vmem:[#allocation5 + $0x60] sm:$0xff]
    %v72 = vld [vmem:[#allocation5 + $0x68] sm:$0xff]
    %v73 = vld [vmem:[#allocation5 + $0x70] sm:$0xff]
    %v74 = vld [vmem:[#allocation5 + $0x78] sm:$0xff]
    %v75 = vld [vmem:[#allocation7] sm:$0xff]
    %v76 = vld [vmem:[#allocation7 + $0x8] sm:$0xff]
    %v77 = vld [vmem:[#allocation7 + $0x10] sm:$0xff]
    %v78 = vld [vmem:[#allocation7 + $0x18] sm:$0xff]
    %v79 = vld [vmem:[#allocation7 + $0x20] sm:$0xff]
    %v80 = vld [vmem:[#allocation7 + $0x28] sm:$0xff]
    %v81 = vld [vmem:[#allocation7 + $0x30] sm:$0xff]
    %v82 = vld [vmem:[#allocation7 + $0x38] sm:$0xff]
    %v83 = vld [vmem:[#allocation7 + $0x40] sm:$0xff]
    %v84 = vld [vmem:[#allocation7 + $0x48] sm:$0xff]
    %v85 = vld [vmem:[#allocation7 + $0x50] sm:$0xff]
    %v86 = vld [vmem:[#allocation7 + $0x58] sm:$0xff]
    %v87 = vld [vmem:[#allocation7 + $0x60] sm:$0xff]
    %v88 = vld [vmem:[#allocation7 + $0x68] sm:$0xff]
    %v89 = vld [vmem:[#allocation7 + $0x70] sm:$0xff]
    %v90 = vld [vmem:[#allocation7 + $0x78] sm:$0xff]
    %v91 = vld [vmem:[#allocation2] sm:$0xff]
    %v92 = vld [vmem:[#allocation2 + $0x8] sm:$0xff]
    %v93 = vld [vmem:[#allocation2 + $0x10] sm:$0xff]
    %v94 = vld [vmem:[#allocation2 + $0x18] sm:$0xff]
    %v95 = vld [vmem:[#allocation2 + $0x20] sm:$0xff]
    %v96 = vld [vmem:[#allocation2 + $0x28] sm:$0xff]
    %v97 = vld [vmem:[#allocation2 + $0x30] sm:$0xff]
    %v98 = vld [vmem:[#allocation2 + $0x38] sm:$0xff]
    %v99 = vld [vmem:[#allocation2 + $0x40] sm:$0xff]
    %v100 = vld [vmem:[#allocation2 + $0x48] sm:$0xff]
    %v101 = vld [vmem:[#allocation2 + $0x50] sm:$0xff]
    %v102 = vld [vmem:[#allocation2 + $0x58] sm:$0xff]
    %v103 = vld [vmem:[#allocation2 + $0x60] sm:$0xff]
    %v104 = vld [vmem:[#allocation2 + $0x68] sm:$0xff]
    %v105 = vld [vmem:[#allocation2 + $0x70] sm:$0xff]
    %v106 = vld [vmem:[#allocation2 + $0x78] sm:$0xff]
    %v107 = vld [vmem:[#allocation2 + $0x80] sm:$0xff]
    %v108 = vld [vmem:[#allocation2 + $0x88] sm:$0xff]
    %v109 = vld [vmem:[#allocation2 + $0x90] sm:$0xff]
    %v110 = vld [vmem:[#allocation2 + $0x98] sm:$0xff]
    %v111 = vld [vmem:[#allocation2 + $0xa0] sm:$0xff]
    %v112 = vld [vmem:[#allocation2 + $0xa8] sm:$0xff]
    %v113 = vld [vmem:[#allocation2 + $0xb0] sm:$0xff]
    %v114 = vld [vmem:[#allocation2 + $0xb8] sm:$0xff]
    %v115 = vld [vmem:[#allocation2 + $0xc0] sm:$0xff]
    %v116 = vld [vmem:[#allocation2 + $0xc8] sm:$0xff]
    %v117 = vld [vmem:[#allocation2 + $0xd0] sm:$0xff]
    %v118 = vld [vmem:[#allocation2 + $0xd8] sm:$0xff]
    %v119 = vld [vmem:[#allocation2 + $0xe0] sm:$0xff]
    %v120 = vld [vmem:[#allocation2 + $0xe8] sm:$0xff]
    %v121 = vld [vmem:[#allocation2 + $0xf0] sm:$0xff]
    %v122 = vld [vmem:[#allocation2 + $0xf8] sm:$0xff]
    %v123 = vld [vmem:[#allocation2 + $0x100] sm:$0xff]
    %v124 = vld [vmem:[#allocation2 + $0x108] sm:$0xff]
    %v125 = vld [vmem:[#allocation2 + $0x110] sm:$0xff]
    %v126 = vld [vmem:[#allocation2 + $0x118] sm:$0xff]
    %v127 = vld [vmem:[#allocation2 + $0x120] sm:$0xff]
    %v128 = vld [vmem:[#allocation2 + $0x128] sm:$0xff]
    %v129 = vld [vmem:[#allocation2 + $0x130] sm:$0xff]
    %v130 = vld [vmem:[#allocation2 + $0x138] sm:$0xff]
    %v131 = vld [vmem:[#allocation2 + $0x140] sm:$0xff]
    %v132 = vld [vmem:[#allocation2 + $0x148] sm:$0xff]
    %v133 = vld [vmem:[#allocation2 + $0x150] sm:$0xff]
    %v134 = vld [vmem:[#allocation2 + $0x158] sm:$0xff]
    %v135 = vld [vmem:[#allocation2 + $0x160] sm:$0xff]
    %v136 = vld [vmem:[#allocation2 + $0x168] sm:$0xff]
    %v137 = vld [vmem:[#allocation2 + $0x170] sm:$0xff]
    %v138 = vld [vmem:[#allocation2 + $0x178] sm:$0xff]
    %v139 = vld [vmem:[#allocation2 + $0x180] sm:$0xff]
    %v140 = vld [vmem:[#allocation2 + $0x188] sm:$0xff]
    %v141 = vld [vmem:[#allocation2 + $0x190] sm:$0xff]
    %v142 = vld [vmem:[#allocation2 + $0x198] sm:$0xff]
    %v143 = vld [vmem:[#allocation2 + $0x1a0] sm:$0xff]
    %v144 = vld [vmem:[#allocation2 + $0x1a8] sm:$0xff]
    %v145 = vld [vmem:[#allocation2 + $0x1b0] sm:$0xff]
    %v146 = vld [vmem:[#allocation2 + $0x1b8] sm:$0xff]
    %v147 = vld [vmem:[#allocation2 + $0x1c0] sm:$0xff]
    %v148 = vld [vmem:[#allocation2 + $0x1c8] sm:$0xff]
    %v149 = vld [vmem:[#allocation2 + $0x1d0] sm:$0xff]
    %v150 = vld [vmem:[#allocation2 + $0x1d8] sm:$0xff]
    %v151 = vld [vmem:[#allocation2 + $0x1e0] sm:$0xff]
    %v152 = vld [vmem:[#allocation2 + $0x1e8] sm:$0xff]
    %v153 = vld [vmem:[#allocation2 + $0x1f0] sm:$0xff]
    %v154 = vld [vmem:[#allocation2 + $0x1f8] sm:$0xff]
    %v155 = vld [vmem:[%s3] sm:$0xff]
    %v156 = vlaneseq
    %v157 = vshrl.u32 %v156, 7
    %v158 = vsub.s32 0, %v157
    %v159 = vrot.slane %v155, %v158
    %160 = vmatprep.subr.mxu0 0.0
    %161 = vmatpush1.msra.mxu0 %v59
    %162 = vmatprep.subr.mxu0 0.0
    %163 = vmatpush1.msra.mxu0 %v60
    %164 = vmatprep.subr.mxu0 0.0
    %165 = vmatpush1.msra.mxu0 %v61
    %166 = vmatprep.subr.mxu0 0.0
    %167 = vmatpush1.msra.mxu0 %v62
    %168 = vmatprep.subr.mxu0 0.0
    %169 = vmatpush1.msra.mxu0 %v63
    %170 = vmatprep.subr.mxu0 0.0
    %171 = vmatpush1.msra.mxu0 %v64
    %172 = vmatprep.subr.mxu0 0.0
    %173 = vmatpush1.msra.mxu0 %v65
    %174 = vmatprep.subr.mxu0 0.0
    %175 = vmatpush1.msra.mxu0 %v66
    %176 = vmatprep.subr.mxu0 0.0
    %177 = vmatpush1.msra.mxu0 %v67
    %178 = vmatprep.subr.mxu0 0.0
    %179 = vmatpush1.msra.mxu0 %v68
    %180 = vmatprep.subr.mxu0 0.0
    %181 = vmatpush1.msra.mxu0 %v69
    %182 = vmatprep.subr.mxu0 0.0
    %183 = vmatpush1.msra.mxu0 %v70
    %184 = vmatprep.subr.mxu0 0.0
    %185 = vmatpush1.msra.mxu0 %v71
    %186 = vmatprep.subr.mxu0 0.0
    %187 = vmatpush1.msra.mxu0 %v72
    %188 = vmatprep.subr.mxu0 0.0
    %189 = vmatpush1.msra.mxu0 %v73
    %190 = vmatprep.subr.mxu0 0.0
    %191 = vmatpush1.msra.mxu0 %v74
    %192 = vmatprep.subr.mxu0 0.0
    %193 = vmatpush1.msra.mxu0 0.0
    %194 = vmatprep.subr.mxu0 0.0
    %195 = vmatpush1.msra.mxu0 0.0
    %196 = vmatprep.subr.mxu0 0.0
    %197 = vmatpush1.msra.mxu0 0.0
    %198 = vmatprep.subr.mxu0 0.0
    %199 = vmatpush1.msra.mxu0 0.0
    %200 = vmatprep.subr.mxu0 0.0
    %201 = vmatpush1.msra.mxu0 0.0
    %202 = vmatprep.subr.mxu0 0.0
    %203 = vmatpush1.msra.mxu0 0.0
    %204 = vmatprep.subr.mxu0 0.0
    %205 = vmatpush1.msra.mxu0 0.0
    %206 = vmatprep.subr.mxu0 0.0
    %207 = vmatpush1.msra.mxu0 0.0
    %208 = vmatprep.subr.mxu0 0.0
    %209 = vmatpush1.msra.mxu0 0.0
    %210 = vmatprep.subr.mxu0 0.0
    %211 = vmatpush1.msra.mxu0 0.0
    %212 = vmatprep.subr.mxu0 0.0
    %213 = vmatpush1.msra.mxu0 0.0
    %214 = vmatprep.subr.mxu0 0.0
    %215 = vmatpush1.msra.mxu0 0.0
    %216 = vmatprep.subr.mxu0 0.0
    %217 = vmatpush1.msra.mxu0 0.0
    %218 = vmatprep.subr.mxu0 0.0
    %219 = vmatpush1.msra.mxu0 0.0
    %220 = vmatprep.subr.mxu0 0.0
    %221 = vmatpush1.msra.mxu0 0.0
    %222 = vmatprep.subr.mxu0 0.0
    %223 = vmatpush1.msra.mxu0 0.0
    %224 = vmatprep.mubr.f32.mxu0 0.0
    %225 = vmatmul.mubr.f32.gmra.mrb[0].mxu0 %v91
    %v226 = vpop.f32.mrb[0].mxu0
    %v227 = vadd.f32 %v159, %v226
    %v228 = vpop.f32.mrb[0].mxu0
    %229 = vmatprep.mubr.f32.mxu0 0.0
    %230 = vmatmul.mubr.f32.gmra.mrb[0].mxu0 %v92
    %v231 = vpop.f32.mrb[0].mxu0
    %v232 = vadd.f32 %v159, %v231
    %v233 = vpop.f32.mrb[0].mxu0
    %234 = vmatprep.mubr.f32.mxu0 0.0
    %235 = vmatmul.mubr.f32.gmra.mrb[0].mxu0 %v93
    %v236 = vpop.f32.mrb[0].mxu0
    %v237 = vadd.f32 %v159, %v236
    %v238 = vpop.f32.mrb[0].mxu0
    %239 = vmatprep.mubr.f32.mxu0 0.0
    %240 = vmatmul.mubr.f32.gmra.mrb[0].mxu0 %v94
    %v241 = vpop.f32.mrb[0].mxu0
    %v242 = vadd.f32 %v159, %v241
    %v243 = vpop.f32.mrb[0].mxu0
    %244 = vmatprep.mubr.f32.mxu0 0.0
    %245 = vmatmul.mubr.f32.gmra.mrb[0].mxu0 %v95
    %v246 = vpop.f32.mrb[0].mxu0
    %v247 = vadd.f32 %v159, %v246
    %v248 = vpop.f32.mrb[0].mxu0
    %249 = vmatprep.mubr.f32.mxu0 0.0
    %250 = vmatmul.mubr.f32.gmra.mrb[0].mxu0 %v96
    %v251 = vpop.f32.mrb[0].mxu0
    %v252 = vadd.f32 %v159, %v251
    %v253 = vpop.f32.mrb[0].mxu0
    %254 = vmatprep.mubr.f32.mxu0 0.0
    %255 = vmatmul.mubr.f32.gmra.mrb[0].mxu0 %v97
    %v256 = vpop.f32.mrb[0].mxu0
    %v257 = vadd.f32 %v159, %v256
    %v258 = vpop.f32.mrb[0].mxu0
    %259 = vmatprep.mubr.f32.mxu0 0.0
    %260 = vmatmul.mubr.f32.gmra.mrb[0].mxu0 %v98
    %v261 = vpop.f32.mrb[0].mxu0
    %v262 = vadd.f32 %v159, %v261
    %v263 = vpop.f32.mrb[0].mxu0
    %264 = vmatprep.mubr.f32.mxu0 0.0
    %265 = vmatmul.mubr.f32.gmra.mrb[0].mxu0 %v99
    %v266 = vpop.f32.mrb[0].mxu0
    %v267 = vadd.f32 %v159, %v266
    %v268 = vpop.f32.mrb[0].mxu0
    %269 = vmatprep.mubr.f32.mxu0 0.0
    %270 = vmatmul.mubr.f32.gmra.mrb[0].mxu0 %v100
    %v271 = vpop.f32.mrb[0].mxu0
    %v272 = vadd.f32 %v159, %v271
    %v273 = vpop.f32.mrb[0].mxu0
    %274 = vmatprep.mubr.f32.mxu0 0.0
    %275 = vmatmul.mubr.f32.gmra.mrb[0].mxu0 %v101
    %v276 = vpop.f32.mrb[0].mxu0
    %v277 = vadd.f32 %v159, %v276
    %v278 = vpop.f32.mrb[0].mxu0
    %279 = vmatprep.mubr.f32.mxu0 0.0
    %280 = vmatmul.mubr.f32.gmra.mrb[0].mxu0 %v102
    %v281 = vpop.f32.mrb[0].mxu0
    %v282 = vadd.f32 %v159, %v281
    %v283 = vpop.f32.mrb[0].mxu0
    %284 = vmatprep.mubr.f32.mxu0 0.0
    %285 = vmatmul.mubr.f32.gmra.mrb[0].mxu0 %v103
    %v286 = vpop.f32.mrb[0].mxu0
    %v287 = vadd.f32 %v159, %v286
    %v288 = vpop.f32.mrb[0].mxu0
    %289 = vmatprep.mubr.f32.mxu0 0.0
    %290 = vmatmul.mubr.f32.gmra.mrb[0].mxu0 %v104
    %v291 = vpop.f32.mrb[0].mxu0
    %v292 = vadd.f32 %v159, %v291
    %v293 = vpop.f32.mrb[0].mxu0
    %294 = vmatprep.mubr.f32.mxu0 0.0
    %295 = vmatmul.mubr.f32.gmra.mrb[0].mxu0 %v105
    %v296 = vpop.f32.mrb[0].mxu0
    %v297 = vadd.f32 %v159, %v296
    %v298 = vpop.f32.mrb[0].mxu0
    %299 = vmatprep.mubr.f32.mxu0 0.0
    %300 = vmatmul.mubr.f32.gmra.mrb[0].mxu0 %v106
    %v301 = vpop.f32.mrb[0].mxu0
    %v302 = vadd.f32 %v159, %v301
    %v303 = vpop.f32.mrb[0].mxu0
    %304 = vmatprep.mubr.f32.mxu0 0.0
    %305 = vmatmul.mubr.f32.gmra.mrb[0].mxu0 %v107
    %v306 = vpop.f32.mrb[0].mxu0
    %v307 = vadd.f32 %v159, %v306
    %v308 = vpop.f32.mrb[0].mxu0
    %309 = vmatprep.mubr.f32.mxu0 0.0
    %310 = vmatmul.mubr.f32.gmra.mrb[0].mxu0 %v108
    %v311 = vpop.f32.mrb[0].mxu0
    %v312 = vadd.f32 %v159, %v311
    %v313 = vpop.f32.mrb[0].mxu0
    %314 = vmatprep.mubr.f32.mxu0 0.0
    %315 = vmatmul.mubr.f32.gmra.mrb[0].mxu0 %v109
    %v316 = vpop.f32.mrb[0].mxu0
    %v317 = vadd.f32 %v159, %v316
    %v318 = vpop.f32.mrb[0].mxu0
    %319 = vmatprep.mubr.f32.mxu0 0.0
    %320 = vmatmul.mubr.f32.gmra.mrb[0].mxu0 %v110
    %v321 = vpop.f32.mrb[0].mxu0
    %v322 = vadd.f32 %v159, %v321
    %v323 = vpop.f32.mrb[0].mxu0
    %324 = vmatprep.mubr.f32.mxu0 0.0
    %325 = vmatmul.mubr.f32.gmra.mrb[0].mxu0 %v111
    %v326 = vpop.f32.mrb[0].mxu0
    %v327 = vadd.f32 %v159, %v326
    %v328 = vpop.f32.mrb[0].mxu0
    %329 = vmatprep.mubr.f32.mxu0 0.0
    %330 = vmatmul.mubr.f32.gmra.mrb[0].mxu0 %v112
    %v331 = vpop.f32.mrb[0].mxu0
    %v332 = vadd.f32 %v159, %v331
    %v333 = vpop.f32.mrb[0].mxu0
    %334 = vmatprep.mubr.f32.mxu0 0.0
    %335 = vmatmul.mubr.f32.gmra.mrb[0].mxu0 %v113
    %v336 = vpop.f32.mrb[0].mxu0
    %v337 = vadd.f32 %v159, %v336
    %v338 = vpop.f32.mrb[0].mxu0
    %339 = vmatprep.mubr.f32.mxu0 0.0
    %340 = vmatmul.mubr.f32.gmra.mrb[0].mxu0 %v114
    %v341 = vpop.f32.mrb[0].mxu0
    %v342 = vadd.f32 %v159, %v341
    %v343 = vpop.f32.mrb[0].mxu0
    %344 = vmatprep.mubr.f32.mxu0 0.0
    %345 = vmatmul.mubr.f32.gmra.mrb[0].mxu0 %v115
    %v346 = vpop.f32.mrb[0].mxu0
    %v347 = vadd.f32 %v159, %v346
    %v348 = vpop.f32.mrb[0].mxu0
    %349 = vmatprep.mubr.f32.mxu0 0.0
    %350 = vmatmul.mubr.f32.gmra.mrb[0].mxu0 %v116
    %v351 = vpop.f32.mrb[0].mxu0
    %v352 = vadd.f32 %v159, %v351
    %v353 = vpop.f32.mrb[0].mxu0
    %354 = vmatprep.mubr.f32.mxu0 0.0
    %355 = vmatmul.mubr.f32.gmra.mrb[0].mxu0 %v117
    %v356 = vpop.f32.mrb[0].mxu0
    %v357 = vadd.f32 %v159, %v356
    %v358 = vpop.f32.mrb[0].mxu0
    %359 = vmatprep.mubr.f32.mxu0 0.0
    %360 = vmatmul.mubr.f32.gmra.mrb[0].mxu0 %v118
    %v361 = vpop.f32.mrb[0].mxu0
    %v362 = vadd.f32 %v159, %v361
    %v363 = vpop.f32.mrb[0].mxu0
    %364 = vmatprep.mubr.f32.mxu0 0.0
    %365 = vmatmul.mubr.f32.gmra.mrb[0].mxu0 %v119
    %v366 = vpop.f32.mrb[0].mxu0
    %v367 = vadd.f32 %v159, %v366
    %v368 = vpop.f32.mrb[0].mxu0
    %369 = vmatprep.mubr.f32.mxu0 0.0
    %370 = vmatmul.mubr.f32.gmra.mrb[0].mxu0 %v120
    %v371 = vpop.f32.mrb[0].mxu0
    %v372 = vadd.f32 %v159, %v371
    %v373 = vpop.f32.mrb[0].mxu0
    %374 = vmatprep.mubr.f32.mxu0 0.0
    %375 = vmatmul.mubr.f32.gmra.mrb[0].mxu0 %v121
    %v376 = vpop.f32.mrb[0].mxu0
    %v377 = vadd.f32 %v159, %v376
    %v378 = vpop.f32.mrb[0].mxu0
    %379 = vmatprep.mubr.f32.mxu0 0.0
    %380 = vmatmul.mubr.f32.gmra.mrb[0].mxu0 %v122
    %v381 = vpop.f32.mrb[0].mxu0
    %v382 = vadd.f32 %v159, %v381
    %v383 = vpop.f32.mrb[0].mxu0
    %384 = vmatprep.mubr.f32.mxu0 0.0
    %385 = vmatmul.mubr.f32.gmra.mrb[0].mxu0 %v123
    %v386 = vpop.f32.mrb[0].mxu0
    %v387 = vadd.f32 %v159, %v386
    %v388 = vpop.f32.mrb[0].mxu0
    %389 = vmatprep.mubr.f32.mxu0 0.0
    %390 = vmatmul.mubr.f32.gmra.mrb[0].mxu0 %v124
    %v391 = vpop.f32.mrb[0].mxu0
    %v392 = vadd.f32 %v159, %v391
    %v393 = vpop.f32.mrb[0].mxu0
    %394 = vmatprep.mubr.f32.mxu0 0.0
    %395 = vmatmul.mubr.f32.gmra.mrb[0].mxu0 %v125
    %v396 = vpop.f32.mrb[0].mxu0
    %v397 = vadd.f32 %v159, %v396
    %v398 = vpop.f32.mrb[0].mxu0
    %399 = vmatprep.mubr.f32.mxu0 0.0
    %400 = vmatmul.mubr.f32.gmra.mrb[0].mxu0 %v126
    %v401 = vpop.f32.mrb[0].mxu0
    %v402 = vadd.f32 %v159, %v401
    %v403 = vpop.f32.mrb[0].mxu0
    %404 = vmatprep.mubr.f32.mxu0 0.0
    %405 = vmatmul.mubr.f32.gmra.mrb[0].mxu0 %v127
    %v406 = vpop.f32.mrb[0].mxu0
    %v407 = vadd.f32 %v159, %v406
    %v408 = vpop.f32.mrb[0].mxu0
    %409 = vmatprep.mubr.f32.mxu0 0.0
    %410 = vmatmul.mubr.f32.gmra.mrb[0].mxu0 %v128
    %v411 = vpop.f32.mrb[0].mxu0
    %v412 = vadd.f32 %v159, %v411
    %v413 = vpop.f32.mrb[0].mxu0
    %414 = vmatprep.mubr.f32.mxu0 0.0
    %415 = vmatmul.mubr.f32.gmra.mrb[0].mxu0 %v129
    %v416 = vpop.f32.mrb[0].mxu0
    %v417 = vadd.f32 %v159, %v416
    %v418 = vpop.f32.mrb[0].mxu0
    %419 = vmatprep.mubr.f32.mxu0 0.0
    %420 = vmatmul.mubr.f32.gmra.mrb[0].mxu0 %v130
    %v421 = vpop.f32.mrb[0].mxu0
    %v422 = vadd.f32 %v159, %v421
    %v423 = vpop.f32.mrb[0].mxu0
    %424 = vmatprep.mubr.f32.mxu0 0.0
    %425 = vmatmul.mubr.f32.gmra.mrb[0].mxu0 %v131
    %v426 = vpop.f32.mrb[0].mxu0
    %v427 = vadd.f32 %v159, %v426
    %v428 = vpop.f32.mrb[0].mxu0
    %429 = vmatprep.mubr.f32.mxu0 0.0
    %430 = vmatmul.mubr.f32.gmra.mrb[0].mxu0 %v132
    %v431 = vpop.f32.mrb[0].mxu0
    %v432 = vadd.f32 %v159, %v431
    %v433 = vpop.f32.mrb[0].mxu0
    %434 = vmatprep.mubr.f32.mxu0 0.0
    %435 = vmatmul.mubr.f32.gmra.mrb[0].mxu0 %v133
    %v436 = vpop.f32.mrb[0].mxu0
    %v437 = vadd.f32 %v159, %v436
    %v438 = vpop.f32.mrb[0].mxu0
    %439 = vmatprep.mubr.f32.mxu0 0.0
    %440 = vmatmul.mubr.f32.gmra.mrb[0].mxu0 %v134
    %v441 = vpop.f32.mrb[0].mxu0
    %v442 = vadd.f32 %v159, %v441
    %v443 = vpop.f32.mrb[0].mxu0
    %444 = vmatprep.mubr.f32.mxu0 0.0
    %445 = vmatmul.mubr.f32.gmra.mrb[0].mxu0 %v135
    %v446 = vpop.f32.mrb[0].mxu0
    %v447 = vadd.f32 %v159, %v446
    %v448 = vpop.f32.mrb[0].mxu0
    %449 = vmatprep.mubr.f32.mxu0 0.0
    %450 = vmatmul.mubr.f32.gmra.mrb[0].mxu0 %v136
    %v451 = vpop.f32.mrb[0].mxu0
    %v452 = vadd.f32 %v159, %v451
    %v453 = vpop.f32.mrb[0].mxu0
    %454 = vmatprep.mubr.f32.mxu0 0.0
    %455 = vmatmul.mubr.f32.gmra.mrb[0].mxu0 %v137
    %v456 = vpop.f32.mrb[0].mxu0
    %v457 = vadd.f32 %v159, %v456
    %v458 = vpop.f32.mrb[0].mxu0
    %459 = vmatprep.mubr.f32.mxu0 0.0
    %460 = vmatmul.mubr.f32.gmra.mrb[0].mxu0 %v138
    %v461 = vpop.f32.mrb[0].mxu0
    %v462 = vadd.f32 %v159, %v461
    %v463 = vpop.f32.mrb[0].mxu0
    %464 = vmatprep.mubr.f32.mxu0 0.0
    %465 = vmatmul.mubr.f32.gmra.mrb[0].mxu0 %v139
    %v466 = vpop.f32.mrb[0].mxu0
    %v467 = vadd.f32 %v159, %v466
    %v468 = vpop.f32.mrb[0].mxu0
    %469 = vmatprep.mubr.f32.mxu0 0.0
    %470 = vmatmul.mubr.f32.gmra.mrb[0].mxu0 %v140
    %v471 = vpop.f32.mrb[0].mxu0
    %v472 = vadd.f32 %v159, %v471
    %v473 = vpop.f32.mrb[0].mxu0
    %474 = vmatprep.mubr.f32.mxu0 0.0
    %475 = vmatmul.mubr.f32.gmra.mrb[0].mxu0 %v141
    %v476 = vpop.f32.mrb[0].mxu0
    %v477 = vadd.f32 %v159, %v476
    %v478 = vpop.f32.mrb[0].mxu0
    %479 = vmatprep.mubr.f32.mxu0 0.0
    %480 = vmatmul.mubr.f32.gmra.mrb[0].mxu0 %v142
    %v481 = vpop.f32.mrb[0].mxu0
    %v482 = vadd.f32 %v159, %v481
    %v483 = vpop.f32.mrb[0].mxu0
    %484 = vmatprep.mubr.f32.mxu0 0.0
    %485 = vmatmul.mubr.f32.gmra.mrb[0].mxu0 %v143
    %v486 = vpop.f32.mrb[0].mxu0
    %v487 = vadd.f32 %v159, %v486
    %v488 = vpop.f32.mrb[0].mxu0
    %489 = vmatprep.mubr.f32.mxu0 0.0
    %490 = vmatmul.mubr.f32.gmra.mrb[0].mxu0 %v144
    %v491 = vpop.f32.mrb[0].mxu0
    %v492 = vadd.f32 %v159, %v491
    %v493 = vpop.f32.mrb[0].mxu0
    %494 = vmatprep.mubr.f32.mxu0 0.0
    %495 = vmatmul.mubr.f32.gmra.mrb[0].mxu0 %v145
    %v496 = vpop.f32.mrb[0].mxu0
    %v497 = vadd.f32 %v159, %v496
    %v498 = vpop.f32.mrb[0].mxu0
    %499 = vmatprep.mubr.f32.mxu0 0.0
    %500 = vmatmul.mubr.f32.gmra.mrb[0].mxu0 %v146
    %v501 = vpop.f32.mrb[0].mxu0
    %v502 = vadd.f32 %v159, %v501
    %v503 = vpop.f32.mrb[0].mxu0
    %504 = vmatprep.mubr.f32.mxu0 0.0
    %505 = vmatmul.mubr.f32.gmra.mrb[0].mxu0 %v147
    %v506 = vpop.f32.mrb[0].mxu0
    %v507 = vadd.f32 %v159, %v506
    %v508 = vpop.f32.mrb[0].mxu0
    %509 = vmatprep.mubr.f32.mxu0 0.0
    %510 = vmatmul.mubr.f32.gmra.mrb[0].mxu0 %v148
    %v511 = vpop.f32.mrb[0].mxu0
    %v512 = vadd.f32 %v159, %v511
    %v513 = vpop.f32.mrb[0].mxu0
    %514 = vmatprep.mubr.f32.mxu0 0.0
    %515 = vmatmul.mubr.f32.gmra.mrb[0].mxu0 %v149
    %v516 = vpop.f32.mrb[0].mxu0
    %v517 = vadd.f32 %v159, %v516
    %v518 = vpop.f32.mrb[0].mxu0
    %519 = vmatprep.mubr.f32.mxu0 0.0
    %520 = vmatmul.mubr.f32.gmra.mrb[0].mxu0 %v150
    %v521 = vpop.f32.mrb[0].mxu0
    %v522 = vadd.f32 %v159, %v521
    %v523 = vpop.f32.mrb[0].mxu0
    %524 = vmatprep.mubr.f32.mxu0 0.0
    %525 = vmatmul.mubr.f32.gmra.mrb[0].mxu0 %v151
    %v526 = vpop.f32.mrb[0].mxu0
    %v527 = vadd.f32 %v159, %v526
    %v528 = vpop.f32.mrb[0].mxu0
    %529 = vmatprep.mubr.f32.mxu0 0.0
    %530 = vmatmul.mubr.f32.gmra.mrb[0].mxu0 %v152
    %v531 = vpop.f32.mrb[0].mxu0
    %v532 = vadd.f32 %v159, %v531
    %v533 = vpop.f32.mrb[0].mxu0
    %534 = vmatprep.mubr.f32.mxu0 0.0
    %535 = vmatmul.mubr.f32.gmra.mrb[0].mxu0 %v153
    %v536 = vpop.f32.mrb[0].mxu0
    %v537 = vadd.f32 %v159, %v536
    %v538 = vpop.f32.mrb[0].mxu0
    %539 = vmatprep.mubr.f32.mxu0 0.0
    %540 = vmatmul.mubr.f32.gmra.mrb[0].mxu0 %v154
    %v541 = vpop.f32.mrb[0].mxu0
    %v542 = vadd.f32 %v159, %v541
    %v543 = vpop.f32.mrb[0].mxu0
    %544 = vdwg.mxu0
    %v545 = vmax.f32 %v227, 0.0
    %v546 = vmax.f32 %v232, 0.0
    %v547 = vmax.f32 %v237, 0.0
    %v548 = vmax.f32 %v242, 0.0
    %v549 = vmax.f32 %v247, 0.0
    %v550 = vmax.f32 %v252, 0.0
    %v551 = vmax.f32 %v257, 0.0
    %v552 = vmax.f32 %v262, 0.0
    %v553 = vmax.f32 %v267, 0.0
    %v554 = vmax.f32 %v272, 0.0
    %v555 = vmax.f32 %v277, 0.0
    %v556 = vmax.f32 %v282, 0.0
    %v557 = vmax.f32 %v287, 0.0
    %v558 = vmax.f32 %v292, 0.0
    %v559 = vmax.f32 %v297, 0.0
    %v560 = vmax.f32 %v302, 0.0
    %v561 = vmax.f32 %v307, 0.0
    %v562 = vmax.f32 %v312, 0.0
    %v563 = vmax.f32 %v317, 0.0
    %v564 = vmax.f32 %v322, 0.0
    %v565 = vmax.f32 %v327, 0.0
    %v566 = vmax.f32 %v332, 0.0
    %v567 = vmax.f32 %v337, 0.0
    %v568 = vmax.f32 %v342, 0.0
    %v569 = vmax.f32 %v347, 0.0
    %v570 = vmax.f32 %v352, 0.0
    %v571 = vmax.f32 %v357, 0.0
    %v572 = vmax.f32 %v362, 0.0
    %v573 = vmax.f32 %v367, 0.0
    %v574 = vmax.f32 %v372, 0.0
    %v575 = vmax.f32 %v377, 0.0
    %v576 = vmax.f32 %v382, 0.0
    %v577 = vmax.f32 %v387, 0.0
    %v578 = vmax.f32 %v392, 0.0
    %v579 = vmax.f32 %v397, 0.0
    %v580 = vmax.f32 %v402, 0.0
    %v581 = vmax.f32 %v407, 0.0
    %v582 = vmax.f32 %v412, 0.0
    %v583 = vmax.f32 %v417, 0.0
    %v584 = vmax.f32 %v422, 0.0
    %v585 = vmax.f32 %v427, 0.0
    %v586 = vmax.f32 %v432, 0.0
    %v587 = vmax.f32 %v437, 0.0
    %v588 = vmax.f32 %v442, 0.0
    %v589 = vmax.f32 %v447, 0.0
    %v590 = vmax.f32 %v452, 0.0
    %v591 = vmax.f32 %v457, 0.0
    %v592 = vmax.f32 %v462, 0.0
    %v593 = vmax.f32 %v467, 0.0
    %v594 = vmax.f32 %v472, 0.0
    %v595 = vmax.f32 %v477, 0.0
    %v596 = vmax.f32 %v482, 0.0
    %v597 = vmax.f32 %v487, 0.0
    %v598 = vmax.f32 %v492, 0.0
    %v599 = vmax.f32 %v497, 0.0
    %v600 = vmax.f32 %v502, 0.0
    %v601 = vmax.f32 %v507, 0.0
    %v602 = vmax.f32 %v512, 0.0
    %v603 = vmax.f32 %v517, 0.0
    %v604 = vmax.f32 %v522, 0.0
    %v605 = vmax.f32 %v527, 0.0
    %v606 = vmax.f32 %v532, 0.0
    %v607 = vmax.f32 %v537, 0.0
    %v608 = vmax.f32 %v542, 0.0
    %v609 = vlaneseq
    %v610 = vshrl.u32 %v609, 7
    %v611 = vsub.s32 1, %v610
    %v612 = vrot.slane %v155, %v611
    %613 = vmatprep.subr.mxu0 0.0
    %614 = vmatpush1.msra.mxu0 %v75
    %615 = vmatprep.subr.mxu0 0.0
    %616 = vmatpush1.msra.mxu0 %v76
    %617 = vmatprep.subr.mxu0 0.0
    %618 = vmatpush1.msra.mxu0 %v77
    %619 = vmatprep.subr.mxu0 0.0
    %620 = vmatpush1.msra.mxu0 %v78
    %621 = vmatprep.subr.mxu0 0.0
    %622 = vmatpush1.msra.mxu0 %v79
    %623 = vmatprep.subr.mxu0 0.0
    %624 = vmatpush1.msra.mxu0 %v80
    %625 = vmatprep.subr.mxu0 0.0
    %626 = vmatpush1.msra.mxu0 %v81
    %627 = vmatprep.subr.mxu0 0.0
    %628 = vmatpush1.msra.mxu0 %v82
    %629 = vmatprep.subr.mxu0 0.0
    %630 = vmatpush1.msra.mxu0 %v83
    %631 = vmatprep.subr.mxu0 0.0
    %632 = vmatpush1.msra.mxu0 %v84
    %633 = vmatprep.subr.mxu0 0.0
    %634 = vmatpush1.msra.mxu0 %v85
    %635 = vmatprep.subr.mxu0 0.0
    %636 = vmatpush1.msra.mxu0 %v86
    %637 = vmatprep.subr.mxu0 0.0
    %638 = vmatpush1.msra.mxu0 %v87
    %639 = vmatprep.subr.mxu0 0.0
    %640 = vmatpush1.msra.mxu0 %v88
    %641 = vmatprep.subr.mxu0 0.0
    %642 = vmatpush1.msra.mxu0 %v89
    %643 = vmatprep.subr.mxu0 0.0
    %644 = vmatpush1.msra.mxu0 %v90
    %645 = vmatprep.subr.mxu0 0.0
    %646 = vmatpush1.msra.mxu0 0.0
    %647 = vmatprep.subr.mxu0 0.0
    %648 = vmatpush1.msra.mxu0 0.0
    %649 = vmatprep.subr.mxu0 0.0
    %650 = vmatpush1.msra.mxu0 0.0
    %651 = vmatprep.subr.mxu0 0.0
    %652 = vmatpush1.msra.mxu0 0.0
    %653 = vmatprep.subr.mxu0 0.0
    %654 = vmatpush1.msra.mxu0 0.0
    %655 = vmatprep.subr.mxu0 0.0
    %656 = vmatpush1.msra.mxu0 0.0
    %657 = vmatprep.subr.mxu0 0.0
    %658 = vmatpush1.msra.mxu0 0.0
    %659 = vmatprep.subr.mxu0 0.0
    %660 = vmatpush1.msra.mxu0 0.0
    %661 = vmatprep.subr.mxu0 0.0
    %662 = vmatpush1.msra.mxu0 0.0
    %663 = vmatprep.subr.mxu0 0.0
    %664 = vmatpush1.msra.mxu0 0.0
    %665 = vmatprep.subr.mxu0 0.0
    %666 = vmatpush1.msra.mxu0 0.0
    %667 = vmatprep.subr.mxu0 0.0
    %668 = vmatpush1.msra.mxu0 0.0
    %669 = vmatprep.subr.mxu0 0.0
    %670 = vmatpush1.msra.mxu0 0.0
    %671 = vmatprep.subr.mxu0 0.0
    %672 = vmatpush1.msra.mxu0 0.0
    %673 = vmatprep.subr.mxu0 0.0
    %674 = vmatpush1.msra.mxu0 0.0
    %675 = vmatprep.subr.mxu0 0.0
    %676 = vmatpush1.msra.mxu0 0.0
    %677 = vmatprep.mubr.f32.mxu0 0.0
    %678 = vmatmul.mubr.f32.gmra.mrb[0].mxu0 %v545
    %v679 = vpop.f32.mrb[0].mxu0
    %v680 = vadd.f32 %v612, %v679
    %v681 = vpop.f32.mrb[0].mxu0
    %682 = vmatprep.mubr.f32.mxu0 0.0
    %683 = vmatmul.mubr.f32.gmra.mrb[0].mxu0 %v546
    %v684 = vpop.f32.mrb[0].mxu0
    %v685 = vadd.f32 %v612, %v684
    %v686 = vpop.f32.mrb[0].mxu0
    %687 = vmatprep.mubr.f32.mxu0 0.0
    %688 = vmatmul.mubr.f32.gmra.mrb[0].mxu0 %v547
    %v689 = vpop.f32.mrb[0].mxu0
    %v690 = vadd.f32 %v612, %v689
    %v691 = vpop.f32.mrb[0].mxu0
    %692 = vmatprep.mubr.f32.mxu0 0.0
    %693 = vmatmul.mubr.f32.gmra.mrb[0].mxu0 %v548
    %v694 = vpop.f32.mrb[0].mxu0
    %v695 = vadd.f32 %v612, %v694
    %v696 = vpop.f32.mrb[0].mxu0
    %697 = vmatprep.mubr.f32.mxu0 0.0
    %698 = vmatmul.mubr.f32.gmra.mrb[0].mxu0 %v549
    %v699 = vpop.f32.mrb[0].mxu0
    %v700 = vadd.f32 %v612, %v699
    %v701 = vpop.f32.mrb[0].mxu0
    %702 = vmatprep.mubr.f32.mxu0 0.0
    %703 = vmatmul.mubr.f32.gmra.mrb[0].mxu0 %v550
    %v704 = vpop.f32.mrb[0].mxu0
    %v705 = vadd.f32 %v612, %v704
    %v706 = vpop.f32.mrb[0].mxu0
    %707 = vmatprep.mubr.f32.mxu0 0.0
    %708 = vmatmul.mubr.f32.gmra.mrb[0].mxu0 %v551
    %v709 = vpop.f32.mrb[0].mxu0
    %v710 = vadd.f32 %v612, %v709
    %v711 = vpop.f32.mrb[0].mxu0
    %712 = vmatprep.mubr.f32.mxu0 0.0
    %713 = vmatmul.mubr.f32.gmra.mrb[0].mxu0 %v552
    %v714 = vpop.f32.mrb[0].mxu0
    %v715 = vadd.f32 %v612, %v714
    %v716 = vpop.f32.mrb[0].mxu0
    %717 = vmatprep.mubr.f32.mxu0 0.0
    %718 = vmatmul.mubr.f32.gmra.mrb[0].mxu0 %v553
    %v719 = vpop.f32.mrb[0].mxu0
    %v720 = vadd.f32 %v612, %v719
    %v721 = vpop.f32.mrb[0].mxu0
    %722 = vmatprep.mubr.f32.mxu0 0.0
    %723 = vmatmul.mubr.f32.gmra.mrb[0].mxu0 %v554
    %v724 = vpop.f32.mrb[0].mxu0
    %v725 = vadd.f32 %v612, %v724
    %v726 = vpop.f32.mrb[0].mxu0
    %727 = vmatprep.mubr.f32.mxu0 0.0
    %728 = vmatmul.mubr.f32.gmra.mrb[0].mxu0 %v555
    %v729 = vpop.f32.mrb[0].mxu0
    %v730 = vadd.f32 %v612, %v729
    %v731 = vpop.f32.mrb[0].mxu0
    %732 = vmatprep.mubr.f32.mxu0 0.0
    %733 = vmatmul.mubr.f32.gmra.mrb[0].mxu0 %v556
    %v734 = vpop.f32.mrb[0].mxu0
    %v735 = vadd.f32 %v612, %v734
    %v736 = vpop.f32.mrb[0].mxu0
    %737 = vmatprep.mubr.f32.mxu0 0.0
    %738 = vmatmul.mubr.f32.gmra.mrb[0].mxu0 %v557
    %v739 = vpop.f32.mrb[0].mxu0
    %v740 = vadd.f32 %v612, %v739
    %v741 = vpop.f32.mrb[0].mxu0
    %742 = vmatprep.mubr.f32.mxu0 0.0
    %743 = vmatmul.mubr.f32.gmra.mrb[0].mxu0 %v558
    %v744 = vpop.f32.mrb[0].mxu0
    %v745 = vadd.f32 %v612, %v744
    %v746 = vpop.f32.mrb[0].mxu0
    %747 = vmatprep.mubr.f32.mxu0 0.0
    %748 = vmatmul.mubr.f32.gmra.mrb[0].mxu0 %v559
    %v749 = vpop.f32.mrb[0].mxu0
    %v750 = vadd.f32 %v612, %v749
    %v751 = vpop.f32.mrb[0].mxu0
    %752 = vmatprep.mubr.f32.mxu0 0.0
    %753 = vmatmul.mubr.f32.gmra.mrb[0].mxu0 %v560
    %v754 = vpop.f32.mrb[0].mxu0
    %v755 = vadd.f32 %v612, %v754
    %v756 = vpop.f32.mrb[0].mxu0
    %757 = vmatprep.mubr.f32.mxu0 0.0
    %758 = vmatmul.mubr.f32.gmra.mrb[0].mxu0 %v561
    %v759 = vpop.f32.mrb[0].mxu0
    %v760 = vadd.f32 %v612, %v759
    %v761 = vpop.f32.mrb[0].mxu0
    %762 = vmatprep.mubr.f32.mxu0 0.0
    %763 = vmatmul.mubr.f32.gmra.mrb[0].mxu0 %v562
    %v764 = vpop.f32.mrb[0].mxu0
    %v765 = vadd.f32 %v612, %v764
    %v766 = vpop.f32.mrb[0].mxu0
    %767 = vmatprep.mubr.f32.mxu0 0.0
    %768 = vmatmul.mubr.f32.gmra.mrb[0].mxu0 %v563
    %v769 = vpop.f32.mrb[0].mxu0
    %v770 = vadd.f32 %v612, %v769
    %v771 = vpop.f32.mrb[0].mxu0
    %772 = vmatprep.mubr.f32.mxu0 0.0
    %773 = vmatmul.mubr.f32.gmra.mrb[0].mxu0 %v564
    %v774 = vpop.f32.mrb[0].mxu0
    %v775 = vadd.f32 %v612, %v774
    %v776 = vpop.f32.mrb[0].mxu0
    %777 = vmatprep.mubr.f32.mxu0 0.0
    %778 = vmatmul.mubr.f32.gmra.mrb[0].mxu0 %v565
    %v779 = vpop.f32.mrb[0].mxu0
    %v780 = vadd.f32 %v612, %v779
    %v781 = vpop.f32.mrb[0].mxu0
    %782 = vmatprep.mubr.f32.mxu0 0.0
    %783 = vmatmul.mubr.f32.gmra.mrb[0].mxu0 %v566
    %v784 = vpop.f32.mrb[0].mxu0
    %v785 = vadd.f32 %v612, %v784
    %v786 = vpop.f32.mrb[0].mxu0
    %787 = vmatprep.mubr.f32.mxu0 0.0
    %788 = vmatmul.mubr.f32.gmra.mrb[0].mxu0 %v567
    %v789 = vpop.f32.mrb[0].mxu0
    %v790 = vadd.f32 %v612, %v789
    %v791 = vpop.f32.mrb[0].mxu0
    %792 = vmatprep.mubr.f32.mxu0 0.0
    %793 = vmatmul.mubr.f32.gmra.mrb[0].mxu0 %v568
    %v794 = vpop.f32.mrb[0].mxu0
    %v795 = vadd.f32 %v612, %v794
    %v796 = vpop.f32.mrb[0].mxu0
    %797 = vmatprep.mubr.f32.mxu0 0.0
    %798 = vmatmul.mubr.f32.gmra.mrb[0].mxu0 %v569
    %v799 = vpop.f32.mrb[0].mxu0
    %v800 = vadd.f32 %v612, %v799
    %v801 = vpop.f32.mrb[0].mxu0
    %802 = vmatprep.mubr.f32.mxu0 0.0
    %803 = vmatmul.mubr.f32.gmra.mrb[0].mxu0 %v570
    %v804 = vpop.f32.mrb[0].mxu0
    %v805 = vadd.f32 %v612, %v804
    %v806 = vpop.f32.mrb[0].mxu0
    %807 = vmatprep.mubr.f32.mxu0 0.0
    %808 = vmatmul.mubr.f32.gmra.mrb[0].mxu0 %v571
    %v809 = vpop.f32.mrb[0].mxu0
    %v810 = vadd.f32 %v612, %v809
    %v811 = vpop.f32.mrb[0].mxu0
    %812 = vmatprep.mubr.f32.mxu0 0.0
    %813 = vmatmul.mubr.f32.gmra.mrb[0].mxu0 %v572
    %v814 = vpop.f32.mrb[0].mxu0
    %v815 = vadd.f32 %v612, %v814
    %v816 = vpop.f32.mrb[0].mxu0
    %817 = vmatprep.mubr.f32.mxu0 0.0
    %818 = vmatmul.mubr.f32.gmra.mrb[0].mxu0 %v573
    %v819 = vpop.f32.mrb[0].mxu0
    %v820 = vadd.f32 %v612, %v819
    %v821 = vpop.f32.mrb[0].mxu0
    %822 = vmatprep.mubr.f32.mxu0 0.0
    %823 = vmatmul.mubr.f32.gmra.mrb[0].mxu0 %v574
    %v824 = vpop.f32.mrb[0].mxu0
    %v825 = vadd.f32 %v612, %v824
    %v826 = vpop.f32.mrb[0].mxu0
    %827 = vmatprep.mubr.f32.mxu0 0.0
    %828 = vmatmul.mubr.f32.gmra.mrb[0].mxu0 %v575
    %v829 = vpop.f32.mrb[0].mxu0
    %v830 = vadd.f32 %v612, %v829
    %v831 = vpop.f32.mrb[0].mxu0
    %832 = vmatprep.mubr.f32.mxu0 0.0
    %833 = vmatmul.mubr.f32.gmra.mrb[0].mxu0 %v576
    %v834 = vpop.f32.mrb[0].mxu0
    %v835 = vadd.f32 %v612, %v834
    %v836 = vpop.f32.mrb[0].mxu0
    %837 = vmatprep.mubr.f32.mxu0 0.0
    %838 = vmatmul.mubr.f32.gmra.mrb[0].mxu0 %v577
    %v839 = vpop.f32.mrb[0].mxu0
    %v840 = vadd.f32 %v612, %v839
    %v841 = vpop.f32.mrb[0].mxu0
    %842 = vmatprep.mubr.f32.mxu0 0.0
    %843 = vmatmul.mubr.f32.gmra.mrb[0].mxu0 %v578
    %v844 = vpop.f32.mrb[0].mxu0
    %v845 = vadd.f32 %v612, %v844
    %v846 = vpop.f32.mrb[0].mxu0
    %847 = vmatprep.mubr.f32.mxu0 0.0
    %848 = vmatmul.mubr.f32.gmra.mrb[0].mxu0 %v579
    %v849 = vpop.f32.mrb[0].mxu0
    %v850 = vadd.f32 %v612, %v849
    %v851 = vpop.f32.mrb[0].mxu0
    %852 = vmatprep.mubr.f32.mxu0 0.0
    %853 = vmatmul.mubr.f32.gmra.mrb[0].mxu0 %v580
    %v854 = vpop.f32.mrb[0].mxu0
    %v855 = vadd.f32 %v612, %v854
    %v856 = vpop.f32.mrb[0].mxu0
    %857 = vmatprep.mubr.f32.mxu0 0.0
    %858 = vmatmul.mubr.f32.gmra.mrb[0].mxu0 %v581
    %v859 = vpop.f32.mrb[0].mxu0
    %v860 = vadd.f32 %v612, %v859
    %v861 = vpop.f32.mrb[0].mxu0
    %862 = vmatprep.mubr.f32.mxu0 0.0
    %863 = vmatmul.mubr.f32.gmra.mrb[0].mxu0 %v582
    %v864 = vpop.f32.mrb[0].mxu0
    %v865 = vadd.f32 %v612, %v864
    %v866 = vpop.f32.mrb[0].mxu0
    %867 = vmatprep.mubr.f32.mxu0 0.0
    %868 = vmatmul.mubr.f32.gmra.mrb[0].mxu0 %v583
    %v869 = vpop.f32.mrb[0].mxu0
    %v870 = vadd.f32 %v612, %v869
    %v871 = vpop.f32.mrb[0].mxu0
    %872 = vmatprep.mubr.f32.mxu0 0.0
    %873 = vmatmul.mubr.f32.gmra.mrb[0].mxu0 %v584
    %v874 = vpop.f32.mrb[0].mxu0
    %v875 = vadd.f32 %v612, %v874
    %v876 = vpop.f32.mrb[0].mxu0
    %877 = vmatprep.mubr.f32.mxu0 0.0
    %878 = vmatmul.mubr.f32.gmra.mrb[0].mxu0 %v585
    %v879 = vpop.f32.mrb[0].mxu0
    %v880 = vadd.f32 %v612, %v879
    %v881 = vpop.f32.mrb[0].mxu0
    %882 = vmatprep.mubr.f32.mxu0 0.0
    %883 = vmatmul.mubr.f32.gmra.mrb[0].mxu0 %v586
    %v884 = vpop.f32.mrb[0].mxu0
    %v885 = vadd.f32 %v612, %v884
    %v886 = vpop.f32.mrb[0].mxu0
    %887 = vmatprep.mubr.f32.mxu0 0.0
    %888 = vmatmul.mubr.f32.gmra.mrb[0].mxu0 %v587
    %v889 = vpop.f32.mrb[0].mxu0
    %v890 = vadd.f32 %v612, %v889
    %v891 = vpop.f32.mrb[0].mxu0
    %892 = vmatprep.mubr.f32.mxu0 0.0
    %893 = vmatmul.mubr.f32.gmra.mrb[0].mxu0 %v588
    %v894 = vpop.f32.mrb[0].mxu0
    %v895 = vadd.f32 %v612, %v894
    %v896 = vpop.f32.mrb[0].mxu0
    %897 = vmatprep.mubr.f32.mxu0 0.0
    %898 = vmatmul.mubr.f32.gmra.mrb[0].mxu0 %v589
    %v899 = vpop.f32.mrb[0].mxu0
    %v900 = vadd.f32 %v612, %v899
    %v901 = vpop.f32.mrb[0].mxu0
    %902 = vmatprep.mubr.f32.mxu0 0.0
    %903 = vmatmul.mubr.f32.gmra.mrb[0].mxu0 %v590
    %v904 = vpop.f32.mrb[0].mxu0
    %v905 = vadd.f32 %v612, %v904
    %v906 = vpop.f32.mrb[0].mxu0
    %907 = vmatprep.mubr.f32.mxu0 0.0
    %908 = vmatmul.mubr.f32.gmra.mrb[0].mxu0 %v591
    %v909 = vpop.f32.mrb[0].mxu0
    %v910 = vadd.f32 %v612, %v909
    %v911 = vpop.f32.mrb[0].mxu0
    %912 = vmatprep.mubr.f32.mxu0 0.0
    %913 = vmatmul.mubr.f32.gmra.mrb[0].mxu0 %v592
    %v914 = vpop.f32.mrb[0].mxu0
    %v915 = vadd.f32 %v612, %v914
    %v916 = vpop.f32.mrb[0].mxu0
    %917 = vmatprep.mubr.f32.mxu0 0.0
    %918 = vmatmul.mubr.f32.gmra.mrb[0].mxu0 %v593
    %v919 = vpop.f32.mrb[0].mxu0
    %v920 = vadd.f32 %v612, %v919
    %v921 = vpop.f32.mrb[0].mxu0
    %922 = vmatprep.mubr.f32.mxu0 0.0
    %923 = vmatmul.mubr.f32.gmra.mrb[0].mxu0 %v594
    %v924 = vpop.f32.mrb[0].mxu0
    %v925 = vadd.f32 %v612, %v924
    %v926 = vpop.f32.mrb[0].mxu0
    %927 = vmatprep.mubr.f32.mxu0 0.0
    %928 = vmatmul.mubr.f32.gmra.mrb[0].mxu0 %v595
    %v929 = vpop.f32.mrb[0].mxu0
    %v930 = vadd.f32 %v612, %v929
    %v931 = vpop.f32.mrb[0].mxu0
    %932 = vmatprep.mubr.f32.mxu0 0.0
    %933 = vmatmul.mubr.f32.gmra.mrb[0].mxu0 %v596
    %v934 = vpop.f32.mrb[0].mxu0
    %v935 = vadd.f32 %v612, %v934
    %v936 = vpop.f32.mrb[0].mxu0
    %937 = vmatprep.mubr.f32.mxu0 0.0
    %938 = vmatmul.mubr.f32.gmra.mrb[0].mxu0 %v597
    %v939 = vpop.f32.mrb[0].mxu0
    %v940 = vadd.f32 %v612, %v939
    %v941 = vpop.f32.mrb[0].mxu0
    %942 = vmatprep.mubr.f32.mxu0 0.0
    %943 = vmatmul.mubr.f32.gmra.mrb[0].mxu0 %v598
    %v944 = vpop.f32.mrb[0].mxu0
    %v945 = vadd.f32 %v612, %v944
    %v946 = vpop.f32.mrb[0].mxu0
    %947 = vmatprep.mubr.f32.mxu0 0.0
    %948 = vmatmul.mubr.f32.gmra.mrb[0].mxu0 %v599
    %v949 = vpop.f32.mrb[0].mxu0
    %v950 = vadd.f32 %v612, %v949
    %v951 = vpop.f32.mrb[0].mxu0
    %952 = vmatprep.mubr.f32.mxu0 0.0
    %953 = vmatmul.mubr.f32.gmra.mrb[0].mxu0 %v600
    %v954 = vpop.f32.mrb[0].mxu0
    %v955 = vadd.f32 %v612, %v954
    %v956 = vpop.f32.mrb[0].mxu0
    %957 = vmatprep.mubr.f32.mxu0 0.0
    %958 = vmatmul.mubr.f32.gmra.mrb[0].mxu0 %v601
    %v959 = vpop.f32.mrb[0].mxu0
    %v960 = vadd.f32 %v612, %v959
    %v961 = vpop.f32.mrb[0].mxu0
    %962 = vmatprep.mubr.f32.mxu0 0.0
    %963 = vmatmul.mubr.f32.gmra.mrb[0].mxu0 %v602
    %v964 = vpop.f32.mrb[0].mxu0
    %v965 = vadd.f32 %v612, %v964
    %v966 = vpop.f32.mrb[0].mxu0
    %967 = vmatprep.mubr.f32.mxu0 0.0
    %968 = vmatmul.mubr.f32.gmra.mrb[0].mxu0 %v603
    %v969 = vpop.f32.mrb[0].mxu0
    %v970 = vadd.f32 %v612, %v969
    %v971 = vpop.f32.mrb[0].mxu0
    %972 = vmatprep.mubr.f32.mxu0 0.0
    %973 = vmatmul.mubr.f32.gmra.mrb[0].mxu0 %v604
    %v974 = vpop.f32.mrb[0].mxu0
    %v975 = vadd.f32 %v612, %v974
    %v976 = vpop.f32.mrb[0].mxu0
    %977 = vmatprep.mubr.f32.mxu0 0.0
    %978 = vmatmul.mubr.f32.gmra.mrb[0].mxu0 %v605
    %v979 = vpop.f32.mrb[0].mxu0
    %v980 = vadd.f32 %v612, %v979
    %v981 = vpop.f32.mrb[0].mxu0
    %982 = vmatprep.mubr.f32.mxu0 0.0
    %983 = vmatmul.mubr.f32.gmra.mrb[0].mxu0 %v606
    %v984 = vpop.f32.mrb[0].mxu0
    %v985 = vadd.f32 %v612, %v984
    %v986 = vpop.f32.mrb[0].mxu0
    %987 = vmatprep.mubr.f32.mxu0 0.0
    %988 = vmatmul.mubr.f32.gmra.mrb[0].mxu0 %v607
    %v989 = vpop.f32.mrb[0].mxu0
    %v990 = vadd.f32 %v612, %v989
    %v991 = vpop.f32.mrb[0].mxu0
    %992 = vmatprep.mubr.f32.mxu0 0.0
    %993 = vmatmul.mubr.f32.gmra.mrb[0].mxu0 %v608
    %v994 = vpop.f32.mrb[0].mxu0
    %v995 = vadd.f32 %v612, %v994
    %v996 = vpop.f32.mrb[0].mxu0
    %997 = vdwg.mxu0
    %v998 = vmax.f32 %v680, 0.0
    %v999 = vmax.f32 %v685, 0.0
    %v1000 = vmax.f32 %v690, 0.0
    %v1001 = vmax.f32 %v695, 0.0
    %v1002 = vmax.f32 %v700, 0.0
    %v1003 = vmax.f32 %v705, 0.0
    %v1004 = vmax.f32 %v710, 0.0
    %v1005 = vmax.f32 %v715, 0.0
    %v1006 = vmax.f32 %v720, 0.0
    %v1007 = vmax.f32 %v725, 0.0
    %v1008 = vmax.f32 %v730, 0.0
    %v1009 = vmax.f32 %v735, 0.0
    %v1010 = vmax.f32 %v740, 0.0
    %v1011 = vmax.f32 %v745, 0.0
    %v1012 = vmax.f32 %v750, 0.0
    %v1013 = vmax.f32 %v755, 0.0
    %v1014 = vmax.f32 %v760, 0.0
    %v1015 = vmax.f32 %v765, 0.0
    %v1016 = vmax.f32 %v770, 0.0
    %v1017 = vmax.f32 %v775, 0.0
    %v1018 = vmax.f32 %v780, 0.0
    %v1019 = vmax.f32 %v785, 0.0
    %v1020 = vmax.f32 %v790, 0.0
    %v1021 = vmax.f32 %v795, 0.0
    %v1022 = vmax.f32 %v800, 0.0
    %v1023 = vmax.f32 %v805, 0.0
    %v1024 = vmax.f32 %v810, 0.0
    %v1025 = vmax.f32 %v815, 0.0
    %v1026 = vmax.f32 %v820, 0.0
    %v1027 = vmax.f32 %v825, 0.0
    %v1028 = vmax.f32 %v830, 0.0
    %v1029 = vmax.f32 %v835, 0.0
    %v1030 = vmax.f32 %v840, 0.0
    %v1031 = vmax.f32 %v845, 0.0
    %v1032 = vmax.f32 %v850, 0.0
    %v1033 = vmax.f32 %v855, 0.0
    %v1034 = vmax.f32 %v860, 0.0
    %v1035 = vmax.f32 %v865, 0.0
    %v1036 = vmax.f32 %v870, 0.0
    %v1037 = vmax.f32 %v875, 0.0
    %v1038 = vmax.f32 %v880, 0.0
    %v1039 = vmax.f32 %v885, 0.0
    %v1040 = vmax.f32 %v890, 0.0
    %v1041 = vmax.f32 %v895, 0.0
    %v1042 = vmax.f32 %v900, 0.0
    %v1043 = vmax.f32 %v905, 0.0
    %v1044 = vmax.f32 %v910, 0.0
    %v1045 = vmax.f32 %v915, 0.0
    %v1046 = vmax.f32 %v920, 0.0
    %v1047 = vmax.f32 %v925, 0.0
    %v1048 = vmax.f32 %v930, 0.0
    %v1049 = vmax.f32 %v935, 0.0
    %v1050 = vmax.f32 %v940, 0.0
    %v1051 = vmax.f32 %v945, 0.0
    %v1052 = vmax.f32 %v950, 0.0
    %v1053 = vmax.f32 %v955, 0.0
    %v1054 = vmax.f32 %v960, 0.0
    %v1055 = vmax.f32 %v965, 0.0
    %v1056 = vmax.f32 %v970, 0.0
    %v1057 = vmax.f32 %v975, 0.0
    %v1058 = vmax.f32 %v980, 0.0
    %v1059 = vmax.f32 %v985, 0.0
    %v1060 = vmax.f32 %v990, 0.0
    %v1061 = vmax.f32 %v995, 0.0
    %v1062 = vadd.f32 %v998, %v545
    %v1063 = vadd.f32 %v999, %v546
    %v1064 = vadd.f32 %v1000, %v547
    %v1065 = vadd.f32 %v1001, %v548
    %v1066 = vadd.f32 %v1002, %v549
    %v1067 = vadd.f32 %v1003, %v550
    %v1068 = vadd.f32 %v1004, %v551
    %v1069 = vadd.f32 %v1005, %v552
    %v1070 = vadd.f32 %v1006, %v553
    %v1071 = vadd.f32 %v1007, %v554
    %v1072 = vadd.f32 %v1008, %v555
    %v1073 = vadd.f32 %v1009, %v556
    %v1074 = vadd.f32 %v1010, %v557
    %v1075 = vadd.f32 %v1011, %v558
    %v1076 = vadd.f32 %v1012, %v559
    %v1077 = vadd.f32 %v1013, %v560
    %v1078 = vadd.f32 %v1014, %v561
    %v1079 = vadd.f32 %v1015, %v562
    %v1080 = vadd.f32 %v1016, %v563
    %v1081 = vadd.f32 %v1017, %v564
    %v1082 = vadd.f32 %v1018, %v565
    %v1083 = vadd.f32 %v1019, %v566
    %v1084 = vadd.f32 %v1020, %v567
    %v1085 = vadd.f32 %v1021, %v568
    %v1086 = vadd.f32 %v1022, %v569
    %v1087 = vadd.f32 %v1023, %v570
    %v1088 = vadd.f32 %v1024, %v571
    %v1089 = vadd.f32 %v1025, %v572
    %v1090 = vadd.f32 %v1026, %v573
    %v1091 = vadd.f32 %v1027, %v574
    %v1092 = vadd.f32 %v1028, %v575
    %v1093 = vadd.f32 %v1029, %v576
    %v1094 = vadd.f32 %v1030, %v577
    %v1095 = vadd.f32 %v1031, %v578
    %v1096 = vadd.f32 %v1032, %v579
    %v1097 = vadd.f32 %v1033, %v580
    %v1098 = vadd.f32 %v1034, %v581
    %v1099 = vadd.f32 %v1035, %v582
    %v1100 = vadd.f32 %v1036, %v583
    %v1101 = vadd.f32 %v1037, %v584
    %v1102 = vadd.f32 %v1038, %v585
    %v1103 = vadd.f32 %v1039, %v586
    %v1104 = vadd.f32 %v1040, %v587
    %v1105 = vadd.f32 %v1041, %v588
    %v1106 = vadd.f32 %v1042, %v589
    %v1107 = vadd.f32 %v1043, %v590
    %v1108 = vadd.f32 %v1044, %v591
    %v1109 = vadd.f32 %v1045, %v592
    %v1110 = vadd.f32 %v1046, %v593
    %v1111 = vadd.f32 %v1047, %v594
    %v1112 = vadd.f32 %v1048, %v595
    %v1113 = vadd.f32 %v1049, %v596
    %v1114 = vadd.f32 %v1050, %v597
    %v1115 = vadd.f32 %v1051, %v598
    %v1116 = vadd.f32 %v1052, %v599
    %v1117 = vadd.f32 %v1053, %v600
    %v1118 = vadd.f32 %v1054, %v601
    %v1119 = vadd.f32 %v1055, %v602
    %v1120 = vadd.f32 %v1056, %v603
    %v1121 = vadd.f32 %v1057, %v604
    %v1122 = vadd.f32 %v1058, %v605
    %v1123 = vadd.f32 %v1059, %v606
    %v1124 = vadd.f32 %v1060, %v607
    %v1125 = vadd.f32 %v1061, %v608
    %1126 = vadd.xlane.f32.xlu0 %v1062
    %v1127 = vpop.xlane.xlu0 %1126
    %1128 = vadd.xlane.f32.xlu0 %v1063
    %v1129 = vpop.xlane.xlu0 %1128
    %1130 = vadd.xlane.f32.xlu0 %v1064
    %v1131 = vpop.xlane.xlu0 %1130
    %1132 = vadd.xlane.f32.xlu0 %v1065
    %v1133 = vpop.xlane.xlu0 %1132
    %1134 = vadd.xlane.f32.xlu0 %v1066
    %v1135 = vpop.xlane.xlu0 %1134
    %1136 = vadd.xlane.f32.xlu0 %v1067
    %v1137 = vpop.xlane.xlu0 %1136
    %1138 = vadd.xlane.f32.xlu0 %v1068
    %v1139 = vpop.xlane.xlu0 %1138
    %1140 = vadd.xlane.f32.xlu0 %v1069
    %v1141 = vpop.xlane.xlu0 %1140
    %1142 = vadd.xlane.f32.xlu0 %v1070
    %v1143 = vpop.xlane.xlu0 %1142
    %1144 = vadd.xlane.f32.xlu0 %v1071
    %v1145 = vpop.xlane.xlu0 %1144
    %1146 = vadd.xlane.f32.xlu0 %v1072
    %v1147 = vpop.xlane.xlu0 %1146
    %1148 = vadd.xlane.f32.xlu0 %v1073
    %v1149 = vpop.xlane.xlu0 %1148
    %1150 = vadd.xlane.f32.xlu0 %v1074
    %v1151 = vpop.xlane.xlu0 %1150
    %1152 = vadd.xlane.f32.xlu0 %v1075
    %v1153 = vpop.xlane.xlu0 %1152
    %1154 = vadd.xlane.f32.xlu0 %v1076
    %v1155 = vpop.xlane.xlu0 %1154
    %1156 = vadd.xlane.f32.xlu0 %v1077
    %v1157 = vpop.xlane.xlu0 %1156
    %1158 = vadd.xlane.f32.xlu0 %v1078
    %v1159 = vpop.xlane.xlu0 %1158
    %1160 = vadd.xlane.f32.xlu0 %v1079
    %v1161 = vpop.xlane.xlu0 %1160
    %1162 = vadd.xlane.f32.xlu0 %v1080
    %v1163 = vpop.xlane.xlu0 %1162
    %1164 = vadd.xlane.f32.xlu0 %v1081
    %v1165 = vpop.xlane.xlu0 %1164
    %1166 = vadd.xlane.f32.xlu0 %v1082
    %v1167 = vpop.xlane.xlu0 %1166
    %1168 = vadd.xlane.f32.xlu0 %v1083
    %v1169 = vpop.xlane.xlu0 %1168
    %1170 = vadd.xlane.f32.xlu0 %v1084
    %v1171 = vpop.xlane.xlu0 %1170
    %1172 = vadd.xlane.f32.xlu0 %v1085
    %v1173 = vpop.xlane.xlu0 %1172
    %1174 = vadd.xlane.f32.xlu0 %v1086
    %v1175 = vpop.xlane.xlu0 %1174
    %1176 = vadd.xlane.f32.xlu0 %v1087
    %v1177 = vpop.xlane.xlu0 %1176
    %1178 = vadd.xlane.f32.xlu0 %v1088
    %v1179 = vpop.xlane.xlu0 %1178
    %1180 = vadd.xlane.f32.xlu0 %v1089
    %v1181 = vpop.xlane.xlu0 %1180
    %1182 = vadd.xlane.f32.xlu0 %v1090
    %v1183 = vpop.xlane.xlu0 %1182
    %1184 = vadd.xlane.f32.xlu0 %v1091
    %v1185 = vpop.xlane.xlu0 %1184
    %1186 = vadd.xlane.f32.xlu0 %v1092
    %v1187 = vpop.xlane.xlu0 %1186
    %1188 = vadd.xlane.f32.xlu0 %v1093
    %v1189 = vpop.xlane.xlu0 %1188
    %1190 = vadd.xlane.f32.xlu0 %v1094
    %v1191 = vpop.xlane.xlu0 %1190
    %1192 = vadd.xlane.f32.xlu0 %v1095
    %v1193 = vpop.xlane.xlu0 %1192
    %1194 = vadd.xlane.f32.xlu0 %v1096
    %v1195 = vpop.xlane.xlu0 %1194
    %1196 = vadd.xlane.f32.xlu0 %v1097
    %v1197 = vpop.xlane.xlu0 %1196
    %1198 = vadd.xlane.f32.xlu0 %v1098
    %v1199 = vpop.xlane.xlu0 %1198
    %1200 = vadd.xlane.f32.xlu0 %v1099
    %v1201 = vpop.xlane.xlu0 %1200
    %1202 = vadd.xlane.f32.xlu0 %v1100
    %v1203 = vpop.xlane.xlu0 %1202
    %1204 = vadd.xlane.f32.xlu0 %v1101
    %v1205 = vpop.xlane.xlu0 %1204
    %1206 = vadd.xlane.f32.xlu0 %v1102
    %v1207 = vpop.xlane.xlu0 %1206
    %1208 = vadd.xlane.f32.xlu0 %v1103
    %v1209 = vpop.xlane.xlu0 %1208
    %1210 = vadd.xlane.f32.xlu0 %v1104
    %v1211 = vpop.xlane.xlu0 %1210
    %1212 = vadd.xlane.f32.xlu0 %v1105
    %v1213 = vpop.xlane.xlu0 %1212
    %1214 = vadd.xlane.f32.xlu0 %v1106
    %v1215 = vpop.xlane.xlu0 %1214
    %1216 = vadd.xlane.f32.xlu0 %v1107
    %v1217 = vpop.xlane.xlu0 %1216
    %1218 = vadd.xlane.f32.xlu0 %v1108
    %v1219 = vpop.xlane.xlu0 %1218
    %1220 = vadd.xlane.f32.xlu0 %v1109
    %v1221 = vpop.xlane.xlu0 %1220
    %1222 = vadd.xlane.f32.xlu0 %v1110
    %v1223 = vpop.xlane.xlu0 %1222
    %1224 = vadd.xlane.f32.xlu0 %v1111
    %v1225 = vpop.xlane.xlu0 %1224
    %1226 = vadd.xlane.f32.xlu0 %v1112
    %v1227 = vpop.xlane.xlu0 %1226
    %1228 = vadd.xlane.f32.xlu0 %v1113
    %v1229 = vpop.xlane.xlu0 %1228
    %1230 = vadd.xlane.f32.xlu0 %v1114
    %v1231 = vpop.xlane.xlu0 %1230
    %1232 = vadd.xlane.f32.xlu0 %v1115
    %v1233 = vpop.xlane.xlu0 %1232
    %1234 = vadd.xlane.f32.xlu0 %v1116
    %v1235 = vpop.xlane.xlu0 %1234
    %1236 = vadd.xlane.f32.xlu0 %v1117
    %v1237 = vpop.xlane.xlu0 %1236
    %1238 = vadd.xlane.f32.xlu0 %v1118
    %v1239 = vpop.xlane.xlu0 %1238
    %1240 = vadd.xlane.f32.xlu0 %v1119
    %v1241 = vpop.xlane.xlu0 %1240
    %1242 = vadd.xlane.f32.xlu0 %v1120
    %v1243 = vpop.xlane.xlu0 %1242
    %1244 = vadd.xlane.f32.xlu0 %v1121
    %v1245 = vpop.xlane.xlu0 %1244
    %1246 = vadd.xlane.f32.xlu0 %v1122
    %v1247 = vpop.xlane.xlu0 %1246
    %1248 = vadd.xlane.f32.xlu0 %v1123
    %v1249 = vpop.xlane.xlu0 %1248
    %1250 = vadd.xlane.f32.xlu0 %v1124
    %v1251 = vpop.xlane.xlu0 %1250
    %1252 = vadd.xlane.f32.xlu0 %v1125
    %v1253 = vpop.xlane.xlu0 %1252
    %v1254 = vmul.f32 %v1127, 0.01
    %v1255 = vmul.f32 %v1129, 0.01
    %v1256 = vmul.f32 %v1131, 0.01
    %v1257 = vmul.f32 %v1133, 0.01
    %v1258 = vmul.f32 %v1135, 0.01
    %v1259 = vmul.f32 %v1137, 0.01
    %v1260 = vmul.f32 %v1139, 0.01
    %v1261 = vmul.f32 %v1141, 0.01
    %v1262 = vmul.f32 %v1143, 0.01
    %v1263 = vmul.f32 %v1145, 0.01
    %v1264 = vmul.f32 %v1147, 0.01
    %v1265 = vmul.f32 %v1149, 0.01
    %v1266 = vmul.f32 %v1151, 0.01
    %v1267 = vmul.f32 %v1153, 0.01
    %v1268 = vmul.f32 %v1155, 0.01
    %v1269 = vmul.f32 %v1157, 0.01
    %v1270 = vmul.f32 %v1159, 0.01
    %v1271 = vmul.f32 %v1161, 0.01
    %v1272 = vmul.f32 %v1163, 0.01
    %v1273 = vmul.f32 %v1165, 0.01
    %v1274 = vmul.f32 %v1167, 0.01
    %v1275 = vmul.f32 %v1169, 0.01
    %v1276 = vmul.f32 %v1171, 0.01
    %v1277 = vmul.f32 %v1173, 0.01
    %v1278 = vmul.f32 %v1175, 0.01
    %v1279 = vmul.f32 %v1177, 0.01
    %v1280 = vmul.f32 %v1179, 0.01
    %v1281 = vmul.f32 %v1181, 0.01
    %v1282 = vmul.f32 %v1183, 0.01
    %v1283 = vmul.f32 %v1185, 0.01
    %v1284 = vmul.f32 %v1187, 0.01
    %v1285 = vmul.f32 %v1189, 0.01
    %v1286 = vmul.f32 %v1191, 0.01
    %v1287 = vmul.f32 %v1193, 0.01
    %v1288 = vmul.f32 %v1195, 0.01
    %v1289 = vmul.f32 %v1197, 0.01
    %v1290 = vmul.f32 %v1199, 0.01
    %v1291 = vmul.f32 %v1201, 0.01
    %v1292 = vmul.f32 %v1203, 0.01
    %v1293 = vmul.f32 %v1205, 0.01
    %v1294 = vmul.f32 %v1207, 0.01
    %v1295 = vmul.f32 %v1209, 0.01
    %v1296 = vmul.f32 %v1211, 0.01
    %v1297 = vmul.f32 %v1213, 0.01
    %v1298 = vmul.f32 %v1215, 0.01
    %v1299 = vmul.f32 %v1217, 0.01
    %v1300 = vmul.f32 %v1219, 0.01
    %v1301 = vmul.f32 %v1221, 0.01
    %v1302 = vmul.f32 %v1223, 0.01
    %v1303 = vmul.f32 %v1225, 0.01
    %v1304 = vmul.f32 %v1227, 0.01
    %v1305 = vmul.f32 %v1229, 0.01
    %v1306 = vmul.f32 %v1231, 0.01
    %v1307 = vmul.f32 %v1233, 0.01
    %v1308 = vmul.f32 %v1235, 0.01
    %v1309 = vmul.f32 %v1237, 0.01
    %v1310 = vmul.f32 %v1239, 0.01
    %v1311 = vmul.f32 %v1241, 0.01
    %v1312 = vmul.f32 %v1243, 0.01
    %v1313 = vmul.f32 %v1245, 0.01
    %v1314 = vmul.f32 %v1247, 0.01
    %v1315 = vmul.f32 %v1249, 0.01
    %v1316 = vmul.f32 %v1251, 0.01
    %v1317 = vmul.f32 %v1253, 0.01
    %v1318 = vsub.f32 %v1062, %v1254
    %v1319 = vsub.f32 %v1063, %v1255
    %v1320 = vsub.f32 %v1064, %v1256
    %v1321 = vsub.f32 %v1065, %v1257
    %v1322 = vsub.f32 %v1066, %v1258
    %v1323 = vsub.f32 %v1067, %v1259
    %v1324 = vsub.f32 %v1068, %v1260
    %v1325 = vsub.f32 %v1069, %v1261
    %v1326 = vsub.f32 %v1070, %v1262
    %v1327 = vsub.f32 %v1071, %v1263
    %v1328 = vsub.f32 %v1072, %v1264
    %v1329 = vsub.f32 %v1073, %v1265
    %v1330 = vsub.f32 %v1074, %v1266
    %v1331 = vsub.f32 %v1075, %v1267
    %v1332 = vsub.f32 %v1076, %v1268
    %v1333 = vsub.f32 %v1077, %v1269
    %v1334 = vsub.f32 %v1078, %v1270
    %v1335 = vsub.f32 %v1079, %v1271
    %v1336 = vsub.f32 %v1080, %v1272
    %v1337 = vsub.f32 %v1081, %v1273
    %v1338 = vsub.f32 %v1082, %v1274
    %v1339 = vsub.f32 %v1083, %v1275
    %v1340 = vsub.f32 %v1084, %v1276
    %v1341 = vsub.f32 %v1085, %v1277
    %v1342 = vsub.f32 %v1086, %v1278
    %v1343 = vsub.f32 %v1087, %v1279
    %v1344 = vsub.f32 %v1088, %v1280
    %v1345 = vsub.f32 %v1089, %v1281
    %v1346 = vsub.f32 %v1090, %v1282
    %v1347 = vsub.f32 %v1091, %v1283
    %v1348 = vsub.f32 %v1092, %v1284
    %v1349 = vsub.f32 %v1093, %v1285
    %v1350 = vsub.f32 %v1094, %v1286
    %v1351 = vsub.f32 %v1095, %v1287
    %v1352 = vsub.f32 %v1096, %v1288
    %v1353 = vsub.f32 %v1097, %v1289
    %v1354 = vsub.f32 %v1098, %v1290
    %v1355 = vsub.f32 %v1099, %v1291
    %v1356 = vsub.f32 %v1100, %v1292
    %v1357 = vsub.f32 %v1101, %v1293
    %v1358 = vsub.f32 %v1102, %v1294
    %v1359 = vsub.f32 %v1103, %v1295
    %v1360 = vsub.f32 %v1104, %v1296
    %v1361 = vsub.f32 %v1105, %v1297
    %v1362 = vsub.f32 %v1106, %v1298
    %v1363 = vsub.f32 %v1107, %v1299
    %v1364 = vsub.f32 %v1108, %v1300
    %v1365 = vsub.f32 %v1109, %v1301
    %v1366 = vsub.f32 %v1110, %v1302
    %v1367 = vsub.f32 %v1111, %v1303
    %v1368 = vsub.f32 %v1112, %v1304
    %v1369 = vsub.f32 %v1113, %v1305
    %v1370 = vsub.f32 %v1114, %v1306
    %v1371 = vsub.f32 %v1115, %v1307
    %v1372 = vsub.f32 %v1116, %v1308
    %v1373 = vsub.f32 %v1117, %v1309
    %v1374 = vsub.f32 %v1118, %v1310
    %v1375 = vsub.f32 %v1119, %v1311
    %v1376 = vsub.f32 %v1120, %v1312
    %v1377 = vsub.f32 %v1121, %v1313
    %v1378 = vsub.f32 %v1122, %v1314
    %v1379 = vsub.f32 %v1123, %v1315
    %v1380 = vsub.f32 %v1124, %v1316
    %v1381 = vsub.f32 %v1125, %v1317
    %v1382 = vlaneseq
    %v1383 = vand.u32 %v1382, 127
    %vm1384 = vcmp.lt.s32.totalorder %v1383, 100
    %v1385 = vsel %vm1384, 1, 0
    %vm1386 = vcmp.eq.s32.totalorder %v1385, 1
    %v1387 = vsel %vm1386, %v1318, 0.0
    %v1388 = vsel %vm1386, %v1319, 0.0
    %v1389 = vsel %vm1386, %v1320, 0.0
    %v1390 = vsel %vm1386, %v1321, 0.0
    %v1391 = vsel %vm1386, %v1322, 0.0
    %v1392 = vsel %vm1386, %v1323, 0.0
    %v1393 = vsel %vm1386, %v1324, 0.0
    %v1394 = vsel %vm1386, %v1325, 0.0
    %v1395 = vsel %vm1386, %v1326, 0.0
    %v1396 = vsel %vm1386, %v1327, 0.0
    %v1397 = vsel %vm1386, %v1328, 0.0
    %v1398 = vsel %vm1386, %v1329, 0.0
    %v1399 = vsel %vm1386, %v1330, 0.0
    %v1400 = vsel %vm1386, %v1331, 0.0
    %v1401 = vsel %vm1386, %v1332, 0.0
    %v1402 = vsel %vm1386, %v1333, 0.0
    %v1403 = vsel %vm1386, %v1334, 0.0
    %v1404 = vsel %vm1386, %v1335, 0.0
    %v1405 = vsel %vm1386, %v1336, 0.0
    %v1406 = vsel %vm1386, %v1337, 0.0
    %v1407 = vsel %vm1386, %v1338, 0.0
    %v1408 = vsel %vm1386, %v1339, 0.0
    %v1409 = vsel %vm1386, %v1340, 0.0
    %v1410 = vsel %vm1386, %v1341, 0.0
    %v1411 = vsel %vm1386, %v1342, 0.0
    %v1412 = vsel %vm1386, %v1343, 0.0
    %v1413 = vsel %vm1386, %v1344, 0.0
    %v1414 = vsel %vm1386, %v1345, 0.0
    %v1415 = vsel %vm1386, %v1346, 0.0
    %v1416 = vsel %vm1386, %v1347, 0.0
    %v1417 = vsel %vm1386, %v1348, 0.0
    %v1418 = vsel %vm1386, %v1349, 0.0
    %v1419 = vsel %vm1386, %v1350, 0.0
    %v1420 = vsel %vm1386, %v1351, 0.0
    %v1421 = vsel %vm1386, %v1352, 0.0
    %v1422 = vsel %vm1386, %v1353, 0.0
    %v1423 = vsel %vm1386, %v1354, 0.0
    %v1424 = vsel %vm1386, %v1355, 0.0
    %v1425 = vsel %vm1386, %v1356, 0.0
    %v1426 = vsel %vm1386, %v1357, 0.0
    %v1427 = vsel %vm1386, %v1358, 0.0
    %v1428 = vsel %vm1386, %v1359, 0.0
    %v1429 = vsel %vm1386, %v1360, 0.0
    %v1430 = vsel %vm1386, %v1361, 0.0
    %v1431 = vsel %vm1386, %v1362, 0.0
    %v1432 = vsel %vm1386, %v1363, 0.0
    %v1433 = vsel %vm1386, %v1364, 0.0
    %v1434 = vsel %vm1386, %v1365, 0.0
    %v1435 = vsel %vm1386, %v1366, 0.0
    %v1436 = vsel %vm1386, %v1367, 0.0
    %v1437 = vsel %vm1386, %v1368, 0.0
    %v1438 = vsel %vm1386, %v1369, 0.0
    %v1439 = vsel %vm1386, %v1370, 0.0
    %v1440 = vsel %vm1386, %v1371, 0.0
    %v1441 = vsel %vm1386, %v1372, 0.0
    %v1442 = vsel %vm1386, %v1373, 0.0
    %v1443 = vsel %vm1386, %v1374, 0.0
    %v1444 = vsel %vm1386, %v1375, 0.0
    %v1445 = vsel %vm1386, %v1376, 0.0
    %v1446 = vsel %vm1386, %v1377, 0.0
    %v1447 = vsel %vm1386, %v1378, 0.0
    %v1448 = vsel %vm1386, %v1379, 0.0
    %v1449 = vsel %vm1386, %v1380, 0.0
    %v1450 = vsel %vm1386, %v1381, 0.0
    %v1451 = vmul.f32 %v1387, %v1387
    %v1452 = vmul.f32 %v1388, %v1388
    %v1453 = vmul.f32 %v1389, %v1389
    %v1454 = vmul.f32 %v1390, %v1390
    %v1455 = vmul.f32 %v1391, %v1391
    %v1456 = vmul.f32 %v1392, %v1392
    %v1457 = vmul.f32 %v1393, %v1393
    %v1458 = vmul.f32 %v1394, %v1394
    %v1459 = vmul.f32 %v1395, %v1395
    %v1460 = vmul.f32 %v1396, %v1396
    %v1461 = vmul.f32 %v1397, %v1397
    %v1462 = vmul.f32 %v1398, %v1398
    %v1463 = vmul.f32 %v1399, %v1399
    %v1464 = vmul.f32 %v1400, %v1400
    %v1465 = vmul.f32 %v1401, %v1401
    %v1466 = vmul.f32 %v1402, %v1402
    %v1467 = vmul.f32 %v1403, %v1403
    %v1468 = vmul.f32 %v1404, %v1404
    %v1469 = vmul.f32 %v1405, %v1405
    %v1470 = vmul.f32 %v1406, %v1406
    %v1471 = vmul.f32 %v1407, %v1407
    %v1472 = vmul.f32 %v1408, %v1408
    %v1473 = vmul.f32 %v1409, %v1409
    %v1474 = vmul.f32 %v1410, %v1410
    %v1475 = vmul.f32 %v1411, %v1411
    %v1476 = vmul.f32 %v1412, %v1412
    %v1477 = vmul.f32 %v1413, %v1413
    %v1478 = vmul.f32 %v1414, %v1414
    %v1479 = vmul.f32 %v1415, %v1415
    %v1480 = vmul.f32 %v1416, %v1416
    %v1481 = vmul.f32 %v1417, %v1417
    %v1482 = vmul.f32 %v1418, %v1418
    %v1483 = vmul.f32 %v1419, %v1419
    %v1484 = vmul.f32 %v1420, %v1420
    %v1485 = vmul.f32 %v1421, %v1421
    %v1486 = vmul.f32 %v1422, %v1422
    %v1487 = vmul.f32 %v1423, %v1423
    %v1488 = vmul.f32 %v1424, %v1424
    %v1489 = vmul.f32 %v1425, %v1425
    %v1490 = vmul.f32 %v1426, %v1426
    %v1491 = vmul.f32 %v1427, %v1427
    %v1492 = vmul.f32 %v1428, %v1428
    %v1493 = vmul.f32 %v1429, %v1429
    %v1494 = vmul.f32 %v1430, %v1430
    %v1495 = vmul.f32 %v1431, %v1431
    %v1496 = vmul.f32 %v1432, %v1432
    %v1497 = vmul.f32 %v1433, %v1433
    %v1498 = vmul.f32 %v1434, %v1434
    %v1499 = vmul.f32 %v1435, %v1435
    %v1500 = vmul.f32 %v1436, %v1436
    %v1501 = vmul.f32 %v1437, %v1437
    %v1502 = vmul.f32 %v1438, %v1438
    %v1503 = vmul.f32 %v1439, %v1439
    %v1504 = vmul.f32 %v1440, %v1440
    %v1505 = vmul.f32 %v1441, %v1441
    %v1506 = vmul.f32 %v1442, %v1442
    %v1507 = vmul.f32 %v1443, %v1443
    %v1508 = vmul.f32 %v1444, %v1444
    %v1509 = vmul.f32 %v1445, %v1445
    %v1510 = vmul.f32 %v1446, %v1446
    %v1511 = vmul.f32 %v1447, %v1447
    %v1512 = vmul.f32 %v1448, %v1448
    %v1513 = vmul.f32 %v1449, %v1449
    %v1514 = vmul.f32 %v1450, %v1450
    %1515 = vadd.xlane.f32.xlu0 %v1451
    %v1516 = vpop.xlane.xlu0 %1515
    %1517 = vadd.xlane.f32.xlu0 %v1452
    %v1518 = vpop.xlane.xlu0 %1517
    %1519 = vadd.xlane.f32.xlu0 %v1453
    %v1520 = vpop.xlane.xlu0 %1519
    %1521 = vadd.xlane.f32.xlu0 %v1454
    %v1522 = vpop.xlane.xlu0 %1521
    %1523 = vadd.xlane.f32.xlu0 %v1455
    %v1524 = vpop.xlane.xlu0 %1523
    %1525 = vadd.xlane.f32.xlu0 %v1456
    %v1526 = vpop.xlane.xlu0 %1525
    %1527 = vadd.xlane.f32.xlu0 %v1457
    %v1528 = vpop.xlane.xlu0 %1527
    %1529 = vadd.xlane.f32.xlu0 %v1458
    %v1530 = vpop.xlane.xlu0 %1529
    %1531 = vadd.xlane.f32.xlu0 %v1459
    %v1532 = vpop.xlane.xlu0 %1531
    %1533 = vadd.xlane.f32.xlu0 %v1460
    %v1534 = vpop.xlane.xlu0 %1533
    %1535 = vadd.xlane.f32.xlu0 %v1461
    %v1536 = vpop.xlane.xlu0 %1535
    %1537 = vadd.xlane.f32.xlu0 %v1462
    %v1538 = vpop.xlane.xlu0 %1537
    %1539 = vadd.xlane.f32.xlu0 %v1463
    %v1540 = vpop.xlane.xlu0 %1539
    %1541 = vadd.xlane.f32.xlu0 %v1464
    %v1542 = vpop.xlane.xlu0 %1541
    %1543 = vadd.xlane.f32.xlu0 %v1465
    %v1544 = vpop.xlane.xlu0 %1543
    %1545 = vadd.xlane.f32.xlu0 %v1466
    %v1546 = vpop.xlane.xlu0 %1545
    %1547 = vadd.xlane.f32.xlu0 %v1467
    %v1548 = vpop.xlane.xlu0 %1547
    %1549 = vadd.xlane.f32.xlu0 %v1468
    %v1550 = vpop.xlane.xlu0 %1549
    %1551 = vadd.xlane.f32.xlu0 %v1469
    %v1552 = vpop.xlane.xlu0 %1551
    %1553 = vadd.xlane.f32.xlu0 %v1470
    %v1554 = vpop.xlane.xlu0 %1553
    %1555 = vadd.xlane.f32.xlu0 %v1471
    %v1556 = vpop.xlane.xlu0 %1555
    %1557 = vadd.xlane.f32.xlu0 %v1472
    %v1558 = vpop.xlane.xlu0 %1557
    %1559 = vadd.xlane.f32.xlu0 %v1473
    %v1560 = vpop.xlane.xlu0 %1559
    %1561 = vadd.xlane.f32.xlu0 %v1474
    %v1562 = vpop.xlane.xlu0 %1561
    %1563 = vadd.xlane.f32.xlu0 %v1475
    %v1564 = vpop.xlane.xlu0 %1563
    %1565 = vadd.xlane.f32.xlu0 %v1476
    %v1566 = vpop.xlane.xlu0 %1565
    %1567 = vadd.xlane.f32.xlu0 %v1477
    %v1568 = vpop.xlane.xlu0 %1567
    %1569 = vadd.xlane.f32.xlu0 %v1478
    %v1570 = vpop.xlane.xlu0 %1569
    %1571 = vadd.xlane.f32.xlu0 %v1479
    %v1572 = vpop.xlane.xlu0 %1571
    %1573 = vadd.xlane.f32.xlu0 %v1480
    %v1574 = vpop.xlane.xlu0 %1573
    %1575 = vadd.xlane.f32.xlu0 %v1481
    %v1576 = vpop.xlane.xlu0 %1575
    %1577 = vadd.xlane.f32.xlu0 %v1482
    %v1578 = vpop.xlane.xlu0 %1577
    %1579 = vadd.xlane.f32.xlu0 %v1483
    %v1580 = vpop.xlane.xlu0 %1579
    %1581 = vadd.xlane.f32.xlu0 %v1484
    %v1582 = vpop.xlane.xlu0 %1581
    %1583 = vadd.xlane.f32.xlu0 %v1485
    %v1584 = vpop.xlane.xlu0 %1583
    %1585 = vadd.xlane.f32.xlu0 %v1486
    %v1586 = vpop.xlane.xlu0 %1585
    %1587 = vadd.xlane.f32.xlu0 %v1487
    %v1588 = vpop.xlane.xlu0 %1587
    %1589 = vadd.xlane.f32.xlu0 %v1488
    %v1590 = vpop.xlane.xlu0 %1589
    %1591 = vadd.xlane.f32.xlu0 %v1489
    %v1592 = vpop.xlane.xlu0 %1591
    %1593 = vadd.xlane.f32.xlu0 %v1490
    %v1594 = vpop.xlane.xlu0 %1593
    %1595 = vadd.xlane.f32.xlu0 %v1491
    %v1596 = vpop.xlane.xlu0 %1595
    %1597 = vadd.xlane.f32.xlu0 %v1492
    %v1598 = vpop.xlane.xlu0 %1597
    %1599 = vadd.xlane.f32.xlu0 %v1493
    %v1600 = vpop.xlane.xlu0 %1599
    %1601 = vadd.xlane.f32.xlu0 %v1494
    %v1602 = vpop.xlane.xlu0 %1601
    %1603 = vadd.xlane.f32.xlu0 %v1495
    %v1604 = vpop.xlane.xlu0 %1603
    %1605 = vadd.xlane.f32.xlu0 %v1496
    %v1606 = vpop.xlane.xlu0 %1605
    %1607 = vadd.xlane.f32.xlu0 %v1497
    %v1608 = vpop.xlane.xlu0 %1607
    %1609 = vadd.xlane.f32.xlu0 %v1498
    %v1610 = vpop.xlane.xlu0 %1609
    %1611 = vadd.xlane.f32.xlu0 %v1499
    %v1612 = vpop.xlane.xlu0 %1611
    %1613 = vadd.xlane.f32.xlu0 %v1500
    %v1614 = vpop.xlane.xlu0 %1613
    %1615 = vadd.xlane.f32.xlu0 %v1501
    %v1616 = vpop.xlane.xlu0 %1615
    %1617 = vadd.xlane.f32.xlu0 %v1502
    %v1618 = vpop.xlane.xlu0 %1617
    %1619 = vadd.xlane.f32.xlu0 %v1503
    %v1620 = vpop.xlane.xlu0 %1619
    %1621 = vadd.xlane.f32.xlu0 %v1504
    %v1622 = vpop.xlane.xlu0 %1621
    %1623 = vadd.xlane.f32.xlu0 %v1505
    %v1624 = vpop.xlane.xlu0 %1623
    %1625 = vadd.xlane.f32.xlu0 %v1506
    %v1626 = vpop.xlane.xlu0 %1625
    %1627 = vadd.xlane.f32.xlu0 %v1507
    %v1628 = vpop.xlane.xlu0 %1627
    %1629 = vadd.xlane.f32.xlu0 %v1508
    %v1630 = vpop.xlane.xlu0 %1629
    %1631 = vadd.xlane.f32.xlu0 %v1509
    %v1632 = vpop.xlane.xlu0 %1631
    %1633 = vadd.xlane.f32.xlu0 %v1510
    %v1634 = vpop.xlane.xlu0 %1633
    %1635 = vadd.xlane.f32.xlu0 %v1511
    %v1636 = vpop.xlane.xlu0 %1635
    %1637 = vadd.xlane.f32.xlu0 %v1512
    %v1638 = vpop.xlane.xlu0 %1637
    %1639 = vadd.xlane.f32.xlu0 %v1513
    %v1640 = vpop.xlane.xlu0 %1639
    %1641 = vadd.xlane.f32.xlu0 %v1514
    %v1642 = vpop.xlane.xlu0 %1641
    %v1643 = vmul.f32 %v1516, 0.01
    %v1644 = vmul.f32 %v1518, 0.01
    %v1645 = vmul.f32 %v1520, 0.01
    %v1646 = vmul.f32 %v1522, 0.01
    %v1647 = vmul.f32 %v1524, 0.01
    %v1648 = vmul.f32 %v1526, 0.01
    %v1649 = vmul.f32 %v1528, 0.01
    %v1650 = vmul.f32 %v1530, 0.01
    %v1651 = vmul.f32 %v1532, 0.01
    %v1652 = vmul.f32 %v1534, 0.01
    %v1653 = vmul.f32 %v1536, 0.01
    %v1654 = vmul.f32 %v1538, 0.01
    %v1655 = vmul.f32 %v1540, 0.01
    %v1656 = vmul.f32 %v1542, 0.01
    %v1657 = vmul.f32 %v1544, 0.01
    %v1658 = vmul.f32 %v1546, 0.01
    %v1659 = vmul.f32 %v1548, 0.01
    %v1660 = vmul.f32 %v1550, 0.01
    %v1661 = vmul.f32 %v1552, 0.01
    %v1662 = vmul.f32 %v1554, 0.01
    %v1663 = vmul.f32 %v1556, 0.01
    %v1664 = vmul.f32 %v1558, 0.01
    %v1665 = vmul.f32 %v1560, 0.01
    %v1666 = vmul.f32 %v1562, 0.01
    %v1667 = vmul.f32 %v1564, 0.01
    %v1668 = vmul.f32 %v1566, 0.01
    %v1669 = vmul.f32 %v1568, 0.01
    %v1670 = vmul.f32 %v1570, 0.01
    %v1671 = vmul.f32 %v1572, 0.01
    %v1672 = vmul.f32 %v1574, 0.01
    %v1673 = vmul.f32 %v1576, 0.01
    %v1674 = vmul.f32 %v1578, 0.01
    %v1675 = vmul.f32 %v1580, 0.01
    %v1676 = vmul.f32 %v1582, 0.01
    %v1677 = vmul.f32 %v1584, 0.01
    %v1678 = vmul.f32 %v1586, 0.01
    %v1679 = vmul.f32 %v1588, 0.01
    %v1680 = vmul.f32 %v1590, 0.01
    %v1681 = vmul.f32 %v1592, 0.01
    %v1682 = vmul.f32 %v1594, 0.01
    %v1683 = vmul.f32 %v1596, 0.01
    %v1684 = vmul.f32 %v1598, 0.01
    %v1685 = vmul.f32 %v1600, 0.01
    %v1686 = vmul.f32 %v1602, 0.01
    %v1687 = vmul.f32 %v1604, 0.01
    %v1688 = vmul.f32 %v1606, 0.01
    %v1689 = vmul.f32 %v1608, 0.01
    %v1690 = vmul.f32 %v1610, 0.01
    %v1691 = vmul.f32 %v1612, 0.01
    %v1692 = vmul.f32 %v1614, 0.01
    %v1693 = vmul.f32 %v1616, 0.01
    %v1694 = vmul.f32 %v1618, 0.01
    %v1695 = vmul.f32 %v1620, 0.01
    %v1696 = vmul.f32 %v1622, 0.01
    %v1697 = vmul.f32 %v1624, 0.01
    %v1698 = vmul.f32 %v1626, 0.01
    %v1699 = vmul.f32 %v1628, 0.01
    %v1700 = vmul.f32 %v1630, 0.01
    %v1701 = vmul.f32 %v1632, 0.01
    %v1702 = vmul.f32 %v1634, 0.01
    %v1703 = vmul.f32 %v1636, 0.01
    %v1704 = vmul.f32 %v1638, 0.01
    %v1705 = vmul.f32 %v1640, 0.01
    %v1706 = vmul.f32 %v1642, 0.01
    %v1707 = vadd.f32 %v1643, 1e-05
    %v1708 = vadd.f32 %v1644, 1e-05
    %v1709 = vadd.f32 %v1645, 1e-05
    %v1710 = vadd.f32 %v1646, 1e-05
    %v1711 = vadd.f32 %v1647, 1e-05
    %v1712 = vadd.f32 %v1648, 1e-05
    %v1713 = vadd.f32 %v1649, 1e-05
    %v1714 = vadd.f32 %v1650, 1e-05
    %v1715 = vadd.f32 %v1651, 1e-05
    %v1716 = vadd.f32 %v1652, 1e-05
    %v1717 = vadd.f32 %v1653, 1e-05
    %v1718 = vadd.f32 %v1654, 1e-05
    %v1719 = vadd.f32 %v1655, 1e-05
    %v1720 = vadd.f32 %v1656, 1e-05
    %v1721 = vadd.f32 %v1657, 1e-05
    %v1722 = vadd.f32 %v1658, 1e-05
    %v1723 = vadd.f32 %v1659, 1e-05
    %v1724 = vadd.f32 %v1660, 1e-05
    %v1725 = vadd.f32 %v1661, 1e-05
    %v1726 = vadd.f32 %v1662, 1e-05
    %v1727 = vadd.f32 %v1663, 1e-05
    %v1728 = vadd.f32 %v1664, 1e-05
    %v1729 = vadd.f32 %v1665, 1e-05
    %v1730 = vadd.f32 %v1666, 1e-05
    %v1731 = vadd.f32 %v1667, 1e-05
    %v1732 = vadd.f32 %v1668, 1e-05
    %v1733 = vadd.f32 %v1669, 1e-05
    %v1734 = vadd.f32 %v1670, 1e-05
    %v1735 = vadd.f32 %v1671, 1e-05
    %v1736 = vadd.f32 %v1672, 1e-05
    %v1737 = vadd.f32 %v1673, 1e-05
    %v1738 = vadd.f32 %v1674, 1e-05
    %v1739 = vadd.f32 %v1675, 1e-05
    %v1740 = vadd.f32 %v1676, 1e-05
    %v1741 = vadd.f32 %v1677, 1e-05
    %v1742 = vadd.f32 %v1678, 1e-05
    %v1743 = vadd.f32 %v1679, 1e-05
    %v1744 = vadd.f32 %v1680, 1e-05
    %v1745 = vadd.f32 %v1681, 1e-05
    %v1746 = vadd.f32 %v1682, 1e-05
    %v1747 = vadd.f32 %v1683, 1e-05
    %v1748 = vadd.f32 %v1684, 1e-05
    %v1749 = vadd.f32 %v1685, 1e-05
    %v1750 = vadd.f32 %v1686, 1e-05
    %v1751 = vadd.f32 %v1687, 1e-05
    %v1752 = vadd.f32 %v1688, 1e-05
    %v1753 = vadd.f32 %v1689, 1e-05
    %v1754 = vadd.f32 %v1690, 1e-05
    %v1755 = vadd.f32 %v1691, 1e-05
    %v1756 = vadd.f32 %v1692, 1e-05
    %v1757 = vadd.f32 %v1693, 1e-05
    %v1758 = vadd.f32 %v1694, 1e-05
    %v1759 = vadd.f32 %v1695, 1e-05
    %v1760 = vadd.f32 %v1696, 1e-05
    %v1761 = vadd.f32 %v1697, 1e-05
    %v1762 = vadd.f32 %v1698, 1e-05
    %v1763 = vadd.f32 %v1699, 1e-05
    %v1764 = vadd.f32 %v1700, 1e-05
    %v1765 = vadd.f32 %v1701, 1e-05
    %v1766 = vadd.f32 %v1702, 1e-05
    %v1767 = vadd.f32 %v1703, 1e-05
    %v1768 = vadd.f32 %v1704, 1e-05
    %v1769 = vadd.f32 %v1705, 1e-05
    %v1770 = vadd.f32 %v1706, 1e-05
    %v1771 = vrsqrt.pop %v1707
    %v1772 = vrsqrt.pop %v1708
    %v1773 = vrsqrt.pop %v1709
    %v1774 = vrsqrt.pop %v1710
    %v1775 = vrsqrt.pop %v1711
    %v1776 = vrsqrt.pop %v1712
    %v1777 = vrsqrt.pop %v1713
    %v1778 = vrsqrt.pop %v1714
    %v1779 = vrsqrt.pop %v1715
    %v1780 = vrsqrt.pop %v1716
    %v1781 = vrsqrt.pop %v1717
    %v1782 = vrsqrt.pop %v1718
    %v1783 = vrsqrt.pop %v1719
    %v1784 = vrsqrt.pop %v1720
    %v1785 = vrsqrt.pop %v1721
    %v1786 = vrsqrt.pop %v1722
    %v1787 = vrsqrt.pop %v1723
    %v1788 = vrsqrt.pop %v1724
    %v1789 = vrsqrt.pop %v1725
    %v1790 = vrsqrt.pop %v1726
    %v1791 = vrsqrt.pop %v1727
    %v1792 = vrsqrt.pop %v1728
    %v1793 = vrsqrt.pop %v1729
    %v1794 = vrsqrt.pop %v1730
    %v1795 = vrsqrt.pop %v1731
    %v1796 = vrsqrt.pop %v1732
    %v1797 = vrsqrt.pop %v1733
    %v1798 = vrsqrt.pop %v1734
    %v1799 = vrsqrt.pop %v1735
    %v1800 = vrsqrt.pop %v1736
    %v1801 = vrsqrt.pop %v1737
    %v1802 = vrsqrt.pop %v1738
    %v1803 = vrsqrt.pop %v1739
    %v1804 = vrsqrt.pop %v1740
    %v1805 = vrsqrt.pop %v1741
    %v1806 = vrsqrt.pop %v1742
    %v1807 = vrsqrt.pop %v1743
    %v1808 = vrsqrt.pop %v1744
    %v1809 = vrsqrt.pop %v1745
    %v1810 = vrsqrt.pop %v1746
    %v1811 = vrsqrt.pop %v1747
    %v1812 = vrsqrt.pop %v1748
    %v1813 = vrsqrt.pop %v1749
    %v1814 = vrsqrt.pop %v1750
    %v1815 = vrsqrt.pop %v1751
    %v1816 = vrsqrt.pop %v1752
    %v1817 = vrsqrt.pop %v1753
    %v1818 = vrsqrt.pop %v1754
    %v1819 = vrsqrt.pop %v1755
    %v1820 = vrsqrt.pop %v1756
    %v1821 = vrsqrt.pop %v1757
    %v1822 = vrsqrt.pop %v1758
    %v1823 = vrsqrt.pop %v1759
    %v1824 = vrsqrt.pop %v1760
    %v1825 = vrsqrt.pop %v1761
    %v1826 = vrsqrt.pop %v1762
    %v1827 = vrsqrt.pop %v1763
    %v1828 = vrsqrt.pop %v1764
    %v1829 = vrsqrt.pop %v1765
    %v1830 = vrsqrt.pop %v1766
    %v1831 = vrsqrt.pop %v1767
    %v1832 = vrsqrt.pop %v1768
    %v1833 = vrsqrt.pop %v1769
    %v1834 = vrsqrt.pop %v1770
    %v1835 = vmul.f32 %v1387, %v1771
    %v1836 = vmul.f32 %v1388, %v1772
    %v1837 = vmul.f32 %v1389, %v1773
    %v1838 = vmul.f32 %v1390, %v1774
    %v1839 = vmul.f32 %v1391, %v1775
    %v1840 = vmul.f32 %v1392, %v1776
    %v1841 = vmul.f32 %v1393, %v1777
    %v1842 = vmul.f32 %v1394, %v1778
    %v1843 = vmul.f32 %v1395, %v1779
    %v1844 = vmul.f32 %v1396, %v1780
    %v1845 = vmul.f32 %v1397, %v1781
    %v1846 = vmul.f32 %v1398, %v1782
    %v1847 = vmul.f32 %v1399, %v1783
    %v1848 = vmul.f32 %v1400, %v1784
    %v1849 = vmul.f32 %v1401, %v1785
    %v1850 = vmul.f32 %v1402, %v1786
    %v1851 = vmul.f32 %v1403, %v1787
    %v1852 = vmul.f32 %v1404, %v1788
    %v1853 = vmul.f32 %v1405, %v1789
    %v1854 = vmul.f32 %v1406, %v1790
    %v1855 = vmul.f32 %v1407, %v1791
    %v1856 = vmul.f32 %v1408, %v1792
    %v1857 = vmul.f32 %v1409, %v1793
    %v1858 = vmul.f32 %v1410, %v1794
    %v1859 = vmul.f32 %v1411, %v1795
    %v1860 = vmul.f32 %v1412, %v1796
    %v1861 = vmul.f32 %v1413, %v1797
    %v1862 = vmul.f32 %v1414, %v1798
    %v1863 = vmul.f32 %v1415, %v1799
    %v1864 = vmul.f32 %v1416, %v1800
    %v1865 = vmul.f32 %v1417, %v1801
    %v1866 = vmul.f32 %v1418, %v1802
    %v1867 = vmul.f32 %v1419, %v1803
    %v1868 = vmul.f32 %v1420, %v1804
    %v1869 = vmul.f32 %v1421, %v1805
    %v1870 = vmul.f32 %v1422, %v1806
    %v1871 = vmul.f32 %v1423, %v1807
    %v1872 = vmul.f32 %v1424, %v1808
    %v1873 = vmul.f32 %v1425, %v1809
    %v1874 = vmul.f32 %v1426, %v1810
    %v1875 = vmul.f32 %v1427, %v1811
    %v1876 = vmul.f32 %v1428, %v1812
    %v1877 = vmul.f32 %v1429, %v1813
    %v1878 = vmul.f32 %v1430, %v1814
    %v1879 = vmul.f32 %v1431, %v1815
    %v1880 = vmul.f32 %v1432, %v1816
    %v1881 = vmul.f32 %v1433, %v1817
    %v1882 = vmul.f32 %v1434, %v1818
    %v1883 = vmul.f32 %v1435, %v1819
    %v1884 = vmul.f32 %v1436, %v1820
    %v1885 = vmul.f32 %v1437, %v1821
    %v1886 = vmul.f32 %v1438, %v1822
    %v1887 = vmul.f32 %v1439, %v1823
    %v1888 = vmul.f32 %v1440, %v1824
    %v1889 = vmul.f32 %v1441, %v1825
    %v1890 = vmul.f32 %v1442, %v1826
    %v1891 = vmul.f32 %v1443, %v1827
    %v1892 = vmul.f32 %v1444, %v1828
    %v1893 = vmul.f32 %v1445, %v1829
    %v1894 = vmul.f32 %v1446, %v1830
    %v1895 = vmul.f32 %v1447, %v1831
    %v1896 = vmul.f32 %v1448, %v1832
    %v1897 = vmul.f32 %v1449, %v1833
    %v1898 = vmul.f32 %v1450, %v1834
    %v1899 = vlaneseq
    %v1900 = vshrl.u32 %v1899, 7
    %v1901 = vsub.s32 2, %v1900
    %v1902 = vrot.slane %v155, %v1901
    %v1903 = vmul.f32 %v1835, %v1902
    %v1904 = vmul.f32 %v1836, %v1902
    %v1905 = vmul.f32 %v1837, %v1902
    %v1906 = vmul.f32 %v1838, %v1902
    %v1907 = vmul.f32 %v1839, %v1902
    %v1908 = vmul.f32 %v1840, %v1902
    %v1909 = vmul.f32 %v1841, %v1902
    %v1910 = vmul.f32 %v1842, %v1902
    %v1911 = vmul.f32 %v1843, %v1902
    %v1912 = vmul.f32 %v1844, %v1902
    %v1913 = vmul.f32 %v1845, %v1902
    %v1914 = vmul.f32 %v1846, %v1902
    %v1915 = vmul.f32 %v1847, %v1902
    %v1916 = vmul.f32 %v1848, %v1902
    %v1917 = vmul.f32 %v1849, %v1902
    %v1918 = vmul.f32 %v1850, %v1902
    %v1919 = vmul.f32 %v1851, %v1902
    %v1920 = vmul.f32 %v1852, %v1902
    %v1921 = vmul.f32 %v1853, %v1902
    %v1922 = vmul.f32 %v1854, %v1902
    %v1923 = vmul.f32 %v1855, %v1902
    %v1924 = vmul.f32 %v1856, %v1902
    %v1925 = vmul.f32 %v1857, %v1902
    %v1926 = vmul.f32 %v1858, %v1902
    %v1927 = vmul.f32 %v1859, %v1902
    %v1928 = vmul.f32 %v1860, %v1902
    %v1929 = vmul.f32 %v1861, %v1902
    %v1930 = vmul.f32 %v1862, %v1902
    %v1931 = vmul.f32 %v1863, %v1902
    %v1932 = vmul.f32 %v1864, %v1902
    %v1933 = vmul.f32 %v1865, %v1902
    %v1934 = vmul.f32 %v1866, %v1902
    %v1935 = vmul.f32 %v1867, %v1902
    %v1936 = vmul.f32 %v1868, %v1902
    %v1937 = vmul.f32 %v1869, %v1902
    %v1938 = vmul.f32 %v1870, %v1902
    %v1939 = vmul.f32 %v1871, %v1902
    %v1940 = vmul.f32 %v1872, %v1902
    %v1941 = vmul.f32 %v1873, %v1902
    %v1942 = vmul.f32 %v1874, %v1902
    %v1943 = vmul.f32 %v1875, %v1902
    %v1944 = vmul.f32 %v1876, %v1902
    %v1945 = vmul.f32 %v1877, %v1902
    %v1946 = vmul.f32 %v1878, %v1902
    %v1947 = vmul.f32 %v1879, %v1902
    %v1948 = vmul.f32 %v1880, %v1902
    %v1949 = vmul.f32 %v1881, %v1902
    %v1950 = vmul.f32 %v1882, %v1902
    %v1951 = vmul.f32 %v1883, %v1902
    %v1952 = vmul.f32 %v1884, %v1902
    %v1953 = vmul.f32 %v1885, %v1902
    %v1954 = vmul.f32 %v1886, %v1902
    %v1955 = vmul.f32 %v1887, %v1902
    %v1956 = vmul.f32 %v1888, %v1902
    %v1957 = vmul.f32 %v1889, %v1902
    %v1958 = vmul.f32 %v1890, %v1902
    %v1959 = vmul.f32 %v1891, %v1902
    %v1960 = vmul.f32 %v1892, %v1902
    %v1961 = vmul.f32 %v1893, %v1902
    %v1962 = vmul.f32 %v1894, %v1902
    %v1963 = vmul.f32 %v1895, %v1902
    %v1964 = vmul.f32 %v1896, %v1902
    %v1965 = vmul.f32 %v1897, %v1902
    %v1966 = vmul.f32 %v1898, %v1902
    %v1967 = vlaneseq
    %v1968 = vshrl.u32 %v1967, 7
    %v1969 = vsub.s32 3, %v1968
    %v1970 = vrot.slane %v155, %v1969
    %v1971 = vadd.f32 %v1903, %v1970
    %v1972 = vadd.f32 %v1904, %v1970
    %v1973 = vadd.f32 %v1905, %v1970
    %v1974 = vadd.f32 %v1906, %v1970
    %v1975 = vadd.f32 %v1907, %v1970
    %v1976 = vadd.f32 %v1908, %v1970
    %v1977 = vadd.f32 %v1909, %v1970
    %v1978 = vadd.f32 %v1910, %v1970
    %v1979 = vadd.f32 %v1911, %v1970
    %v1980 = vadd.f32 %v1912, %v1970
    %v1981 = vadd.f32 %v1913, %v1970
    %v1982 = vadd.f32 %v1914, %v1970
    %v1983 = vadd.f32 %v1915, %v1970
    %v1984 = vadd.f32 %v1916, %v1970
    %v1985 = vadd.f32 %v1917, %v1970
    %v1986 = vadd.f32 %v1918, %v1970
    %v1987 = vadd.f32 %v1919, %v1970
    %v1988 = vadd.f32 %v1920, %v1970
    %v1989 = vadd.f32 %v1921, %v1970
    %v1990 = vadd.f32 %v1922, %v1970
    %v1991 = vadd.f32 %v1923, %v1970
    %v1992 = vadd.f32 %v1924, %v1970
    %v1993 = vadd.f32 %v1925, %v1970
    %v1994 = vadd.f32 %v1926, %v1970
    %v1995 = vadd.f32 %v1927, %v1970
    %v1996 = vadd.f32 %v1928, %v1970
    %v1997 = vadd.f32 %v1929, %v1970
    %v1998 = vadd.f32 %v1930, %v1970
    %v1999 = vadd.f32 %v1931, %v1970
    %v2000 = vadd.f32 %v1932, %v1970
    %v2001 = vadd.f32 %v1933, %v1970
    %v2002 = vadd.f32 %v1934, %v1970
    %v2003 = vadd.f32 %v1935, %v1970
    %v2004 = vadd.f32 %v1936, %v1970
    %v2005 = vadd.f32 %v1937, %v1970
    %v2006 = vadd.f32 %v1938, %v1970
    %v2007 = vadd.f32 %v1939, %v1970
    %v2008 = vadd.f32 %v1940, %v1970
    %v2009 = vadd.f32 %v1941, %v1970
    %v2010 = vadd.f32 %v1942, %v1970
    %v2011 = vadd.f32 %v1943, %v1970
    %v2012 = vadd.f32 %v1944, %v1970
    %v2013 = vadd.f32 %v1945, %v1970
    %v2014 = vadd.f32 %v1946, %v1970
    %v2015 = vadd.f32 %v1947, %v1970
    %v2016 = vadd.f32 %v1948, %v1970
    %v2017 = vadd.f32 %v1949, %v1970
    %v2018 = vadd.f32 %v1950, %v1970
    %v2019 = vadd.f32 %v1951, %v1970
    %v2020 = vadd.f32 %v1952, %v1970
    %v2021 = vadd.f32 %v1953, %v1970
    %v2022 = vadd.f32 %v1954, %v1970
    %v2023 = vadd.f32 %v1955, %v1970
    %v2024 = vadd.f32 %v1956, %v1970
    %v2025 = vadd.f32 %v1957, %v1970
    %v2026 = vadd.f32 %v1958, %v1970
    %v2027 = vadd.f32 %v1959, %v1970
    %v2028 = vadd.f32 %v1960, %v1970
    %v2029 = vadd.f32 %v1961, %v1970
    %v2030 = vadd.f32 %v1962, %v1970
    %v2031 = vadd.f32 %v1963, %v1970
    %v2032 = vadd.f32 %v1964, %v1970
    %v2033 = vadd.f32 %v1965, %v1970
    %v2034 = vadd.f32 %v1966, %v1970
    %2035 = vst [vmem:[#allocation8] sm:$0xff] %v1971
    %2036 = vst [vmem:[#allocation8 + $0x8] sm:$0xff] %v1972
    %2037 = vst [vmem:[#allocation8 + $0x10] sm:$0xff] %v1973
    %2038 = vst [vmem:[#allocation8 + $0x18] sm:$0xff] %v1974
    %2039 = vst [vmem:[#allocation8 + $0x20] sm:$0xff] %v1975
    %2040 = vst [vmem:[#allocation8 + $0x28] sm:$0xff] %v1976
    %2041 = vst [vmem:[#allocation8 + $0x30] sm:$0xff] %v1977
    %2042 = vst [vmem:[#allocation8 + $0x38] sm:$0xff] %v1978
    %2043 = vst [vmem:[#allocation8 + $0x40] sm:$0xff] %v1979
    %2044 = vst [vmem:[#allocation8 + $0x48] sm:$0xff] %v1980
    %2045 = vst [vmem:[#allocation8 + $0x50] sm:$0xff] %v1981
    %2046 = vst [vmem:[#allocation8 + $0x58] sm:$0xff] %v1982
    %2047 = vst [vmem:[#allocation8 + $0x60] sm:$0xff] %v1983
    %2048 = vst [vmem:[#allocation8 + $0x68] sm:$0xff] %v1984
    %2049 = vst [vmem:[#allocation8 + $0x70] sm:$0xff] %v1985
    %2050 = vst [vmem:[#allocation8 + $0x78] sm:$0xff] %v1986
    %2051 = vst [vmem:[#allocation8 + $0x80] sm:$0xff] %v1987
    %2052 = vst [vmem:[#allocation8 + $0x88] sm:$0xff] %v1988
    %2053 = vst [vmem:[#allocation8 + $0x90] sm:$0xff] %v1989
    %2054 = vst [vmem:[#allocation8 + $0x98] sm:$0xff] %v1990
    %2055 = vst [vmem:[#allocation8 + $0xa0] sm:$0xff] %v1991
    %2056 = vst [vmem:[#allocation8 + $0xa8] sm:$0xff] %v1992
    %2057 = vst [vmem:[#allocation8 + $0xb0] sm:$0xff] %v1993
    %2058 = vst [vmem:[#allocation8 + $0xb8] sm:$0xff] %v1994
    %2059 = vst [vmem:[#allocation8 + $0xc0] sm:$0xff] %v1995
    %2060 = vst [vmem:[#allocation8 + $0xc8] sm:$0xff] %v1996
    %2061 = vst [vmem:[#allocation8 + $0xd0] sm:$0xff] %v1997
    %2062 = vst [vmem:[#allocation8 + $0xd8] sm:$0xff] %v1998
    %2063 = vst [vmem:[#allocation8 + $0xe0] sm:$0xff] %v1999
    %2064 = vst [vmem:[#allocation8 + $0xe8] sm:$0xff] %v2000
    %2065 = vst [vmem:[#allocation8 + $0xf0] sm:$0xff] %v2001
    %2066 = vst [vmem:[#allocation8 + $0xf8] sm:$0xff] %v2002
    %2067 = vst [vmem:[#allocation8 + $0x100] sm:$0xff] %v2003
    %2068 = vst [vmem:[#allocation8 + $0x108] sm:$0xff] %v2004
    %2069 = vst [vmem:[#allocation8 + $0x110] sm:$0xff] %v2005
    %2070 = vst [vmem:[#allocation8 + $0x118] sm:$0xff] %v2006
    %2071 = vst [vmem:[#allocation8 + $0x120] sm:$0xff] %v2007
    %2072 = vst [vmem:[#allocation8 + $0x128] sm:$0xff] %v2008
    %2073 = vst [vmem:[#allocation8 + $0x130] sm:$0xff] %v2009
    %2074 = vst [vmem:[#allocation8 + $0x138] sm:$0xff] %v2010
    %2075 = vst [vmem:[#allocation8 + $0x140] sm:$0xff] %v2011
    %2076 = vst [vmem:[#allocation8 + $0x148] sm:$0xff] %v2012
    %2077 = vst [vmem:[#allocation8 + $0x150] sm:$0xff] %v2013
    %2078 = vst [vmem:[#allocation8 + $0x158] sm:$0xff] %v2014
    %2079 = vst [vmem:[#allocation8 + $0x160] sm:$0xff] %v2015
    %2080 = vst [vmem:[#allocation8 + $0x168] sm:$0xff] %v2016
    %2081 = vst [vmem:[#allocation8 + $0x170] sm:$0xff] %v2017
    %2082 = vst [vmem:[#allocation8 + $0x178] sm:$0xff] %v2018
    %2083 = vst [vmem:[#allocation8 + $0x180] sm:$0xff] %v2019
    %2084 = vst [vmem:[#allocation8 + $0x188] sm:$0xff] %v2020
    %2085 = vst [vmem:[#allocation8 + $0x190] sm:$0xff] %v2021
    %2086 = vst [vmem:[#allocation8 + $0x198] sm:$0xff] %v2022
    %2087 = vst [vmem:[#allocation8 + $0x1a0] sm:$0xff] %v2023
    %2088 = vst [vmem:[#allocation8 + $0x1a8] sm:$0xff] %v2024
    %2089 = vst [vmem:[#allocation8 + $0x1b0] sm:$0xff] %v2025
    %2090 = vst [vmem:[#allocation8 + $0x1b8] sm:$0xff] %v2026
    %2091 = vst [vmem:[#allocation8 + $0x1c0] sm:$0xff] %v2027
    %2092 = vst [vmem:[#allocation8 + $0x1c8] sm:$0xff] %v2028
    %2093 = vst [vmem:[#allocation8 + $0x1d0] sm:$0xff] %v2029
    %2094 = vst [vmem:[#allocation8 + $0x1d8] sm:$0xff] %v2030
    %2095 = vst [vmem:[#allocation8 + $0x1e0] sm:$0xff] %v2031
    %2096 = vst [vmem:[#allocation8 + $0x1e8] sm:$0xff] %v2032
    %2097 = vst [vmem:[#allocation8 + $0x1f0] sm:$0xff] %v2033
    %2098 = vst [vmem:[#allocation8 + $0x1f8] sm:$0xff] %v2034
    // Predicated region
    $region30: #{tpu_custom_call.1} parent=1 // pred_check
      _
    $region31: #{tpu_custom_call.1} parent=1 // pred_check_branch
      %2100 = sbr.rel (0) target = $region33
    $region32: #{tpu_custom_call.1} parent=1 // pred_region
      %s2102 = ssub.s32 8192, 8192
      %2103 = vsyncadd [#allocation4], %s2102
      %s2104 = sshll.u32 [#allocation8], 4
      %s2105 = int_to_ptr.vmem [resolvable:$true] %s2104
      %2110 = dma.vmem_to_hbm [thread:$0]  %s2105, 8192, %s4, [#allocation4], 128, 128, 8
    $region33: #{tpu_custom_call.1} parent=1 // pred_fallthru
      _
    // Predicated region
    $region34: #{tpu_custom_call.1} parent=1 // pred_check
      _
    $region35: #{tpu_custom_call.1} parent=1 // pred_check_branch
      %2112 = sbr.rel (0) target = $region37
    $region36: #{tpu_custom_call.1} parent=1 // pred_region
      %2113 = dma.done [#allocation4], 8192
    $region37: #{tpu_custom_call.1} parent=1 // pred_fallthru
      _
    %2114 = vsyncpa [#allocation3], 1
    %2115 = vsyncpa [#allocation6], 1
    %2116 = vsyncpa [#allocation4], 1

</llo_original>
